<compile_context>
chip_gen: v7x
topology: tpu7x:2x2x1
jax: 0.10.0
libtpu: 0.0.40
codegen_flags: <defaults>
</compile_context>

<pallas_src>
import numpy as np
import jax
import jax.numpy as jnp
from jax.experimental import pallas as pl
from jax.experimental.pallas import tpu as pltpu


# ---------------------------------------------------------------------------
# Pallas kernels
# ---------------------------------------------------------------------------
def _conv_kernel(relu):
    """(tm, K) @ (K, Cout) + shift, optional fused ReLU."""
    def kernel(x_ref, w_ref, shift_ref, o_ref):
        acc = jnp.dot(x_ref[...], w_ref[...], preferred_element_type=jnp.float32)
        acc = acc + shift_ref[...]
        if relu:
            acc = jnp.maximum(acc, 0.0)
        o_ref[...] = acc.astype(o_ref.dtype)
    return kernel


def _merge_kernel(pool_skip, repeat, skip_c):
    """EncoderModule tail: output_conv+BN, skip (maybe 2x2-max-pooled, maybe
    channel-repeated) add, ReLU — all in one pass."""
    def kernel(x_ref, w_ref, shift_ref, skip_ref, o_ref):
        acc = jnp.dot(x_ref[...], w_ref[...], preferred_element_type=jnp.float32)
        acc = acc + shift_ref[...]
        s = skip_ref[...]
        if pool_skip:
            # skip rows are space-to-depth in (dy, dx, c) order: max over 2x2 window.
            s = jnp.maximum(
                jnp.maximum(s[:, 0 * skip_c:1 * skip_c], s[:, 1 * skip_c:2 * skip_c]),
                jnp.maximum(s[:, 2 * skip_c:3 * skip_c], s[:, 3 * skip_c:4 * skip_c]))
        if repeat > 1:
            s = jnp.concatenate([s] * repeat, axis=-1)  # torch .repeat on channels
        o_ref[...] = jnp.maximum(acc + s, 0.0).astype(o_ref.dtype)
    return kernel


def _initial_kernel(cin):
    """InitialBlock: [3x3/s2 conv (+folded BN)  ||  2x2 max-pool (+BN affine)] + ReLU."""
    def kernel(p_ref, w_ref, shift_ref, sc_ref, sh_ref, o_ref):
        p = p_ref[...]                                     # (tm, 9*cin)
        conv = jnp.dot(p, w_ref[...], preferred_element_type=jnp.float32)
        conv = conv + shift_ref[...]
        # taps 4,5,7,8 of the 3x3/stride-2 window are exactly the 2x2 pool window.
        def g(k):
            return p[:, k * cin:(k + 1) * cin]
        pooled = jnp.maximum(jnp.maximum(g(4), g(5)), jnp.maximum(g(7), g(8)))
        pooled = pooled * sc_ref[...] + sh_ref[...]
        out = jnp.concatenate([conv, pooled], axis=-1)
        o_ref[...] = jnp.maximum(out, 0.0).astype(o_ref.dtype)
    return kernel


# ---------------------------------------------------------------------------
# pallas_call wrappers
# ---------------------------------------------------------------------------
_PARALLEL = pltpu.CompilerParams(dimension_semantics=("parallel",))


def _row_tile(m, target=1024):
    if m <= target:
        return m
    for t in (1024, 512, 256, 128, 64, 32, 16, 8):
        if m % t == 0:
            return t
    return m


def conv_bn_act(x2d, w, shift, relu):
    M, K = x2d.shape
    Cout = w.shape[1]
    tm = _row_tile(M)
    return pl.pallas_call(
        _conv_kernel(relu),
        out_shape=jax.ShapeDtypeStruct((M, Cout), jnp.float32),
        grid_spec=pltpu.PrefetchScalarGridSpec(
            num_scalar_prefetch=0,
            grid=(M // tm,),
            in_specs=[
                pl.BlockSpec((tm, K), lambda i: (i, 0)),
                pl.BlockSpec((K, Cout), lambda i: (0, 0)),
                pl.BlockSpec((1, Cout), lambda i: (0, 0)),
            ],
            out_specs=pl.BlockSpec((tm, Cout), lambda i: (i, 0)),
        ),
        compiler_params=_PARALLEL,
    )(x2d, w, shift)


def conv_bn_merge(x2d, w, shift, skip2d, pool_skip, repeat):
    M, K = x2d.shape
    Cout = w.shape[1]
    Ks = skip2d.shape[1]
    skip_c = Ks // 4 if pool_skip else Ks
    tm = _row_tile(M)
    return pl.pallas_call(
        _merge_kernel(pool_skip, repeat, skip_c),
        out_shape=jax.ShapeDtypeStruct((M, Cout), jnp.float32),
        grid_spec=pltpu.PrefetchScalarGridSpec(
            num_scalar_prefetch=0,
            grid=(M // tm,),
            in_specs=[
                pl.BlockSpec((tm, K), lambda i: (i, 0)),
                pl.BlockSpec((K, Cout), lambda i: (0, 0)),
                pl.BlockSpec((1, Cout), lambda i: (0, 0)),
                pl.BlockSpec((tm, Ks), lambda i: (i, 0)),
            ],
            out_specs=pl.BlockSpec((tm, Cout), lambda i: (i, 0)),
        ),
        compiler_params=_PARALLEL,
    )(x2d, w, shift, skip2d)


def initial_block_call(patches2d, w, shift13, scale3, shift3, cin):
    M, K = patches2d.shape
    C13 = w.shape[1]
    Cout = C13 + cin
    tm = _row_tile(M)
    return pl.pallas_call(
        _initial_kernel(cin),
        out_shape=jax.ShapeDtypeStruct((M, Cout), jnp.float32),
        grid_spec=pltpu.PrefetchScalarGridSpec(
            num_scalar_prefetch=0,
            grid=(M // tm,),
            in_specs=[
                pl.BlockSpec((tm, K), lambda i: (i, 0)),
                pl.BlockSpec((K, C13), lambda i: (0, 0)),
                pl.BlockSpec((1, C13), lambda i: (0, 0)),
                pl.BlockSpec((1, cin), lambda i: (0, 0)),
                pl.BlockSpec((1, cin), lambda i: (0, 0)),
            ],
            out_specs=pl.BlockSpec((tm, Cout), lambda i: (i, 0)),
        ),
        compiler_params=_PARALLEL,
    )(patches2d, w, shift13, scale3, shift3)


# ---------------------------------------------------------------------------
# XLA glue: layout, patch extraction, weight/BN folding
# ---------------------------------------------------------------------------
def nchw_to_nhwc(x):
    return jnp.transpose(x, (0, 2, 3, 1))


def nhwc_to_nchw(x):
    return jnp.transpose(x, (0, 3, 1, 2))


def im2col3x3(x, stride):
    """(N,H,W,C) -> (N,H//stride,W//stride,9*C), pad=1, tap order (dy, dx, c)."""
    N, H, W, C = x.shape
    Ho, Wo = H // stride, W // stride
    xp = jnp.pad(x, ((0, 0), (1, 1), (1, 1), (0, 0)))
    cols = [xp[:, dy:dy + stride * (Ho - 1) + 1:stride,
               dx:dx + stride * (Wo - 1) + 1:stride, :]
            for dy in range(3) for dx in range(3)]
    return jnp.concatenate(cols, axis=-1)


def space_to_depth2(x):
    """(N,H,W,C) -> (N,H//2,W//2,4*C), group order (dy, dx, c)."""
    N, H, W, C = x.shape
    x = x.reshape(N, H // 2, 2, W // 2, 2, C)
    x = jnp.transpose(x, (0, 1, 3, 2, 4, 5))
    return x.reshape(N, H // 2, W // 2, 4 * C)


def conv_w_to_mat(w_oihw):
    """(O,I,kh,kw) -> (kh*kw*I, O), row index (dy*kw+dx)*I + i (matches im2col/s2d)."""
    O, I, kh, kw = w_oihw.shape
    return jnp.transpose(w_oihw, (2, 3, 1, 0)).reshape(kh * kw * I, O)


def fold_bn(w_mat, bias, bn, eps=1e-3):
    s = bn["gamma"] / jnp.sqrt(bn["var"] + eps)
    w_f = w_mat * s[None, :]
    b = bias if bias is not None else jnp.zeros_like(bn["beta"])
    shift = b * s + bn["beta"] - bn["mean"] * s
    return w_f, shift.reshape(1, -1)


def fold_weights(raw, eps=1e-3):
    folded = {}
    ib = raw["initial"]
    w_mat = conv_w_to_mat(ib["w"])                        # (27, 13)
    s = ib["bn"]["gamma"] / jnp.sqrt(ib["bn"]["var"] + eps)
    shift_all = ib["bn"]["beta"] - ib["bn"]["mean"] * s
    folded["initial"] = dict(
        w=w_mat * s[:13][None, :],
        shift13=(ib["b"] * s[:13] + shift_all[:13]).reshape(1, -1),
        scale3=s[13:].reshape(1, -1),
        shift3=shift_all[13:].reshape(1, -1))
    layers = []
    for lw in raw["layers"]:
        w_in, sh_in = fold_bn(conv_w_to_mat(lw["w_in"]), None, lw["bn_in"], eps)
        w_mid, sh_mid = fold_bn(conv_w_to_mat(lw["w_mid"]), lw["b_mid"], lw["bn_mid"], eps)
        w_out, sh_out = fold_bn(conv_w_to_mat(lw["w_out"]), None, lw["bn_out"], eps)
        layers.append(dict(w_in=w_in, shift_in=sh_in, w_mid=w_mid, shift_mid=sh_mid,
                           w_out=w_out, shift_out=sh_out))
    folded["layers"] = layers
    folded["predict"] = dict(w=conv_w_to_mat(raw["predict"]["w"]),
                             shift=raw["predict"]["b"].reshape(1, -1))
    return folded


# ---------------------------------------------------------------------------
# Encoder forward (Pallas)
# ---------------------------------------------------------------------------
def initial_block_forward(x, w):
    N, H, W, C = x.shape
    Ho, Wo = H // 2, W // 2
    patches = im2col3x3(x, stride=2).reshape(N * Ho * Wo, 9 * C)
    out = initial_block_call(patches, w["w"], w["shift13"], w["scale3"], w["shift3"], C)
    return out.reshape(N, Ho, Wo, out.shape[-1])


def encoder_module_forward(x, p, w):
    N, H, W, Cin = x.shape
    Cout = p["output_channels"]
    down = p["downsample"]
    if down:
        Ho, Wo = H // 2, W // 2
        s2d = space_to_depth2(x)                          # (N,Ho,Wo,4*Cin)
        main_in = s2d.reshape(N * Ho * Wo, 4 * Cin)       # 2x2/s2 conv patches
        skip2d = main_in                                  # max-pool taken in merge kernel
    else:
        Ho, Wo = H, W
        main_in = x.reshape(N * H * W, Cin)               # 1x1 conv rows
        skip2d = main_in                                  # identity skip
    M = N * Ho * Wo

    t = conv_bn_act(main_in, w["w_in"], w["shift_in"], relu=True)          # input_conv+BN+ReLU
    patches = im2col3x3(t.reshape(N, Ho, Wo, t.shape[-1]), stride=1)
    t = conv_bn_act(patches.reshape(M, patches.shape[-1]),
                    w["w_mid"], w["shift_mid"], relu=True)                 # middle_conv+BN+ReLU
    # TODO(synk): Dropout2d is eval-mode identity here (train mode drops whole channels).
    out = conv_bn_merge(t, w["w_out"], w["shift_out"], skip2d,
                        pool_skip=down, repeat=Cout // Cin)                # out_conv+BN+skip+ReLU
    return out.reshape(N, Ho, Wo, Cout)


def encoder_forward(x_nchw, folded, params_list, predict=False):
    x = nchw_to_nhwc(x_nchw.astype(jnp.float32))
    x = initial_block_forward(x, folded["initial"])
    for p, w in zip(params_list, folded["layers"]):
        x = encoder_module_forward(x, p, w)
    if predict:
        N, H, W, C = x.shape
        y = conv_bn_act(x.reshape(N * H * W, C), folded["predict"]["w"],
                        folded["predict"]["shift"], relu=False)
        x = y.reshape(N, H, W, -1)
    return nhwc_to_nchw(x)


# ---------------------------------------------------------------------------
# Weight init (torch layout) + pure-numpy reference (eval-mode BN, identity dropout)
# ---------------------------------------------------------------------------
def init_raw_weights(key, params_list, nclasses):
    keys = iter(jax.random.split(key, 256))

    def nrm(shape, std):
        return jax.random.normal(next(keys), shape, jnp.float32) * std

    def bn_params(c):
        return dict(gamma=1.0 + 0.1 * nrm((c,), 1.0),
                    beta=0.1 * nrm((c,), 1.0),
                    mean=0.1 * nrm((c,), 1.0),
                    var=jnp.abs(nrm((c,), 1.0)) * 0.5 + 0.5)

    raw = dict(initial=dict(w=nrm((13, 3, 3, 3), 1.0 / np.sqrt(27.0)),
                            b=0.1 * nrm((13,), 1.0),
                            bn=bn_params(16)),
               layers=[], )
    for p in params_list:
        cin, cout = p["input_channels"], p["output_channels"]
        cint = cout // p["internal_scale"]
        k = 2 if p["downsample"] else 1
        raw["layers"].append(dict(
            w_in=nrm((cint, cin, k, k), 1.0 / np.sqrt(k * k * cin)),
            bn_in=bn_params(cint),
            w_mid=nrm((cint, cint, 3, 3), 1.0 / np.sqrt(9.0 * cint)),
            b_mid=0.1 * nrm((cint,), 1.0),
            bn_mid=bn_params(cint),
            w_out=nrm((cout, cint, 1, 1), 1.0 / np.sqrt(cint)),
            bn_out=bn_params(cout)))
    raw["predict"] = dict(w=nrm((nclasses, 128, 1, 1), 1.0 / np.sqrt(128.0)),
                          b=0.1 * nrm((nclasses,), 1.0))
    return raw


def _np_conv2d(x, w, b, stride, pad):
    x = np.asarray(x, np.float32)
    w = np.asarray(w, np.float32)
    N, C, H, W = x.shape
    O, _, kh, kw = w.shape
    Ho = (H + 2 * pad - kh) // stride + 1
    Wo = (W + 2 * pad - kw) // stride + 1
    xp = np.pad(x, ((0, 0), (0, 0), (pad, pad), (pad, pad)))
    out = np.zeros((N, O, Ho, Wo), np.float32)
    for dy in range(kh):
        for dx in range(kw):
            xs = xp[:, :, dy:dy + stride * (Ho - 1) + 1:stride,
                    dx:dx + stride * (Wo - 1) + 1:stride]
            out += np.einsum("nchw,oc->nohw", xs, w[:, :, dy, dx])
    if b is not None:
        out += np.asarray(b, np.float32)[None, :, None, None]
    return out


def _np_bn(x, bn, eps=1e-3):
    s = np.asarray(bn["gamma"]) / np.sqrt(np.asarray(bn["var"]) + eps)
    sh = np.asarray(bn["beta"]) - np.asarray(bn["mean"]) * s
    return x * s[None, :, None, None] + sh[None, :, None, None]


def _np_maxpool2(x):
    N, C, H, W = x.shape
    return x.reshape(N, C, H // 2, 2, W // 2, 2).max(axis=(3, 5))


def _np_relu(x):
    return np.maximum(x, 0.0)


def reference_encoder(x, raw, params_list, predict):
    x = np.asarray(x, np.float32)
    ib = raw["initial"]
    out = np.concatenate([_np_conv2d(x, ib["w"], ib["b"], stride=2, pad=1),
                          _np_maxpool2(x)], axis=1)
    out = _np_relu(_np_bn(out, ib["bn"]))
    for p, lw in zip(params_list, raw["layers"]):
        stride = 2 if p["downsample"] else 1
        main = _np_conv2d(out, lw["w_in"], None, stride=stride, pad=0)
        main = _np_relu(_np_bn(main, lw["bn_in"]))
        main = _np_conv2d(main, lw["w_mid"], lw["b_mid"], stride=1, pad=1)
        main = _np_relu(_np_bn(main, lw["bn_mid"]))
        main = _np_conv2d(main, lw["w_out"], None, stride=1, pad=0)
        main = _np_bn(main, lw["bn_out"])
        other = _np_maxpool2(out) if p["downsample"] else out
        r = p["output_channels"] // p["input_channels"]
        if p["output_channels"] != p["input_channels"]:
            other = np.tile(other, (1, r, 1, 1))
        out = _np_relu(main + other)
    if predict:
        pw = raw["predict"]
        out = _np_conv2d(out, pw["w"], pw["b"], stride=1, pad=0)
    return out


# ---------------------------------------------------------------------------
if __name__ == "__main__":
    ENCODER_PARAMS = [
        dict(internal_scale=4, use_relu=True, asymmetric=False, dilated=False,
             input_channels=16, output_channels=64, downsample=True, dropout_prob=0.01),
        dict(internal_scale=4, use_relu=True, asymmetric=False, dilated=False,
             input_channels=64, output_channels=64, downsample=False, dropout_prob=0.01),
        dict(internal_scale=4, use_relu=True, asymmetric=False, dilated=False,
             input_channels=64, output_channels=128, downsample=True, dropout_prob=0.1),
        dict(internal_scale=4, use_relu=True, asymmetric=False, dilated=False,
             input_channels=128, output_channels=128, downsample=False, dropout_prob=0.1),
    ]
    NCLASSES = 12
    N, H, W = 2, 64, 64

    key = jax.random.PRNGKey(0)
    kx, kw = jax.random.split(key)
    x = jax.random.normal(kx, (N, 3, H, W), jnp.float32)
    raw = init_raw_weights(kw, ENCODER_PARAMS, NCLASSES)
    folded = fold_weights(raw)

    fwd = jax.jit(lambda xx, ww: encoder_forward(xx, ww, ENCODER_PARAMS, predict=True))
    out = jax.block_until_ready(fwd(x, folded))

    raw_np = jax.tree_util.tree_map(np.asarray, raw)
    ref = reference_encoder(np.asarray(x), raw_np, ENCODER_PARAMS, predict=True)

    assert out.shape == ref.shape, (out.shape, ref.shape)
    np.testing.assert_allclose(np.asarray(out), ref, rtol=5e-3, atol=5e-3)
    print("KERNEL_OK")
</pallas_src>

<mosaic_0001>
module attributes {stable_mosaic.version = 11 : i64} {
  func.func @kernel(%arg0: i32, %arg1: memref<1024x27xf32, #tpu.memory_space<vmem>>, %arg2: memref<27x13xf32, #tpu.memory_space<vmem>>, %arg3: memref<1x13xf32, #tpu.memory_space<vmem>>, %arg4: memref<1x3xf32, #tpu.memory_space<vmem>>, %arg5: memref<1x3xf32, #tpu.memory_space<vmem>>, %arg6: memref<1024x16xf32, #tpu.memory_space<vmem>>) attributes {dimension_semantics = [#tpu.dimension_semantics<parallel>], iteration_bounds = array<i64: 2>, scalar_prefetch = 0 : i64, scratch_operands = 0 : i64, tpu.core_type = #tpu.core_type<tc>, window_params = [{transform_indices = @transform_0, window_bounds = array<i64: 1024, 27>}, {pipeline_mode = #tpu.pipeline_mode<synchronous>, transform_indices = @transform_1, window_bounds = array<i64: 27, 13>}, {pipeline_mode = #tpu.pipeline_mode<synchronous>, transform_indices = @transform_2, window_bounds = array<i64: 1, 13>}, {pipeline_mode = #tpu.pipeline_mode<synchronous>, transform_indices = @transform_3, window_bounds = array<i64: 1, 3>}, {pipeline_mode = #tpu.pipeline_mode<synchronous>, transform_indices = @transform_4, window_bounds = array<i64: 1, 3>}, {transform_indices = @transform_5, window_bounds = array<i64: 1024, 16>}]} {
    %c0 = arith.constant 0 : index
    %c0_0 = arith.constant 0 : index
    %0 = vector.load %arg1[%c0, %c0_0] : memref<1024x27xf32, #tpu.memory_space<vmem>>, vector<1024x27xf32>
    %c0_1 = arith.constant 0 : index
    %c0_2 = arith.constant 0 : index
    %1 = vector.load %arg2[%c0_1, %c0_2] : memref<27x13xf32, #tpu.memory_space<vmem>>, vector<27x13xf32>
    %cst = arith.constant dense<0.000000e+00> : vector<1024x13xf32>
    %2 = tpu.matmul %0, %1, %cst {dimension_numbers = #tpu.dot_dimension_numbers<[1], [0], [0], [1], [0, 0, 1, 1], [], []>} : vector<1024x27xf32>, vector<27x13xf32>, vector<1024x13xf32> -> vector<1024x13xf32>
    %c0_3 = arith.constant 0 : index
    %c0_4 = arith.constant 0 : index
    %3 = vector.load %arg3[%c0_3, %c0_4] : memref<1x13xf32, #tpu.memory_space<vmem>>, vector<1x13xf32>
    %4 = vector.broadcast %3 : vector<1x13xf32> to vector<1024x13xf32>
    %5 = arith.addf %2, %4 : vector<1024x13xf32>
    %6 = vector.extract_strided_slice %0 {offsets = [0, 12], sizes = [1024, 3], strides = [1, 1]} : vector<1024x27xf32> to vector<1024x3xf32>
    %7 = vector.extract_strided_slice %0 {offsets = [0, 15], sizes = [1024, 3], strides = [1, 1]} : vector<1024x27xf32> to vector<1024x3xf32>
    %8 = arith.maximumf %6, %7 : vector<1024x3xf32>
    %9 = vector.extract_strided_slice %0 {offsets = [0, 21], sizes = [1024, 3], strides = [1, 1]} : vector<1024x27xf32> to vector<1024x3xf32>
    %10 = vector.extract_strided_slice %0 {offsets = [0, 24], sizes = [1024, 3], strides = [1, 1]} : vector<1024x27xf32> to vector<1024x3xf32>
    %11 = arith.maximumf %9, %10 : vector<1024x3xf32>
    %12 = arith.maximumf %8, %11 : vector<1024x3xf32>
    %c0_5 = arith.constant 0 : index
    %c0_6 = arith.constant 0 : index
    %13 = vector.load %arg4[%c0_5, %c0_6] : memref<1x3xf32, #tpu.memory_space<vmem>>, vector<1x3xf32>
    %14 = vector.broadcast %13 : vector<1x3xf32> to vector<1024x3xf32>
    %15 = arith.mulf %12, %14 : vector<1024x3xf32>
    %c0_7 = arith.constant 0 : index
    %c0_8 = arith.constant 0 : index
    %16 = vector.load %arg5[%c0_7, %c0_8] : memref<1x3xf32, #tpu.memory_space<vmem>>, vector<1x3xf32>
    %17 = vector.broadcast %16 : vector<1x3xf32> to vector<1024x3xf32>
    %18 = arith.addf %15, %17 : vector<1024x3xf32>
    %19 = tpu.concatenate %5, %18 in 1 : vector<1024x13xf32>, vector<1024x3xf32> -> vector<1024x16xf32>
    %cst_9 = arith.constant 0.000000e+00 : f32
    %20 = vector.broadcast %cst_9 : f32 to vector<1024x16xf32>
    %21 = arith.maximumf %19, %20 : vector<1024x16xf32>
    %c0_10 = arith.constant 0 : index
    %c0_11 = arith.constant 0 : index
    %22 = vector.load %arg6[%c0_10, %c0_11] : memref<1024x16xf32, #tpu.memory_space<vmem>>, vector<1024x16xf32>
    tpu.vector_store %arg6[%c0_10, %c0_11], %21 {strides = array<i32>} : memref<1024x16xf32, #tpu.memory_space<vmem>>, vector<1024x16xf32>,
    return
  }
  func.func @transform_0(%arg0: i32) -> (i32, i32) {
    %c0_i32 = arith.constant 0 : i32
    %c0_i32_0 = arith.constant 0 : i32
    return %arg0, %c0_i32 : i32, i32
  }
  func.func @transform_1(%arg0: i32) -> (i32, i32) {
    %c0_i32 = arith.constant 0 : i32
    %c0_i32_0 = arith.constant 0 : i32
    %c0_i32_1 = arith.constant 0 : i32
    return %c0_i32, %c0_i32_0 : i32, i32
  }
  func.func @transform_2(%arg0: i32) -> (i32, i32) {
    %c0_i32 = arith.constant 0 : i32
    %c0_i32_0 = arith.constant 0 : i32
    %c0_i32_1 = arith.constant 0 : i32
    return %c0_i32, %c0_i32_0 : i32, i32
  }
  func.func @transform_3(%arg0: i32) -> (i32, i32) {
    %c0_i32 = arith.constant 0 : i32
    %c0_i32_0 = arith.constant 0 : i32
    %c0_i32_1 = arith.constant 0 : i32
    return %c0_i32, %c0_i32_0 : i32, i32
  }
  func.func @transform_4(%arg0: i32) -> (i32, i32) {
    %c0_i32 = arith.constant 0 : i32
    %c0_i32_0 = arith.constant 0 : i32
    %c0_i32_1 = arith.constant 0 : i32
    return %c0_i32, %c0_i32_0 : i32, i32
  }
  func.func @transform_5(%arg0: i32) -> (i32, i32) {
    %c0_i32 = arith.constant 0 : i32
    %c0_i32_0 = arith.constant 0 : i32
    return %arg0, %c0_i32 : i32, i32
  }
}

module attributes {stable_mosaic.version = 11 : i64} {
  func.func @kernel(%arg0: i32, %arg1: memref<512x64xf32, #tpu.memory_space<vmem>>, %arg2: memref<64x16xf32, #tpu.memory_space<vmem>>, %arg3: memref<1x16xf32, #tpu.memory_space<vmem>>, %arg4: memref<512x16xf32, #tpu.memory_space<vmem>>) attributes {dimension_semantics = [#tpu.dimension_semantics<parallel>], iteration_bounds = array<i64: 1>, scalar_prefetch = 0 : i64, scratch_operands = 0 : i64, tpu.core_type = #tpu.core_type<tc>, window_params = [{transform_indices = @transform_0, window_bounds = array<i64: 512, 64>}, {pipeline_mode = #tpu.pipeline_mode<synchronous>, transform_indices = @transform_1, window_bounds = array<i64: 64, 16>}, {pipeline_mode = #tpu.pipeline_mode<synchronous>, transform_indices = @transform_2, window_bounds = array<i64: 1, 16>}, {transform_indices = @transform_3, window_bounds = array<i64: 512, 16>}]} {
    %c0 = arith.constant 0 : index
    %c0_0 = arith.constant 0 : index
    %0 = vector.load %arg1[%c0, %c0_0] : memref<512x64xf32, #tpu.memory_space<vmem>>, vector<512x64xf32>
    %c0_1 = arith.constant 0 : index
    %c0_2 = arith.constant 0 : index
    %1 = vector.load %arg2[%c0_1, %c0_2] : memref<64x16xf32, #tpu.memory_space<vmem>>, vector<64x16xf32>
    %cst = arith.constant dense<0.000000e+00> : vector<512x16xf32>
    %2 = tpu.matmul %0, %1, %cst {dimension_numbers = #tpu.dot_dimension_numbers<[1], [0], [0], [1], [0, 0, 1, 1], [], []>} : vector<512x64xf32>, vector<64x16xf32>, vector<512x16xf32> -> vector<512x16xf32>
    %c0_3 = arith.constant 0 : index
    %c0_4 = arith.constant 0 : index
    %3 = vector.load %arg3[%c0_3, %c0_4] : memref<1x16xf32, #tpu.memory_space<vmem>>, vector<1x16xf32>
    %4 = vector.broadcast %3 : vector<1x16xf32> to vector<512x16xf32>
    %5 = arith.addf %2, %4 : vector<512x16xf32>
    %cst_5 = arith.constant 0.000000e+00 : f32
    %6 = vector.broadcast %cst_5 : f32 to vector<512x16xf32>
    %7 = arith.maximumf %5, %6 : vector<512x16xf32>
    %c0_6 = arith.constant 0 : index
    %c0_7 = arith.constant 0 : index
    %8 = vector.load %arg4[%c0_6, %c0_7] : memref<512x16xf32, #tpu.memory_space<vmem>>, vector<512x16xf32>
    tpu.vector_store %arg4[%c0_6, %c0_7], %7 {strides = array<i32>} : memref<512x16xf32, #tpu.memory_space<vmem>>, vector<512x16xf32>,
    return
  }
  func.func @transform_0(%arg0: i32) -> (i32, i32) {
    %c0_i32 = arith.constant 0 : i32
    %c0_i32_0 = arith.constant 0 : i32
    return %arg0, %c0_i32 : i32, i32
  }
  func.func @transform_1(%arg0: i32) -> (i32, i32) {
    %c0_i32 = arith.constant 0 : i32
    %c0_i32_0 = arith.constant 0 : i32
    %c0_i32_1 = arith.constant 0 : i32
    return %c0_i32, %c0_i32_0 : i32, i32
  }
  func.func @transform_2(%arg0: i32) -> (i32, i32) {
    %c0_i32 = arith.constant 0 : i32
    %c0_i32_0 = arith.constant 0 : i32
    %c0_i32_1 = arith.constant 0 : i32
    return %c0_i32, %c0_i32_0 : i32, i32
  }
  func.func @transform_3(%arg0: i32) -> (i32, i32) {
    %c0_i32 = arith.constant 0 : i32
    %c0_i32_0 = arith.constant 0 : i32
    return %arg0, %c0_i32 : i32, i32
  }
}

module attributes {stable_mosaic.version = 11 : i64} {
  func.func @kernel(%arg0: i32, %arg1: memref<512x144xf32, #tpu.memory_space<vmem>>, %arg2: memref<144x16xf32, #tpu.memory_space<vmem>>, %arg3: memref<1x16xf32, #tpu.memory_space<vmem>>, %arg4: memref<512x16xf32, #tpu.memory_space<vmem>>) attributes {dimension_semantics = [#tpu.dimension_semantics<parallel>], iteration_bounds = array<i64: 1>, scalar_prefetch = 0 : i64, scratch_operands = 0 : i64, tpu.core_type = #tpu.core_type<tc>, window_params = [{transform_indices = @transform_0, window_bounds = array<i64: 512, 144>}, {pipeline_mode = #tpu.pipeline_mode<synchronous>, transform_indices = @transform_1, window_bounds = array<i64: 144, 16>}, {pipeline_mode = #tpu.pipeline_mode<synchronous>, transform_indices = @transform_2, window_bounds = array<i64: 1, 16>}, {transform_indices = @transform_3, window_bounds = array<i64: 512, 16>}]} {
    %c0 = arith.constant 0 : index
    %c0_0 = arith.constant 0 : index
    %0 = vector.load %arg1[%c0, %c0_0] : memref<512x144xf32, #tpu.memory_space<vmem>>, vector<512x144xf32>
    %c0_1 = arith.constant 0 : index
    %c0_2 = arith.constant 0 : index
    %1 = vector.load %arg2[%c0_1, %c0_2] : memref<144x16xf32, #tpu.memory_space<vmem>>, vector<144x16xf32>
    %cst = arith.constant dense<0.000000e+00> : vector<512x16xf32>
    %2 = tpu.matmul %0, %1, %cst {dimension_numbers = #tpu.dot_dimension_numbers<[1], [0], [0], [1], [0, 0, 1, 1], [], []>} : vector<512x144xf32>, vector<144x16xf32>, vector<512x16xf32> -> vector<512x16xf32>
    %c0_3 = arith.constant 0 : index
    %c0_4 = arith.constant 0 : index
    %3 = vector.load %arg3[%c0_3, %c0_4] : memref<1x16xf32, #tpu.memory_space<vmem>>, vector<1x16xf32>
    %4 = vector.broadcast %3 : vector<1x16xf32> to vector<512x16xf32>
    %5 = arith.addf %2, %4 : vector<512x16xf32>
    %cst_5 = arith.constant 0.000000e+00 : f32
    %6 = vector.broadcast %cst_5 : f32 to vector<512x16xf32>
    %7 = arith.maximumf %5, %6 : vector<512x16xf32>
    %c0_6 = arith.constant 0 : index
    %c0_7 = arith.constant 0 : index
    %8 = vector.load %arg4[%c0_6, %c0_7] : memref<512x16xf32, #tpu.memory_space<vmem>>, vector<512x16xf32>
    tpu.vector_store %arg4[%c0_6, %c0_7], %7 {strides = array<i32>} : memref<512x16xf32, #tpu.memory_space<vmem>>, vector<512x16xf32>,
    return
  }
  func.func @transform_0(%arg0: i32) -> (i32, i32) {
    %c0_i32 = arith.constant 0 : i32
    %c0_i32_0 = arith.constant 0 : i32
    return %arg0, %c0_i32 : i32, i32
  }
  func.func @transform_1(%arg0: i32) -> (i32, i32) {
    %c0_i32 = arith.constant 0 : i32
    %c0_i32_0 = arith.constant 0 : i32
    %c0_i32_1 = arith.constant 0 : i32
    return %c0_i32, %c0_i32_0 : i32, i32
  }
  func.func @transform_2(%arg0: i32) -> (i32, i32) {
    %c0_i32 = arith.constant 0 : i32
    %c0_i32_0 = arith.constant 0 : i32
    %c0_i32_1 = arith.constant 0 : i32
    return %c0_i32, %c0_i32_0 : i32, i32
  }
  func.func @transform_3(%arg0: i32) -> (i32, i32) {
    %c0_i32 = arith.constant 0 : i32
    %c0_i32_0 = arith.constant 0 : i32
    return %arg0, %c0_i32 : i32, i32
  }
}

module attributes {stable_mosaic.version = 11 : i64} {
  func.func @kernel(%arg0: i32, %arg1: memref<512x16xf32, #tpu.memory_space<vmem>>, %arg2: memref<16x64xf32, #tpu.memory_space<vmem>>, %arg3: memref<1x64xf32, #tpu.memory_space<vmem>>, %arg4: memref<512x64xf32, #tpu.memory_space<vmem>>, %arg5: memref<512x64xf32, #tpu.memory_space<vmem>>) attributes {dimension_semantics = [#tpu.dimension_semantics<parallel>], iteration_bounds = array<i64: 1>, scalar_prefetch = 0 : i64, scratch_operands = 0 : i64, tpu.core_type = #tpu.core_type<tc>, window_params = [{transform_indices = @transform_0, window_bounds = array<i64: 512, 16>}, {pipeline_mode = #tpu.pipeline_mode<synchronous>, transform_indices = @transform_1, window_bounds = array<i64: 16, 64>}, {pipeline_mode = #tpu.pipeline_mode<synchronous>, transform_indices = @transform_2, window_bounds = array<i64: 1, 64>}, {transform_indices = @transform_3, window_bounds = array<i64: 512, 64>}, {transform_indices = @transform_4, window_bounds = array<i64: 512, 64>}]} {
    %c0 = arith.constant 0 : index
    %c0_0 = arith.constant 0 : index
    %0 = vector.load %arg1[%c0, %c0_0] : memref<512x16xf32, #tpu.memory_space<vmem>>, vector<512x16xf32>
    %c0_1 = arith.constant 0 : index
    %c0_2 = arith.constant 0 : index
    %1 = vector.load %arg2[%c0_1, %c0_2] : memref<16x64xf32, #tpu.memory_space<vmem>>, vector<16x64xf32>
    %cst = arith.constant dense<0.000000e+00> : vector<512x64xf32>
    %2 = tpu.matmul %0, %1, %cst {dimension_numbers = #tpu.dot_dimension_numbers<[1], [0], [0], [1], [0, 0, 1, 1], [], []>} : vector<512x16xf32>, vector<16x64xf32>, vector<512x64xf32> -> vector<512x64xf32>
    %c0_3 = arith.constant 0 : index
    %c0_4 = arith.constant 0 : index
    %3 = vector.load %arg3[%c0_3, %c0_4] : memref<1x64xf32, #tpu.memory_space<vmem>>, vector<1x64xf32>
    %4 = vector.broadcast %3 : vector<1x64xf32> to vector<512x64xf32>
    %5 = arith.addf %2, %4 : vector<512x64xf32>
    %c0_5 = arith.constant 0 : index
    %c0_6 = arith.constant 0 : index
    %6 = vector.load %arg4[%c0_5, %c0_6] : memref<512x64xf32, #tpu.memory_space<vmem>>, vector<512x64xf32>
    %7 = vector.extract_strided_slice %6 {offsets = [0, 0], sizes = [512, 16], strides = [1, 1]} : vector<512x64xf32> to vector<512x16xf32>
    %8 = vector.extract_strided_slice %6 {offsets = [0, 16], sizes = [512, 16], strides = [1, 1]} : vector<512x64xf32> to vector<512x16xf32>
    %9 = arith.maximumf %7, %8 : vector<512x16xf32>
    %10 = vector.extract_strided_slice %6 {offsets = [0, 32], sizes = [512, 16], strides = [1, 1]} : vector<512x64xf32> to vector<512x16xf32>
    %11 = vector.extract_strided_slice %6 {offsets = [0, 48], sizes = [512, 16], strides = [1, 1]} : vector<512x64xf32> to vector<512x16xf32>
    %12 = arith.maximumf %10, %11 : vector<512x16xf32>
    %13 = arith.maximumf %9, %12 : vector<512x16xf32>
    %14 = tpu.concatenate %13, %13, %13, %13 in 1 : vector<512x16xf32>, vector<512x16xf32>, vector<512x16xf32>, vector<512x16xf32> -> vector<512x64xf32>
    %15 = arith.addf %5, %14 : vector<512x64xf32>
    %cst_7 = arith.constant 0.000000e+00 : f32
    %16 = vector.broadcast %cst_7 : f32 to vector<512x64xf32>
    %17 = arith.maximumf %15, %16 : vector<512x64xf32>
    %c0_8 = arith.constant 0 : index
    %c0_9 = arith.constant 0 : index
    %18 = vector.load %arg5[%c0_8, %c0_9] : memref<512x64xf32, #tpu.memory_space<vmem>>, vector<512x64xf32>
    tpu.vector_store %arg5[%c0_8, %c0_9], %17 {strides = array<i32>} : memref<512x64xf32, #tpu.memory_space<vmem>>, vector<512x64xf32>,
    return
  }
  func.func @transform_0(%arg0: i32) -> (i32, i32) {
    %c0_i32 = arith.constant 0 : i32
    %c0_i32_0 = arith.constant 0 : i32
    return %arg0, %c0_i32 : i32, i32
  }
  func.func @transform_1(%arg0: i32) -> (i32, i32) {
    %c0_i32 = arith.constant 0 : i32
    %c0_i32_0 = arith.constant 0 : i32
    %c0_i32_1 = arith.constant 0 : i32
    return %c0_i32, %c0_i32_0 : i32, i32
  }
  func.func @transform_2(%arg0: i32) -> (i32, i32) {
    %c0_i32 = arith.constant 0 : i32
    %c0_i32_0 = arith.constant 0 : i32
    %c0_i32_1 = arith.constant 0 : i32
    return %c0_i32, %c0_i32_0 : i32, i32
  }
  func.func @transform_3(%arg0: i32) -> (i32, i32) {
    %c0_i32 = arith.constant 0 : i32
    %c0_i32_0 = arith.constant 0 : i32
    return %arg0, %c0_i32 : i32, i32
  }
  func.func @transform_4(%arg0: i32) -> (i32, i32) {
    %c0_i32 = arith.constant 0 : i32
    %c0_i32_0 = arith.constant 0 : i32
    return %arg0, %c0_i32 : i32, i32
  }
}

module attributes {stable_mosaic.version = 11 : i64} {
  func.func @kernel(%arg0: i32, %arg1: memref<512x16xf32, #tpu.memory_space<vmem>>, %arg2: memref<16x64xf32, #tpu.memory_space<vmem>>, %arg3: memref<1x64xf32, #tpu.memory_space<vmem>>, %arg4: memref<512x64xf32, #tpu.memory_space<vmem>>, %arg5: memref<512x64xf32, #tpu.memory_space<vmem>>) attributes {dimension_semantics = [#tpu.dimension_semantics<parallel>], iteration_bounds = array<i64: 1>, scalar_prefetch = 0 : i64, scratch_operands = 0 : i64, tpu.core_type = #tpu.core_type<tc>, window_params = [{transform_indices = @transform_0, window_bounds = array<i64: 512, 16>}, {pipeline_mode = #tpu.pipeline_mode<synchronous>, transform_indices = @transform_1, window_bounds = array<i64: 16, 64>}, {pipeline_mode = #tpu.pipeline_mode<synchronous>, transform_indices = @transform_2, window_bounds = array<i64: 1, 64>}, {transform_indices = @transform_3, window_bounds = array<i64: 512, 64>}, {transform_indices = @transform_4, window_bounds = array<i64: 512, 64>}]} {
    %c0 = arith.constant 0 : index
    %c0_0 = arith.constant 0 : index
    %0 = vector.load %arg1[%c0, %c0_0] : memref<512x16xf32, #tpu.memory_space<vmem>>, vector<512x16xf32>
    %c0_1 = arith.constant 0 : index
    %c0_2 = arith.constant 0 : index
    %1 = vector.load %arg2[%c0_1, %c0_2] : memref<16x64xf32, #tpu.memory_space<vmem>>, vector<16x64xf32>
    %cst = arith.constant dense<0.000000e+00> : vector<512x64xf32>
    %2 = tpu.matmul %0, %1, %cst {dimension_numbers = #tpu.dot_dimension_numbers<[1], [0], [0], [1], [0, 0, 1, 1], [], []>} : vector<512x16xf32>, vector<16x64xf32>, vector<512x64xf32> -> vector<512x64xf32>
    %c0_3 = arith.constant 0 : index
    %c0_4 = arith.constant 0 : index
    %3 = vector.load %arg3[%c0_3, %c0_4] : memref<1x64xf32, #tpu.memory_space<vmem>>, vector<1x64xf32>
    %4 = vector.broadcast %3 : vector<1x64xf32> to vector<512x64xf32>
    %5 = arith.addf %2, %4 : vector<512x64xf32>
    %c0_5 = arith.constant 0 : index
    %c0_6 = arith.constant 0 : index
    %6 = vector.load %arg4[%c0_5, %c0_6] : memref<512x64xf32, #tpu.memory_space<vmem>>, vector<512x64xf32>
    %7 = arith.addf %5, %6 : vector<512x64xf32>
    %cst_7 = arith.constant 0.000000e+00 : f32
    %8 = vector.broadcast %cst_7 : f32 to vector<512x64xf32>
    %9 = arith.maximumf %7, %8 : vector<512x64xf32>
    %c0_8 = arith.constant 0 : index
    %c0_9 = arith.constant 0 : index
    %10 = vector.load %arg5[%c0_8, %c0_9] : memref<512x64xf32, #tpu.memory_space<vmem>>, vector<512x64xf32>
    tpu.vector_store %arg5[%c0_8, %c0_9], %9 {strides = array<i32>} : memref<512x64xf32, #tpu.memory_space<vmem>>, vector<512x64xf32>,
    return
  }
  func.func @transform_0(%arg0: i32) -> (i32, i32) {
    %c0_i32 = arith.constant 0 : i32
    %c0_i32_0 = arith.constant 0 : i32
    return %arg0, %c0_i32 : i32, i32
  }
  func.func @transform_1(%arg0: i32) -> (i32, i32) {
    %c0_i32 = arith.constant 0 : i32
    %c0_i32_0 = arith.constant 0 : i32
    %c0_i32_1 = arith.constant 0 : i32
    return %c0_i32, %c0_i32_0 : i32, i32
  }
  func.func @transform_2(%arg0: i32) -> (i32, i32) {
    %c0_i32 = arith.constant 0 : i32
    %c0_i32_0 = arith.constant 0 : i32
    %c0_i32_1 = arith.constant 0 : i32
    return %c0_i32, %c0_i32_0 : i32, i32
  }
  func.func @transform_3(%arg0: i32) -> (i32, i32) {
    %c0_i32 = arith.constant 0 : i32
    %c0_i32_0 = arith.constant 0 : i32
    return %arg0, %c0_i32 : i32, i32
  }
  func.func @transform_4(%arg0: i32) -> (i32, i32) {
    %c0_i32 = arith.constant 0 : i32
    %c0_i32_0 = arith.constant 0 : i32
    return %arg0, %c0_i32 : i32, i32
  }
}

module attributes {stable_mosaic.version = 11 : i64} {
  func.func @kernel(%arg0: i32, %arg1: memref<128x256xf32, #tpu.memory_space<vmem>>, %arg2: memref<256x32xf32, #tpu.memory_space<vmem>>, %arg3: memref<1x32xf32, #tpu.memory_space<vmem>>, %arg4: memref<128x32xf32, #tpu.memory_space<vmem>>) attributes {dimension_semantics = [#tpu.dimension_semantics<parallel>], iteration_bounds = array<i64: 1>, scalar_prefetch = 0 : i64, scratch_operands = 0 : i64, tpu.core_type = #tpu.core_type<tc>, window_params = [{transform_indices = @transform_0, window_bounds = array<i64: 128, 256>}, {pipeline_mode = #tpu.pipeline_mode<synchronous>, transform_indices = @transform_1, window_bounds = array<i64: 256, 32>}, {pipeline_mode = #tpu.pipeline_mode<synchronous>, transform_indices = @transform_2, window_bounds = array<i64: 1, 32>}, {transform_indices = @transform_3, window_bounds = array<i64: 128, 32>}]} {
    %c0 = arith.constant 0 : index
    %c0_0 = arith.constant 0 : index
    %0 = vector.load %arg1[%c0, %c0_0] : memref<128x256xf32, #tpu.memory_space<vmem>>, vector<128x256xf32>
    %c0_1 = arith.constant 0 : index
    %c0_2 = arith.constant 0 : index
    %1 = vector.load %arg2[%c0_1, %c0_2] : memref<256x32xf32, #tpu.memory_space<vmem>>, vector<256x32xf32>
    %cst = arith.constant dense<0.000000e+00> : vector<128x32xf32>
    %2 = tpu.matmul %0, %1, %cst {dimension_numbers = #tpu.dot_dimension_numbers<[1], [0], [0], [1], [0, 0, 1, 1], [], []>} : vector<128x256xf32>, vector<256x32xf32>, vector<128x32xf32> -> vector<128x32xf32>
    %c0_3 = arith.constant 0 : index
    %c0_4 = arith.constant 0 : index
    %3 = vector.load %arg3[%c0_3, %c0_4] : memref<1x32xf32, #tpu.memory_space<vmem>>, vector<1x32xf32>
    %4 = vector.broadcast %3 : vector<1x32xf32> to vector<128x32xf32>
    %5 = arith.addf %2, %4 : vector<128x32xf32>
    %cst_5 = arith.constant 0.000000e+00 : f32
    %6 = vector.broadcast %cst_5 : f32 to vector<128x32xf32>
    %7 = arith.maximumf %5, %6 : vector<128x32xf32>
    %c0_6 = arith.constant 0 : index
    %c0_7 = arith.constant 0 : index
    %8 = vector.load %arg4[%c0_6, %c0_7] : memref<128x32xf32, #tpu.memory_space<vmem>>, vector<128x32xf32>
    tpu.vector_store %arg4[%c0_6, %c0_7], %7 {strides = array<i32>} : memref<128x32xf32, #tpu.memory_space<vmem>>, vector<128x32xf32>,
    return
  }
  func.func @transform_0(%arg0: i32) -> (i32, i32) {
    %c0_i32 = arith.constant 0 : i32
    %c0_i32_0 = arith.constant 0 : i32
    return %arg0, %c0_i32 : i32, i32
  }
  func.func @transform_1(%arg0: i32) -> (i32, i32) {
    %c0_i32 = arith.constant 0 : i32
    %c0_i32_0 = arith.constant 0 : i32
    %c0_i32_1 = arith.constant 0 : i32
    return %c0_i32, %c0_i32_0 : i32, i32
  }
  func.func @transform_2(%arg0: i32) -> (i32, i32) {
    %c0_i32 = arith.constant 0 : i32
    %c0_i32_0 = arith.constant 0 : i32
    %c0_i32_1 = arith.constant 0 : i32
    return %c0_i32, %c0_i32_0 : i32, i32
  }
  func.func @transform_3(%arg0: i32) -> (i32, i32) {
    %c0_i32 = arith.constant 0 : i32
    %c0_i32_0 = arith.constant 0 : i32
    return %arg0, %c0_i32 : i32, i32
  }
}

module attributes {stable_mosaic.version = 11 : i64} {
  func.func @kernel(%arg0: i32, %arg1: memref<128x288xf32, #tpu.memory_space<vmem>>, %arg2: memref<288x32xf32, #tpu.memory_space<vmem>>, %arg3: memref<1x32xf32, #tpu.memory_space<vmem>>, %arg4: memref<128x32xf32, #tpu.memory_space<vmem>>) attributes {dimension_semantics = [#tpu.dimension_semantics<parallel>], iteration_bounds = array<i64: 1>, scalar_prefetch = 0 : i64, scratch_operands = 0 : i64, tpu.core_type = #tpu.core_type<tc>, window_params = [{transform_indices = @transform_0, window_bounds = array<i64: 128, 288>}, {pipeline_mode = #tpu.pipeline_mode<synchronous>, transform_indices = @transform_1, window_bounds = array<i64: 288, 32>}, {pipeline_mode = #tpu.pipeline_mode<synchronous>, transform_indices = @transform_2, window_bounds = array<i64: 1, 32>}, {transform_indices = @transform_3, window_bounds = array<i64: 128, 32>}]} {
    %c0 = arith.constant 0 : index
    %c0_0 = arith.constant 0 : index
    %0 = vector.load %arg1[%c0, %c0_0] : memref<128x288xf32, #tpu.memory_space<vmem>>, vector<128x288xf32>
    %c0_1 = arith.constant 0 : index
    %c0_2 = arith.constant 0 : index
    %1 = vector.load %arg2[%c0_1, %c0_2] : memref<288x32xf32, #tpu.memory_space<vmem>>, vector<288x32xf32>
    %cst = arith.constant dense<0.000000e+00> : vector<128x32xf32>
    %2 = tpu.matmul %0, %1, %cst {dimension_numbers = #tpu.dot_dimension_numbers<[1], [0], [0], [1], [0, 0, 1, 1], [], []>} : vector<128x288xf32>, vector<288x32xf32>, vector<128x32xf32> -> vector<128x32xf32>
    %c0_3 = arith.constant 0 : index
    %c0_4 = arith.constant 0 : index
    %3 = vector.load %arg3[%c0_3, %c0_4] : memref<1x32xf32, #tpu.memory_space<vmem>>, vector<1x32xf32>
    %4 = vector.broadcast %3 : vector<1x32xf32> to vector<128x32xf32>
    %5 = arith.addf %2, %4 : vector<128x32xf32>
    %cst_5 = arith.constant 0.000000e+00 : f32
    %6 = vector.broadcast %cst_5 : f32 to vector<128x32xf32>
    %7 = arith.maximumf %5, %6 : vector<128x32xf32>
    %c0_6 = arith.constant 0 : index
    %c0_7 = arith.constant 0 : index
    %8 = vector.load %arg4[%c0_6, %c0_7] : memref<128x32xf32, #tpu.memory_space<vmem>>, vector<128x32xf32>
    tpu.vector_store %arg4[%c0_6, %c0_7], %7 {strides = array<i32>} : memref<128x32xf32, #tpu.memory_space<vmem>>, vector<128x32xf32>,
    return
  }
  func.func @transform_0(%arg0: i32) -> (i32, i32) {
    %c0_i32 = arith.constant 0 : i32
    %c0_i32_0 = arith.constant 0 : i32
    return %arg0, %c0_i32 : i32, i32
  }
  func.func @transform_1(%arg0: i32) -> (i32, i32) {
    %c0_i32 = arith.constant 0 : i32
    %c0_i32_0 = arith.constant 0 : i32
    %c0_i32_1 = arith.constant 0 : i32
    return %c0_i32, %c0_i32_0 : i32, i32
  }
  func.func @transform_2(%arg0: i32) -> (i32, i32) {
    %c0_i32 = arith.constant 0 : i32
    %c0_i32_0 = arith.constant 0 : i32
    %c0_i32_1 = arith.constant 0 : i32
    return %c0_i32, %c0_i32_0 : i32, i32
  }
  func.func @transform_3(%arg0: i32) -> (i32, i32) {
    %c0_i32 = arith.constant 0 : i32
    %c0_i32_0 = arith.constant 0 : i32
    return %arg0, %c0_i32 : i32, i32
  }
}

module attributes {stable_mosaic.version = 11 : i64} {
  func.func @kernel(%arg0: i32, %arg1: memref<128x32xf32, #tpu.memory_space<vmem>>, %arg2: memref<32x128xf32, #tpu.memory_space<vmem>>, %arg3: memref<1x128xf32, #tpu.memory_space<vmem>>, %arg4: memref<128x256xf32, #tpu.memory_space<vmem>>, %arg5: memref<128x128xf32, #tpu.memory_space<vmem>>) attributes {dimension_semantics = [#tpu.dimension_semantics<parallel>], iteration_bounds = array<i64: 1>, scalar_prefetch = 0 : i64, scratch_operands = 0 : i64, tpu.core_type = #tpu.core_type<tc>, window_params = [{transform_indices = @transform_0, window_bounds = array<i64: 128, 32>}, {pipeline_mode = #tpu.pipeline_mode<synchronous>, transform_indices = @transform_1, window_bounds = array<i64: 32, 128>}, {pipeline_mode = #tpu.pipeline_mode<synchronous>, transform_indices = @transform_2, window_bounds = array<i64: 1, 128>}, {transform_indices = @transform_3, window_bounds = array<i64: 128, 256>}, {transform_indices = @transform_4, window_bounds = array<i64: 128, 128>}]} {
    %c0 = arith.constant 0 : index
    %c0_0 = arith.constant 0 : index
    %0 = vector.load %arg1[%c0, %c0_0] : memref<128x32xf32, #tpu.memory_space<vmem>>, vector<128x32xf32>
    %c0_1 = arith.constant 0 : index
    %c0_2 = arith.constant 0 : index
    %1 = vector.load %arg2[%c0_1, %c0_2] : memref<32x128xf32, #tpu.memory_space<vmem>>, vector<32x128xf32>
    %cst = arith.constant dense<0.000000e+00> : vector<128x128xf32>
    %2 = tpu.matmul %0, %1, %cst {dimension_numbers = #tpu.dot_dimension_numbers<[1], [0], [0], [1], [0, 0, 1, 1], [], []>} : vector<128x32xf32>, vector<32x128xf32>, vector<128x128xf32> -> vector<128x128xf32>
    %c0_3 = arith.constant 0 : index
    %c0_4 = arith.constant 0 : index
    %3 = vector.load %arg3[%c0_3, %c0_4] : memref<1x128xf32, #tpu.memory_space<vmem>>, vector<1x128xf32>
    %4 = vector.broadcast %3 : vector<1x128xf32> to vector<128x128xf32>
    %5 = arith.addf %2, %4 : vector<128x128xf32>
    %c0_5 = arith.constant 0 : index
    %c0_6 = arith.constant 0 : index
    %6 = vector.load %arg4[%c0_5, %c0_6] : memref<128x256xf32, #tpu.memory_space<vmem>>, vector<128x256xf32>
    %7 = vector.extract_strided_slice %6 {offsets = [0, 0], sizes = [128, 64], strides = [1, 1]} : vector<128x256xf32> to vector<128x64xf32>
    %8 = vector.extract_strided_slice %6 {offsets = [0, 64], sizes = [128, 64], strides = [1, 1]} : vector<128x256xf32> to vector<128x64xf32>
    %9 = arith.maximumf %7, %8 : vector<128x64xf32>
    %10 = vector.extract_strided_slice %6 {offsets = [0, 128], sizes = [128, 64], strides = [1, 1]} : vector<128x256xf32> to vector<128x64xf32>
    %11 = vector.extract_strided_slice %6 {offsets = [0, 192], sizes = [128, 64], strides = [1, 1]} : vector<128x256xf32> to vector<128x64xf32>
    %12 = arith.maximumf %10, %11 : vector<128x64xf32>
    %13 = arith.maximumf %9, %12 : vector<128x64xf32>
    %14 = tpu.concatenate %13, %13 in 1 : vector<128x64xf32>, vector<128x64xf32> -> vector<128x128xf32>
    %15 = arith.addf %5, %14 : vector<128x128xf32>
    %cst_7 = arith.constant 0.000000e+00 : f32
    %16 = vector.broadcast %cst_7 : f32 to vector<128x128xf32>
    %17 = arith.maximumf %15, %16 : vector<128x128xf32>
    %c0_8 = arith.constant 0 : index
    %c0_9 = arith.constant 0 : index
    %18 = vector.load %arg5[%c0_8, %c0_9] : memref<128x128xf32, #tpu.memory_space<vmem>>, vector<128x128xf32>
    tpu.vector_store %arg5[%c0_8, %c0_9], %17 {strides = array<i32>} : memref<128x128xf32, #tpu.memory_space<vmem>>, vector<128x128xf32>,
    return
  }
  func.func @transform_0(%arg0: i32) -> (i32, i32) {
    %c0_i32 = arith.constant 0 : i32
    %c0_i32_0 = arith.constant 0 : i32
    return %arg0, %c0_i32 : i32, i32
  }
  func.func @transform_1(%arg0: i32) -> (i32, i32) {
    %c0_i32 = arith.constant 0 : i32
    %c0_i32_0 = arith.constant 0 : i32
    %c0_i32_1 = arith.constant 0 : i32
    return %c0_i32, %c0_i32_0 : i32, i32
  }
  func.func @transform_2(%arg0: i32) -> (i32, i32) {
    %c0_i32 = arith.constant 0 : i32
    %c0_i32_0 = arith.constant 0 : i32
    %c0_i32_1 = arith.constant 0 : i32
    return %c0_i32, %c0_i32_0 : i32, i32
  }
  func.func @transform_3(%arg0: i32) -> (i32, i32) {
    %c0_i32 = arith.constant 0 : i32
    %c0_i32_0 = arith.constant 0 : i32
    return %arg0, %c0_i32 : i32, i32
  }
  func.func @transform_4(%arg0: i32) -> (i32, i32) {
    %c0_i32 = arith.constant 0 : i32
    %c0_i32_0 = arith.constant 0 : i32
    return %arg0, %c0_i32 : i32, i32
  }
}

module attributes {stable_mosaic.version = 11 : i64} {
  func.func @kernel(%arg0: i32, %arg1: memref<128x128xf32, #tpu.memory_space<vmem>>, %arg2: memref<128x32xf32, #tpu.memory_space<vmem>>, %arg3: memref<1x32xf32, #tpu.memory_space<vmem>>, %arg4: memref<128x32xf32, #tpu.memory_space<vmem>>) attributes {dimension_semantics = [#tpu.dimension_semantics<parallel>], iteration_bounds = array<i64: 1>, scalar_prefetch = 0 : i64, scratch_operands = 0 : i64, tpu.core_type = #tpu.core_type<tc>, window_params = [{transform_indices = @transform_0, window_bounds = array<i64: 128, 128>}, {pipeline_mode = #tpu.pipeline_mode<synchronous>, transform_indices = @transform_1, window_bounds = array<i64: 128, 32>}, {pipeline_mode = #tpu.pipeline_mode<synchronous>, transform_indices = @transform_2, window_bounds = array<i64: 1, 32>}, {transform_indices = @transform_3, window_bounds = array<i64: 128, 32>}]} {
    %c0 = arith.constant 0 : index
    %c0_0 = arith.constant 0 : index
    %0 = vector.load %arg1[%c0, %c0_0] : memref<128x128xf32, #tpu.memory_space<vmem>>, vector<128x128xf32>
    %c0_1 = arith.constant 0 : index
    %c0_2 = arith.constant 0 : index
    %1 = vector.load %arg2[%c0_1, %c0_2] : memref<128x32xf32, #tpu.memory_space<vmem>>, vector<128x32xf32>
    %cst = arith.constant dense<0.000000e+00> : vector<128x32xf32>
    %2 = tpu.matmul %0, %1, %cst {dimension_numbers = #tpu.dot_dimension_numbers<[1], [0], [0], [1], [0, 0, 1, 1], [], []>} : vector<128x128xf32>, vector<128x32xf32>, vector<128x32xf32> -> vector<128x32xf32>
    %c0_3 = arith.constant 0 : index
    %c0_4 = arith.constant 0 : index
    %3 = vector.load %arg3[%c0_3, %c0_4] : memref<1x32xf32, #tpu.memory_space<vmem>>, vector<1x32xf32>
    %4 = vector.broadcast %3 : vector<1x32xf32> to vector<128x32xf32>
    %5 = arith.addf %2, %4 : vector<128x32xf32>
    %cst_5 = arith.constant 0.000000e+00 : f32
    %6 = vector.broadcast %cst_5 : f32 to vector<128x32xf32>
    %7 = arith.maximumf %5, %6 : vector<128x32xf32>
    %c0_6 = arith.constant 0 : index
    %c0_7 = arith.constant 0 : index
    %8 = vector.load %arg4[%c0_6, %c0_7] : memref<128x32xf32, #tpu.memory_space<vmem>>, vector<128x32xf32>
    tpu.vector_store %arg4[%c0_6, %c0_7], %7 {strides = array<i32>} : memref<128x32xf32, #tpu.memory_space<vmem>>, vector<128x32xf32>,
    return
  }
  func.func @transform_0(%arg0: i32) -> (i32, i32) {
    %c0_i32 = arith.constant 0 : i32
    %c0_i32_0 = arith.constant 0 : i32
    return %arg0, %c0_i32 : i32, i32
  }
  func.func @transform_1(%arg0: i32) -> (i32, i32) {
    %c0_i32 = arith.constant 0 : i32
    %c0_i32_0 = arith.constant 0 : i32
    %c0_i32_1 = arith.constant 0 : i32
    return %c0_i32, %c0_i32_0 : i32, i32
  }
  func.func @transform_2(%arg0: i32) -> (i32, i32) {
    %c0_i32 = arith.constant 0 : i32
    %c0_i32_0 = arith.constant 0 : i32
    %c0_i32_1 = arith.constant 0 : i32
    return %c0_i32, %c0_i32_0 : i32, i32
  }
  func.func @transform_3(%arg0: i32) -> (i32, i32) {
    %c0_i32 = arith.constant 0 : i32
    %c0_i32_0 = arith.constant 0 : i32
    return %arg0, %c0_i32 : i32, i32
  }
}

module attributes {stable_mosaic.version = 11 : i64} {
  func.func @kernel(%arg0: i32, %arg1: memref<128x32xf32, #tpu.memory_space<vmem>>, %arg2: memref<32x128xf32, #tpu.memory_space<vmem>>, %arg3: memref<1x128xf32, #tpu.memory_space<vmem>>, %arg4: memref<128x128xf32, #tpu.memory_space<vmem>>, %arg5: memref<128x128xf32, #tpu.memory_space<vmem>>) attributes {dimension_semantics = [#tpu.dimension_semantics<parallel>], iteration_bounds = array<i64: 1>, scalar_prefetch = 0 : i64, scratch_operands = 0 : i64, tpu.core_type = #tpu.core_type<tc>, window_params = [{transform_indices = @transform_0, window_bounds = array<i64: 128, 32>}, {pipeline_mode = #tpu.pipeline_mode<synchronous>, transform_indices = @transform_1, window_bounds = array<i64: 32, 128>}, {pipeline_mode = #tpu.pipeline_mode<synchronous>, transform_indices = @transform_2, window_bounds = array<i64: 1, 128>}, {transform_indices = @transform_3, window_bounds = array<i64: 128, 128>}, {transform_indices = @transform_4, window_bounds = array<i64: 128, 128>}]} {
    %c0 = arith.constant 0 : index
    %c0_0 = arith.constant 0 : index
    %0 = vector.load %arg1[%c0, %c0_0] : memref<128x32xf32, #tpu.memory_space<vmem>>, vector<128x32xf32>
    %c0_1 = arith.constant 0 : index
    %c0_2 = arith.constant 0 : index
    %1 = vector.load %arg2[%c0_1, %c0_2] : memref<32x128xf32, #tpu.memory_space<vmem>>, vector<32x128xf32>
    %cst = arith.constant dense<0.000000e+00> : vector<128x128xf32>
    %2 = tpu.matmul %0, %1, %cst {dimension_numbers = #tpu.dot_dimension_numbers<[1], [0], [0], [1], [0, 0, 1, 1], [], []>} : vector<128x32xf32>, vector<32x128xf32>, vector<128x128xf32> -> vector<128x128xf32>
    %c0_3 = arith.constant 0 : index
    %c0_4 = arith.constant 0 : index
    %3 = vector.load %arg3[%c0_3, %c0_4] : memref<1x128xf32, #tpu.memory_space<vmem>>, vector<1x128xf32>
    %4 = vector.broadcast %3 : vector<1x128xf32> to vector<128x128xf32>
    %5 = arith.addf %2, %4 : vector<128x128xf32>
    %c0_5 = arith.constant 0 : index
    %c0_6 = arith.constant 0 : index
    %6 = vector.load %arg4[%c0_5, %c0_6] : memref<128x128xf32, #tpu.memory_space<vmem>>, vector<128x128xf32>
    %7 = arith.addf %5, %6 : vector<128x128xf32>
    %cst_7 = arith.constant 0.000000e+00 : f32
    %8 = vector.broadcast %cst_7 : f32 to vector<128x128xf32>
    %9 = arith.maximumf %7, %8 : vector<128x128xf32>
    %c0_8 = arith.constant 0 : index
    %c0_9 = arith.constant 0 : index
    %10 = vector.load %arg5[%c0_8, %c0_9] : memref<128x128xf32, #tpu.memory_space<vmem>>, vector<128x128xf32>
    tpu.vector_store %arg5[%c0_8, %c0_9], %9 {strides = array<i32>} : memref<128x128xf32, #tpu.memory_space<vmem>>, vector<128x128xf32>,
    return
  }
  func.func @transform_0(%arg0: i32) -> (i32, i32) {
    %c0_i32 = arith.constant 0 : i32
    %c0_i32_0 = arith.constant 0 : i32
    return %arg0, %c0_i32 : i32, i32
  }
  func.func @transform_1(%arg0: i32) -> (i32, i32) {
    %c0_i32 = arith.constant 0 : i32
    %c0_i32_0 = arith.constant 0 : i32
    %c0_i32_1 = arith.constant 0 : i32
    return %c0_i32, %c0_i32_0 : i32, i32
  }
  func.func @transform_2(%arg0: i32) -> (i32, i32) {
    %c0_i32 = arith.constant 0 : i32
    %c0_i32_0 = arith.constant 0 : i32
    %c0_i32_1 = arith.constant 0 : i32
    return %c0_i32, %c0_i32_0 : i32, i32
  }
  func.func @transform_3(%arg0: i32) -> (i32, i32) {
    %c0_i32 = arith.constant 0 : i32
    %c0_i32_0 = arith.constant 0 : i32
    return %arg0, %c0_i32 : i32, i32
  }
  func.func @transform_4(%arg0: i32) -> (i32, i32) {
    %c0_i32 = arith.constant 0 : i32
    %c0_i32_0 = arith.constant 0 : i32
    return %arg0, %c0_i32 : i32, i32
  }
}

module attributes {stable_mosaic.version = 11 : i64} {
  func.func @kernel(%arg0: i32, %arg1: memref<128x128xf32, #tpu.memory_space<vmem>>, %arg2: memref<128x12xf32, #tpu.memory_space<vmem>>, %arg3: memref<1x12xf32, #tpu.memory_space<vmem>>, %arg4: memref<128x12xf32, #tpu.memory_space<vmem>>) attributes {dimension_semantics = [#tpu.dimension_semantics<parallel>], iteration_bounds = array<i64: 1>, scalar_prefetch = 0 : i64, scratch_operands = 0 : i64, tpu.core_type = #tpu.core_type<tc>, window_params = [{transform_indices = @transform_0, window_bounds = array<i64: 128, 128>}, {pipeline_mode = #tpu.pipeline_mode<synchronous>, transform_indices = @transform_1, window_bounds = array<i64: 128, 12>}, {pipeline_mode = #tpu.pipeline_mode<synchronous>, transform_indices = @transform_2, window_bounds = array<i64: 1, 12>}, {transform_indices = @transform_3, window_bounds = array<i64: 128, 12>}]} {
    %c0 = arith.constant 0 : index
    %c0_0 = arith.constant 0 : index
    %0 = vector.load %arg1[%c0, %c0_0] : memref<128x128xf32, #tpu.memory_space<vmem>>, vector<128x128xf32>
    %c0_1 = arith.constant 0 : index
    %c0_2 = arith.constant 0 : index
    %1 = vector.load %arg2[%c0_1, %c0_2] : memref<128x12xf32, #tpu.memory_space<vmem>>, vector<128x12xf32>
    %cst = arith.constant dense<0.000000e+00> : vector<128x12xf32>
    %2 = tpu.matmul %0, %1, %cst {dimension_numbers = #tpu.dot_dimension_numbers<[1], [0], [0], [1], [0, 0, 1, 1], [], []>} : vector<128x128xf32>, vector<128x12xf32>, vector<128x12xf32> -> vector<128x12xf32>
    %c0_3 = arith.constant 0 : index
    %c0_4 = arith.constant 0 : index
    %3 = vector.load %arg3[%c0_3, %c0_4] : memref<1x12xf32, #tpu.memory_space<vmem>>, vector<1x12xf32>
    %4 = vector.broadcast %3 : vector<1x12xf32> to vector<128x12xf32>
    %5 = arith.addf %2, %4 : vector<128x12xf32>
    %c0_5 = arith.constant 0 : index
    %c0_6 = arith.constant 0 : index
    %6 = vector.load %arg4[%c0_5, %c0_6] : memref<128x12xf32, #tpu.memory_space<vmem>>, vector<128x12xf32>
    tpu.vector_store %arg4[%c0_5, %c0_6], %5 {strides = array<i32>} : memref<128x12xf32, #tpu.memory_space<vmem>>, vector<128x12xf32>,
    return
  }
  func.func @transform_0(%arg0: i32) -> (i32, i32) {
    %c0_i32 = arith.constant 0 : i32
    %c0_i32_0 = arith.constant 0 : i32
    return %arg0, %c0_i32 : i32, i32
  }
  func.func @transform_1(%arg0: i32) -> (i32, i32) {
    %c0_i32 = arith.constant 0 : i32
    %c0_i32_0 = arith.constant 0 : i32
    %c0_i32_1 = arith.constant 0 : i32
    return %c0_i32, %c0_i32_0 : i32, i32
  }
  func.func @transform_2(%arg0: i32) -> (i32, i32) {
    %c0_i32 = arith.constant 0 : i32
    %c0_i32_0 = arith.constant 0 : i32
    %c0_i32_1 = arith.constant 0 : i32
    return %c0_i32, %c0_i32_0 : i32, i32
  }
  func.func @transform_3(%arg0: i32) -> (i32, i32) {
    %c0_i32 = arith.constant 0 : i32
    %c0_i32_0 = arith.constant 0 : i32
    return %arg0, %c0_i32 : i32, i32
  }
}

</mosaic_0001>

<llo_original>
// kernel: _lambda_.14
$region0: #{_lambda_.14}
  #allocation0 [shape = 'u32[]', space=smem, size = 0x4, offset = 0x4, fixed_abs, tag = 'smem constant byte address 0x4 - core index']
  #allocation1 [shape = 'u32[144,128]{1,0:T(1,128)}', space=vmem, size = 0x12000, scoped, tag = 'internal scratch']
  %s0 = inlined_call_operand.vmem [shape: f32[2048,27], index: 0, kind: input, shape index: {}]
  %s1 = inlined_call_operand.vmem [shape: f32[27,13], index: 1, kind: input, shape index: {}]
  %s2 = inlined_call_operand.vmem [shape: f32[1,13], index: 2, kind: input, shape index: {}]
  %s3 = inlined_call_operand.vmem [shape: f32[1,3], index: 3, kind: input, shape index: {}]
  %s4 = inlined_call_operand.vmem [shape: f32[1,3], index: 4, kind: input, shape index: {}]
  %s5 = inlined_call_operand.vmem [shape: f32[2048,16], index: 5, kind: output, shape index: {}]
  %s6 = sld [smem:[#allocation0]]
  $region53: #{_lambda_.14} parent=0
    _
  %s8 = ssub.s32 1, %s6
  %s9 = scalar_select 0, %s8, %s6
  loop: start=0, step=1, limit=4
  $region2: #{_lambda_.14} parent=0 // loop_pre_header
    _
  $region3: #{_lambda_.14} parent=0 // loop_header
    %s11 = sphi 0, %s15
    %p12 = scmp.ge.s32.totalorder %s11, 4
    %s21 = sphi 0, %s23
    %s24 = sphi 0, %s21
    %s25 = sphi 0, %s24
    %s41 = sphi 0, %s25
    %s45 = sphi 0, %s45
    %s47 = sphi 0, %s45
    %s48 = sphi 0, %s47
    %s62 = sphi 0, %s48
    %s66 = sphi 0, %s66
    %s68 = sphi 0, %s66
    %s69 = sphi 0, %s68
    %s83 = sphi 0, %s69
    %s87 = sphi 0, %s87
    %s89 = sphi 0, %s87
    %s90 = sphi 0, %s89
    %s104 = sphi 0, %s90
    %s108 = sphi 0, %s108
    %s110 = sphi 0, %s108
    %s111 = sphi 0, %s110
    %s125 = sphi 0, %s111
    %s131 = sphi 0, %s133
    %s134 = sphi 0, %s131
    %s135 = sphi 0, %s134
    %s151 = sphi 0, %s135
  $region4: #{_lambda_.14} parent=0 // loop_header_branch
    %14 = sbr.rel (%p12) target = $region8
  $region5: #{_lambda_.14} parent=0 // loop_body
    %s16 = ssub.s32 %s11, 1
    %s17 = ssub.s32 %s11, 2
    %s18 = sadd.s32 %s11, 1
    %s19 = ssub.s32 %s11, %s18
    %p20 = scmp.eq.s32.totalorder %s19, 0
    %s22 = sadd.s32 %s21, 1
    %s23 = scalar_select %p20, %s21, %s22
    %p26 = pneg %p20
    %p27 = scmp.eq.s32.totalorder %s11, 1
    %p28 = por %p26, %p27
    %p29 = scmp.ne.s32.totalorder %s21, %s24
    %p30 = scmp.eq.s32.totalorder %s11, 0
    %p31 = por %p29, %p30
    %p32 = scmp.ne.s32.totalorder %s21, %s24
    %p33 = scmp.eq.s32.totalorder %s16, 1
    %p34 = por %p32, %p33
    %p35 = scmp.ne.s32.totalorder %s24, %s25
    %p36 = scmp.eq.s32.totalorder %s16, 0
    %p37 = por %p35, %p36
    %p38 = scmp.ne.s32.totalorder %s24, %s25
    %p39 = scmp.eq.s32.totalorder %s17, 1
    %p40 = por %p38, %p39
    %p42 = scmp.ne.s32.totalorder %s25, %s41
    %p43 = scmp.eq.s32.totalorder %s17, 0
    %p44 = por %p42, %p43
    %s46 = sadd.s32 %s45, 1
    %p49 = scmp.eq.s32.totalorder %s11, 1
    %p50 = scmp.ne.s32.totalorder %s45, %s47
    %p51 = scmp.eq.s32.totalorder %s11, 0
    %p52 = por %p50, %p51
    %p53 = scmp.ne.s32.totalorder %s45, %s47
    %p54 = scmp.eq.s32.totalorder %s16, 1
    %p55 = por %p53, %p54
    %p56 = scmp.ne.s32.totalorder %s47, %s48
    %p57 = scmp.eq.s32.totalorder %s16, 0
    %p58 = por %p56, %p57
    %p59 = scmp.ne.s32.totalorder %s47, %s48
    %p60 = scmp.eq.s32.totalorder %s17, 1
    %p61 = por %p59, %p60
    %p63 = scmp.ne.s32.totalorder %s48, %s62
    %p64 = scmp.eq.s32.totalorder %s17, 0
    %p65 = por %p63, %p64
    %s67 = sadd.s32 %s66, 1
    %p70 = scmp.eq.s32.totalorder %s11, 1
    %p71 = scmp.ne.s32.totalorder %s66, %s68
    %p72 = scmp.eq.s32.totalorder %s11, 0
    %p73 = por %p71, %p72
    %p74 = scmp.ne.s32.totalorder %s66, %s68
    %p75 = scmp.eq.s32.totalorder %s16, 1
    %p76 = por %p74, %p75
    %p77 = scmp.ne.s32.totalorder %s68, %s69
    %p78 = scmp.eq.s32.totalorder %s16, 0
    %p79 = por %p77, %p78
    %p80 = scmp.ne.s32.totalorder %s68, %s69
    %p81 = scmp.eq.s32.totalorder %s17, 1
    %p82 = por %p80, %p81
    %p84 = scmp.ne.s32.totalorder %s69, %s83
    %p85 = scmp.eq.s32.totalorder %s17, 0
    %p86 = por %p84, %p85
    %s88 = sadd.s32 %s87, 1
    %p91 = scmp.eq.s32.totalorder %s11, 1
    %p92 = scmp.ne.s32.totalorder %s87, %s89
    %p93 = scmp.eq.s32.totalorder %s11, 0
    %p94 = por %p92, %p93
    %p95 = scmp.ne.s32.totalorder %s87, %s89
    %p96 = scmp.eq.s32.totalorder %s16, 1
    %p97 = por %p95, %p96
    %p98 = scmp.ne.s32.totalorder %s89, %s90
    %p99 = scmp.eq.s32.totalorder %s16, 0
    %p100 = por %p98, %p99
    %p101 = scmp.ne.s32.totalorder %s89, %s90
    %p102 = scmp.eq.s32.totalorder %s17, 1
    %p103 = por %p101, %p102
    %p105 = scmp.ne.s32.totalorder %s90, %s104
    %p106 = scmp.eq.s32.totalorder %s17, 0
    %p107 = por %p105, %p106
    %s109 = sadd.s32 %s108, 1
    %p112 = scmp.eq.s32.totalorder %s11, 1
    %p113 = scmp.ne.s32.totalorder %s108, %s110
    %p114 = scmp.eq.s32.totalorder %s11, 0
    %p115 = por %p113, %p114
    %p116 = scmp.ne.s32.totalorder %s108, %s110
    %p117 = scmp.eq.s32.totalorder %s16, 1
    %p118 = por %p116, %p117
    %p119 = scmp.ne.s32.totalorder %s110, %s111
    %p120 = scmp.eq.s32.totalorder %s16, 0
    %p121 = por %p119, %p120
    %p122 = scmp.ne.s32.totalorder %s110, %s111
    %p123 = scmp.eq.s32.totalorder %s17, 1
    %p124 = por %p122, %p123
    %p126 = scmp.ne.s32.totalorder %s111, %s125
    %p127 = scmp.eq.s32.totalorder %s17, 0
    %p128 = por %p126, %p127
    %s129 = ssub.s32 %s11, %s18
    %p130 = scmp.eq.s32.totalorder %s129, 0
    %s132 = sadd.s32 %s131, 1
    %s133 = scalar_select %p130, %s131, %s132
    %p136 = pneg %p130
    %p137 = scmp.eq.s32.totalorder %s11, 1
    %p138 = por %p136, %p137
    %p139 = scmp.ne.s32.totalorder %s131, %s134
    %p140 = scmp.eq.s32.totalorder %s11, 0
    %p141 = por %p139, %p140
    %p142 = scmp.ne.s32.totalorder %s131, %s134
    %p143 = scmp.eq.s32.totalorder %s16, 1
    %p144 = por %p142, %p143
    %p145 = scmp.ne.s32.totalorder %s134, %s135
    %p146 = scmp.eq.s32.totalorder %s16, 0
    %p147 = por %p145, %p146
    %p148 = scmp.ne.s32.totalorder %s134, %s135
    %p149 = scmp.eq.s32.totalorder %s17, 1
    %p150 = por %p148, %p149
    %p152 = scmp.ne.s32.totalorder %s135, %s151
    %p153 = scmp.eq.s32.totalorder %s17, 0
    %p154 = por %p152, %p153
    %p155 = scmp.le.s32.totalorder 1, %s11
    %p156 = scmp.lt.s32.totalorder %s11, 3
    %p157 = pnand %p155, %p156
    %p158 = pneg %p157
    // Predicated region
    $region9: #{_lambda_.14} parent=5 // pred_check
      _
    $region10: #{_lambda_.14} parent=5 // pred_check_branch
      %160 = sbr.rel (%p157) target = $region12
    $region11: #{_lambda_.14} parent=5 // pred_region
      %s161 = ssub.s32 %s11, 1
      // Predicated region
      $region13: #{_lambda_.14} parent=11 // pred_check
        %p162 = pneg %p58
      $region14: #{_lambda_.14} parent=11 // pred_check_branch
        %164 = sbr.rel (%p162) target = $region16
      $region15: #{_lambda_.14} parent=11 // pred_region
        _
      $region16: #{_lambda_.14} parent=11 // pred_fallthru
        _
      // Predicated region
      $region17: #{_lambda_.14} parent=11 // pred_check
        %p165 = pneg %p79
      $region18: #{_lambda_.14} parent=11 // pred_check_branch
        %167 = sbr.rel (%p165) target = $region20
      $region19: #{_lambda_.14} parent=11 // pred_region
        _
      $region20: #{_lambda_.14} parent=11 // pred_fallthru
        _
      // Predicated region
      $region21: #{_lambda_.14} parent=11 // pred_check
        %p168 = pneg %p100
      $region22: #{_lambda_.14} parent=11 // pred_check_branch
        %170 = sbr.rel (%p168) target = $region24
      $region23: #{_lambda_.14} parent=11 // pred_region
        _
      $region24: #{_lambda_.14} parent=11 // pred_fallthru
        _
      // Predicated region
      $region25: #{_lambda_.14} parent=11 // pred_check
        %p171 = pneg %p121
      $region26: #{_lambda_.14} parent=11 // pred_check_branch
        %173 = sbr.rel (%p171) target = $region28
      $region27: #{_lambda_.14} parent=11 // pred_region
        _
      $region28: #{_lambda_.14} parent=11 // pred_fallthru
        _
    $region12: #{_lambda_.14} parent=5 // pred_fallthru
      _
    %p174 = scmp.lt.s32.totalorder %s11, 2
    // Predicated region
    $region29: #{_lambda_.14} parent=5 // pred_check
      %p175 = pneg %p174
    $region30: #{_lambda_.14} parent=5 // pred_check_branch
      %177 = sbr.rel (%p175) target = $region32
    $region31: #{_lambda_.14} parent=5 // pred_region
      // Predicated region
      $region33: #{_lambda_.14} parent=31 // pred_check
        %p178 = pneg %p31
      $region34: #{_lambda_.14} parent=31 // pred_check_branch
        %180 = sbr.rel (%p178) target = $region36
      $region35: #{_lambda_.14} parent=31 // pred_region
        %s181 = smul.u32 128, %s11
        %p182 = scmp.lt.s32.totalorder %s181, 255
        %s183 = scalar_select %p182, %s181, 255
        %s184 = smul.addr %s183, 8
        %s185 = scalar_lea.vmem %s0, %s184
        %s186 = smul.u32 128, %s11
      $region36: #{_lambda_.14} parent=31 // pred_fallthru
        _
    $region32: #{_lambda_.14} parent=5 // pred_fallthru
      _
    %p187 = scmp.le.s32.totalorder 1, %s11
    %p188 = scmp.lt.s32.totalorder %s11, 3
    %p189 = pnand %p187, %p188
    %p190 = pneg %p189
    // Predicated region
    $region37: #{_lambda_.14} parent=5 // pred_check
      _
    $region38: #{_lambda_.14} parent=5 // pred_check_branch
      %192 = sbr.rel (%p189) target = $region40
    $region39: #{_lambda_.14} parent=5 // pred_region
      %s193 = ssub.s32 %s11, 1
      %s194 = smul.u32 128, %s16
      %p195 = scmp.lt.s32.totalorder %s194, 255
      %s196 = scalar_select %p195, %s194, 255
      %s197 = smul.addr %s196, 8
      %s198 = scalar_lea.vmem %s0, %s197
      %p199 = pneg %p37
      %p200 = pneg %p34
      %p201 = pneg %p58
      %p202 = pneg %p55
      %p203 = pneg %p79
      %p204 = pneg %p76
      %p205 = pneg %p100
      %p206 = pneg %p97
      %p207 = pneg %p121
      %p208 = pneg %p118
      %p209 = pneg %p147
      %p210 = pneg %p144
      %s211 = smul.u32 128, %s16
      %p212 = scmp.lt.s32.totalorder %s211, 255
      %s213 = scalar_select %p212, %s211, 255
      %s214 = smul.addr %s213, 8
      %s215 = scalar_lea.vmem %s5, %s214
      %s216 = smul.u32 128, %s16
      %p217 = scmp.lt.s32.totalorder %s216, 255
      %s218 = scalar_select %p217, %s216, 255
      %s219 = smul.addr %s218, 8
      %s220 = scalar_lea.vmem %s0, %s219
      %s221 = smul.u32 128, %s16
      %s222 = smul.u32 128, %s16
      %p223 = scmp.lt.s32.totalorder %s222, 255
      %s224 = scalar_select %p223, %s222, 255
      %s225 = smul.addr %s224, 8
      %s226 = scalar_lea.vmem %s5, %s225
      %s227 = smul.u32 128, %s16
      %v228 = vld [vmem:[%s220] sm:$0xff]
      %v229 = vld [vmem:[%s220 + $0x8] sm:$0xff]
      %v230 = vld [vmem:[%s220 + $0x10] sm:$0xff]
      %v231 = vld [vmem:[%s220 + $0x18] sm:$0xff]
      %v232 = vld [vmem:[%s220 + $0x20] sm:$0xff]
      %v233 = vld [vmem:[%s220 + $0x28] sm:$0xff]
      %v234 = vld [vmem:[%s220 + $0x30] sm:$0xff]
      %v235 = vld [vmem:[%s220 + $0x38] sm:$0xff]
      %v236 = vld [vmem:[%s220 + $0x40] sm:$0xff]
      %v237 = vld [vmem:[%s220 + $0x48] sm:$0xff]
      %v238 = vld [vmem:[%s220 + $0x50] sm:$0xff]
      %v239 = vld [vmem:[%s220 + $0x58] sm:$0xff]
      %v240 = vld [vmem:[%s220 + $0x60] sm:$0xff]
      %v241 = vld [vmem:[%s220 + $0x68] sm:$0xff]
      %v242 = vld [vmem:[%s220 + $0x70] sm:$0xff]
      %v243 = vld [vmem:[%s220 + $0x78] sm:$0xff]
      %v244 = vld [vmem:[%s220 + $0x80] sm:$0xff]
      %v245 = vld [vmem:[%s220 + $0x88] sm:$0xff]
      %v246 = vld [vmem:[%s220 + $0x90] sm:$0xff]
      %v247 = vld [vmem:[%s220 + $0x98] sm:$0xff]
      %v248 = vld [vmem:[%s220 + $0xa0] sm:$0xff]
      %v249 = vld [vmem:[%s220 + $0xa8] sm:$0xff]
      %v250 = vld [vmem:[%s220 + $0xb0] sm:$0xff]
      %v251 = vld [vmem:[%s220 + $0xb8] sm:$0xff]
      %v252 = vld [vmem:[%s220 + $0xc0] sm:$0xff]
      %v253 = vld [vmem:[%s220 + $0xc8] sm:$0xff]
      %v254 = vld [vmem:[%s220 + $0xd0] sm:$0xff]
      %v255 = vld [vmem:[%s220 + $0xd8] sm:$0xff]
      %v256 = vld [vmem:[%s220 + $0xe0] sm:$0xff]
      %v257 = vld [vmem:[%s220 + $0xe8] sm:$0xff]
      %v258 = vld [vmem:[%s220 + $0xf0] sm:$0xff]
      %v259 = vld [vmem:[%s220 + $0xf8] sm:$0xff]
      %v260 = vld [vmem:[%s220 + $0x100] sm:$0xff]
      %v261 = vld [vmem:[%s220 + $0x108] sm:$0xff]
      %v262 = vld [vmem:[%s220 + $0x110] sm:$0xff]
      %v263 = vld [vmem:[%s220 + $0x118] sm:$0xff]
      %v264 = vld [vmem:[%s220 + $0x120] sm:$0xff]
      %v265 = vld [vmem:[%s220 + $0x128] sm:$0xff]
      %v266 = vld [vmem:[%s220 + $0x130] sm:$0xff]
      %v267 = vld [vmem:[%s220 + $0x138] sm:$0xff]
      %v268 = vld [vmem:[%s220 + $0x140] sm:$0xff]
      %v269 = vld [vmem:[%s220 + $0x148] sm:$0xff]
      %v270 = vld [vmem:[%s220 + $0x150] sm:$0xff]
      %v271 = vld [vmem:[%s220 + $0x158] sm:$0xff]
      %v272 = vld [vmem:[%s220 + $0x160] sm:$0xff]
      %v273 = vld [vmem:[%s220 + $0x168] sm:$0xff]
      %v274 = vld [vmem:[%s220 + $0x170] sm:$0xff]
      %v275 = vld [vmem:[%s220 + $0x178] sm:$0xff]
      %v276 = vld [vmem:[%s220 + $0x180] sm:$0xff]
      %v277 = vld [vmem:[%s220 + $0x188] sm:$0xff]
      %v278 = vld [vmem:[%s220 + $0x190] sm:$0xff]
      %v279 = vld [vmem:[%s220 + $0x198] sm:$0xff]
      %v280 = vld [vmem:[%s220 + $0x1a0] sm:$0xff]
      %v281 = vld [vmem:[%s220 + $0x1a8] sm:$0xff]
      %v282 = vld [vmem:[%s220 + $0x1b0] sm:$0xff]
      %v283 = vld [vmem:[%s220 + $0x1b8] sm:$0xff]
      %v284 = vld [vmem:[%s220 + $0x1c0] sm:$0xff]
      %v285 = vld [vmem:[%s220 + $0x1c8] sm:$0xff]
      %v286 = vld [vmem:[%s220 + $0x1d0] sm:$0xff]
      %v287 = vld [vmem:[%s220 + $0x1d8] sm:$0xff]
      %v288 = vld [vmem:[%s220 + $0x1e0] sm:$0xff]
      %v289 = vld [vmem:[%s220 + $0x1e8] sm:$0xff]
      %v290 = vld [vmem:[%s220 + $0x1f0] sm:$0xff]
      %v291 = vld [vmem:[%s220 + $0x1f8] sm:$0xff]
      %v292 = vld [vmem:[%s220 + $0x200] sm:$0xff]
      %v293 = vld [vmem:[%s220 + $0x208] sm:$0xff]
      %v294 = vld [vmem:[%s220 + $0x210] sm:$0xff]
      %v295 = vld [vmem:[%s220 + $0x218] sm:$0xff]
      %v296 = vld [vmem:[%s220 + $0x220] sm:$0xff]
      %v297 = vld [vmem:[%s220 + $0x228] sm:$0xff]
      %v298 = vld [vmem:[%s220 + $0x230] sm:$0xff]
      %v299 = vld [vmem:[%s220 + $0x238] sm:$0xff]
      %v300 = vld [vmem:[%s220 + $0x240] sm:$0xff]
      %v301 = vld [vmem:[%s220 + $0x248] sm:$0xff]
      %v302 = vld [vmem:[%s220 + $0x250] sm:$0xff]
      %v303 = vld [vmem:[%s220 + $0x258] sm:$0xff]
      %v304 = vld [vmem:[%s220 + $0x260] sm:$0xff]
      %v305 = vld [vmem:[%s220 + $0x268] sm:$0xff]
      %v306 = vld [vmem:[%s220 + $0x270] sm:$0xff]
      %v307 = vld [vmem:[%s220 + $0x278] sm:$0xff]
      %v308 = vld [vmem:[%s220 + $0x280] sm:$0xff]
      %v309 = vld [vmem:[%s220 + $0x288] sm:$0xff]
      %v310 = vld [vmem:[%s220 + $0x290] sm:$0xff]
      %v311 = vld [vmem:[%s220 + $0x298] sm:$0xff]
      %v312 = vld [vmem:[%s220 + $0x2a0] sm:$0xff]
      %v313 = vld [vmem:[%s220 + $0x2a8] sm:$0xff]
      %v314 = vld [vmem:[%s220 + $0x2b0] sm:$0xff]
      %v315 = vld [vmem:[%s220 + $0x2b8] sm:$0xff]
      %v316 = vld [vmem:[%s220 + $0x2c0] sm:$0xff]
      %v317 = vld [vmem:[%s220 + $0x2c8] sm:$0xff]
      %v318 = vld [vmem:[%s220 + $0x2d0] sm:$0xff]
      %v319 = vld [vmem:[%s220 + $0x2d8] sm:$0xff]
      %v320 = vld [vmem:[%s220 + $0x2e0] sm:$0xff]
      %v321 = vld [vmem:[%s220 + $0x2e8] sm:$0xff]
      %v322 = vld [vmem:[%s220 + $0x2f0] sm:$0xff]
      %v323 = vld [vmem:[%s220 + $0x2f8] sm:$0xff]
      %v324 = vld [vmem:[%s220 + $0x300] sm:$0xff]
      %v325 = vld [vmem:[%s220 + $0x308] sm:$0xff]
      %v326 = vld [vmem:[%s220 + $0x310] sm:$0xff]
      %v327 = vld [vmem:[%s220 + $0x318] sm:$0xff]
      %v328 = vld [vmem:[%s220 + $0x320] sm:$0xff]
      %v329 = vld [vmem:[%s220 + $0x328] sm:$0xff]
      %v330 = vld [vmem:[%s220 + $0x330] sm:$0xff]
      %v331 = vld [vmem:[%s220 + $0x338] sm:$0xff]
      %v332 = vld [vmem:[%s220 + $0x340] sm:$0xff]
      %v333 = vld [vmem:[%s220 + $0x348] sm:$0xff]
      %v334 = vld [vmem:[%s220 + $0x350] sm:$0xff]
      %v335 = vld [vmem:[%s220 + $0x358] sm:$0xff]
      %v336 = vld [vmem:[%s220 + $0x360] sm:$0xff]
      %v337 = vld [vmem:[%s220 + $0x368] sm:$0xff]
      %v338 = vld [vmem:[%s220 + $0x370] sm:$0xff]
      %v339 = vld [vmem:[%s220 + $0x378] sm:$0xff]
      %v340 = vld [vmem:[%s220 + $0x380] sm:$0xff]
      %v341 = vld [vmem:[%s220 + $0x388] sm:$0xff]
      %v342 = vld [vmem:[%s220 + $0x390] sm:$0xff]
      %v343 = vld [vmem:[%s220 + $0x398] sm:$0xff]
      %v344 = vld [vmem:[%s220 + $0x3a0] sm:$0xff]
      %v345 = vld [vmem:[%s220 + $0x3a8] sm:$0xff]
      %v346 = vld [vmem:[%s220 + $0x3b0] sm:$0xff]
      %v347 = vld [vmem:[%s220 + $0x3b8] sm:$0xff]
      %v348 = vld [vmem:[%s220 + $0x3c0] sm:$0xff]
      %v349 = vld [vmem:[%s220 + $0x3c8] sm:$0xff]
      %v350 = vld [vmem:[%s220 + $0x3d0] sm:$0xff]
      %v351 = vld [vmem:[%s220 + $0x3d8] sm:$0xff]
      %v352 = vld [vmem:[%s220 + $0x3e0] sm:$0xff]
      %v353 = vld [vmem:[%s220 + $0x3e8] sm:$0xff]
      %v354 = vld [vmem:[%s220 + $0x3f0] sm:$0xff]
      %v355 = vld [vmem:[%s220 + $0x3f8] sm:$0xff]
      %v356 = vld [vmem:[%s1] sm:$0xff]
      %v357 = vld [vmem:[%s1 + $0x8] sm:$0xff]
      %v358 = vld [vmem:[%s1 + $0x10] sm:$0xff]
      %v359 = vld [vmem:[%s1 + $0x18] sm:$0x7]
      %v360 = vld [vmem:[%s2] sm:$0x1]
      %v362 = vlaneseq
      %v363 = vshrl.u32 %v362, 7
      %v364 = vsub.s32 0, %v363
      %v365 = vrot.slane %v360, %v364
      %vm367 = vcmask 220160
      %v369 = vsel %vm367, %v228, 0
      %v372 = vsel %vm367, %v229, 0
      %v375 = vsel %vm367, %v230, 0
      %v378 = vsel %vm367, %v231, 0
      %v381 = vsel %vm367, %v232, 0
      %v384 = vsel %vm367, %v233, 0
      %v387 = vsel %vm367, %v234, 0
      %v390 = vsel %vm367, %v235, 0
      %v393 = vsel %vm367, %v236, 0
      %v396 = vsel %vm367, %v237, 0
      %v399 = vsel %vm367, %v238, 0
      %v402 = vsel %vm367, %v239, 0
      %v405 = vsel %vm367, %v240, 0
      %v408 = vsel %vm367, %v241, 0
      %v411 = vsel %vm367, %v242, 0
      %v414 = vsel %vm367, %v243, 0
      %v417 = vsel %vm367, %v244, 0
      %v420 = vsel %vm367, %v245, 0
      %v423 = vsel %vm367, %v246, 0
      %v426 = vsel %vm367, %v247, 0
      %v429 = vsel %vm367, %v248, 0
      %v432 = vsel %vm367, %v249, 0
      %v435 = vsel %vm367, %v250, 0
      %v438 = vsel %vm367, %v251, 0
      %v441 = vsel %vm367, %v252, 0
      %v444 = vsel %vm367, %v253, 0
      %v447 = vsel %vm367, %v254, 0
      %v450 = vsel %vm367, %v255, 0
      %v453 = vsel %vm367, %v256, 0
      %v456 = vsel %vm367, %v257, 0
      %v459 = vsel %vm367, %v258, 0
      %v462 = vsel %vm367, %v259, 0
      %v465 = vsel %vm367, %v260, 0
      %v468 = vsel %vm367, %v261, 0
      %v471 = vsel %vm367, %v262, 0
      %v474 = vsel %vm367, %v263, 0
      %v477 = vsel %vm367, %v264, 0
      %v480 = vsel %vm367, %v265, 0
      %v483 = vsel %vm367, %v266, 0
      %v486 = vsel %vm367, %v267, 0
      %v489 = vsel %vm367, %v268, 0
      %v492 = vsel %vm367, %v269, 0
      %v495 = vsel %vm367, %v270, 0
      %v498 = vsel %vm367, %v271, 0
      %v501 = vsel %vm367, %v272, 0
      %v504 = vsel %vm367, %v273, 0
      %v507 = vsel %vm367, %v274, 0
      %v510 = vsel %vm367, %v275, 0
      %v513 = vsel %vm367, %v276, 0
      %v516 = vsel %vm367, %v277, 0
      %v519 = vsel %vm367, %v278, 0
      %v522 = vsel %vm367, %v279, 0
      %v525 = vsel %vm367, %v280, 0
      %v528 = vsel %vm367, %v281, 0
      %v531 = vsel %vm367, %v282, 0
      %v534 = vsel %vm367, %v283, 0
      %v537 = vsel %vm367, %v284, 0
      %v540 = vsel %vm367, %v285, 0
      %v543 = vsel %vm367, %v286, 0
      %v546 = vsel %vm367, %v287, 0
      %v549 = vsel %vm367, %v288, 0
      %v552 = vsel %vm367, %v289, 0
      %v555 = vsel %vm367, %v290, 0
      %v558 = vsel %vm367, %v291, 0
      %v561 = vsel %vm367, %v292, 0
      %v564 = vsel %vm367, %v293, 0
      %v567 = vsel %vm367, %v294, 0
      %v570 = vsel %vm367, %v295, 0
      %v573 = vsel %vm367, %v296, 0
      %v576 = vsel %vm367, %v297, 0
      %v579 = vsel %vm367, %v298, 0
      %v582 = vsel %vm367, %v299, 0
      %v585 = vsel %vm367, %v300, 0
      %v588 = vsel %vm367, %v301, 0
      %v591 = vsel %vm367, %v302, 0
      %v594 = vsel %vm367, %v303, 0
      %v597 = vsel %vm367, %v304, 0
      %v600 = vsel %vm367, %v305, 0
      %v603 = vsel %vm367, %v306, 0
      %v606 = vsel %vm367, %v307, 0
      %v609 = vsel %vm367, %v308, 0
      %v612 = vsel %vm367, %v309, 0
      %v615 = vsel %vm367, %v310, 0
      %v618 = vsel %vm367, %v311, 0
      %v621 = vsel %vm367, %v312, 0
      %v624 = vsel %vm367, %v313, 0
      %v627 = vsel %vm367, %v314, 0
      %v630 = vsel %vm367, %v315, 0
      %v633 = vsel %vm367, %v316, 0
      %v636 = vsel %vm367, %v317, 0
      %v639 = vsel %vm367, %v318, 0
      %v642 = vsel %vm367, %v319, 0
      %v645 = vsel %vm367, %v320, 0
      %v648 = vsel %vm367, %v321, 0
      %v651 = vsel %vm367, %v322, 0
      %v654 = vsel %vm367, %v323, 0
      %v657 = vsel %vm367, %v324, 0
      %v660 = vsel %vm367, %v325, 0
      %v663 = vsel %vm367, %v326, 0
      %v666 = vsel %vm367, %v327, 0
      %v669 = vsel %vm367, %v328, 0
      %v672 = vsel %vm367, %v329, 0
      %v675 = vsel %vm367, %v330, 0
      %v678 = vsel %vm367, %v331, 0
      %v681 = vsel %vm367, %v332, 0
      %v684 = vsel %vm367, %v333, 0
      %v687 = vsel %vm367, %v334, 0
      %v690 = vsel %vm367, %v335, 0
      %v693 = vsel %vm367, %v336, 0
      %v696 = vsel %vm367, %v337, 0
      %v699 = vsel %vm367, %v338, 0
      %v702 = vsel %vm367, %v339, 0
      %v705 = vsel %vm367, %v340, 0
      %v708 = vsel %vm367, %v341, 0
      %v711 = vsel %vm367, %v342, 0
      %v714 = vsel %vm367, %v343, 0
      %v717 = vsel %vm367, %v344, 0
      %v720 = vsel %vm367, %v345, 0
      %v723 = vsel %vm367, %v346, 0
      %v726 = vsel %vm367, %v347, 0
      %v729 = vsel %vm367, %v348, 0
      %v732 = vsel %vm367, %v349, 0
      %v735 = vsel %vm367, %v350, 0
      %v738 = vsel %vm367, %v351, 0
      %v741 = vsel %vm367, %v352, 0
      %v744 = vsel %vm367, %v353, 0
      %v747 = vsel %vm367, %v354, 0
      %v750 = vsel %vm367, %v355, 0
      %vm752 = vcmask 1042432
      %v754 = vsel %vm752, %v359, 0
      %756 = vmatprep.subr.mxu0 0.0
      %757 = vmatpush1.msra.mxu0 %v356
      %758 = vmatprep.subr.mxu0 0.0
      %759 = vmatpush1.msra.mxu0 %v357
      %760 = vmatprep.subr.mxu0 0.0
      %761 = vmatpush1.msra.mxu0 %v358
      %762 = vmatprep.subr.mxu0 0.0
      %763 = vmatpush1.msra.mxu0 %v754
      %764 = vmatprep.subr.mxu0 0.0
      %765 = vmatpush1.msra.mxu0 0.0
      %766 = vmatprep.subr.mxu0 0.0
      %767 = vmatpush1.msra.mxu0 0.0
      %768 = vmatprep.subr.mxu0 0.0
      %769 = vmatpush1.msra.mxu0 0.0
      %770 = vmatprep.subr.mxu0 0.0
      %771 = vmatpush1.msra.mxu0 0.0
      %772 = vmatprep.subr.mxu0 0.0
      %773 = vmatpush1.msra.mxu0 0.0
      %774 = vmatprep.subr.mxu0 0.0
      %775 = vmatpush1.msra.mxu0 0.0
      %776 = vmatprep.subr.mxu0 0.0
      %777 = vmatpush1.msra.mxu0 0.0
      %778 = vmatprep.subr.mxu0 0.0
      %779 = vmatpush1.msra.mxu0 0.0
      %780 = vmatprep.subr.mxu0 0.0
      %781 = vmatpush1.msra.mxu0 0.0
      %782 = vmatprep.subr.mxu0 0.0
      %783 = vmatpush1.msra.mxu0 0.0
      %784 = vmatprep.subr.mxu0 0.0
      %785 = vmatpush1.msra.mxu0 0.0
      %786 = vmatprep.subr.mxu0 0.0
      %787 = vmatpush1.msra.mxu0 0.0
      %788 = vmatprep.subr.mxu0 0.0
      %789 = vmatpush1.msra.mxu0 0.0
      %790 = vmatprep.subr.mxu0 0.0
      %791 = vmatpush1.msra.mxu0 0.0
      %792 = vmatprep.subr.mxu0 0.0
      %793 = vmatpush1.msra.mxu0 0.0
      %794 = vmatprep.subr.mxu0 0.0
      %795 = vmatpush1.msra.mxu0 0.0
      %796 = vmatprep.subr.mxu0 0.0
      %797 = vmatpush1.msra.mxu0 0.0
      %798 = vmatprep.subr.mxu0 0.0
      %799 = vmatpush1.msra.mxu0 0.0
      %800 = vmatprep.subr.mxu0 0.0
      %801 = vmatpush1.msra.mxu0 0.0
      %802 = vmatprep.subr.mxu0 0.0
      %803 = vmatpush1.msra.mxu0 0.0
      %804 = vmatprep.subr.mxu0 0.0
      %805 = vmatpush1.msra.mxu0 0.0
      %806 = vmatprep.subr.mxu0 0.0
      %807 = vmatpush1.msra.mxu0 0.0
      %808 = vmatprep.subr.mxu0 0.0
      %809 = vmatpush1.msra.mxu0 0.0
      %810 = vmatprep.subr.mxu0 0.0
      %811 = vmatpush1.msra.mxu0 0.0
      %812 = vmatprep.subr.mxu0 0.0
      %813 = vmatpush1.msra.mxu0 0.0
      %814 = vmatprep.subr.mxu0 0.0
      %815 = vmatpush1.msra.mxu0 0.0
      %816 = vmatprep.subr.mxu0 0.0
      %817 = vmatpush1.msra.mxu0 0.0
      %818 = vmatprep.subr.mxu0 0.0
      %819 = vmatpush1.msra.mxu0 0.0
      %820 = vmatprep.mubr.f32.mxu0 0.0
      %821 = vmatmul.mubr.f32.gmra.mrb[0].mxu0 %v369
      %v822 = vpop.f32.mrb[0].mxu0
      %v823 = vadd.f32 %v365, %v822
      %v824 = vpop.f32.mrb[0].mxu0
      %825 = vmatprep.mubr.f32.mxu0 0.0
      %826 = vmatmul.mubr.f32.gmra.mrb[0].mxu0 %v372
      %v827 = vpop.f32.mrb[0].mxu0
      %v828 = vadd.f32 %v365, %v827
      %v829 = vpop.f32.mrb[0].mxu0
      %830 = vmatprep.mubr.f32.mxu0 0.0
      %831 = vmatmul.mubr.f32.gmra.mrb[0].mxu0 %v375
      %v832 = vpop.f32.mrb[0].mxu0
      %v833 = vadd.f32 %v365, %v832
      %v834 = vpop.f32.mrb[0].mxu0
      %835 = vmatprep.mubr.f32.mxu0 0.0
      %836 = vmatmul.mubr.f32.gmra.mrb[0].mxu0 %v378
      %v837 = vpop.f32.mrb[0].mxu0
      %v838 = vadd.f32 %v365, %v837
      %v839 = vpop.f32.mrb[0].mxu0
      %840 = vmatprep.mubr.f32.mxu0 0.0
      %841 = vmatmul.mubr.f32.gmra.mrb[0].mxu0 %v381
      %v842 = vpop.f32.mrb[0].mxu0
      %v843 = vadd.f32 %v365, %v842
      %v844 = vpop.f32.mrb[0].mxu0
      %845 = vmatprep.mubr.f32.mxu0 0.0
      %846 = vmatmul.mubr.f32.gmra.mrb[0].mxu0 %v384
      %v847 = vpop.f32.mrb[0].mxu0
      %v848 = vadd.f32 %v365, %v847
      %v849 = vpop.f32.mrb[0].mxu0
      %850 = vmatprep.mubr.f32.mxu0 0.0
      %851 = vmatmul.mubr.f32.gmra.mrb[0].mxu0 %v387
      %v852 = vpop.f32.mrb[0].mxu0
      %v853 = vadd.f32 %v365, %v852
      %v854 = vpop.f32.mrb[0].mxu0
      %855 = vmatprep.mubr.f32.mxu0 0.0
      %856 = vmatmul.mubr.f32.gmra.mrb[0].mxu0 %v390
      %v857 = vpop.f32.mrb[0].mxu0
      %v858 = vadd.f32 %v365, %v857
      %v859 = vpop.f32.mrb[0].mxu0
      %860 = vmatprep.mubr.f32.mxu0 0.0
      %861 = vmatmul.mubr.f32.gmra.mrb[0].mxu0 %v393
      %v862 = vpop.f32.mrb[0].mxu0
      %v863 = vadd.f32 %v365, %v862
      %v864 = vpop.f32.mrb[0].mxu0
      %865 = vmatprep.mubr.f32.mxu0 0.0
      %866 = vmatmul.mubr.f32.gmra.mrb[0].mxu0 %v396
      %v867 = vpop.f32.mrb[0].mxu0
      %v868 = vadd.f32 %v365, %v867
      %v869 = vpop.f32.mrb[0].mxu0
      %870 = vmatprep.mubr.f32.mxu0 0.0
      %871 = vmatmul.mubr.f32.gmra.mrb[0].mxu0 %v399
      %v872 = vpop.f32.mrb[0].mxu0
      %v873 = vadd.f32 %v365, %v872
      %v874 = vpop.f32.mrb[0].mxu0
      %875 = vmatprep.mubr.f32.mxu0 0.0
      %876 = vmatmul.mubr.f32.gmra.mrb[0].mxu0 %v402
      %v877 = vpop.f32.mrb[0].mxu0
      %v878 = vadd.f32 %v365, %v877
      %v879 = vpop.f32.mrb[0].mxu0
      %880 = vmatprep.mubr.f32.mxu0 0.0
      %881 = vmatmul.mubr.f32.gmra.mrb[0].mxu0 %v405
      %v882 = vpop.f32.mrb[0].mxu0
      %v883 = vadd.f32 %v365, %v882
      %v884 = vpop.f32.mrb[0].mxu0
      %885 = vmatprep.mubr.f32.mxu0 0.0
      %886 = vmatmul.mubr.f32.gmra.mrb[0].mxu0 %v408
      %v887 = vpop.f32.mrb[0].mxu0
      %v888 = vadd.f32 %v365, %v887
      %v889 = vpop.f32.mrb[0].mxu0
      %890 = vmatprep.mubr.f32.mxu0 0.0
      %891 = vmatmul.mubr.f32.gmra.mrb[0].mxu0 %v411
      %v892 = vpop.f32.mrb[0].mxu0
      %v893 = vadd.f32 %v365, %v892
      %v894 = vpop.f32.mrb[0].mxu0
      %895 = vmatprep.mubr.f32.mxu0 0.0
      %896 = vmatmul.mubr.f32.gmra.mrb[0].mxu0 %v414
      %v897 = vpop.f32.mrb[0].mxu0
      %v898 = vadd.f32 %v365, %v897
      %v899 = vpop.f32.mrb[0].mxu0
      %900 = vmatprep.mubr.f32.mxu0 0.0
      %901 = vmatmul.mubr.f32.gmra.mrb[0].mxu0 %v417
      %v902 = vpop.f32.mrb[0].mxu0
      %v903 = vadd.f32 %v365, %v902
      %v904 = vpop.f32.mrb[0].mxu0
      %905 = vmatprep.mubr.f32.mxu0 0.0
      %906 = vmatmul.mubr.f32.gmra.mrb[0].mxu0 %v420
      %v907 = vpop.f32.mrb[0].mxu0
      %v908 = vadd.f32 %v365, %v907
      %v909 = vpop.f32.mrb[0].mxu0
      %910 = vmatprep.mubr.f32.mxu0 0.0
      %911 = vmatmul.mubr.f32.gmra.mrb[0].mxu0 %v423
      %v912 = vpop.f32.mrb[0].mxu0
      %v913 = vadd.f32 %v365, %v912
      %v914 = vpop.f32.mrb[0].mxu0
      %915 = vmatprep.mubr.f32.mxu0 0.0
      %916 = vmatmul.mubr.f32.gmra.mrb[0].mxu0 %v426
      %v917 = vpop.f32.mrb[0].mxu0
      %v918 = vadd.f32 %v365, %v917
      %v919 = vpop.f32.mrb[0].mxu0
      %920 = vmatprep.mubr.f32.mxu0 0.0
      %921 = vmatmul.mubr.f32.gmra.mrb[0].mxu0 %v429
      %v922 = vpop.f32.mrb[0].mxu0
      %v923 = vadd.f32 %v365, %v922
      %v924 = vpop.f32.mrb[0].mxu0
      %925 = vmatprep.mubr.f32.mxu0 0.0
      %926 = vmatmul.mubr.f32.gmra.mrb[0].mxu0 %v432
      %v927 = vpop.f32.mrb[0].mxu0
      %v928 = vadd.f32 %v365, %v927
      %v929 = vpop.f32.mrb[0].mxu0
      %930 = vmatprep.mubr.f32.mxu0 0.0
      %931 = vmatmul.mubr.f32.gmra.mrb[0].mxu0 %v435
      %v932 = vpop.f32.mrb[0].mxu0
      %v933 = vadd.f32 %v365, %v932
      %v934 = vpop.f32.mrb[0].mxu0
      %935 = vmatprep.mubr.f32.mxu0 0.0
      %936 = vmatmul.mubr.f32.gmra.mrb[0].mxu0 %v438
      %v937 = vpop.f32.mrb[0].mxu0
      %v938 = vadd.f32 %v365, %v937
      %v939 = vpop.f32.mrb[0].mxu0
      %940 = vmatprep.mubr.f32.mxu0 0.0
      %941 = vmatmul.mubr.f32.gmra.mrb[0].mxu0 %v441
      %v942 = vpop.f32.mrb[0].mxu0
      %v943 = vadd.f32 %v365, %v942
      %v944 = vpop.f32.mrb[0].mxu0
      %945 = vmatprep.mubr.f32.mxu0 0.0
      %946 = vmatmul.mubr.f32.gmra.mrb[0].mxu0 %v444
      %v947 = vpop.f32.mrb[0].mxu0
      %v948 = vadd.f32 %v365, %v947
      %v949 = vpop.f32.mrb[0].mxu0
      %950 = vmatprep.mubr.f32.mxu0 0.0
      %951 = vmatmul.mubr.f32.gmra.mrb[0].mxu0 %v447
      %v952 = vpop.f32.mrb[0].mxu0
      %v953 = vadd.f32 %v365, %v952
      %v954 = vpop.f32.mrb[0].mxu0
      %955 = vmatprep.mubr.f32.mxu0 0.0
      %956 = vmatmul.mubr.f32.gmra.mrb[0].mxu0 %v450
      %v957 = vpop.f32.mrb[0].mxu0
      %v958 = vadd.f32 %v365, %v957
      %v959 = vpop.f32.mrb[0].mxu0
      %960 = vmatprep.mubr.f32.mxu0 0.0
      %961 = vmatmul.mubr.f32.gmra.mrb[0].mxu0 %v453
      %v962 = vpop.f32.mrb[0].mxu0
      %v963 = vadd.f32 %v365, %v962
      %v964 = vpop.f32.mrb[0].mxu0
      %965 = vmatprep.mubr.f32.mxu0 0.0
      %966 = vmatmul.mubr.f32.gmra.mrb[0].mxu0 %v456
      %v967 = vpop.f32.mrb[0].mxu0
      %v968 = vadd.f32 %v365, %v967
      %v969 = vpop.f32.mrb[0].mxu0
      %970 = vmatprep.mubr.f32.mxu0 0.0
      %971 = vmatmul.mubr.f32.gmra.mrb[0].mxu0 %v459
      %v972 = vpop.f32.mrb[0].mxu0
      %v973 = vadd.f32 %v365, %v972
      %v974 = vpop.f32.mrb[0].mxu0
      %975 = vmatprep.mubr.f32.mxu0 0.0
      %976 = vmatmul.mubr.f32.gmra.mrb[0].mxu0 %v462
      %v977 = vpop.f32.mrb[0].mxu0
      %v978 = vadd.f32 %v365, %v977
      %v979 = vpop.f32.mrb[0].mxu0
      %980 = vmatprep.mubr.f32.mxu0 0.0
      %981 = vmatmul.mubr.f32.gmra.mrb[0].mxu0 %v465
      %v982 = vpop.f32.mrb[0].mxu0
      %v983 = vadd.f32 %v365, %v982
      %v984 = vpop.f32.mrb[0].mxu0
      %985 = vmatprep.mubr.f32.mxu0 0.0
      %986 = vmatmul.mubr.f32.gmra.mrb[0].mxu0 %v468
      %v987 = vpop.f32.mrb[0].mxu0
      %v988 = vadd.f32 %v365, %v987
      %v989 = vpop.f32.mrb[0].mxu0
      %990 = vmatprep.mubr.f32.mxu0 0.0
      %991 = vmatmul.mubr.f32.gmra.mrb[0].mxu0 %v471
      %v992 = vpop.f32.mrb[0].mxu0
      %v993 = vadd.f32 %v365, %v992
      %v994 = vpop.f32.mrb[0].mxu0
      %995 = vmatprep.mubr.f32.mxu0 0.0
      %996 = vmatmul.mubr.f32.gmra.mrb[0].mxu0 %v474
      %v997 = vpop.f32.mrb[0].mxu0
      %v998 = vadd.f32 %v365, %v997
      %v999 = vpop.f32.mrb[0].mxu0
      %1000 = vmatprep.mubr.f32.mxu0 0.0
      %1001 = vmatmul.mubr.f32.gmra.mrb[0].mxu0 %v477
      %v1002 = vpop.f32.mrb[0].mxu0
      %v1003 = vadd.f32 %v365, %v1002
      %v1004 = vpop.f32.mrb[0].mxu0
      %1005 = vmatprep.mubr.f32.mxu0 0.0
      %1006 = vmatmul.mubr.f32.gmra.mrb[0].mxu0 %v480
      %v1007 = vpop.f32.mrb[0].mxu0
      %v1008 = vadd.f32 %v365, %v1007
      %v1009 = vpop.f32.mrb[0].mxu0
      %1010 = vmatprep.mubr.f32.mxu0 0.0
      %1011 = vmatmul.mubr.f32.gmra.mrb[0].mxu0 %v483
      %v1012 = vpop.f32.mrb[0].mxu0
      %v1013 = vadd.f32 %v365, %v1012
      %v1014 = vpop.f32.mrb[0].mxu0
      %1015 = vmatprep.mubr.f32.mxu0 0.0
      %1016 = vmatmul.mubr.f32.gmra.mrb[0].mxu0 %v486
      %v1017 = vpop.f32.mrb[0].mxu0
      %v1018 = vadd.f32 %v365, %v1017
      %v1019 = vpop.f32.mrb[0].mxu0
      %1020 = vmatprep.mubr.f32.mxu0 0.0
      %1021 = vmatmul.mubr.f32.gmra.mrb[0].mxu0 %v489
      %v1022 = vpop.f32.mrb[0].mxu0
      %v1023 = vadd.f32 %v365, %v1022
      %v1024 = vpop.f32.mrb[0].mxu0
      %1025 = vmatprep.mubr.f32.mxu0 0.0
      %1026 = vmatmul.mubr.f32.gmra.mrb[0].mxu0 %v492
      %v1027 = vpop.f32.mrb[0].mxu0
      %v1028 = vadd.f32 %v365, %v1027
      %v1029 = vpop.f32.mrb[0].mxu0
      %1030 = vmatprep.mubr.f32.mxu0 0.0
      %1031 = vmatmul.mubr.f32.gmra.mrb[0].mxu0 %v495
      %v1032 = vpop.f32.mrb[0].mxu0
      %v1033 = vadd.f32 %v365, %v1032
      %v1034 = vpop.f32.mrb[0].mxu0
      %1035 = vmatprep.mubr.f32.mxu0 0.0
      %1036 = vmatmul.mubr.f32.gmra.mrb[0].mxu0 %v498
      %v1037 = vpop.f32.mrb[0].mxu0
      %v1038 = vadd.f32 %v365, %v1037
      %v1039 = vpop.f32.mrb[0].mxu0
      %1040 = vmatprep.mubr.f32.mxu0 0.0
      %1041 = vmatmul.mubr.f32.gmra.mrb[0].mxu0 %v501
      %v1042 = vpop.f32.mrb[0].mxu0
      %v1043 = vadd.f32 %v365, %v1042
      %v1044 = vpop.f32.mrb[0].mxu0
      %1045 = vmatprep.mubr.f32.mxu0 0.0
      %1046 = vmatmul.mubr.f32.gmra.mrb[0].mxu0 %v504
      %v1047 = vpop.f32.mrb[0].mxu0
      %v1048 = vadd.f32 %v365, %v1047
      %v1049 = vpop.f32.mrb[0].mxu0
      %1050 = vmatprep.mubr.f32.mxu0 0.0
      %1051 = vmatmul.mubr.f32.gmra.mrb[0].mxu0 %v507
      %v1052 = vpop.f32.mrb[0].mxu0
      %v1053 = vadd.f32 %v365, %v1052
      %v1054 = vpop.f32.mrb[0].mxu0
      %1055 = vmatprep.mubr.f32.mxu0 0.0
      %1056 = vmatmul.mubr.f32.gmra.mrb[0].mxu0 %v510
      %v1057 = vpop.f32.mrb[0].mxu0
      %v1058 = vadd.f32 %v365, %v1057
      %v1059 = vpop.f32.mrb[0].mxu0
      %1060 = vmatprep.mubr.f32.mxu0 0.0
      %1061 = vmatmul.mubr.f32.gmra.mrb[0].mxu0 %v513
      %v1062 = vpop.f32.mrb[0].mxu0
      %v1063 = vadd.f32 %v365, %v1062
      %v1064 = vpop.f32.mrb[0].mxu0
      %1065 = vmatprep.mubr.f32.mxu0 0.0
      %1066 = vmatmul.mubr.f32.gmra.mrb[0].mxu0 %v516
      %v1067 = vpop.f32.mrb[0].mxu0
      %v1068 = vadd.f32 %v365, %v1067
      %v1069 = vpop.f32.mrb[0].mxu0
      %1070 = vmatprep.mubr.f32.mxu0 0.0
      %1071 = vmatmul.mubr.f32.gmra.mrb[0].mxu0 %v519
      %v1072 = vpop.f32.mrb[0].mxu0
      %v1073 = vadd.f32 %v365, %v1072
      %v1074 = vpop.f32.mrb[0].mxu0
      %1075 = vmatprep.mubr.f32.mxu0 0.0
      %1076 = vmatmul.mubr.f32.gmra.mrb[0].mxu0 %v522
      %v1077 = vpop.f32.mrb[0].mxu0
      %v1078 = vadd.f32 %v365, %v1077
      %v1079 = vpop.f32.mrb[0].mxu0
      %1080 = vmatprep.mubr.f32.mxu0 0.0
      %1081 = vmatmul.mubr.f32.gmra.mrb[0].mxu0 %v525
      %v1082 = vpop.f32.mrb[0].mxu0
      %v1083 = vadd.f32 %v365, %v1082
      %v1084 = vpop.f32.mrb[0].mxu0
      %1085 = vmatprep.mubr.f32.mxu0 0.0
      %1086 = vmatmul.mubr.f32.gmra.mrb[0].mxu0 %v528
      %v1087 = vpop.f32.mrb[0].mxu0
      %v1088 = vadd.f32 %v365, %v1087
      %v1089 = vpop.f32.mrb[0].mxu0
      %1090 = vmatprep.mubr.f32.mxu0 0.0
      %1091 = vmatmul.mubr.f32.gmra.mrb[0].mxu0 %v531
      %v1092 = vpop.f32.mrb[0].mxu0
      %v1093 = vadd.f32 %v365, %v1092
      %v1094 = vpop.f32.mrb[0].mxu0
      %1095 = vmatprep.mubr.f32.mxu0 0.0
      %1096 = vmatmul.mubr.f32.gmra.mrb[0].mxu0 %v534
      %v1097 = vpop.f32.mrb[0].mxu0
      %v1098 = vadd.f32 %v365, %v1097
      %v1099 = vpop.f32.mrb[0].mxu0
      %1100 = vmatprep.mubr.f32.mxu0 0.0
      %1101 = vmatmul.mubr.f32.gmra.mrb[0].mxu0 %v537
      %v1102 = vpop.f32.mrb[0].mxu0
      %v1103 = vadd.f32 %v365, %v1102
      %v1104 = vpop.f32.mrb[0].mxu0
      %1105 = vmatprep.mubr.f32.mxu0 0.0
      %1106 = vmatmul.mubr.f32.gmra.mrb[0].mxu0 %v540
      %v1107 = vpop.f32.mrb[0].mxu0
      %v1108 = vadd.f32 %v365, %v1107
      %v1109 = vpop.f32.mrb[0].mxu0
      %1110 = vmatprep.mubr.f32.mxu0 0.0
      %1111 = vmatmul.mubr.f32.gmra.mrb[0].mxu0 %v543
      %v1112 = vpop.f32.mrb[0].mxu0
      %v1113 = vadd.f32 %v365, %v1112
      %v1114 = vpop.f32.mrb[0].mxu0
      %1115 = vmatprep.mubr.f32.mxu0 0.0
      %1116 = vmatmul.mubr.f32.gmra.mrb[0].mxu0 %v546
      %v1117 = vpop.f32.mrb[0].mxu0
      %v1118 = vadd.f32 %v365, %v1117
      %v1119 = vpop.f32.mrb[0].mxu0
      %1120 = vmatprep.mubr.f32.mxu0 0.0
      %1121 = vmatmul.mubr.f32.gmra.mrb[0].mxu0 %v549
      %v1122 = vpop.f32.mrb[0].mxu0
      %v1123 = vadd.f32 %v365, %v1122
      %v1124 = vpop.f32.mrb[0].mxu0
      %1125 = vmatprep.mubr.f32.mxu0 0.0
      %1126 = vmatmul.mubr.f32.gmra.mrb[0].mxu0 %v552
      %v1127 = vpop.f32.mrb[0].mxu0
      %v1128 = vadd.f32 %v365, %v1127
      %v1129 = vpop.f32.mrb[0].mxu0
      %1130 = vmatprep.mubr.f32.mxu0 0.0
      %1131 = vmatmul.mubr.f32.gmra.mrb[0].mxu0 %v555
      %v1132 = vpop.f32.mrb[0].mxu0
      %v1133 = vadd.f32 %v365, %v1132
      %v1134 = vpop.f32.mrb[0].mxu0
      %1135 = vmatprep.mubr.f32.mxu0 0.0
      %1136 = vmatmul.mubr.f32.gmra.mrb[0].mxu0 %v558
      %v1137 = vpop.f32.mrb[0].mxu0
      %v1138 = vadd.f32 %v365, %v1137
      %v1139 = vpop.f32.mrb[0].mxu0
      %1140 = vmatprep.mubr.f32.mxu0 0.0
      %1141 = vmatmul.mubr.f32.gmra.mrb[0].mxu0 %v561
      %v1142 = vpop.f32.mrb[0].mxu0
      %v1143 = vadd.f32 %v365, %v1142
      %v1144 = vpop.f32.mrb[0].mxu0
      %1145 = vmatprep.mubr.f32.mxu0 0.0
      %1146 = vmatmul.mubr.f32.gmra.mrb[0].mxu0 %v564
      %v1147 = vpop.f32.mrb[0].mxu0
      %v1148 = vadd.f32 %v365, %v1147
      %v1149 = vpop.f32.mrb[0].mxu0
      %1150 = vmatprep.mubr.f32.mxu0 0.0
      %1151 = vmatmul.mubr.f32.gmra.mrb[0].mxu0 %v567
      %v1152 = vpop.f32.mrb[0].mxu0
      %v1153 = vadd.f32 %v365, %v1152
      %v1154 = vpop.f32.mrb[0].mxu0
      %1155 = vmatprep.mubr.f32.mxu0 0.0
      %1156 = vmatmul.mubr.f32.gmra.mrb[0].mxu0 %v570
      %v1157 = vpop.f32.mrb[0].mxu0
      %v1158 = vadd.f32 %v365, %v1157
      %v1159 = vpop.f32.mrb[0].mxu0
      %1160 = vmatprep.mubr.f32.mxu0 0.0
      %1161 = vmatmul.mubr.f32.gmra.mrb[0].mxu0 %v573
      %v1162 = vpop.f32.mrb[0].mxu0
      %v1163 = vadd.f32 %v365, %v1162
      %v1164 = vpop.f32.mrb[0].mxu0
      %1165 = vmatprep.mubr.f32.mxu0 0.0
      %1166 = vmatmul.mubr.f32.gmra.mrb[0].mxu0 %v576
      %v1167 = vpop.f32.mrb[0].mxu0
      %v1168 = vadd.f32 %v365, %v1167
      %v1169 = vpop.f32.mrb[0].mxu0
      %1170 = vmatprep.mubr.f32.mxu0 0.0
      %1171 = vmatmul.mubr.f32.gmra.mrb[0].mxu0 %v579
      %v1172 = vpop.f32.mrb[0].mxu0
      %v1173 = vadd.f32 %v365, %v1172
      %v1174 = vpop.f32.mrb[0].mxu0
      %1175 = vmatprep.mubr.f32.mxu0 0.0
      %1176 = vmatmul.mubr.f32.gmra.mrb[0].mxu0 %v582
      %v1177 = vpop.f32.mrb[0].mxu0
      %v1178 = vadd.f32 %v365, %v1177
      %v1179 = vpop.f32.mrb[0].mxu0
      %1180 = vmatprep.mubr.f32.mxu0 0.0
      %1181 = vmatmul.mubr.f32.gmra.mrb[0].mxu0 %v585
      %v1182 = vpop.f32.mrb[0].mxu0
      %v1183 = vadd.f32 %v365, %v1182
      %v1184 = vpop.f32.mrb[0].mxu0
      %1185 = vmatprep.mubr.f32.mxu0 0.0
      %1186 = vmatmul.mubr.f32.gmra.mrb[0].mxu0 %v588
      %v1187 = vpop.f32.mrb[0].mxu0
      %v1188 = vadd.f32 %v365, %v1187
      %v1189 = vpop.f32.mrb[0].mxu0
      %1190 = vmatprep.mubr.f32.mxu0 0.0
      %1191 = vmatmul.mubr.f32.gmra.mrb[0].mxu0 %v591
      %v1192 = vpop.f32.mrb[0].mxu0
      %v1193 = vadd.f32 %v365, %v1192
      %v1194 = vpop.f32.mrb[0].mxu0
      %1195 = vmatprep.mubr.f32.mxu0 0.0
      %1196 = vmatmul.mubr.f32.gmra.mrb[0].mxu0 %v594
      %v1197 = vpop.f32.mrb[0].mxu0
      %v1198 = vadd.f32 %v365, %v1197
      %v1199 = vpop.f32.mrb[0].mxu0
      %1200 = vmatprep.mubr.f32.mxu0 0.0
      %1201 = vmatmul.mubr.f32.gmra.mrb[0].mxu0 %v597
      %v1202 = vpop.f32.mrb[0].mxu0
      %v1203 = vadd.f32 %v365, %v1202
      %v1204 = vpop.f32.mrb[0].mxu0
      %1205 = vmatprep.mubr.f32.mxu0 0.0
      %1206 = vmatmul.mubr.f32.gmra.mrb[0].mxu0 %v600
      %v1207 = vpop.f32.mrb[0].mxu0
      %v1208 = vadd.f32 %v365, %v1207
      %v1209 = vpop.f32.mrb[0].mxu0
      %1210 = vmatprep.mubr.f32.mxu0 0.0
      %1211 = vmatmul.mubr.f32.gmra.mrb[0].mxu0 %v603
      %v1212 = vpop.f32.mrb[0].mxu0
      %v1213 = vadd.f32 %v365, %v1212
      %v1214 = vpop.f32.mrb[0].mxu0
      %1215 = vmatprep.mubr.f32.mxu0 0.0
      %1216 = vmatmul.mubr.f32.gmra.mrb[0].mxu0 %v606
      %v1217 = vpop.f32.mrb[0].mxu0
      %v1218 = vadd.f32 %v365, %v1217
      %v1219 = vpop.f32.mrb[0].mxu0
      %1220 = vmatprep.mubr.f32.mxu0 0.0
      %1221 = vmatmul.mubr.f32.gmra.mrb[0].mxu0 %v609
      %v1222 = vpop.f32.mrb[0].mxu0
      %v1223 = vadd.f32 %v365, %v1222
      %v1224 = vpop.f32.mrb[0].mxu0
      %1225 = vmatprep.mubr.f32.mxu0 0.0
      %1226 = vmatmul.mubr.f32.gmra.mrb[0].mxu0 %v612
      %v1227 = vpop.f32.mrb[0].mxu0
      %v1228 = vadd.f32 %v365, %v1227
      %v1229 = vpop.f32.mrb[0].mxu0
      %1230 = vmatprep.mubr.f32.mxu0 0.0
      %1231 = vmatmul.mubr.f32.gmra.mrb[0].mxu0 %v615
      %v1232 = vpop.f32.mrb[0].mxu0
      %v1233 = vadd.f32 %v365, %v1232
      %v1234 = vpop.f32.mrb[0].mxu0
      %1235 = vmatprep.mubr.f32.mxu0 0.0
      %1236 = vmatmul.mubr.f32.gmra.mrb[0].mxu0 %v618
      %v1237 = vpop.f32.mrb[0].mxu0
      %v1238 = vadd.f32 %v365, %v1237
      %v1239 = vpop.f32.mrb[0].mxu0
      %1240 = vmatprep.mubr.f32.mxu0 0.0
      %1241 = vmatmul.mubr.f32.gmra.mrb[0].mxu0 %v621
      %v1242 = vpop.f32.mrb[0].mxu0
      %v1243 = vadd.f32 %v365, %v1242
      %v1244 = vpop.f32.mrb[0].mxu0
      %1245 = vmatprep.mubr.f32.mxu0 0.0
      %1246 = vmatmul.mubr.f32.gmra.mrb[0].mxu0 %v624
      %v1247 = vpop.f32.mrb[0].mxu0
      %v1248 = vadd.f32 %v365, %v1247
      %v1249 = vpop.f32.mrb[0].mxu0
      %1250 = vmatprep.mubr.f32.mxu0 0.0
      %1251 = vmatmul.mubr.f32.gmra.mrb[0].mxu0 %v627
      %v1252 = vpop.f32.mrb[0].mxu0
      %v1253 = vadd.f32 %v365, %v1252
      %v1254 = vpop.f32.mrb[0].mxu0
      %1255 = vmatprep.mubr.f32.mxu0 0.0
      %1256 = vmatmul.mubr.f32.gmra.mrb[0].mxu0 %v630
      %v1257 = vpop.f32.mrb[0].mxu0
      %v1258 = vadd.f32 %v365, %v1257
      %v1259 = vpop.f32.mrb[0].mxu0
      %1260 = vmatprep.mubr.f32.mxu0 0.0
      %1261 = vmatmul.mubr.f32.gmra.mrb[0].mxu0 %v633
      %v1262 = vpop.f32.mrb[0].mxu0
      %v1263 = vadd.f32 %v365, %v1262
      %v1264 = vpop.f32.mrb[0].mxu0
      %1265 = vmatprep.mubr.f32.mxu0 0.0
      %1266 = vmatmul.mubr.f32.gmra.mrb[0].mxu0 %v636
      %v1267 = vpop.f32.mrb[0].mxu0
      %v1268 = vadd.f32 %v365, %v1267
      %v1269 = vpop.f32.mrb[0].mxu0
      %1270 = vmatprep.mubr.f32.mxu0 0.0
      %1271 = vmatmul.mubr.f32.gmra.mrb[0].mxu0 %v639
      %v1272 = vpop.f32.mrb[0].mxu0
      %v1273 = vadd.f32 %v365, %v1272
      %v1274 = vpop.f32.mrb[0].mxu0
      %1275 = vmatprep.mubr.f32.mxu0 0.0
      %1276 = vmatmul.mubr.f32.gmra.mrb[0].mxu0 %v642
      %v1277 = vpop.f32.mrb[0].mxu0
      %v1278 = vadd.f32 %v365, %v1277
      %v1279 = vpop.f32.mrb[0].mxu0
      %1280 = vmatprep.mubr.f32.mxu0 0.0
      %1281 = vmatmul.mubr.f32.gmra.mrb[0].mxu0 %v645
      %v1282 = vpop.f32.mrb[0].mxu0
      %v1283 = vadd.f32 %v365, %v1282
      %v1284 = vpop.f32.mrb[0].mxu0
      %1285 = vmatprep.mubr.f32.mxu0 0.0
      %1286 = vmatmul.mubr.f32.gmra.mrb[0].mxu0 %v648
      %v1287 = vpop.f32.mrb[0].mxu0
      %v1288 = vadd.f32 %v365, %v1287
      %v1289 = vpop.f32.mrb[0].mxu0
      %1290 = vmatprep.mubr.f32.mxu0 0.0
      %1291 = vmatmul.mubr.f32.gmra.mrb[0].mxu0 %v651
      %v1292 = vpop.f32.mrb[0].mxu0
      %v1293 = vadd.f32 %v365, %v1292
      %v1294 = vpop.f32.mrb[0].mxu0
      %1295 = vmatprep.mubr.f32.mxu0 0.0
      %1296 = vmatmul.mubr.f32.gmra.mrb[0].mxu0 %v654
      %v1297 = vpop.f32.mrb[0].mxu0
      %v1298 = vadd.f32 %v365, %v1297
      %v1299 = vpop.f32.mrb[0].mxu0
      %1300 = vmatprep.mubr.f32.mxu0 0.0
      %1301 = vmatmul.mubr.f32.gmra.mrb[0].mxu0 %v657
      %v1302 = vpop.f32.mrb[0].mxu0
      %v1303 = vadd.f32 %v365, %v1302
      %v1304 = vpop.f32.mrb[0].mxu0
      %1305 = vmatprep.mubr.f32.mxu0 0.0
      %1306 = vmatmul.mubr.f32.gmra.mrb[0].mxu0 %v660
      %v1307 = vpop.f32.mrb[0].mxu0
      %v1308 = vadd.f32 %v365, %v1307
      %v1309 = vpop.f32.mrb[0].mxu0
      %1310 = vmatprep.mubr.f32.mxu0 0.0
      %1311 = vmatmul.mubr.f32.gmra.mrb[0].mxu0 %v663
      %v1312 = vpop.f32.mrb[0].mxu0
      %v1313 = vadd.f32 %v365, %v1312
      %v1314 = vpop.f32.mrb[0].mxu0
      %1315 = vmatprep.mubr.f32.mxu0 0.0
      %1316 = vmatmul.mubr.f32.gmra.mrb[0].mxu0 %v666
      %v1317 = vpop.f32.mrb[0].mxu0
      %v1318 = vadd.f32 %v365, %v1317
      %v1319 = vpop.f32.mrb[0].mxu0
      %1320 = vmatprep.mubr.f32.mxu0 0.0
      %1321 = vmatmul.mubr.f32.gmra.mrb[0].mxu0 %v669
      %v1322 = vpop.f32.mrb[0].mxu0
      %v1323 = vadd.f32 %v365, %v1322
      %v1324 = vpop.f32.mrb[0].mxu0
      %1325 = vmatprep.mubr.f32.mxu0 0.0
      %1326 = vmatmul.mubr.f32.gmra.mrb[0].mxu0 %v672
      %v1327 = vpop.f32.mrb[0].mxu0
      %v1328 = vadd.f32 %v365, %v1327
      %v1329 = vpop.f32.mrb[0].mxu0
      %1330 = vmatprep.mubr.f32.mxu0 0.0
      %1331 = vmatmul.mubr.f32.gmra.mrb[0].mxu0 %v675
      %v1332 = vpop.f32.mrb[0].mxu0
      %v1333 = vadd.f32 %v365, %v1332
      %v1334 = vpop.f32.mrb[0].mxu0
      %1335 = vmatprep.mubr.f32.mxu0 0.0
      %1336 = vmatmul.mubr.f32.gmra.mrb[0].mxu0 %v678
      %v1337 = vpop.f32.mrb[0].mxu0
      %v1338 = vadd.f32 %v365, %v1337
      %v1339 = vpop.f32.mrb[0].mxu0
      %1340 = vmatprep.mubr.f32.mxu0 0.0
      %1341 = vmatmul.mubr.f32.gmra.mrb[0].mxu0 %v681
      %v1342 = vpop.f32.mrb[0].mxu0
      %v1343 = vadd.f32 %v365, %v1342
      %v1344 = vpop.f32.mrb[0].mxu0
      %1345 = vmatprep.mubr.f32.mxu0 0.0
      %1346 = vmatmul.mubr.f32.gmra.mrb[0].mxu0 %v684
      %v1347 = vpop.f32.mrb[0].mxu0
      %v1348 = vadd.f32 %v365, %v1347
      %v1349 = vpop.f32.mrb[0].mxu0
      %1350 = vmatprep.mubr.f32.mxu0 0.0
      %1351 = vmatmul.mubr.f32.gmra.mrb[0].mxu0 %v687
      %v1352 = vpop.f32.mrb[0].mxu0
      %v1353 = vadd.f32 %v365, %v1352
      %v1354 = vpop.f32.mrb[0].mxu0
      %1355 = vmatprep.mubr.f32.mxu0 0.0
      %1356 = vmatmul.mubr.f32.gmra.mrb[0].mxu0 %v690
      %v1357 = vpop.f32.mrb[0].mxu0
      %v1358 = vadd.f32 %v365, %v1357
      %v1359 = vpop.f32.mrb[0].mxu0
      %1360 = vmatprep.mubr.f32.mxu0 0.0
      %1361 = vmatmul.mubr.f32.gmra.mrb[0].mxu0 %v693
      %v1362 = vpop.f32.mrb[0].mxu0
      %v1363 = vadd.f32 %v365, %v1362
      %v1364 = vpop.f32.mrb[0].mxu0
      %1365 = vmatprep.mubr.f32.mxu0 0.0
      %1366 = vmatmul.mubr.f32.gmra.mrb[0].mxu0 %v696
      %v1367 = vpop.f32.mrb[0].mxu0
      %v1368 = vadd.f32 %v365, %v1367
      %v1369 = vpop.f32.mrb[0].mxu0
      %1370 = vmatprep.mubr.f32.mxu0 0.0
      %1371 = vmatmul.mubr.f32.gmra.mrb[0].mxu0 %v699
      %v1372 = vpop.f32.mrb[0].mxu0
      %v1373 = vadd.f32 %v365, %v1372
      %v1374 = vpop.f32.mrb[0].mxu0
      %1375 = vmatprep.mubr.f32.mxu0 0.0
      %1376 = vmatmul.mubr.f32.gmra.mrb[0].mxu0 %v702
      %v1377 = vpop.f32.mrb[0].mxu0
      %v1378 = vadd.f32 %v365, %v1377
      %v1379 = vpop.f32.mrb[0].mxu0
      %1380 = vmatprep.mubr.f32.mxu0 0.0
      %1381 = vmatmul.mubr.f32.gmra.mrb[0].mxu0 %v705
      %v1382 = vpop.f32.mrb[0].mxu0
      %v1383 = vadd.f32 %v365, %v1382
      %v1384 = vpop.f32.mrb[0].mxu0
      %1385 = vmatprep.mubr.f32.mxu0 0.0
      %1386 = vmatmul.mubr.f32.gmra.mrb[0].mxu0 %v708
      %v1387 = vpop.f32.mrb[0].mxu0
      %v1388 = vadd.f32 %v365, %v1387
      %v1389 = vpop.f32.mrb[0].mxu0
      %1390 = vmatprep.mubr.f32.mxu0 0.0
      %1391 = vmatmul.mubr.f32.gmra.mrb[0].mxu0 %v711
      %v1392 = vpop.f32.mrb[0].mxu0
      %v1393 = vadd.f32 %v365, %v1392
      %v1394 = vpop.f32.mrb[0].mxu0
      %1395 = vmatprep.mubr.f32.mxu0 0.0
      %1396 = vmatmul.mubr.f32.gmra.mrb[0].mxu0 %v714
      %v1397 = vpop.f32.mrb[0].mxu0
      %v1398 = vadd.f32 %v365, %v1397
      %v1399 = vpop.f32.mrb[0].mxu0
      %1400 = vmatprep.mubr.f32.mxu0 0.0
      %1401 = vmatmul.mubr.f32.gmra.mrb[0].mxu0 %v717
      %v1402 = vpop.f32.mrb[0].mxu0
      %v1403 = vadd.f32 %v365, %v1402
      %v1404 = vpop.f32.mrb[0].mxu0
      %1405 = vmatprep.mubr.f32.mxu0 0.0
      %1406 = vmatmul.mubr.f32.gmra.mrb[0].mxu0 %v720
      %v1407 = vpop.f32.mrb[0].mxu0
      %v1408 = vadd.f32 %v365, %v1407
      %v1409 = vpop.f32.mrb[0].mxu0
      %1410 = vmatprep.mubr.f32.mxu0 0.0
      %1411 = vmatmul.mubr.f32.gmra.mrb[0].mxu0 %v723
      %v1412 = vpop.f32.mrb[0].mxu0
      %v1413 = vadd.f32 %v365, %v1412
      %v1414 = vpop.f32.mrb[0].mxu0
      %1415 = vmatprep.mubr.f32.mxu0 0.0
      %1416 = vmatmul.mubr.f32.gmra.mrb[0].mxu0 %v726
      %v1417 = vpop.f32.mrb[0].mxu0
      %v1418 = vadd.f32 %v365, %v1417
      %v1419 = vpop.f32.mrb[0].mxu0
      %1420 = vmatprep.mubr.f32.mxu0 0.0
      %1421 = vmatmul.mubr.f32.gmra.mrb[0].mxu0 %v729
      %v1422 = vpop.f32.mrb[0].mxu0
      %v1423 = vadd.f32 %v365, %v1422
      %v1424 = vpop.f32.mrb[0].mxu0
      %1425 = vmatprep.mubr.f32.mxu0 0.0
      %1426 = vmatmul.mubr.f32.gmra.mrb[0].mxu0 %v732
      %v1427 = vpop.f32.mrb[0].mxu0
      %v1428 = vadd.f32 %v365, %v1427
      %v1429 = vpop.f32.mrb[0].mxu0
      %1430 = vmatprep.mubr.f32.mxu0 0.0
      %1431 = vmatmul.mubr.f32.gmra.mrb[0].mxu0 %v735
      %v1432 = vpop.f32.mrb[0].mxu0
      %v1433 = vadd.f32 %v365, %v1432
      %v1434 = vpop.f32.mrb[0].mxu0
      %1435 = vmatprep.mubr.f32.mxu0 0.0
      %1436 = vmatmul.mubr.f32.gmra.mrb[0].mxu0 %v738
      %v1437 = vpop.f32.mrb[0].mxu0
      %v1438 = vadd.f32 %v365, %v1437
      %v1439 = vpop.f32.mrb[0].mxu0
      %1440 = vmatprep.mubr.f32.mxu0 0.0
      %1441 = vmatmul.mubr.f32.gmra.mrb[0].mxu0 %v741
      %v1442 = vpop.f32.mrb[0].mxu0
      %v1443 = vadd.f32 %v365, %v1442
      %v1444 = vpop.f32.mrb[0].mxu0
      %1445 = vmatprep.mubr.f32.mxu0 0.0
      %1446 = vmatmul.mubr.f32.gmra.mrb[0].mxu0 %v744
      %v1447 = vpop.f32.mrb[0].mxu0
      %v1448 = vadd.f32 %v365, %v1447
      %v1449 = vpop.f32.mrb[0].mxu0
      %1450 = vmatprep.mubr.f32.mxu0 0.0
      %1451 = vmatmul.mubr.f32.gmra.mrb[0].mxu0 %v747
      %v1452 = vpop.f32.mrb[0].mxu0
      %v1453 = vadd.f32 %v365, %v1452
      %v1454 = vpop.f32.mrb[0].mxu0
      %1455 = vmatprep.mubr.f32.mxu0 0.0
      %1456 = vmatmul.mubr.f32.gmra.mrb[0].mxu0 %v750
      %v1457 = vpop.f32.mrb[0].mxu0
      %v1458 = vadd.f32 %v365, %v1457
      %v1459 = vpop.f32.mrb[0].mxu0
      %1460 = vdwg.mxu0
      %1461 = vrot.lane.b32.xlu0 %v228, 125
      %v1462 = vpop.permute.xlu0 %1461
      %1463 = vrot.lane.b32.xlu0 %v229, 125
      %v1464 = vpop.permute.xlu0 %1463
      %1465 = vrot.lane.b32.xlu0 %v230, 125
      %v1466 = vpop.permute.xlu0 %1465
      %1467 = vrot.lane.b32.xlu0 %v231, 125
      %v1468 = vpop.permute.xlu0 %1467
      %1469 = vrot.lane.b32.xlu0 %v232, 125
      %v1470 = vpop.permute.xlu0 %1469
      %1471 = vrot.lane.b32.xlu0 %v233, 125
      %v1472 = vpop.permute.xlu0 %1471
      %1473 = vrot.lane.b32.xlu0 %v234, 125
      %v1474 = vpop.permute.xlu0 %1473
      %1475 = vrot.lane.b32.xlu0 %v235, 125
      %v1476 = vpop.permute.xlu0 %1475
      %1477 = vrot.lane.b32.xlu0 %v236, 125
      %v1478 = vpop.permute.xlu0 %1477
      %1479 = vrot.lane.b32.xlu0 %v237, 125
      %v1480 = vpop.permute.xlu0 %1479
      %1481 = vrot.lane.b32.xlu0 %v238, 125
      %v1482 = vpop.permute.xlu0 %1481
      %1483 = vrot.lane.b32.xlu0 %v239, 125
      %v1484 = vpop.permute.xlu0 %1483
      %1485 = vrot.lane.b32.xlu0 %v240, 125
      %v1486 = vpop.permute.xlu0 %1485
      %1487 = vrot.lane.b32.xlu0 %v241, 125
      %v1488 = vpop.permute.xlu0 %1487
      %1489 = vrot.lane.b32.xlu0 %v242, 125
      %v1490 = vpop.permute.xlu0 %1489
      %1491 = vrot.lane.b32.xlu0 %v243, 125
      %v1492 = vpop.permute.xlu0 %1491
      %1493 = vrot.lane.b32.xlu0 %v244, 125
      %v1494 = vpop.permute.xlu0 %1493
      %1495 = vrot.lane.b32.xlu0 %v245, 125
      %v1496 = vpop.permute.xlu0 %1495
      %1497 = vrot.lane.b32.xlu0 %v246, 125
      %v1498 = vpop.permute.xlu0 %1497
      %1499 = vrot.lane.b32.xlu0 %v247, 125
      %v1500 = vpop.permute.xlu0 %1499
      %1501 = vrot.lane.b32.xlu0 %v248, 125
      %v1502 = vpop.permute.xlu0 %1501
      %1503 = vrot.lane.b32.xlu0 %v249, 125
      %v1504 = vpop.permute.xlu0 %1503
      %1505 = vrot.lane.b32.xlu0 %v250, 125
      %v1506 = vpop.permute.xlu0 %1505
      %1507 = vrot.lane.b32.xlu0 %v251, 125
      %v1508 = vpop.permute.xlu0 %1507
      %1509 = vrot.lane.b32.xlu0 %v252, 125
      %v1510 = vpop.permute.xlu0 %1509
      %1511 = vrot.lane.b32.xlu0 %v253, 125
      %v1512 = vpop.permute.xlu0 %1511
      %1513 = vrot.lane.b32.xlu0 %v254, 125
      %v1514 = vpop.permute.xlu0 %1513
      %1515 = vrot.lane.b32.xlu0 %v255, 125
      %v1516 = vpop.permute.xlu0 %1515
      %1517 = vrot.lane.b32.xlu0 %v256, 125
      %v1518 = vpop.permute.xlu0 %1517
      %1519 = vrot.lane.b32.xlu0 %v257, 125
      %v1520 = vpop.permute.xlu0 %1519
      %1521 = vrot.lane.b32.xlu0 %v258, 125
      %v1522 = vpop.permute.xlu0 %1521
      %1523 = vrot.lane.b32.xlu0 %v259, 125
      %v1524 = vpop.permute.xlu0 %1523
      %1525 = vrot.lane.b32.xlu0 %v260, 125
      %v1526 = vpop.permute.xlu0 %1525
      %1527 = vrot.lane.b32.xlu0 %v261, 125
      %v1528 = vpop.permute.xlu0 %1527
      %1529 = vrot.lane.b32.xlu0 %v262, 125
      %v1530 = vpop.permute.xlu0 %1529
      %1531 = vrot.lane.b32.xlu0 %v263, 125
      %v1532 = vpop.permute.xlu0 %1531
      %1533 = vrot.lane.b32.xlu0 %v264, 125
      %v1534 = vpop.permute.xlu0 %1533
      %1535 = vrot.lane.b32.xlu0 %v265, 125
      %v1536 = vpop.permute.xlu0 %1535
      %1537 = vrot.lane.b32.xlu0 %v266, 125
      %v1538 = vpop.permute.xlu0 %1537
      %1539 = vrot.lane.b32.xlu0 %v267, 125
      %v1540 = vpop.permute.xlu0 %1539
      %1541 = vrot.lane.b32.xlu0 %v268, 125
      %v1542 = vpop.permute.xlu0 %1541
      %1543 = vrot.lane.b32.xlu0 %v269, 125
      %v1544 = vpop.permute.xlu0 %1543
      %1545 = vrot.lane.b32.xlu0 %v270, 125
      %v1546 = vpop.permute.xlu0 %1545
      %1547 = vrot.lane.b32.xlu0 %v271, 125
      %v1548 = vpop.permute.xlu0 %1547
      %1549 = vrot.lane.b32.xlu0 %v272, 125
      %v1550 = vpop.permute.xlu0 %1549
      %1551 = vrot.lane.b32.xlu0 %v273, 125
      %v1552 = vpop.permute.xlu0 %1551
      %1553 = vrot.lane.b32.xlu0 %v274, 125
      %v1554 = vpop.permute.xlu0 %1553
      %1555 = vrot.lane.b32.xlu0 %v275, 125
      %v1556 = vpop.permute.xlu0 %1555
      %1557 = vrot.lane.b32.xlu0 %v276, 125
      %v1558 = vpop.permute.xlu0 %1557
      %1559 = vrot.lane.b32.xlu0 %v277, 125
      %v1560 = vpop.permute.xlu0 %1559
      %1561 = vrot.lane.b32.xlu0 %v278, 125
      %v1562 = vpop.permute.xlu0 %1561
      %1563 = vrot.lane.b32.xlu0 %v279, 125
      %v1564 = vpop.permute.xlu0 %1563
      %1565 = vrot.lane.b32.xlu0 %v280, 125
      %v1566 = vpop.permute.xlu0 %1565
      %1567 = vrot.lane.b32.xlu0 %v281, 125
      %v1568 = vpop.permute.xlu0 %1567
      %1569 = vrot.lane.b32.xlu0 %v282, 125
      %v1570 = vpop.permute.xlu0 %1569
      %1571 = vrot.lane.b32.xlu0 %v283, 125
      %v1572 = vpop.permute.xlu0 %1571
      %1573 = vrot.lane.b32.xlu0 %v284, 125
      %v1574 = vpop.permute.xlu0 %1573
      %1575 = vrot.lane.b32.xlu0 %v285, 125
      %v1576 = vpop.permute.xlu0 %1575
      %1577 = vrot.lane.b32.xlu0 %v286, 125
      %v1578 = vpop.permute.xlu0 %1577
      %1579 = vrot.lane.b32.xlu0 %v287, 125
      %v1580 = vpop.permute.xlu0 %1579
      %1581 = vrot.lane.b32.xlu0 %v288, 125
      %v1582 = vpop.permute.xlu0 %1581
      %1583 = vrot.lane.b32.xlu0 %v289, 125
      %v1584 = vpop.permute.xlu0 %1583
      %1585 = vrot.lane.b32.xlu0 %v290, 125
      %v1586 = vpop.permute.xlu0 %1585
      %1587 = vrot.lane.b32.xlu0 %v291, 125
      %v1588 = vpop.permute.xlu0 %1587
      %1589 = vrot.lane.b32.xlu0 %v292, 125
      %v1590 = vpop.permute.xlu0 %1589
      %1591 = vrot.lane.b32.xlu0 %v293, 125
      %v1592 = vpop.permute.xlu0 %1591
      %1593 = vrot.lane.b32.xlu0 %v294, 125
      %v1594 = vpop.permute.xlu0 %1593
      %1595 = vrot.lane.b32.xlu0 %v295, 125
      %v1596 = vpop.permute.xlu0 %1595
      %1597 = vrot.lane.b32.xlu0 %v296, 125
      %v1598 = vpop.permute.xlu0 %1597
      %1599 = vrot.lane.b32.xlu0 %v297, 125
      %v1600 = vpop.permute.xlu0 %1599
      %1601 = vrot.lane.b32.xlu0 %v298, 125
      %v1602 = vpop.permute.xlu0 %1601
      %1603 = vrot.lane.b32.xlu0 %v299, 125
      %v1604 = vpop.permute.xlu0 %1603
      %1605 = vrot.lane.b32.xlu0 %v300, 125
      %v1606 = vpop.permute.xlu0 %1605
      %1607 = vrot.lane.b32.xlu0 %v301, 125
      %v1608 = vpop.permute.xlu0 %1607
      %1609 = vrot.lane.b32.xlu0 %v302, 125
      %v1610 = vpop.permute.xlu0 %1609
      %1611 = vrot.lane.b32.xlu0 %v303, 125
      %v1612 = vpop.permute.xlu0 %1611
      %1613 = vrot.lane.b32.xlu0 %v304, 125
      %v1614 = vpop.permute.xlu0 %1613
      %1615 = vrot.lane.b32.xlu0 %v305, 125
      %v1616 = vpop.permute.xlu0 %1615
      %1617 = vrot.lane.b32.xlu0 %v306, 125
      %v1618 = vpop.permute.xlu0 %1617
      %1619 = vrot.lane.b32.xlu0 %v307, 125
      %v1620 = vpop.permute.xlu0 %1619
      %1621 = vrot.lane.b32.xlu0 %v308, 125
      %v1622 = vpop.permute.xlu0 %1621
      %1623 = vrot.lane.b32.xlu0 %v309, 125
      %v1624 = vpop.permute.xlu0 %1623
      %1625 = vrot.lane.b32.xlu0 %v310, 125
      %v1626 = vpop.permute.xlu0 %1625
      %1627 = vrot.lane.b32.xlu0 %v311, 125
      %v1628 = vpop.permute.xlu0 %1627
      %1629 = vrot.lane.b32.xlu0 %v312, 125
      %v1630 = vpop.permute.xlu0 %1629
      %1631 = vrot.lane.b32.xlu0 %v313, 125
      %v1632 = vpop.permute.xlu0 %1631
      %1633 = vrot.lane.b32.xlu0 %v314, 125
      %v1634 = vpop.permute.xlu0 %1633
      %1635 = vrot.lane.b32.xlu0 %v315, 125
      %v1636 = vpop.permute.xlu0 %1635
      %1637 = vrot.lane.b32.xlu0 %v316, 125
      %v1638 = vpop.permute.xlu0 %1637
      %1639 = vrot.lane.b32.xlu0 %v317, 125
      %v1640 = vpop.permute.xlu0 %1639
      %1641 = vrot.lane.b32.xlu0 %v318, 125
      %v1642 = vpop.permute.xlu0 %1641
      %1643 = vrot.lane.b32.xlu0 %v319, 125
      %v1644 = vpop.permute.xlu0 %1643
      %1645 = vrot.lane.b32.xlu0 %v320, 125
      %v1646 = vpop.permute.xlu0 %1645
      %1647 = vrot.lane.b32.xlu0 %v321, 125
      %v1648 = vpop.permute.xlu0 %1647
      %1649 = vrot.lane.b32.xlu0 %v322, 125
      %v1650 = vpop.permute.xlu0 %1649
      %1651 = vrot.lane.b32.xlu0 %v323, 125
      %v1652 = vpop.permute.xlu0 %1651
      %1653 = vrot.lane.b32.xlu0 %v324, 125
      %v1654 = vpop.permute.xlu0 %1653
      %1655 = vrot.lane.b32.xlu0 %v325, 125
      %v1656 = vpop.permute.xlu0 %1655
      %1657 = vrot.lane.b32.xlu0 %v326, 125
      %v1658 = vpop.permute.xlu0 %1657
      %1659 = vrot.lane.b32.xlu0 %v327, 125
      %v1660 = vpop.permute.xlu0 %1659
      %1661 = vrot.lane.b32.xlu0 %v328, 125
      %v1662 = vpop.permute.xlu0 %1661
      %1663 = vrot.lane.b32.xlu0 %v329, 125
      %v1664 = vpop.permute.xlu0 %1663
      %1665 = vrot.lane.b32.xlu0 %v330, 125
      %v1666 = vpop.permute.xlu0 %1665
      %1667 = vrot.lane.b32.xlu0 %v331, 125
      %v1668 = vpop.permute.xlu0 %1667
      %1669 = vrot.lane.b32.xlu0 %v332, 125
      %v1670 = vpop.permute.xlu0 %1669
      %1671 = vrot.lane.b32.xlu0 %v333, 125
      %v1672 = vpop.permute.xlu0 %1671
      %1673 = vrot.lane.b32.xlu0 %v334, 125
      %v1674 = vpop.permute.xlu0 %1673
      %1675 = vrot.lane.b32.xlu0 %v335, 125
      %v1676 = vpop.permute.xlu0 %1675
      %1677 = vrot.lane.b32.xlu0 %v336, 125
      %v1678 = vpop.permute.xlu0 %1677
      %1679 = vrot.lane.b32.xlu0 %v337, 125
      %v1680 = vpop.permute.xlu0 %1679
      %1681 = vrot.lane.b32.xlu0 %v338, 125
      %v1682 = vpop.permute.xlu0 %1681
      %1683 = vrot.lane.b32.xlu0 %v339, 125
      %v1684 = vpop.permute.xlu0 %1683
      %1685 = vrot.lane.b32.xlu0 %v340, 125
      %v1686 = vpop.permute.xlu0 %1685
      %1687 = vrot.lane.b32.xlu0 %v341, 125
      %v1688 = vpop.permute.xlu0 %1687
      %1689 = vrot.lane.b32.xlu0 %v342, 125
      %v1690 = vpop.permute.xlu0 %1689
      %1691 = vrot.lane.b32.xlu0 %v343, 125
      %v1692 = vpop.permute.xlu0 %1691
      %1693 = vrot.lane.b32.xlu0 %v344, 125
      %v1694 = vpop.permute.xlu0 %1693
      %1695 = vrot.lane.b32.xlu0 %v345, 125
      %v1696 = vpop.permute.xlu0 %1695
      %1697 = vrot.lane.b32.xlu0 %v346, 125
      %v1698 = vpop.permute.xlu0 %1697
      %1699 = vrot.lane.b32.xlu0 %v347, 125
      %v1700 = vpop.permute.xlu0 %1699
      %1701 = vrot.lane.b32.xlu0 %v348, 125
      %v1702 = vpop.permute.xlu0 %1701
      %1703 = vrot.lane.b32.xlu0 %v349, 125
      %v1704 = vpop.permute.xlu0 %1703
      %1705 = vrot.lane.b32.xlu0 %v350, 125
      %v1706 = vpop.permute.xlu0 %1705
      %1707 = vrot.lane.b32.xlu0 %v351, 125
      %v1708 = vpop.permute.xlu0 %1707
      %1709 = vrot.lane.b32.xlu0 %v352, 125
      %v1710 = vpop.permute.xlu0 %1709
      %1711 = vrot.lane.b32.xlu0 %v353, 125
      %v1712 = vpop.permute.xlu0 %1711
      %1713 = vrot.lane.b32.xlu0 %v354, 125
      %v1714 = vpop.permute.xlu0 %1713
      %1715 = vrot.lane.b32.xlu0 %v355, 125
      %v1716 = vpop.permute.xlu0 %1715
      %v1845 = vmax.f32 %v228, %v1462
      %v1846 = vmax.f32 %v229, %v1464
      %v1847 = vmax.f32 %v230, %v1466
      %v1848 = vmax.f32 %v231, %v1468
      %v1849 = vmax.f32 %v232, %v1470
      %v1850 = vmax.f32 %v233, %v1472
      %v1851 = vmax.f32 %v234, %v1474
      %v1852 = vmax.f32 %v235, %v1476
      %v1853 = vmax.f32 %v236, %v1478
      %v1854 = vmax.f32 %v237, %v1480
      %v1855 = vmax.f32 %v238, %v1482
      %v1856 = vmax.f32 %v239, %v1484
      %v1857 = vmax.f32 %v240, %v1486
      %v1858 = vmax.f32 %v241, %v1488
      %v1859 = vmax.f32 %v242, %v1490
      %v1860 = vmax.f32 %v243, %v1492
      %v1861 = vmax.f32 %v244, %v1494
      %v1862 = vmax.f32 %v245, %v1496
      %v1863 = vmax.f32 %v246, %v1498
      %v1864 = vmax.f32 %v247, %v1500
      %v1865 = vmax.f32 %v248, %v1502
      %v1866 = vmax.f32 %v249, %v1504
      %v1867 = vmax.f32 %v250, %v1506
      %v1868 = vmax.f32 %v251, %v1508
      %v1869 = vmax.f32 %v252, %v1510
      %v1870 = vmax.f32 %v253, %v1512
      %v1871 = vmax.f32 %v254, %v1514
      %v1872 = vmax.f32 %v255, %v1516
      %v1873 = vmax.f32 %v256, %v1518
      %v1874 = vmax.f32 %v257, %v1520
      %v1875 = vmax.f32 %v258, %v1522
      %v1876 = vmax.f32 %v259, %v1524
      %v1877 = vmax.f32 %v260, %v1526
      %v1878 = vmax.f32 %v261, %v1528
      %v1879 = vmax.f32 %v262, %v1530
      %v1880 = vmax.f32 %v263, %v1532
      %v1881 = vmax.f32 %v264, %v1534
      %v1882 = vmax.f32 %v265, %v1536
      %v1883 = vmax.f32 %v266, %v1538
      %v1884 = vmax.f32 %v267, %v1540
      %v1885 = vmax.f32 %v268, %v1542
      %v1886 = vmax.f32 %v269, %v1544
      %v1887 = vmax.f32 %v270, %v1546
      %v1888 = vmax.f32 %v271, %v1548
      %v1889 = vmax.f32 %v272, %v1550
      %v1890 = vmax.f32 %v273, %v1552
      %v1891 = vmax.f32 %v274, %v1554
      %v1892 = vmax.f32 %v275, %v1556
      %v1893 = vmax.f32 %v276, %v1558
      %v1894 = vmax.f32 %v277, %v1560
      %v1895 = vmax.f32 %v278, %v1562
      %v1896 = vmax.f32 %v279, %v1564
      %v1897 = vmax.f32 %v280, %v1566
      %v1898 = vmax.f32 %v281, %v1568
      %v1899 = vmax.f32 %v282, %v1570
      %v1900 = vmax.f32 %v283, %v1572
      %v1901 = vmax.f32 %v284, %v1574
      %v1902 = vmax.f32 %v285, %v1576
      %v1903 = vmax.f32 %v286, %v1578
      %v1904 = vmax.f32 %v287, %v1580
      %v1905 = vmax.f32 %v288, %v1582
      %v1906 = vmax.f32 %v289, %v1584
      %v1907 = vmax.f32 %v290, %v1586
      %v1908 = vmax.f32 %v291, %v1588
      %v1909 = vmax.f32 %v292, %v1590
      %v1910 = vmax.f32 %v293, %v1592
      %v1911 = vmax.f32 %v294, %v1594
      %v1912 = vmax.f32 %v295, %v1596
      %v1913 = vmax.f32 %v296, %v1598
      %v1914 = vmax.f32 %v297, %v1600
      %v1915 = vmax.f32 %v298, %v1602
      %v1916 = vmax.f32 %v299, %v1604
      %v1917 = vmax.f32 %v300, %v1606
      %v1918 = vmax.f32 %v301, %v1608
      %v1919 = vmax.f32 %v302, %v1610
      %v1920 = vmax.f32 %v303, %v1612
      %v1921 = vmax.f32 %v304, %v1614
      %v1922 = vmax.f32 %v305, %v1616
      %v1923 = vmax.f32 %v306, %v1618
      %v1924 = vmax.f32 %v307, %v1620
      %v1925 = vmax.f32 %v308, %v1622
      %v1926 = vmax.f32 %v309, %v1624
      %v1927 = vmax.f32 %v310, %v1626
      %v1928 = vmax.f32 %v311, %v1628
      %v1929 = vmax.f32 %v312, %v1630
      %v1930 = vmax.f32 %v313, %v1632
      %v1931 = vmax.f32 %v314, %v1634
      %v1932 = vmax.f32 %v315, %v1636
      %v1933 = vmax.f32 %v316, %v1638
      %v1934 = vmax.f32 %v317, %v1640
      %v1935 = vmax.f32 %v318, %v1642
      %v1936 = vmax.f32 %v319, %v1644
      %v1937 = vmax.f32 %v320, %v1646
      %v1938 = vmax.f32 %v321, %v1648
      %v1939 = vmax.f32 %v322, %v1650
      %v1940 = vmax.f32 %v323, %v1652
      %v1941 = vmax.f32 %v324, %v1654
      %v1942 = vmax.f32 %v325, %v1656
      %v1943 = vmax.f32 %v326, %v1658
      %v1944 = vmax.f32 %v327, %v1660
      %v1945 = vmax.f32 %v328, %v1662
      %v1946 = vmax.f32 %v329, %v1664
      %v1947 = vmax.f32 %v330, %v1666
      %v1948 = vmax.f32 %v331, %v1668
      %v1949 = vmax.f32 %v332, %v1670
      %v1950 = vmax.f32 %v333, %v1672
      %v1951 = vmax.f32 %v334, %v1674
      %v1952 = vmax.f32 %v335, %v1676
      %v1953 = vmax.f32 %v336, %v1678
      %v1954 = vmax.f32 %v337, %v1680
      %v1955 = vmax.f32 %v338, %v1682
      %v1956 = vmax.f32 %v339, %v1684
      %v1957 = vmax.f32 %v340, %v1686
      %v1958 = vmax.f32 %v341, %v1688
      %v1959 = vmax.f32 %v342, %v1690
      %v1960 = vmax.f32 %v343, %v1692
      %v1961 = vmax.f32 %v344, %v1694
      %v1962 = vmax.f32 %v345, %v1696
      %v1963 = vmax.f32 %v346, %v1698
      %v1964 = vmax.f32 %v347, %v1700
      %v1965 = vmax.f32 %v348, %v1702
      %v1966 = vmax.f32 %v349, %v1704
      %v1967 = vmax.f32 %v350, %v1706
      %v1968 = vmax.f32 %v351, %v1708
      %v1969 = vmax.f32 %v352, %v1710
      %v1970 = vmax.f32 %v353, %v1712
      %v1971 = vmax.f32 %v354, %v1714
      %v1972 = vmax.f32 %v355, %v1716
      %2101 = vrot.lane.b32.xlu0 %v1845, 119
      %v2102 = vpop.permute.xlu0 %2101
      %2103 = vrot.lane.b32.xlu0 %v1846, 119
      %v2104 = vpop.permute.xlu0 %2103
      %2105 = vrot.lane.b32.xlu0 %v1847, 119
      %v2106 = vpop.permute.xlu0 %2105
      %2107 = vrot.lane.b32.xlu0 %v1848, 119
      %v2108 = vpop.permute.xlu0 %2107
      %2109 = vrot.lane.b32.xlu0 %v1849, 119
      %v2110 = vpop.permute.xlu0 %2109
      %2111 = vrot.lane.b32.xlu0 %v1850, 119
      %v2112 = vpop.permute.xlu0 %2111
      %2113 = vrot.lane.b32.xlu0 %v1851, 119
      %v2114 = vpop.permute.xlu0 %2113
      %2115 = vrot.lane.b32.xlu0 %v1852, 119
      %v2116 = vpop.permute.xlu0 %2115
      %2117 = vrot.lane.b32.xlu0 %v1853, 119
      %v2118 = vpop.permute.xlu0 %2117
      %2119 = vrot.lane.b32.xlu0 %v1854, 119
      %v2120 = vpop.permute.xlu0 %2119
      %2121 = vrot.lane.b32.xlu0 %v1855, 119
      %v2122 = vpop.permute.xlu0 %2121
      %2123 = vrot.lane.b32.xlu0 %v1856, 119
      %v2124 = vpop.permute.xlu0 %2123
      %2125 = vrot.lane.b32.xlu0 %v1857, 119
      %v2126 = vpop.permute.xlu0 %2125
      %2127 = vrot.lane.b32.xlu0 %v1858, 119
      %v2128 = vpop.permute.xlu0 %2127
      %2129 = vrot.lane.b32.xlu0 %v1859, 119
      %v2130 = vpop.permute.xlu0 %2129
      %2131 = vrot.lane.b32.xlu0 %v1860, 119
      %v2132 = vpop.permute.xlu0 %2131
      %2133 = vrot.lane.b32.xlu0 %v1861, 119
      %v2134 = vpop.permute.xlu0 %2133
      %2135 = vrot.lane.b32.xlu0 %v1862, 119
      %v2136 = vpop.permute.xlu0 %2135
      %2137 = vrot.lane.b32.xlu0 %v1863, 119
      %v2138 = vpop.permute.xlu0 %2137
      %2139 = vrot.lane.b32.xlu0 %v1864, 119
      %v2140 = vpop.permute.xlu0 %2139
      %2141 = vrot.lane.b32.xlu0 %v1865, 119
      %v2142 = vpop.permute.xlu0 %2141
      %2143 = vrot.lane.b32.xlu0 %v1866, 119
      %v2144 = vpop.permute.xlu0 %2143
      %2145 = vrot.lane.b32.xlu0 %v1867, 119
      %v2146 = vpop.permute.xlu0 %2145
      %2147 = vrot.lane.b32.xlu0 %v1868, 119
      %v2148 = vpop.permute.xlu0 %2147
      %2149 = vrot.lane.b32.xlu0 %v1869, 119
      %v2150 = vpop.permute.xlu0 %2149
      %2151 = vrot.lane.b32.xlu0 %v1870, 119
      %v2152 = vpop.permute.xlu0 %2151
      %2153 = vrot.lane.b32.xlu0 %v1871, 119
      %v2154 = vpop.permute.xlu0 %2153
      %2155 = vrot.lane.b32.xlu0 %v1872, 119
      %v2156 = vpop.permute.xlu0 %2155
      %2157 = vrot.lane.b32.xlu0 %v1873, 119
      %v2158 = vpop.permute.xlu0 %2157
      %2159 = vrot.lane.b32.xlu0 %v1874, 119
      %v2160 = vpop.permute.xlu0 %2159
      %2161 = vrot.lane.b32.xlu0 %v1875, 119
      %v2162 = vpop.permute.xlu0 %2161
      %2163 = vrot.lane.b32.xlu0 %v1876, 119
      %v2164 = vpop.permute.xlu0 %2163
      %2165 = vrot.lane.b32.xlu0 %v1877, 119
      %v2166 = vpop.permute.xlu0 %2165
      %2167 = vrot.lane.b32.xlu0 %v1878, 119
      %v2168 = vpop.permute.xlu0 %2167
      %2169 = vrot.lane.b32.xlu0 %v1879, 119
      %v2170 = vpop.permute.xlu0 %2169
      %2171 = vrot.lane.b32.xlu0 %v1880, 119
      %v2172 = vpop.permute.xlu0 %2171
      %2173 = vrot.lane.b32.xlu0 %v1881, 119
      %v2174 = vpop.permute.xlu0 %2173
      %2175 = vrot.lane.b32.xlu0 %v1882, 119
      %v2176 = vpop.permute.xlu0 %2175
      %2177 = vrot.lane.b32.xlu0 %v1883, 119
      %v2178 = vpop.permute.xlu0 %2177
      %2179 = vrot.lane.b32.xlu0 %v1884, 119
      %v2180 = vpop.permute.xlu0 %2179
      %2181 = vrot.lane.b32.xlu0 %v1885, 119
      %v2182 = vpop.permute.xlu0 %2181
      %2183 = vrot.lane.b32.xlu0 %v1886, 119
      %v2184 = vpop.permute.xlu0 %2183
      %2185 = vrot.lane.b32.xlu0 %v1887, 119
      %v2186 = vpop.permute.xlu0 %2185
      %2187 = vrot.lane.b32.xlu0 %v1888, 119
      %v2188 = vpop.permute.xlu0 %2187
      %2189 = vrot.lane.b32.xlu0 %v1889, 119
      %v2190 = vpop.permute.xlu0 %2189
      %2191 = vrot.lane.b32.xlu0 %v1890, 119
      %v2192 = vpop.permute.xlu0 %2191
      %2193 = vrot.lane.b32.xlu0 %v1891, 119
      %v2194 = vpop.permute.xlu0 %2193
      %2195 = vrot.lane.b32.xlu0 %v1892, 119
      %v2196 = vpop.permute.xlu0 %2195
      %2197 = vrot.lane.b32.xlu0 %v1893, 119
      %v2198 = vpop.permute.xlu0 %2197
      %2199 = vrot.lane.b32.xlu0 %v1894, 119
      %v2200 = vpop.permute.xlu0 %2199
      %2201 = vrot.lane.b32.xlu0 %v1895, 119
      %v2202 = vpop.permute.xlu0 %2201
      %2203 = vrot.lane.b32.xlu0 %v1896, 119
      %v2204 = vpop.permute.xlu0 %2203
      %2205 = vrot.lane.b32.xlu0 %v1897, 119
      %v2206 = vpop.permute.xlu0 %2205
      %2207 = vrot.lane.b32.xlu0 %v1898, 119
      %v2208 = vpop.permute.xlu0 %2207
      %2209 = vrot.lane.b32.xlu0 %v1899, 119
      %v2210 = vpop.permute.xlu0 %2209
      %2211 = vrot.lane.b32.xlu0 %v1900, 119
      %v2212 = vpop.permute.xlu0 %2211
      %2213 = vrot.lane.b32.xlu0 %v1901, 119
      %v2214 = vpop.permute.xlu0 %2213
      %2215 = vrot.lane.b32.xlu0 %v1902, 119
      %v2216 = vpop.permute.xlu0 %2215
      %2217 = vrot.lane.b32.xlu0 %v1903, 119
      %v2218 = vpop.permute.xlu0 %2217
      %2219 = vrot.lane.b32.xlu0 %v1904, 119
      %v2220 = vpop.permute.xlu0 %2219
      %2221 = vrot.lane.b32.xlu0 %v1905, 119
      %v2222 = vpop.permute.xlu0 %2221
      %2223 = vrot.lane.b32.xlu0 %v1906, 119
      %v2224 = vpop.permute.xlu0 %2223
      %2225 = vrot.lane.b32.xlu0 %v1907, 119
      %v2226 = vpop.permute.xlu0 %2225
      %2227 = vrot.lane.b32.xlu0 %v1908, 119
      %v2228 = vpop.permute.xlu0 %2227
      %2229 = vrot.lane.b32.xlu0 %v1909, 119
      %v2230 = vpop.permute.xlu0 %2229
      %2231 = vrot.lane.b32.xlu0 %v1910, 119
      %v2232 = vpop.permute.xlu0 %2231
      %2233 = vrot.lane.b32.xlu0 %v1911, 119
      %v2234 = vpop.permute.xlu0 %2233
      %2235 = vrot.lane.b32.xlu0 %v1912, 119
      %v2236 = vpop.permute.xlu0 %2235
      %2237 = vrot.lane.b32.xlu0 %v1913, 119
      %v2238 = vpop.permute.xlu0 %2237
      %2239 = vrot.lane.b32.xlu0 %v1914, 119
      %v2240 = vpop.permute.xlu0 %2239
      %2241 = vrot.lane.b32.xlu0 %v1915, 119
      %v2242 = vpop.permute.xlu0 %2241
      %2243 = vrot.lane.b32.xlu0 %v1916, 119
      %v2244 = vpop.permute.xlu0 %2243
      %2245 = vrot.lane.b32.xlu0 %v1917, 119
      %v2246 = vpop.permute.xlu0 %2245
      %2247 = vrot.lane.b32.xlu0 %v1918, 119
      %v2248 = vpop.permute.xlu0 %2247
      %2249 = vrot.lane.b32.xlu0 %v1919, 119
      %v2250 = vpop.permute.xlu0 %2249
      %2251 = vrot.lane.b32.xlu0 %v1920, 119
      %v2252 = vpop.permute.xlu0 %2251
      %2253 = vrot.lane.b32.xlu0 %v1921, 119
      %v2254 = vpop.permute.xlu0 %2253
      %2255 = vrot.lane.b32.xlu0 %v1922, 119
      %v2256 = vpop.permute.xlu0 %2255
      %2257 = vrot.lane.b32.xlu0 %v1923, 119
      %v2258 = vpop.permute.xlu0 %2257
      %2259 = vrot.lane.b32.xlu0 %v1924, 119
      %v2260 = vpop.permute.xlu0 %2259
      %2261 = vrot.lane.b32.xlu0 %v1925, 119
      %v2262 = vpop.permute.xlu0 %2261
      %2263 = vrot.lane.b32.xlu0 %v1926, 119
      %v2264 = vpop.permute.xlu0 %2263
      %2265 = vrot.lane.b32.xlu0 %v1927, 119
      %v2266 = vpop.permute.xlu0 %2265
      %2267 = vrot.lane.b32.xlu0 %v1928, 119
      %v2268 = vpop.permute.xlu0 %2267
      %2269 = vrot.lane.b32.xlu0 %v1929, 119
      %v2270 = vpop.permute.xlu0 %2269
      %2271 = vrot.lane.b32.xlu0 %v1930, 119
      %v2272 = vpop.permute.xlu0 %2271
      %2273 = vrot.lane.b32.xlu0 %v1931, 119
      %v2274 = vpop.permute.xlu0 %2273
      %2275 = vrot.lane.b32.xlu0 %v1932, 119
      %v2276 = vpop.permute.xlu0 %2275
      %2277 = vrot.lane.b32.xlu0 %v1933, 119
      %v2278 = vpop.permute.xlu0 %2277
      %2279 = vrot.lane.b32.xlu0 %v1934, 119
      %v2280 = vpop.permute.xlu0 %2279
      %2281 = vrot.lane.b32.xlu0 %v1935, 119
      %v2282 = vpop.permute.xlu0 %2281
      %2283 = vrot.lane.b32.xlu0 %v1936, 119
      %v2284 = vpop.permute.xlu0 %2283
      %2285 = vrot.lane.b32.xlu0 %v1937, 119
      %v2286 = vpop.permute.xlu0 %2285
      %2287 = vrot.lane.b32.xlu0 %v1938, 119
      %v2288 = vpop.permute.xlu0 %2287
      %2289 = vrot.lane.b32.xlu0 %v1939, 119
      %v2290 = vpop.permute.xlu0 %2289
      %2291 = vrot.lane.b32.xlu0 %v1940, 119
      %v2292 = vpop.permute.xlu0 %2291
      %2293 = vrot.lane.b32.xlu0 %v1941, 119
      %v2294 = vpop.permute.xlu0 %2293
      %2295 = vrot.lane.b32.xlu0 %v1942, 119
      %v2296 = vpop.permute.xlu0 %2295
      %2297 = vrot.lane.b32.xlu0 %v1943, 119
      %v2298 = vpop.permute.xlu0 %2297
      %2299 = vrot.lane.b32.xlu0 %v1944, 119
      %v2300 = vpop.permute.xlu0 %2299
      %2301 = vrot.lane.b32.xlu0 %v1945, 119
      %v2302 = vpop.permute.xlu0 %2301
      %2303 = vrot.lane.b32.xlu0 %v1946, 119
      %v2304 = vpop.permute.xlu0 %2303
      %2305 = vrot.lane.b32.xlu0 %v1947, 119
      %v2306 = vpop.permute.xlu0 %2305
      %2307 = vrot.lane.b32.xlu0 %v1948, 119
      %v2308 = vpop.permute.xlu0 %2307
      %2309 = vrot.lane.b32.xlu0 %v1949, 119
      %v2310 = vpop.permute.xlu0 %2309
      %2311 = vrot.lane.b32.xlu0 %v1950, 119
      %v2312 = vpop.permute.xlu0 %2311
      %2313 = vrot.lane.b32.xlu0 %v1951, 119
      %v2314 = vpop.permute.xlu0 %2313
      %2315 = vrot.lane.b32.xlu0 %v1952, 119
      %v2316 = vpop.permute.xlu0 %2315
      %2317 = vrot.lane.b32.xlu0 %v1953, 119
      %v2318 = vpop.permute.xlu0 %2317
      %2319 = vrot.lane.b32.xlu0 %v1954, 119
      %v2320 = vpop.permute.xlu0 %2319
      %2321 = vrot.lane.b32.xlu0 %v1955, 119
      %v2322 = vpop.permute.xlu0 %2321
      %2323 = vrot.lane.b32.xlu0 %v1956, 119
      %v2324 = vpop.permute.xlu0 %2323
      %2325 = vrot.lane.b32.xlu0 %v1957, 119
      %v2326 = vpop.permute.xlu0 %2325
      %2327 = vrot.lane.b32.xlu0 %v1958, 119
      %v2328 = vpop.permute.xlu0 %2327
      %2329 = vrot.lane.b32.xlu0 %v1959, 119
      %v2330 = vpop.permute.xlu0 %2329
      %2331 = vrot.lane.b32.xlu0 %v1960, 119
      %v2332 = vpop.permute.xlu0 %2331
      %2333 = vrot.lane.b32.xlu0 %v1961, 119
      %v2334 = vpop.permute.xlu0 %2333
      %2335 = vrot.lane.b32.xlu0 %v1962, 119
      %v2336 = vpop.permute.xlu0 %2335
      %2337 = vrot.lane.b32.xlu0 %v1963, 119
      %v2338 = vpop.permute.xlu0 %2337
      %2339 = vrot.lane.b32.xlu0 %v1964, 119
      %v2340 = vpop.permute.xlu0 %2339
      %2341 = vrot.lane.b32.xlu0 %v1965, 119
      %v2342 = vpop.permute.xlu0 %2341
      %2343 = vrot.lane.b32.xlu0 %v1966, 119
      %v2344 = vpop.permute.xlu0 %2343
      %2345 = vrot.lane.b32.xlu0 %v1967, 119
      %v2346 = vpop.permute.xlu0 %2345
      %2347 = vrot.lane.b32.xlu0 %v1968, 119
      %v2348 = vpop.permute.xlu0 %2347
      %2349 = vrot.lane.b32.xlu0 %v1969, 119
      %v2350 = vpop.permute.xlu0 %2349
      %2351 = vrot.lane.b32.xlu0 %v1970, 119
      %v2352 = vpop.permute.xlu0 %2351
      %2353 = vrot.lane.b32.xlu0 %v1971, 119
      %v2354 = vpop.permute.xlu0 %2353
      %2355 = vrot.lane.b32.xlu0 %v1972, 119
      %v2356 = vpop.permute.xlu0 %2355
      %v2485 = vmax.f32 %v1845, %v2102
      %v2486 = vmax.f32 %v1846, %v2104
      %v2487 = vmax.f32 %v1847, %v2106
      %v2488 = vmax.f32 %v1848, %v2108
      %v2489 = vmax.f32 %v1849, %v2110
      %v2490 = vmax.f32 %v1850, %v2112
      %v2491 = vmax.f32 %v1851, %v2114
      %v2492 = vmax.f32 %v1852, %v2116
      %v2493 = vmax.f32 %v1853, %v2118
      %v2494 = vmax.f32 %v1854, %v2120
      %v2495 = vmax.f32 %v1855, %v2122
      %v2496 = vmax.f32 %v1856, %v2124
      %v2497 = vmax.f32 %v1857, %v2126
      %v2498 = vmax.f32 %v1858, %v2128
      %v2499 = vmax.f32 %v1859, %v2130
      %v2500 = vmax.f32 %v1860, %v2132
      %v2501 = vmax.f32 %v1861, %v2134
      %v2502 = vmax.f32 %v1862, %v2136
      %v2503 = vmax.f32 %v1863, %v2138
      %v2504 = vmax.f32 %v1864, %v2140
      %v2505 = vmax.f32 %v1865, %v2142
      %v2506 = vmax.f32 %v1866, %v2144
      %v2507 = vmax.f32 %v1867, %v2146
      %v2508 = vmax.f32 %v1868, %v2148
      %v2509 = vmax.f32 %v1869, %v2150
      %v2510 = vmax.f32 %v1870, %v2152
      %v2511 = vmax.f32 %v1871, %v2154
      %v2512 = vmax.f32 %v1872, %v2156
      %v2513 = vmax.f32 %v1873, %v2158
      %v2514 = vmax.f32 %v1874, %v2160
      %v2515 = vmax.f32 %v1875, %v2162
      %v2516 = vmax.f32 %v1876, %v2164
      %v2517 = vmax.f32 %v1877, %v2166
      %v2518 = vmax.f32 %v1878, %v2168
      %v2519 = vmax.f32 %v1879, %v2170
      %v2520 = vmax.f32 %v1880, %v2172
      %v2521 = vmax.f32 %v1881, %v2174
      %v2522 = vmax.f32 %v1882, %v2176
      %v2523 = vmax.f32 %v1883, %v2178
      %v2524 = vmax.f32 %v1884, %v2180
      %v2525 = vmax.f32 %v1885, %v2182
      %v2526 = vmax.f32 %v1886, %v2184
      %v2527 = vmax.f32 %v1887, %v2186
      %v2528 = vmax.f32 %v1888, %v2188
      %v2529 = vmax.f32 %v1889, %v2190
      %v2530 = vmax.f32 %v1890, %v2192
      %v2531 = vmax.f32 %v1891, %v2194
      %v2532 = vmax.f32 %v1892, %v2196
      %v2533 = vmax.f32 %v1893, %v2198
      %v2534 = vmax.f32 %v1894, %v2200
      %v2535 = vmax.f32 %v1895, %v2202
      %v2536 = vmax.f32 %v1896, %v2204
      %v2537 = vmax.f32 %v1897, %v2206
      %v2538 = vmax.f32 %v1898, %v2208
      %v2539 = vmax.f32 %v1899, %v2210
      %v2540 = vmax.f32 %v1900, %v2212
      %v2541 = vmax.f32 %v1901, %v2214
      %v2542 = vmax.f32 %v1902, %v2216
      %v2543 = vmax.f32 %v1903, %v2218
      %v2544 = vmax.f32 %v1904, %v2220
      %v2545 = vmax.f32 %v1905, %v2222
      %v2546 = vmax.f32 %v1906, %v2224
      %v2547 = vmax.f32 %v1907, %v2226
      %v2548 = vmax.f32 %v1908, %v2228
      %v2549 = vmax.f32 %v1909, %v2230
      %v2550 = vmax.f32 %v1910, %v2232
      %v2551 = vmax.f32 %v1911, %v2234
      %v2552 = vmax.f32 %v1912, %v2236
      %v2553 = vmax.f32 %v1913, %v2238
      %v2554 = vmax.f32 %v1914, %v2240
      %v2555 = vmax.f32 %v1915, %v2242
      %v2556 = vmax.f32 %v1916, %v2244
      %v2557 = vmax.f32 %v1917, %v2246
      %v2558 = vmax.f32 %v1918, %v2248
      %v2559 = vmax.f32 %v1919, %v2250
      %v2560 = vmax.f32 %v1920, %v2252
      %v2561 = vmax.f32 %v1921, %v2254
      %v2562 = vmax.f32 %v1922, %v2256
      %v2563 = vmax.f32 %v1923, %v2258
      %v2564 = vmax.f32 %v1924, %v2260
      %v2565 = vmax.f32 %v1925, %v2262
      %v2566 = vmax.f32 %v1926, %v2264
      %v2567 = vmax.f32 %v1927, %v2266
      %v2568 = vmax.f32 %v1928, %v2268
      %v2569 = vmax.f32 %v1929, %v2270
      %v2570 = vmax.f32 %v1930, %v2272
      %v2571 = vmax.f32 %v1931, %v2274
      %v2572 = vmax.f32 %v1932, %v2276
      %v2573 = vmax.f32 %v1933, %v2278
      %v2574 = vmax.f32 %v1934, %v2280
      %v2575 = vmax.f32 %v1935, %v2282
      %v2576 = vmax.f32 %v1936, %v2284
      %v2577 = vmax.f32 %v1937, %v2286
      %v2578 = vmax.f32 %v1938, %v2288
      %v2579 = vmax.f32 %v1939, %v2290
      %v2580 = vmax.f32 %v1940, %v2292
      %v2581 = vmax.f32 %v1941, %v2294
      %v2582 = vmax.f32 %v1942, %v2296
      %v2583 = vmax.f32 %v1943, %v2298
      %v2584 = vmax.f32 %v1944, %v2300
      %v2585 = vmax.f32 %v1945, %v2302
      %v2586 = vmax.f32 %v1946, %v2304
      %v2587 = vmax.f32 %v1947, %v2306
      %v2588 = vmax.f32 %v1948, %v2308
      %v2589 = vmax.f32 %v1949, %v2310
      %v2590 = vmax.f32 %v1950, %v2312
      %v2591 = vmax.f32 %v1951, %v2314
      %v2592 = vmax.f32 %v1952, %v2316
      %v2593 = vmax.f32 %v1953, %v2318
      %v2594 = vmax.f32 %v1954, %v2320
      %v2595 = vmax.f32 %v1955, %v2322
      %v2596 = vmax.f32 %v1956, %v2324
      %v2597 = vmax.f32 %v1957, %v2326
      %v2598 = vmax.f32 %v1958, %v2328
      %v2599 = vmax.f32 %v1959, %v2330
      %v2600 = vmax.f32 %v1960, %v2332
      %v2601 = vmax.f32 %v1961, %v2334
      %v2602 = vmax.f32 %v1962, %v2336
      %v2603 = vmax.f32 %v1963, %v2338
      %v2604 = vmax.f32 %v1964, %v2340
      %v2605 = vmax.f32 %v1965, %v2342
      %v2606 = vmax.f32 %v1966, %v2344
      %v2607 = vmax.f32 %v1967, %v2346
      %v2608 = vmax.f32 %v1968, %v2348
      %v2609 = vmax.f32 %v1969, %v2350
      %v2610 = vmax.f32 %v1970, %v2352
      %v2611 = vmax.f32 %v1971, %v2354
      %v2612 = vmax.f32 %v1972, %v2356
      %v2613 = vld [vmem:[%s3] sm:$0x1]
      %v2615 = vlaneseq
      %v2616 = vshrl.u32 %v2615, 7
      %v2617 = vsub.s32 0, %v2616
      %v2618 = vrot.slane %v2613, %v2617
      %2619 = vrot.lane.b32.xlu0 %v2618, 12
      %v2620 = vpop.permute.xlu0 %2619
      %v2622 = vmul.f32 %v2485, %v2620
      %v2623 = vmul.f32 %v2486, %v2620
      %v2624 = vmul.f32 %v2487, %v2620
      %v2625 = vmul.f32 %v2488, %v2620
      %v2626 = vmul.f32 %v2489, %v2620
      %v2627 = vmul.f32 %v2490, %v2620
      %v2628 = vmul.f32 %v2491, %v2620
      %v2629 = vmul.f32 %v2492, %v2620
      %v2630 = vmul.f32 %v2493, %v2620
      %v2631 = vmul.f32 %v2494, %v2620
      %v2632 = vmul.f32 %v2495, %v2620
      %v2633 = vmul.f32 %v2496, %v2620
      %v2634 = vmul.f32 %v2497, %v2620
      %v2635 = vmul.f32 %v2498, %v2620
      %v2636 = vmul.f32 %v2499, %v2620
      %v2637 = vmul.f32 %v2500, %v2620
      %v2638 = vmul.f32 %v2501, %v2620
      %v2639 = vmul.f32 %v2502, %v2620
      %v2640 = vmul.f32 %v2503, %v2620
      %v2641 = vmul.f32 %v2504, %v2620
      %v2642 = vmul.f32 %v2505, %v2620
      %v2643 = vmul.f32 %v2506, %v2620
      %v2644 = vmul.f32 %v2507, %v2620
      %v2645 = vmul.f32 %v2508, %v2620
      %v2646 = vmul.f32 %v2509, %v2620
      %v2647 = vmul.f32 %v2510, %v2620
      %v2648 = vmul.f32 %v2511, %v2620
      %v2649 = vmul.f32 %v2512, %v2620
      %v2650 = vmul.f32 %v2513, %v2620
      %v2651 = vmul.f32 %v2514, %v2620
      %v2652 = vmul.f32 %v2515, %v2620
      %v2653 = vmul.f32 %v2516, %v2620
      %v2654 = vmul.f32 %v2517, %v2620
      %v2655 = vmul.f32 %v2518, %v2620
      %v2656 = vmul.f32 %v2519, %v2620
      %v2657 = vmul.f32 %v2520, %v2620
      %v2658 = vmul.f32 %v2521, %v2620
      %v2659 = vmul.f32 %v2522, %v2620
      %v2660 = vmul.f32 %v2523, %v2620
      %v2661 = vmul.f32 %v2524, %v2620
      %v2662 = vmul.f32 %v2525, %v2620
      %v2663 = vmul.f32 %v2526, %v2620
      %v2664 = vmul.f32 %v2527, %v2620
      %v2665 = vmul.f32 %v2528, %v2620
      %v2666 = vmul.f32 %v2529, %v2620
      %v2667 = vmul.f32 %v2530, %v2620
      %v2668 = vmul.f32 %v2531, %v2620
      %v2669 = vmul.f32 %v2532, %v2620
      %v2670 = vmul.f32 %v2533, %v2620
      %v2671 = vmul.f32 %v2534, %v2620
      %v2672 = vmul.f32 %v2535, %v2620
      %v2673 = vmul.f32 %v2536, %v2620
      %v2674 = vmul.f32 %v2537, %v2620
      %v2675 = vmul.f32 %v2538, %v2620
      %v2676 = vmul.f32 %v2539, %v2620
      %v2677 = vmul.f32 %v2540, %v2620
      %v2678 = vmul.f32 %v2541, %v2620
      %v2679 = vmul.f32 %v2542, %v2620
      %v2680 = vmul.f32 %v2543, %v2620
      %v2681 = vmul.f32 %v2544, %v2620
      %v2682 = vmul.f32 %v2545, %v2620
      %v2683 = vmul.f32 %v2546, %v2620
      %v2684 = vmul.f32 %v2547, %v2620
      %v2685 = vmul.f32 %v2548, %v2620
      %v2686 = vmul.f32 %v2549, %v2620
      %v2687 = vmul.f32 %v2550, %v2620
      %v2688 = vmul.f32 %v2551, %v2620
      %v2689 = vmul.f32 %v2552, %v2620
      %v2690 = vmul.f32 %v2553, %v2620
      %v2691 = vmul.f32 %v2554, %v2620
      %v2692 = vmul.f32 %v2555, %v2620
      %v2693 = vmul.f32 %v2556, %v2620
      %v2694 = vmul.f32 %v2557, %v2620
      %v2695 = vmul.f32 %v2558, %v2620
      %v2696 = vmul.f32 %v2559, %v2620
      %v2697 = vmul.f32 %v2560, %v2620
      %v2698 = vmul.f32 %v2561, %v2620
      %v2699 = vmul.f32 %v2562, %v2620
      %v2700 = vmul.f32 %v2563, %v2620
      %v2701 = vmul.f32 %v2564, %v2620
      %v2702 = vmul.f32 %v2565, %v2620
      %v2703 = vmul.f32 %v2566, %v2620
      %v2704 = vmul.f32 %v2567, %v2620
      %v2705 = vmul.f32 %v2568, %v2620
      %v2706 = vmul.f32 %v2569, %v2620
      %v2707 = vmul.f32 %v2570, %v2620
      %v2708 = vmul.f32 %v2571, %v2620
      %v2709 = vmul.f32 %v2572, %v2620
      %v2710 = vmul.f32 %v2573, %v2620
      %v2711 = vmul.f32 %v2574, %v2620
      %v2712 = vmul.f32 %v2575, %v2620
      %v2713 = vmul.f32 %v2576, %v2620
      %v2714 = vmul.f32 %v2577, %v2620
      %v2715 = vmul.f32 %v2578, %v2620
      %v2716 = vmul.f32 %v2579, %v2620
      %v2717 = vmul.f32 %v2580, %v2620
      %v2718 = vmul.f32 %v2581, %v2620
      %v2719 = vmul.f32 %v2582, %v2620
      %v2720 = vmul.f32 %v2583, %v2620
      %v2721 = vmul.f32 %v2584, %v2620
      %v2722 = vmul.f32 %v2585, %v2620
      %v2723 = vmul.f32 %v2586, %v2620
      %v2724 = vmul.f32 %v2587, %v2620
      %v2725 = vmul.f32 %v2588, %v2620
      %v2726 = vmul.f32 %v2589, %v2620
      %v2727 = vmul.f32 %v2590, %v2620
      %v2728 = vmul.f32 %v2591, %v2620
      %v2729 = vmul.f32 %v2592, %v2620
      %v2730 = vmul.f32 %v2593, %v2620
      %v2731 = vmul.f32 %v2594, %v2620
      %v2732 = vmul.f32 %v2595, %v2620
      %v2733 = vmul.f32 %v2596, %v2620
      %v2734 = vmul.f32 %v2597, %v2620
      %v2735 = vmul.f32 %v2598, %v2620
      %v2736 = vmul.f32 %v2599, %v2620
      %v2737 = vmul.f32 %v2600, %v2620
      %v2738 = vmul.f32 %v2601, %v2620
      %v2739 = vmul.f32 %v2602, %v2620
      %v2740 = vmul.f32 %v2603, %v2620
      %v2741 = vmul.f32 %v2604, %v2620
      %v2742 = vmul.f32 %v2605, %v2620
      %v2743 = vmul.f32 %v2606, %v2620
      %v2744 = vmul.f32 %v2607, %v2620
      %v2745 = vmul.f32 %v2608, %v2620
      %v2746 = vmul.f32 %v2609, %v2620
      %v2747 = vmul.f32 %v2610, %v2620
      %v2748 = vmul.f32 %v2611, %v2620
      %v2749 = vmul.f32 %v2612, %v2620
      %v2750 = vld [vmem:[%s4] sm:$0x1]
      %v2752 = vlaneseq
      %v2753 = vshrl.u32 %v2752, 7
      %v2754 = vsub.s32 0, %v2753
      %v2755 = vrot.slane %v2750, %v2754
      %2756 = vrot.lane.b32.xlu0 %v2755, 12
      %v2757 = vpop.permute.xlu0 %2756
      %v2759 = vadd.f32 %v2622, %v2757
      %v2760 = vadd.f32 %v2623, %v2757
      %v2761 = vadd.f32 %v2624, %v2757
      %v2762 = vadd.f32 %v2625, %v2757
      %v2763 = vadd.f32 %v2626, %v2757
      %v2764 = vadd.f32 %v2627, %v2757
      %v2765 = vadd.f32 %v2628, %v2757
      %v2766 = vadd.f32 %v2629, %v2757
      %v2767 = vadd.f32 %v2630, %v2757
      %v2768 = vadd.f32 %v2631, %v2757
      %v2769 = vadd.f32 %v2632, %v2757
      %v2770 = vadd.f32 %v2633, %v2757
      %v2771 = vadd.f32 %v2634, %v2757
      %v2772 = vadd.f32 %v2635, %v2757
      %v2773 = vadd.f32 %v2636, %v2757
      %v2774 = vadd.f32 %v2637, %v2757
      %v2775 = vadd.f32 %v2638, %v2757
      %v2776 = vadd.f32 %v2639, %v2757
      %v2777 = vadd.f32 %v2640, %v2757
      %v2778 = vadd.f32 %v2641, %v2757
      %v2779 = vadd.f32 %v2642, %v2757
      %v2780 = vadd.f32 %v2643, %v2757
      %v2781 = vadd.f32 %v2644, %v2757
      %v2782 = vadd.f32 %v2645, %v2757
      %v2783 = vadd.f32 %v2646, %v2757
      %v2784 = vadd.f32 %v2647, %v2757
      %v2785 = vadd.f32 %v2648, %v2757
      %v2786 = vadd.f32 %v2649, %v2757
      %v2787 = vadd.f32 %v2650, %v2757
      %v2788 = vadd.f32 %v2651, %v2757
      %v2789 = vadd.f32 %v2652, %v2757
      %v2790 = vadd.f32 %v2653, %v2757
      %v2791 = vadd.f32 %v2654, %v2757
      %v2792 = vadd.f32 %v2655, %v2757
      %v2793 = vadd.f32 %v2656, %v2757
      %v2794 = vadd.f32 %v2657, %v2757
      %v2795 = vadd.f32 %v2658, %v2757
      %v2796 = vadd.f32 %v2659, %v2757
      %v2797 = vadd.f32 %v2660, %v2757
      %v2798 = vadd.f32 %v2661, %v2757
      %v2799 = vadd.f32 %v2662, %v2757
      %v2800 = vadd.f32 %v2663, %v2757
      %v2801 = vadd.f32 %v2664, %v2757
      %v2802 = vadd.f32 %v2665, %v2757
      %v2803 = vadd.f32 %v2666, %v2757
      %v2804 = vadd.f32 %v2667, %v2757
      %v2805 = vadd.f32 %v2668, %v2757
      %v2806 = vadd.f32 %v2669, %v2757
      %v2807 = vadd.f32 %v2670, %v2757
      %v2808 = vadd.f32 %v2671, %v2757
      %v2809 = vadd.f32 %v2672, %v2757
      %v2810 = vadd.f32 %v2673, %v2757
      %v2811 = vadd.f32 %v2674, %v2757
      %v2812 = vadd.f32 %v2675, %v2757
      %v2813 = vadd.f32 %v2676, %v2757
      %v2814 = vadd.f32 %v2677, %v2757
      %v2815 = vadd.f32 %v2678, %v2757
      %v2816 = vadd.f32 %v2679, %v2757
      %v2817 = vadd.f32 %v2680, %v2757
      %v2818 = vadd.f32 %v2681, %v2757
      %v2819 = vadd.f32 %v2682, %v2757
      %v2820 = vadd.f32 %v2683, %v2757
      %v2821 = vadd.f32 %v2684, %v2757
      %v2822 = vadd.f32 %v2685, %v2757
      %v2823 = vadd.f32 %v2686, %v2757
      %v2824 = vadd.f32 %v2687, %v2757
      %v2825 = vadd.f32 %v2688, %v2757
      %v2826 = vadd.f32 %v2689, %v2757
      %v2827 = vadd.f32 %v2690, %v2757
      %v2828 = vadd.f32 %v2691, %v2757
      %v2829 = vadd.f32 %v2692, %v2757
      %v2830 = vadd.f32 %v2693, %v2757
      %v2831 = vadd.f32 %v2694, %v2757
      %v2832 = vadd.f32 %v2695, %v2757
      %v2833 = vadd.f32 %v2696, %v2757
      %v2834 = vadd.f32 %v2697, %v2757
      %v2835 = vadd.f32 %v2698, %v2757
      %v2836 = vadd.f32 %v2699, %v2757
      %v2837 = vadd.f32 %v2700, %v2757
      %v2838 = vadd.f32 %v2701, %v2757
      %v2839 = vadd.f32 %v2702, %v2757
      %v2840 = vadd.f32 %v2703, %v2757
      %v2841 = vadd.f32 %v2704, %v2757
      %v2842 = vadd.f32 %v2705, %v2757
      %v2843 = vadd.f32 %v2706, %v2757
      %v2844 = vadd.f32 %v2707, %v2757
      %v2845 = vadd.f32 %v2708, %v2757
      %v2846 = vadd.f32 %v2709, %v2757
      %v2847 = vadd.f32 %v2710, %v2757
      %v2848 = vadd.f32 %v2711, %v2757
      %v2849 = vadd.f32 %v2712, %v2757
      %v2850 = vadd.f32 %v2713, %v2757
      %v2851 = vadd.f32 %v2714, %v2757
      %v2852 = vadd.f32 %v2715, %v2757
      %v2853 = vadd.f32 %v2716, %v2757
      %v2854 = vadd.f32 %v2717, %v2757
      %v2855 = vadd.f32 %v2718, %v2757
      %v2856 = vadd.f32 %v2719, %v2757
      %v2857 = vadd.f32 %v2720, %v2757
      %v2858 = vadd.f32 %v2721, %v2757
      %v2859 = vadd.f32 %v2722, %v2757
      %v2860 = vadd.f32 %v2723, %v2757
      %v2861 = vadd.f32 %v2724, %v2757
      %v2862 = vadd.f32 %v2725, %v2757
      %v2863 = vadd.f32 %v2726, %v2757
      %v2864 = vadd.f32 %v2727, %v2757
      %v2865 = vadd.f32 %v2728, %v2757
      %v2866 = vadd.f32 %v2729, %v2757
      %v2867 = vadd.f32 %v2730, %v2757
      %v2868 = vadd.f32 %v2731, %v2757
      %v2869 = vadd.f32 %v2732, %v2757
      %v2870 = vadd.f32 %v2733, %v2757
      %v2871 = vadd.f32 %v2734, %v2757
      %v2872 = vadd.f32 %v2735, %v2757
      %v2873 = vadd.f32 %v2736, %v2757
      %v2874 = vadd.f32 %v2737, %v2757
      %v2875 = vadd.f32 %v2738, %v2757
      %v2876 = vadd.f32 %v2739, %v2757
      %v2877 = vadd.f32 %v2740, %v2757
      %v2878 = vadd.f32 %v2741, %v2757
      %v2879 = vadd.f32 %v2742, %v2757
      %v2880 = vadd.f32 %v2743, %v2757
      %v2881 = vadd.f32 %v2744, %v2757
      %v2882 = vadd.f32 %v2745, %v2757
      %v2883 = vadd.f32 %v2746, %v2757
      %v2884 = vadd.f32 %v2747, %v2757
      %v2885 = vadd.f32 %v2748, %v2757
      %v2886 = vadd.f32 %v2749, %v2757
      %3015 = vrot.lane.b32.xlu0 %v2759, 1
      %v3016 = vpop.permute.xlu0 %3015
      %3017 = vrot.lane.b32.xlu0 %v2760, 1
      %v3018 = vpop.permute.xlu0 %3017
      %3019 = vrot.lane.b32.xlu0 %v2761, 1
      %v3020 = vpop.permute.xlu0 %3019
      %3021 = vrot.lane.b32.xlu0 %v2762, 1
      %v3022 = vpop.permute.xlu0 %3021
      %3023 = vrot.lane.b32.xlu0 %v2763, 1
      %v3024 = vpop.permute.xlu0 %3023
      %3025 = vrot.lane.b32.xlu0 %v2764, 1
      %v3026 = vpop.permute.xlu0 %3025
      %3027 = vrot.lane.b32.xlu0 %v2765, 1
      %v3028 = vpop.permute.xlu0 %3027
      %3029 = vrot.lane.b32.xlu0 %v2766, 1
      %v3030 = vpop.permute.xlu0 %3029
      %3031 = vrot.lane.b32.xlu0 %v2767, 1
      %v3032 = vpop.permute.xlu0 %3031
      %3033 = vrot.lane.b32.xlu0 %v2768, 1
      %v3034 = vpop.permute.xlu0 %3033
      %3035 = vrot.lane.b32.xlu0 %v2769, 1
      %v3036 = vpop.permute.xlu0 %3035
      %3037 = vrot.lane.b32.xlu0 %v2770, 1
      %v3038 = vpop.permute.xlu0 %3037
      %3039 = vrot.lane.b32.xlu0 %v2771, 1
      %v3040 = vpop.permute.xlu0 %3039
      %3041 = vrot.lane.b32.xlu0 %v2772, 1
      %v3042 = vpop.permute.xlu0 %3041
      %3043 = vrot.lane.b32.xlu0 %v2773, 1
      %v3044 = vpop.permute.xlu0 %3043
      %3045 = vrot.lane.b32.xlu0 %v2774, 1
      %v3046 = vpop.permute.xlu0 %3045
      %3047 = vrot.lane.b32.xlu0 %v2775, 1
      %v3048 = vpop.permute.xlu0 %3047
      %3049 = vrot.lane.b32.xlu0 %v2776, 1
      %v3050 = vpop.permute.xlu0 %3049
      %3051 = vrot.lane.b32.xlu0 %v2777, 1
      %v3052 = vpop.permute.xlu0 %3051
      %3053 = vrot.lane.b32.xlu0 %v2778, 1
      %v3054 = vpop.permute.xlu0 %3053
      %3055 = vrot.lane.b32.xlu0 %v2779, 1
      %v3056 = vpop.permute.xlu0 %3055
      %3057 = vrot.lane.b32.xlu0 %v2780, 1
      %v3058 = vpop.permute.xlu0 %3057
      %3059 = vrot.lane.b32.xlu0 %v2781, 1
      %v3060 = vpop.permute.xlu0 %3059
      %3061 = vrot.lane.b32.xlu0 %v2782, 1
      %v3062 = vpop.permute.xlu0 %3061
      %3063 = vrot.lane.b32.xlu0 %v2783, 1
      %v3064 = vpop.permute.xlu0 %3063
      %3065 = vrot.lane.b32.xlu0 %v2784, 1
      %v3066 = vpop.permute.xlu0 %3065
      %3067 = vrot.lane.b32.xlu0 %v2785, 1
      %v3068 = vpop.permute.xlu0 %3067
      %3069 = vrot.lane.b32.xlu0 %v2786, 1
      %v3070 = vpop.permute.xlu0 %3069
      %3071 = vrot.lane.b32.xlu0 %v2787, 1
      %v3072 = vpop.permute.xlu0 %3071
      %3073 = vrot.lane.b32.xlu0 %v2788, 1
      %v3074 = vpop.permute.xlu0 %3073
      %3075 = vrot.lane.b32.xlu0 %v2789, 1
      %v3076 = vpop.permute.xlu0 %3075
      %3077 = vrot.lane.b32.xlu0 %v2790, 1
      %v3078 = vpop.permute.xlu0 %3077
      %3079 = vrot.lane.b32.xlu0 %v2791, 1
      %v3080 = vpop.permute.xlu0 %3079
      %3081 = vrot.lane.b32.xlu0 %v2792, 1
      %v3082 = vpop.permute.xlu0 %3081
      %3083 = vrot.lane.b32.xlu0 %v2793, 1
      %v3084 = vpop.permute.xlu0 %3083
      %3085 = vrot.lane.b32.xlu0 %v2794, 1
      %v3086 = vpop.permute.xlu0 %3085
      %3087 = vrot.lane.b32.xlu0 %v2795, 1
      %v3088 = vpop.permute.xlu0 %3087
      %3089 = vrot.lane.b32.xlu0 %v2796, 1
      %v3090 = vpop.permute.xlu0 %3089
      %3091 = vrot.lane.b32.xlu0 %v2797, 1
      %v3092 = vpop.permute.xlu0 %3091
      %3093 = vrot.lane.b32.xlu0 %v2798, 1
      %v3094 = vpop.permute.xlu0 %3093
      %3095 = vrot.lane.b32.xlu0 %v2799, 1
      %v3096 = vpop.permute.xlu0 %3095
      %3097 = vrot.lane.b32.xlu0 %v2800, 1
      %v3098 = vpop.permute.xlu0 %3097
      %3099 = vrot.lane.b32.xlu0 %v2801, 1
      %v3100 = vpop.permute.xlu0 %3099
      %3101 = vrot.lane.b32.xlu0 %v2802, 1
      %v3102 = vpop.permute.xlu0 %3101
      %3103 = vrot.lane.b32.xlu0 %v2803, 1
      %v3104 = vpop.permute.xlu0 %3103
      %3105 = vrot.lane.b32.xlu0 %v2804, 1
      %v3106 = vpop.permute.xlu0 %3105
      %3107 = vrot.lane.b32.xlu0 %v2805, 1
      %v3108 = vpop.permute.xlu0 %3107
      %3109 = vrot.lane.b32.xlu0 %v2806, 1
      %v3110 = vpop.permute.xlu0 %3109
      %3111 = vrot.lane.b32.xlu0 %v2807, 1
      %v3112 = vpop.permute.xlu0 %3111
      %3113 = vrot.lane.b32.xlu0 %v2808, 1
      %v3114 = vpop.permute.xlu0 %3113
      %3115 = vrot.lane.b32.xlu0 %v2809, 1
      %v3116 = vpop.permute.xlu0 %3115
      %3117 = vrot.lane.b32.xlu0 %v2810, 1
      %v3118 = vpop.permute.xlu0 %3117
      %3119 = vrot.lane.b32.xlu0 %v2811, 1
      %v3120 = vpop.permute.xlu0 %3119
      %3121 = vrot.lane.b32.xlu0 %v2812, 1
      %v3122 = vpop.permute.xlu0 %3121
      %3123 = vrot.lane.b32.xlu0 %v2813, 1
      %v3124 = vpop.permute.xlu0 %3123
      %3125 = vrot.lane.b32.xlu0 %v2814, 1
      %v3126 = vpop.permute.xlu0 %3125
      %3127 = vrot.lane.b32.xlu0 %v2815, 1
      %v3128 = vpop.permute.xlu0 %3127
      %3129 = vrot.lane.b32.xlu0 %v2816, 1
      %v3130 = vpop.permute.xlu0 %3129
      %3131 = vrot.lane.b32.xlu0 %v2817, 1
      %v3132 = vpop.permute.xlu0 %3131
      %3133 = vrot.lane.b32.xlu0 %v2818, 1
      %v3134 = vpop.permute.xlu0 %3133
      %3135 = vrot.lane.b32.xlu0 %v2819, 1
      %v3136 = vpop.permute.xlu0 %3135
      %3137 = vrot.lane.b32.xlu0 %v2820, 1
      %v3138 = vpop.permute.xlu0 %3137
      %3139 = vrot.lane.b32.xlu0 %v2821, 1
      %v3140 = vpop.permute.xlu0 %3139
      %3141 = vrot.lane.b32.xlu0 %v2822, 1
      %v3142 = vpop.permute.xlu0 %3141
      %3143 = vrot.lane.b32.xlu0 %v2823, 1
      %v3144 = vpop.permute.xlu0 %3143
      %3145 = vrot.lane.b32.xlu0 %v2824, 1
      %v3146 = vpop.permute.xlu0 %3145
      %3147 = vrot.lane.b32.xlu0 %v2825, 1
      %v3148 = vpop.permute.xlu0 %3147
      %3149 = vrot.lane.b32.xlu0 %v2826, 1
      %v3150 = vpop.permute.xlu0 %3149
      %3151 = vrot.lane.b32.xlu0 %v2827, 1
      %v3152 = vpop.permute.xlu0 %3151
      %3153 = vrot.lane.b32.xlu0 %v2828, 1
      %v3154 = vpop.permute.xlu0 %3153
      %3155 = vrot.lane.b32.xlu0 %v2829, 1
      %v3156 = vpop.permute.xlu0 %3155
      %3157 = vrot.lane.b32.xlu0 %v2830, 1
      %v3158 = vpop.permute.xlu0 %3157
      %3159 = vrot.lane.b32.xlu0 %v2831, 1
      %v3160 = vpop.permute.xlu0 %3159
      %3161 = vrot.lane.b32.xlu0 %v2832, 1
      %v3162 = vpop.permute.xlu0 %3161
      %3163 = vrot.lane.b32.xlu0 %v2833, 1
      %v3164 = vpop.permute.xlu0 %3163
      %3165 = vrot.lane.b32.xlu0 %v2834, 1
      %v3166 = vpop.permute.xlu0 %3165
      %3167 = vrot.lane.b32.xlu0 %v2835, 1
      %v3168 = vpop.permute.xlu0 %3167
      %3169 = vrot.lane.b32.xlu0 %v2836, 1
      %v3170 = vpop.permute.xlu0 %3169
      %3171 = vrot.lane.b32.xlu0 %v2837, 1
      %v3172 = vpop.permute.xlu0 %3171
      %3173 = vrot.lane.b32.xlu0 %v2838, 1
      %v3174 = vpop.permute.xlu0 %3173
      %3175 = vrot.lane.b32.xlu0 %v2839, 1
      %v3176 = vpop.permute.xlu0 %3175
      %3177 = vrot.lane.b32.xlu0 %v2840, 1
      %v3178 = vpop.permute.xlu0 %3177
      %3179 = vrot.lane.b32.xlu0 %v2841, 1
      %v3180 = vpop.permute.xlu0 %3179
      %3181 = vrot.lane.b32.xlu0 %v2842, 1
      %v3182 = vpop.permute.xlu0 %3181
      %3183 = vrot.lane.b32.xlu0 %v2843, 1
      %v3184 = vpop.permute.xlu0 %3183
      %3185 = vrot.lane.b32.xlu0 %v2844, 1
      %v3186 = vpop.permute.xlu0 %3185
      %3187 = vrot.lane.b32.xlu0 %v2845, 1
      %v3188 = vpop.permute.xlu0 %3187
      %3189 = vrot.lane.b32.xlu0 %v2846, 1
      %v3190 = vpop.permute.xlu0 %3189
      %3191 = vrot.lane.b32.xlu0 %v2847, 1
      %v3192 = vpop.permute.xlu0 %3191
      %3193 = vrot.lane.b32.xlu0 %v2848, 1
      %v3194 = vpop.permute.xlu0 %3193
      %3195 = vrot.lane.b32.xlu0 %v2849, 1
      %v3196 = vpop.permute.xlu0 %3195
      %3197 = vrot.lane.b32.xlu0 %v2850, 1
      %v3198 = vpop.permute.xlu0 %3197
      %3199 = vrot.lane.b32.xlu0 %v2851, 1
      %v3200 = vpop.permute.xlu0 %3199
      %3201 = vrot.lane.b32.xlu0 %v2852, 1
      %v3202 = vpop.permute.xlu0 %3201
      %3203 = vrot.lane.b32.xlu0 %v2853, 1
      %v3204 = vpop.permute.xlu0 %3203
      %3205 = vrot.lane.b32.xlu0 %v2854, 1
      %v3206 = vpop.permute.xlu0 %3205
      %3207 = vrot.lane.b32.xlu0 %v2855, 1
      %v3208 = vpop.permute.xlu0 %3207
      %3209 = vrot.lane.b32.xlu0 %v2856, 1
      %v3210 = vpop.permute.xlu0 %3209
      %3211 = vrot.lane.b32.xlu0 %v2857, 1
      %v3212 = vpop.permute.xlu0 %3211
      %3213 = vrot.lane.b32.xlu0 %v2858, 1
      %v3214 = vpop.permute.xlu0 %3213
      %3215 = vrot.lane.b32.xlu0 %v2859, 1
      %v3216 = vpop.permute.xlu0 %3215
      %3217 = vrot.lane.b32.xlu0 %v2860, 1
      %v3218 = vpop.permute.xlu0 %3217
      %3219 = vrot.lane.b32.xlu0 %v2861, 1
      %v3220 = vpop.permute.xlu0 %3219
      %3221 = vrot.lane.b32.xlu0 %v2862, 1
      %v3222 = vpop.permute.xlu0 %3221
      %3223 = vrot.lane.b32.xlu0 %v2863, 1
      %v3224 = vpop.permute.xlu0 %3223
      %3225 = vrot.lane.b32.xlu0 %v2864, 1
      %v3226 = vpop.permute.xlu0 %3225
      %3227 = vrot.lane.b32.xlu0 %v2865, 1
      %v3228 = vpop.permute.xlu0 %3227
      %3229 = vrot.lane.b32.xlu0 %v2866, 1
      %v3230 = vpop.permute.xlu0 %3229
      %3231 = vrot.lane.b32.xlu0 %v2867, 1
      %v3232 = vpop.permute.xlu0 %3231
      %3233 = vrot.lane.b32.xlu0 %v2868, 1
      %v3234 = vpop.permute.xlu0 %3233
      %3235 = vrot.lane.b32.xlu0 %v2869, 1
      %v3236 = vpop.permute.xlu0 %3235
      %3237 = vrot.lane.b32.xlu0 %v2870, 1
      %v3238 = vpop.permute.xlu0 %3237
      %3239 = vrot.lane.b32.xlu0 %v2871, 1
      %v3240 = vpop.permute.xlu0 %3239
      %3241 = vrot.lane.b32.xlu0 %v2872, 1
      %v3242 = vpop.permute.xlu0 %3241
      %3243 = vrot.lane.b32.xlu0 %v2873, 1
      %v3244 = vpop.permute.xlu0 %3243
      %3245 = vrot.lane.b32.xlu0 %v2874, 1
      %v3246 = vpop.permute.xlu0 %3245
      %3247 = vrot.lane.b32.xlu0 %v2875, 1
      %v3248 = vpop.permute.xlu0 %3247
      %3249 = vrot.lane.b32.xlu0 %v2876, 1
      %v3250 = vpop.permute.xlu0 %3249
      %3251 = vrot.lane.b32.xlu0 %v2877, 1
      %v3252 = vpop.permute.xlu0 %3251
      %3253 = vrot.lane.b32.xlu0 %v2878, 1
      %v3254 = vpop.permute.xlu0 %3253
      %3255 = vrot.lane.b32.xlu0 %v2879, 1
      %v3256 = vpop.permute.xlu0 %3255
      %3257 = vrot.lane.b32.xlu0 %v2880, 1
      %v3258 = vpop.permute.xlu0 %3257
      %3259 = vrot.lane.b32.xlu0 %v2881, 1
      %v3260 = vpop.permute.xlu0 %3259
      %3261 = vrot.lane.b32.xlu0 %v2882, 1
      %v3262 = vpop.permute.xlu0 %3261
      %3263 = vrot.lane.b32.xlu0 %v2883, 1
      %v3264 = vpop.permute.xlu0 %3263
      %3265 = vrot.lane.b32.xlu0 %v2884, 1
      %v3266 = vpop.permute.xlu0 %3265
      %3267 = vrot.lane.b32.xlu0 %v2885, 1
      %v3268 = vpop.permute.xlu0 %3267
      %3269 = vrot.lane.b32.xlu0 %v2886, 1
      %v3270 = vpop.permute.xlu0 %3269
      %vm3399 = vcmask 105472
      %v3400 = vsel %vm3399, %v823, %v3016
      %v3401 = vsel %vm3399, %v828, %v3018
      %v3402 = vsel %vm3399, %v833, %v3020
      %v3403 = vsel %vm3399, %v838, %v3022
      %v3404 = vsel %vm3399, %v843, %v3024
      %v3405 = vsel %vm3399, %v848, %v3026
      %v3406 = vsel %vm3399, %v853, %v3028
      %v3407 = vsel %vm3399, %v858, %v3030
      %v3408 = vsel %vm3399, %v863, %v3032
      %v3409 = vsel %vm3399, %v868, %v3034
      %v3410 = vsel %vm3399, %v873, %v3036
      %v3411 = vsel %vm3399, %v878, %v3038
      %v3412 = vsel %vm3399, %v883, %v3040
      %v3413 = vsel %vm3399, %v888, %v3042
      %v3414 = vsel %vm3399, %v893, %v3044
      %v3415 = vsel %vm3399, %v898, %v3046
      %v3416 = vsel %vm3399, %v903, %v3048
      %v3417 = vsel %vm3399, %v908, %v3050
      %v3418 = vsel %vm3399, %v913, %v3052
      %v3419 = vsel %vm3399, %v918, %v3054
      %v3420 = vsel %vm3399, %v923, %v3056
      %v3421 = vsel %vm3399, %v928, %v3058
      %v3422 = vsel %vm3399, %v933, %v3060
      %v3423 = vsel %vm3399, %v938, %v3062
      %v3424 = vsel %vm3399, %v943, %v3064
      %v3425 = vsel %vm3399, %v948, %v3066
      %v3426 = vsel %vm3399, %v953, %v3068
      %v3427 = vsel %vm3399, %v958, %v3070
      %v3428 = vsel %vm3399, %v963, %v3072
      %v3429 = vsel %vm3399, %v968, %v3074
      %v3430 = vsel %vm3399, %v973, %v3076
      %v3431 = vsel %vm3399, %v978, %v3078
      %v3432 = vsel %vm3399, %v983, %v3080
      %v3433 = vsel %vm3399, %v988, %v3082
      %v3434 = vsel %vm3399, %v993, %v3084
      %v3435 = vsel %vm3399, %v998, %v3086
      %v3436 = vsel %vm3399, %v1003, %v3088
      %v3437 = vsel %vm3399, %v1008, %v3090
      %v3438 = vsel %vm3399, %v1013, %v3092
      %v3439 = vsel %vm3399, %v1018, %v3094
      %v3440 = vsel %vm3399, %v1023, %v3096
      %v3441 = vsel %vm3399, %v1028, %v3098
      %v3442 = vsel %vm3399, %v1033, %v3100
      %v3443 = vsel %vm3399, %v1038, %v3102
      %v3444 = vsel %vm3399, %v1043, %v3104
      %v3445 = vsel %vm3399, %v1048, %v3106
      %v3446 = vsel %vm3399, %v1053, %v3108
      %v3447 = vsel %vm3399, %v1058, %v3110
      %v3448 = vsel %vm3399, %v1063, %v3112
      %v3449 = vsel %vm3399, %v1068, %v3114
      %v3450 = vsel %vm3399, %v1073, %v3116
      %v3451 = vsel %vm3399, %v1078, %v3118
      %v3452 = vsel %vm3399, %v1083, %v3120
      %v3453 = vsel %vm3399, %v1088, %v3122
      %v3454 = vsel %vm3399, %v1093, %v3124
      %v3455 = vsel %vm3399, %v1098, %v3126
      %v3456 = vsel %vm3399, %v1103, %v3128
      %v3457 = vsel %vm3399, %v1108, %v3130
      %v3458 = vsel %vm3399, %v1113, %v3132
      %v3459 = vsel %vm3399, %v1118, %v3134
      %v3460 = vsel %vm3399, %v1123, %v3136
      %v3461 = vsel %vm3399, %v1128, %v3138
      %v3462 = vsel %vm3399, %v1133, %v3140
      %v3463 = vsel %vm3399, %v1138, %v3142
      %v3464 = vsel %vm3399, %v1143, %v3144
      %v3465 = vsel %vm3399, %v1148, %v3146
      %v3466 = vsel %vm3399, %v1153, %v3148
      %v3467 = vsel %vm3399, %v1158, %v3150
      %v3468 = vsel %vm3399, %v1163, %v3152
      %v3469 = vsel %vm3399, %v1168, %v3154
      %v3470 = vsel %vm3399, %v1173, %v3156
      %v3471 = vsel %vm3399, %v1178, %v3158
      %v3472 = vsel %vm3399, %v1183, %v3160
      %v3473 = vsel %vm3399, %v1188, %v3162
      %v3474 = vsel %vm3399, %v1193, %v3164
      %v3475 = vsel %vm3399, %v1198, %v3166
      %v3476 = vsel %vm3399, %v1203, %v3168
      %v3477 = vsel %vm3399, %v1208, %v3170
      %v3478 = vsel %vm3399, %v1213, %v3172
      %v3479 = vsel %vm3399, %v1218, %v3174
      %v3480 = vsel %vm3399, %v1223, %v3176
      %v3481 = vsel %vm3399, %v1228, %v3178
      %v3482 = vsel %vm3399, %v1233, %v3180
      %v3483 = vsel %vm3399, %v1238, %v3182
      %v3484 = vsel %vm3399, %v1243, %v3184
      %v3485 = vsel %vm3399, %v1248, %v3186
      %v3486 = vsel %vm3399, %v1253, %v3188
      %v3487 = vsel %vm3399, %v1258, %v3190
      %v3488 = vsel %vm3399, %v1263, %v3192
      %v3489 = vsel %vm3399, %v1268, %v3194
      %v3490 = vsel %vm3399, %v1273, %v3196
      %v3491 = vsel %vm3399, %v1278, %v3198
      %v3492 = vsel %vm3399, %v1283, %v3200
      %v3493 = vsel %vm3399, %v1288, %v3202
      %v3494 = vsel %vm3399, %v1293, %v3204
      %v3495 = vsel %vm3399, %v1298, %v3206
      %v3496 = vsel %vm3399, %v1303, %v3208
      %v3497 = vsel %vm3399, %v1308, %v3210
      %v3498 = vsel %vm3399, %v1313, %v3212
      %v3499 = vsel %vm3399, %v1318, %v3214
      %v3500 = vsel %vm3399, %v1323, %v3216
      %v3501 = vsel %vm3399, %v1328, %v3218
      %v3502 = vsel %vm3399, %v1333, %v3220
      %v3503 = vsel %vm3399, %v1338, %v3222
      %v3504 = vsel %vm3399, %v1343, %v3224
      %v3505 = vsel %vm3399, %v1348, %v3226
      %v3506 = vsel %vm3399, %v1353, %v3228
      %v3507 = vsel %vm3399, %v1358, %v3230
      %v3508 = vsel %vm3399, %v1363, %v3232
      %v3509 = vsel %vm3399, %v1368, %v3234
      %v3510 = vsel %vm3399, %v1373, %v3236
      %v3511 = vsel %vm3399, %v1378, %v3238
      %v3512 = vsel %vm3399, %v1383, %v3240
      %v3513 = vsel %vm3399, %v1388, %v3242
      %v3514 = vsel %vm3399, %v1393, %v3244
      %v3515 = vsel %vm3399, %v1398, %v3246
      %v3516 = vsel %vm3399, %v1403, %v3248
      %v3517 = vsel %vm3399, %v1408, %v3250
      %v3518 = vsel %vm3399, %v1413, %v3252
      %v3519 = vsel %vm3399, %v1418, %v3254
      %v3520 = vsel %vm3399, %v1423, %v3256
      %v3521 = vsel %vm3399, %v1428, %v3258
      %v3522 = vsel %vm3399, %v1433, %v3260
      %v3523 = vsel %vm3399, %v1438, %v3262
      %v3524 = vsel %vm3399, %v1443, %v3264
      %v3525 = vsel %vm3399, %v1448, %v3266
      %v3526 = vsel %vm3399, %v1453, %v3268
      %v3527 = vsel %vm3399, %v1458, %v3270
      %v3528 = vmax.f32 %v3400, 0.0
      %v3529 = vmax.f32 %v3401, 0.0
      %v3530 = vmax.f32 %v3402, 0.0
      %v3531 = vmax.f32 %v3403, 0.0
      %v3532 = vmax.f32 %v3404, 0.0
      %v3533 = vmax.f32 %v3405, 0.0
      %v3534 = vmax.f32 %v3406, 0.0
      %v3535 = vmax.f32 %v3407, 0.0
      %v3536 = vmax.f32 %v3408, 0.0
      %v3537 = vmax.f32 %v3409, 0.0
      %v3538 = vmax.f32 %v3410, 0.0
      %v3539 = vmax.f32 %v3411, 0.0
      %v3540 = vmax.f32 %v3412, 0.0
      %v3541 = vmax.f32 %v3413, 0.0
      %v3542 = vmax.f32 %v3414, 0.0
      %v3543 = vmax.f32 %v3415, 0.0
      %v3544 = vmax.f32 %v3416, 0.0
      %v3545 = vmax.f32 %v3417, 0.0
      %v3546 = vmax.f32 %v3418, 0.0
      %v3547 = vmax.f32 %v3419, 0.0
      %v3548 = vmax.f32 %v3420, 0.0
      %v3549 = vmax.f32 %v3421, 0.0
      %v3550 = vmax.f32 %v3422, 0.0
      %v3551 = vmax.f32 %v3423, 0.0
      %v3552 = vmax.f32 %v3424, 0.0
      %v3553 = vmax.f32 %v3425, 0.0
      %v3554 = vmax.f32 %v3426, 0.0
      %v3555 = vmax.f32 %v3427, 0.0
      %v3556 = vmax.f32 %v3428, 0.0
      %v3557 = vmax.f32 %v3429, 0.0
      %v3558 = vmax.f32 %v3430, 0.0
      %v3559 = vmax.f32 %v3431, 0.0
      %v3560 = vmax.f32 %v3432, 0.0
      %v3561 = vmax.f32 %v3433, 0.0
      %v3562 = vmax.f32 %v3434, 0.0
      %v3563 = vmax.f32 %v3435, 0.0
      %v3564 = vmax.f32 %v3436, 0.0
      %v3565 = vmax.f32 %v3437, 0.0
      %v3566 = vmax.f32 %v3438, 0.0
      %v3567 = vmax.f32 %v3439, 0.0
      %v3568 = vmax.f32 %v3440, 0.0
      %v3569 = vmax.f32 %v3441, 0.0
      %v3570 = vmax.f32 %v3442, 0.0
      %v3571 = vmax.f32 %v3443, 0.0
      %v3572 = vmax.f32 %v3444, 0.0
      %v3573 = vmax.f32 %v3445, 0.0
      %v3574 = vmax.f32 %v3446, 0.0
      %v3575 = vmax.f32 %v3447, 0.0
      %v3576 = vmax.f32 %v3448, 0.0
      %v3577 = vmax.f32 %v3449, 0.0
      %v3578 = vmax.f32 %v3450, 0.0
      %v3579 = vmax.f32 %v3451, 0.0
      %v3580 = vmax.f32 %v3452, 0.0
      %v3581 = vmax.f32 %v3453, 0.0
      %v3582 = vmax.f32 %v3454, 0.0
      %v3583 = vmax.f32 %v3455, 0.0
      %v3584 = vmax.f32 %v3456, 0.0
      %v3585 = vmax.f32 %v3457, 0.0
      %v3586 = vmax.f32 %v3458, 0.0
      %v3587 = vmax.f32 %v3459, 0.0
      %v3588 = vmax.f32 %v3460, 0.0
      %v3589 = vmax.f32 %v3461, 0.0
      %v3590 = vmax.f32 %v3462, 0.0
      %v3591 = vmax.f32 %v3463, 0.0
      %v3592 = vmax.f32 %v3464, 0.0
      %v3593 = vmax.f32 %v3465, 0.0
      %v3594 = vmax.f32 %v3466, 0.0
      %v3595 = vmax.f32 %v3467, 0.0
      %v3596 = vmax.f32 %v3468, 0.0
      %v3597 = vmax.f32 %v3469, 0.0
      %v3598 = vmax.f32 %v3470, 0.0
      %v3599 = vmax.f32 %v3471, 0.0
      %v3600 = vmax.f32 %v3472, 0.0
      %v3601 = vmax.f32 %v3473, 0.0
      %v3602 = vmax.f32 %v3474, 0.0
      %v3603 = vmax.f32 %v3475, 0.0
      %v3604 = vmax.f32 %v3476, 0.0
      %v3605 = vmax.f32 %v3477, 0.0
      %v3606 = vmax.f32 %v3478, 0.0
      %v3607 = vmax.f32 %v3479, 0.0
      %v3608 = vmax.f32 %v3480, 0.0
      %v3609 = vmax.f32 %v3481, 0.0
      %v3610 = vmax.f32 %v3482, 0.0
      %v3611 = vmax.f32 %v3483, 0.0
      %v3612 = vmax.f32 %v3484, 0.0
      %v3613 = vmax.f32 %v3485, 0.0
      %v3614 = vmax.f32 %v3486, 0.0
      %v3615 = vmax.f32 %v3487, 0.0
      %v3616 = vmax.f32 %v3488, 0.0
      %v3617 = vmax.f32 %v3489, 0.0
      %v3618 = vmax.f32 %v3490, 0.0
      %v3619 = vmax.f32 %v3491, 0.0
      %v3620 = vmax.f32 %v3492, 0.0
      %v3621 = vmax.f32 %v3493, 0.0
      %v3622 = vmax.f32 %v3494, 0.0
      %v3623 = vmax.f32 %v3495, 0.0
      %v3624 = vmax.f32 %v3496, 0.0
      %v3625 = vmax.f32 %v3497, 0.0
      %v3626 = vmax.f32 %v3498, 0.0
      %v3627 = vmax.f32 %v3499, 0.0
      %v3628 = vmax.f32 %v3500, 0.0
      %v3629 = vmax.f32 %v3501, 0.0
      %v3630 = vmax.f32 %v3502, 0.0
      %v3631 = vmax.f32 %v3503, 0.0
      %v3632 = vmax.f32 %v3504, 0.0
      %v3633 = vmax.f32 %v3505, 0.0
      %v3634 = vmax.f32 %v3506, 0.0
      %v3635 = vmax.f32 %v3507, 0.0
      %v3636 = vmax.f32 %v3508, 0.0
      %v3637 = vmax.f32 %v3509, 0.0
      %v3638 = vmax.f32 %v3510, 0.0
      %v3639 = vmax.f32 %v3511, 0.0
      %v3640 = vmax.f32 %v3512, 0.0
      %v3641 = vmax.f32 %v3513, 0.0
      %v3642 = vmax.f32 %v3514, 0.0
      %v3643 = vmax.f32 %v3515, 0.0
      %v3644 = vmax.f32 %v3516, 0.0
      %v3645 = vmax.f32 %v3517, 0.0
      %v3646 = vmax.f32 %v3518, 0.0
      %v3647 = vmax.f32 %v3519, 0.0
      %v3648 = vmax.f32 %v3520, 0.0
      %v3649 = vmax.f32 %v3521, 0.0
      %v3650 = vmax.f32 %v3522, 0.0
      %v3651 = vmax.f32 %v3523, 0.0
      %v3652 = vmax.f32 %v3524, 0.0
      %v3653 = vmax.f32 %v3525, 0.0
      %v3654 = vmax.f32 %v3526, 0.0
      %v3655 = vmax.f32 %v3527, 0.0
      %vm3656 = vcmask 130048
      %3657 = vst.msk [vmem:[%s226] sm:$0xff] %vm3656, %v3528
      %3658 = vst.msk [vmem:[%s226 + $0x8] sm:$0xff] %vm3656, %v3529
      %3659 = vst.msk [vmem:[%s226 + $0x10] sm:$0xff] %vm3656, %v3530
      %3660 = vst.msk [vmem:[%s226 + $0x18] sm:$0xff] %vm3656, %v3531
      %3661 = vst.msk [vmem:[%s226 + $0x20] sm:$0xff] %vm3656, %v3532
      %3662 = vst.msk [vmem:[%s226 + $0x28] sm:$0xff] %vm3656, %v3533
      %3663 = vst.msk [vmem:[%s226 + $0x30] sm:$0xff] %vm3656, %v3534
      %3664 = vst.msk [vmem:[%s226 + $0x38] sm:$0xff] %vm3656, %v3535
      %3665 = vst.msk [vmem:[%s226 + $0x40] sm:$0xff] %vm3656, %v3536
      %3666 = vst.msk [vmem:[%s226 + $0x48] sm:$0xff] %vm3656, %v3537
      %3667 = vst.msk [vmem:[%s226 + $0x50] sm:$0xff] %vm3656, %v3538
      %3668 = vst.msk [vmem:[%s226 + $0x58] sm:$0xff] %vm3656, %v3539
      %3669 = vst.msk [vmem:[%s226 + $0x60] sm:$0xff] %vm3656, %v3540
      %3670 = vst.msk [vmem:[%s226 + $0x68] sm:$0xff] %vm3656, %v3541
      %3671 = vst.msk [vmem:[%s226 + $0x70] sm:$0xff] %vm3656, %v3542
      %3672 = vst.msk [vmem:[%s226 + $0x78] sm:$0xff] %vm3656, %v3543
      %3673 = vst.msk [vmem:[%s226 + $0x80] sm:$0xff] %vm3656, %v3544
      %3674 = vst.msk [vmem:[%s226 + $0x88] sm:$0xff] %vm3656, %v3545
      %3675 = vst.msk [vmem:[%s226 + $0x90] sm:$0xff] %vm3656, %v3546
      %3676 = vst.msk [vmem:[%s226 + $0x98] sm:$0xff] %vm3656, %v3547
      %3677 = vst.msk [vmem:[%s226 + $0xa0] sm:$0xff] %vm3656, %v3548
      %3678 = vst.msk [vmem:[%s226 + $0xa8] sm:$0xff] %vm3656, %v3549
      %3679 = vst.msk [vmem:[%s226 + $0xb0] sm:$0xff] %vm3656, %v3550
      %3680 = vst.msk [vmem:[%s226 + $0xb8] sm:$0xff] %vm3656, %v3551
      %3681 = vst.msk [vmem:[%s226 + $0xc0] sm:$0xff] %vm3656, %v3552
      %3682 = vst.msk [vmem:[%s226 + $0xc8] sm:$0xff] %vm3656, %v3553
      %3683 = vst.msk [vmem:[%s226 + $0xd0] sm:$0xff] %vm3656, %v3554
      %3684 = vst.msk [vmem:[%s226 + $0xd8] sm:$0xff] %vm3656, %v3555
      %3685 = vst.msk [vmem:[%s226 + $0xe0] sm:$0xff] %vm3656, %v3556
      %3686 = vst.msk [vmem:[%s226 + $0xe8] sm:$0xff] %vm3656, %v3557
      %3687 = vst.msk [vmem:[%s226 + $0xf0] sm:$0xff] %vm3656, %v3558
      %3688 = vst.msk [vmem:[%s226 + $0xf8] sm:$0xff] %vm3656, %v3559
      %3689 = vst.msk [vmem:[%s226 + $0x100] sm:$0xff] %vm3656, %v3560
      %3690 = vst.msk [vmem:[%s226 + $0x108] sm:$0xff] %vm3656, %v3561
      %3691 = vst.msk [vmem:[%s226 + $0x110] sm:$0xff] %vm3656, %v3562
      %3692 = vst.msk [vmem:[%s226 + $0x118] sm:$0xff] %vm3656, %v3563
      %3693 = vst.msk [vmem:[%s226 + $0x120] sm:$0xff] %vm3656, %v3564
      %3694 = vst.msk [vmem:[%s226 + $0x128] sm:$0xff] %vm3656, %v3565
      %3695 = vst.msk [vmem:[%s226 + $0x130] sm:$0xff] %vm3656, %v3566
      %3696 = vst.msk [vmem:[%s226 + $0x138] sm:$0xff] %vm3656, %v3567
      %3697 = vst.msk [vmem:[%s226 + $0x140] sm:$0xff] %vm3656, %v3568
      %3698 = vst.msk [vmem:[%s226 + $0x148] sm:$0xff] %vm3656, %v3569
      %3699 = vst.msk [vmem:[%s226 + $0x150] sm:$0xff] %vm3656, %v3570
      %3700 = vst.msk [vmem:[%s226 + $0x158] sm:$0xff] %vm3656, %v3571
      %3701 = vst.msk [vmem:[%s226 + $0x160] sm:$0xff] %vm3656, %v3572
      %3702 = vst.msk [vmem:[%s226 + $0x168] sm:$0xff] %vm3656, %v3573
      %3703 = vst.msk [vmem:[%s226 + $0x170] sm:$0xff] %vm3656, %v3574
      %3704 = vst.msk [vmem:[%s226 + $0x178] sm:$0xff] %vm3656, %v3575
      %3705 = vst.msk [vmem:[%s226 + $0x180] sm:$0xff] %vm3656, %v3576
      %3706 = vst.msk [vmem:[%s226 + $0x188] sm:$0xff] %vm3656, %v3577
      %3707 = vst.msk [vmem:[%s226 + $0x190] sm:$0xff] %vm3656, %v3578
      %3708 = vst.msk [vmem:[%s226 + $0x198] sm:$0xff] %vm3656, %v3579
      %3709 = vst.msk [vmem:[%s226 + $0x1a0] sm:$0xff] %vm3656, %v3580
      %3710 = vst.msk [vmem:[%s226 + $0x1a8] sm:$0xff] %vm3656, %v3581
      %3711 = vst.msk [vmem:[%s226 + $0x1b0] sm:$0xff] %vm3656, %v3582
      %3712 = vst.msk [vmem:[%s226 + $0x1b8] sm:$0xff] %vm3656, %v3583
      %3713 = vst.msk [vmem:[%s226 + $0x1c0] sm:$0xff] %vm3656, %v3584
      %3714 = vst.msk [vmem:[%s226 + $0x1c8] sm:$0xff] %vm3656, %v3585
      %3715 = vst.msk [vmem:[%s226 + $0x1d0] sm:$0xff] %vm3656, %v3586
      %3716 = vst.msk [vmem:[%s226 + $0x1d8] sm:$0xff] %vm3656, %v3587
      %3717 = vst.msk [vmem:[%s226 + $0x1e0] sm:$0xff] %vm3656, %v3588
      %3718 = vst.msk [vmem:[%s226 + $0x1e8] sm:$0xff] %vm3656, %v3589
      %3719 = vst.msk [vmem:[%s226 + $0x1f0] sm:$0xff] %vm3656, %v3590
      %3720 = vst.msk [vmem:[%s226 + $0x1f8] sm:$0xff] %vm3656, %v3591
      %3721 = vst.msk [vmem:[%s226 + $0x200] sm:$0xff] %vm3656, %v3592
      %3722 = vst.msk [vmem:[%s226 + $0x208] sm:$0xff] %vm3656, %v3593
      %3723 = vst.msk [vmem:[%s226 + $0x210] sm:$0xff] %vm3656, %v3594
      %3724 = vst.msk [vmem:[%s226 + $0x218] sm:$0xff] %vm3656, %v3595
      %3725 = vst.msk [vmem:[%s226 + $0x220] sm:$0xff] %vm3656, %v3596
      %3726 = vst.msk [vmem:[%s226 + $0x228] sm:$0xff] %vm3656, %v3597
      %3727 = vst.msk [vmem:[%s226 + $0x230] sm:$0xff] %vm3656, %v3598
      %3728 = vst.msk [vmem:[%s226 + $0x238] sm:$0xff] %vm3656, %v3599
      %3729 = vst.msk [vmem:[%s226 + $0x240] sm:$0xff] %vm3656, %v3600
      %3730 = vst.msk [vmem:[%s226 + $0x248] sm:$0xff] %vm3656, %v3601
      %3731 = vst.msk [vmem:[%s226 + $0x250] sm:$0xff] %vm3656, %v3602
      %3732 = vst.msk [vmem:[%s226 + $0x258] sm:$0xff] %vm3656, %v3603
      %3733 = vst.msk [vmem:[%s226 + $0x260] sm:$0xff] %vm3656, %v3604
      %3734 = vst.msk [vmem:[%s226 + $0x268] sm:$0xff] %vm3656, %v3605
      %3735 = vst.msk [vmem:[%s226 + $0x270] sm:$0xff] %vm3656, %v3606
      %3736 = vst.msk [vmem:[%s226 + $0x278] sm:$0xff] %vm3656, %v3607
      %3737 = vst.msk [vmem:[%s226 + $0x280] sm:$0xff] %vm3656, %v3608
      %3738 = vst.msk [vmem:[%s226 + $0x288] sm:$0xff] %vm3656, %v3609
      %3739 = vst.msk [vmem:[%s226 + $0x290] sm:$0xff] %vm3656, %v3610
      %3740 = vst.msk [vmem:[%s226 + $0x298] sm:$0xff] %vm3656, %v3611
      %3741 = vst.msk [vmem:[%s226 + $0x2a0] sm:$0xff] %vm3656, %v3612
      %3742 = vst.msk [vmem:[%s226 + $0x2a8] sm:$0xff] %vm3656, %v3613
      %3743 = vst.msk [vmem:[%s226 + $0x2b0] sm:$0xff] %vm3656, %v3614
      %3744 = vst.msk [vmem:[%s226 + $0x2b8] sm:$0xff] %vm3656, %v3615
      %3745 = vst.msk [vmem:[%s226 + $0x2c0] sm:$0xff] %vm3656, %v3616
      %3746 = vst.msk [vmem:[%s226 + $0x2c8] sm:$0xff] %vm3656, %v3617
      %3747 = vst.msk [vmem:[%s226 + $0x2d0] sm:$0xff] %vm3656, %v3618
      %3748 = vst.msk [vmem:[%s226 + $0x2d8] sm:$0xff] %vm3656, %v3619
      %3749 = vst.msk [vmem:[%s226 + $0x2e0] sm:$0xff] %vm3656, %v3620
      %3750 = vst.msk [vmem:[%s226 + $0x2e8] sm:$0xff] %vm3656, %v3621
      %3751 = vst.msk [vmem:[%s226 + $0x2f0] sm:$0xff] %vm3656, %v3622
      %3752 = vst.msk [vmem:[%s226 + $0x2f8] sm:$0xff] %vm3656, %v3623
      %3753 = vst.msk [vmem:[%s226 + $0x300] sm:$0xff] %vm3656, %v3624
      %3754 = vst.msk [vmem:[%s226 + $0x308] sm:$0xff] %vm3656, %v3625
      %3755 = vst.msk [vmem:[%s226 + $0x310] sm:$0xff] %vm3656, %v3626
      %3756 = vst.msk [vmem:[%s226 + $0x318] sm:$0xff] %vm3656, %v3627
      %3757 = vst.msk [vmem:[%s226 + $0x320] sm:$0xff] %vm3656, %v3628
      %3758 = vst.msk [vmem:[%s226 + $0x328] sm:$0xff] %vm3656, %v3629
      %3759 = vst.msk [vmem:[%s226 + $0x330] sm:$0xff] %vm3656, %v3630
      %3760 = vst.msk [vmem:[%s226 + $0x338] sm:$0xff] %vm3656, %v3631
      %3761 = vst.msk [vmem:[%s226 + $0x340] sm:$0xff] %vm3656, %v3632
      %3762 = vst.msk [vmem:[%s226 + $0x348] sm:$0xff] %vm3656, %v3633
      %3763 = vst.msk [vmem:[%s226 + $0x350] sm:$0xff] %vm3656, %v3634
      %3764 = vst.msk [vmem:[%s226 + $0x358] sm:$0xff] %vm3656, %v3635
      %3765 = vst.msk [vmem:[%s226 + $0x360] sm:$0xff] %vm3656, %v3636
      %3766 = vst.msk [vmem:[%s226 + $0x368] sm:$0xff] %vm3656, %v3637
      %3767 = vst.msk [vmem:[%s226 + $0x370] sm:$0xff] %vm3656, %v3638
      %3768 = vst.msk [vmem:[%s226 + $0x378] sm:$0xff] %vm3656, %v3639
      %3769 = vst.msk [vmem:[%s226 + $0x380] sm:$0xff] %vm3656, %v3640
      %3770 = vst.msk [vmem:[%s226 + $0x388] sm:$0xff] %vm3656, %v3641
      %3771 = vst.msk [vmem:[%s226 + $0x390] sm:$0xff] %vm3656, %v3642
      %3772 = vst.msk [vmem:[%s226 + $0x398] sm:$0xff] %vm3656, %v3643
      %3773 = vst.msk [vmem:[%s226 + $0x3a0] sm:$0xff] %vm3656, %v3644
      %3774 = vst.msk [vmem:[%s226 + $0x3a8] sm:$0xff] %vm3656, %v3645
      %3775 = vst.msk [vmem:[%s226 + $0x3b0] sm:$0xff] %vm3656, %v3646
      %3776 = vst.msk [vmem:[%s226 + $0x3b8] sm:$0xff] %vm3656, %v3647
      %3777 = vst.msk [vmem:[%s226 + $0x3c0] sm:$0xff] %vm3656, %v3648
      %3778 = vst.msk [vmem:[%s226 + $0x3c8] sm:$0xff] %vm3656, %v3649
      %3779 = vst.msk [vmem:[%s226 + $0x3d0] sm:$0xff] %vm3656, %v3650
      %3780 = vst.msk [vmem:[%s226 + $0x3d8] sm:$0xff] %vm3656, %v3651
      %3781 = vst.msk [vmem:[%s226 + $0x3e0] sm:$0xff] %vm3656, %v3652
      %3782 = vst.msk [vmem:[%s226 + $0x3e8] sm:$0xff] %vm3656, %v3653
      %3783 = vst.msk [vmem:[%s226 + $0x3f0] sm:$0xff] %vm3656, %v3654
      %3784 = vst.msk [vmem:[%s226 + $0x3f8] sm:$0xff] %vm3656, %v3655
      %s3785 = smul.u32 128, %s16
      %p3786 = scmp.lt.s32.totalorder %s3785, 255
      %s3787 = scalar_select %p3786, %s3785, 255
      %s3788 = smul.addr %s3787, 8
      %s3789 = scalar_lea.vmem %s5, %s3788
      // Predicated region
      $region41: #{_lambda_.14} parent=39 // pred_check
        %p3790 = pneg %p144
      $region42: #{_lambda_.14} parent=39 // pred_check_branch
        %3792 = sbr.rel (%p3790) target = $region44
      $region43: #{_lambda_.14} parent=39 // pred_region
        %s3793 = smul.u32 128, %s16
      $region44: #{_lambda_.14} parent=39 // pred_fallthru
        _
    $region40: #{_lambda_.14} parent=5 // pred_fallthru
      _
    %p3794 = scmp.le.s32.totalorder 2, %s11
    // Predicated region
    $region45: #{_lambda_.14} parent=5 // pred_check
      %p3795 = pneg %p3794
    $region46: #{_lambda_.14} parent=5 // pred_check_branch
      %3797 = sbr.rel (%p3795) target = $region48
    $region47: #{_lambda_.14} parent=5 // pred_region
      %s3798 = ssub.s32 %s11, 2
      // Predicated region
      $region49: #{_lambda_.14} parent=47 // pred_check
        %p3799 = pneg %p150
      $region50: #{_lambda_.14} parent=47 // pred_check_branch
        %3801 = sbr.rel (%p3799) target = $region52
      $region51: #{_lambda_.14} parent=47 // pred_region
        %s3802 = smul.u32 128, %s17
        %p3803 = scmp.lt.s32.totalorder %s3802, 255
        %s3804 = scalar_select %p3803, %s3802, 255
        %s3805 = smul.addr %s3804, 8
        %s3806 = scalar_lea.vmem %s5, %s3805
      $region52: #{_lambda_.14} parent=47 // pred_fallthru
        _
    $region48: #{_lambda_.14} parent=5 // pred_fallthru
      _
  $region6: #{_lambda_.14} parent=0 // loop_footer
    %s15 = sadd.s32 1, %s11
  $region7: #{_lambda_.14} parent=0 // loop_footer_branch
    %10 = sbr.rel target = $region3
  $region8: #{_lambda_.14} parent=0 // loop_exit
    _

// kernel: _lambda_.15
$region0: #{_lambda_.15}
  #allocation0 [shape = 'u32[]', space=smem, size = 0x4, offset = 0x4, fixed_abs, tag = 'smem constant byte address 0x4 - core index']
  #allocation1 [shape = 'u32[144,128]{1,0:T(1,128)}', space=vmem, size = 0x12000, scoped, tag = 'internal scratch']
  %s0 = inlined_call_operand.vmem [shape: f32[512,64], index: 0, kind: input, shape index: {}]
  %s1 = inlined_call_operand.vmem [shape: f32[64,16], index: 1, kind: input, shape index: {}]
  %s2 = inlined_call_operand.vmem [shape: f32[1,16], index: 2, kind: input, shape index: {}]
  %s3 = inlined_call_operand.vmem [shape: f32[512,16], index: 3, kind: output, shape index: {}]
  %s4 = sld [smem:[#allocation0]]
  $region22: #{_lambda_.15} parent=0
    _
  %s6 = ssub.s32 1, %s4
  %s7 = scalar_select 0, %s6, %s4
  // Predicated region
  $region2: #{_lambda_.15} parent=0 // pred_check
    _
  $region3: #{_lambda_.15} parent=0 // pred_check_branch
    %9 = sbr.rel (0) target = $region5
  $region4: #{_lambda_.15} parent=0 // pred_region
    _
  $region5: #{_lambda_.15} parent=0 // pred_fallthru
    _
  // Predicated region
  $region6: #{_lambda_.15} parent=0 // pred_check
    _
  $region7: #{_lambda_.15} parent=0 // pred_check_branch
    %11 = sbr.rel (0) target = $region9
  $region8: #{_lambda_.15} parent=0 // pred_region
    _
  $region9: #{_lambda_.15} parent=0 // pred_fallthru
    _
  // Predicated region
  $region10: #{_lambda_.15} parent=0 // pred_check
    _
  $region11: #{_lambda_.15} parent=0 // pred_check_branch
    %13 = sbr.rel (0) target = $region13
  $region12: #{_lambda_.15} parent=0 // pred_region
    _
  $region13: #{_lambda_.15} parent=0 // pred_fallthru
    _
  %v14 = vld [vmem:[%s0] sm:$0xff]
  %v15 = vld [vmem:[%s0 + $0x8] sm:$0xff]
  %v16 = vld [vmem:[%s0 + $0x10] sm:$0xff]
  %v17 = vld [vmem:[%s0 + $0x18] sm:$0xff]
  %v18 = vld [vmem:[%s0 + $0x20] sm:$0xff]
  %v19 = vld [vmem:[%s0 + $0x28] sm:$0xff]
  %v20 = vld [vmem:[%s0 + $0x30] sm:$0xff]
  %v21 = vld [vmem:[%s0 + $0x38] sm:$0xff]
  %v22 = vld [vmem:[%s0 + $0x40] sm:$0xff]
  %v23 = vld [vmem:[%s0 + $0x48] sm:$0xff]
  %v24 = vld [vmem:[%s0 + $0x50] sm:$0xff]
  %v25 = vld [vmem:[%s0 + $0x58] sm:$0xff]
  %v26 = vld [vmem:[%s0 + $0x60] sm:$0xff]
  %v27 = vld [vmem:[%s0 + $0x68] sm:$0xff]
  %v28 = vld [vmem:[%s0 + $0x70] sm:$0xff]
  %v29 = vld [vmem:[%s0 + $0x78] sm:$0xff]
  %v30 = vld [vmem:[%s0 + $0x80] sm:$0xff]
  %v31 = vld [vmem:[%s0 + $0x88] sm:$0xff]
  %v32 = vld [vmem:[%s0 + $0x90] sm:$0xff]
  %v33 = vld [vmem:[%s0 + $0x98] sm:$0xff]
  %v34 = vld [vmem:[%s0 + $0xa0] sm:$0xff]
  %v35 = vld [vmem:[%s0 + $0xa8] sm:$0xff]
  %v36 = vld [vmem:[%s0 + $0xb0] sm:$0xff]
  %v37 = vld [vmem:[%s0 + $0xb8] sm:$0xff]
  %v38 = vld [vmem:[%s0 + $0xc0] sm:$0xff]
  %v39 = vld [vmem:[%s0 + $0xc8] sm:$0xff]
  %v40 = vld [vmem:[%s0 + $0xd0] sm:$0xff]
  %v41 = vld [vmem:[%s0 + $0xd8] sm:$0xff]
  %v42 = vld [vmem:[%s0 + $0xe0] sm:$0xff]
  %v43 = vld [vmem:[%s0 + $0xe8] sm:$0xff]
  %v44 = vld [vmem:[%s0 + $0xf0] sm:$0xff]
  %v45 = vld [vmem:[%s0 + $0xf8] sm:$0xff]
  %v46 = vld [vmem:[%s0 + $0x100] sm:$0xff]
  %v47 = vld [vmem:[%s0 + $0x108] sm:$0xff]
  %v48 = vld [vmem:[%s0 + $0x110] sm:$0xff]
  %v49 = vld [vmem:[%s0 + $0x118] sm:$0xff]
  %v50 = vld [vmem:[%s0 + $0x120] sm:$0xff]
  %v51 = vld [vmem:[%s0 + $0x128] sm:$0xff]
  %v52 = vld [vmem:[%s0 + $0x130] sm:$0xff]
  %v53 = vld [vmem:[%s0 + $0x138] sm:$0xff]
  %v54 = vld [vmem:[%s0 + $0x140] sm:$0xff]
  %v55 = vld [vmem:[%s0 + $0x148] sm:$0xff]
  %v56 = vld [vmem:[%s0 + $0x150] sm:$0xff]
  %v57 = vld [vmem:[%s0 + $0x158] sm:$0xff]
  %v58 = vld [vmem:[%s0 + $0x160] sm:$0xff]
  %v59 = vld [vmem:[%s0 + $0x168] sm:$0xff]
  %v60 = vld [vmem:[%s0 + $0x170] sm:$0xff]
  %v61 = vld [vmem:[%s0 + $0x178] sm:$0xff]
  %v62 = vld [vmem:[%s0 + $0x180] sm:$0xff]
  %v63 = vld [vmem:[%s0 + $0x188] sm:$0xff]
  %v64 = vld [vmem:[%s0 + $0x190] sm:$0xff]
  %v65 = vld [vmem:[%s0 + $0x198] sm:$0xff]
  %v66 = vld [vmem:[%s0 + $0x1a0] sm:$0xff]
  %v67 = vld [vmem:[%s0 + $0x1a8] sm:$0xff]
  %v68 = vld [vmem:[%s0 + $0x1b0] sm:$0xff]
  %v69 = vld [vmem:[%s0 + $0x1b8] sm:$0xff]
  %v70 = vld [vmem:[%s0 + $0x1c0] sm:$0xff]
  %v71 = vld [vmem:[%s0 + $0x1c8] sm:$0xff]
  %v72 = vld [vmem:[%s0 + $0x1d0] sm:$0xff]
  %v73 = vld [vmem:[%s0 + $0x1d8] sm:$0xff]
  %v74 = vld [vmem:[%s0 + $0x1e0] sm:$0xff]
  %v75 = vld [vmem:[%s0 + $0x1e8] sm:$0xff]
  %v76 = vld [vmem:[%s0 + $0x1f0] sm:$0xff]
  %v77 = vld [vmem:[%s0 + $0x1f8] sm:$0xff]
  %v78 = vld [vmem:[%s1] sm:$0xff]
  %v79 = vld [vmem:[%s1 + $0x8] sm:$0xff]
  %v80 = vld [vmem:[%s1 + $0x10] sm:$0xff]
  %v81 = vld [vmem:[%s1 + $0x18] sm:$0xff]
  %v82 = vld [vmem:[%s1 + $0x20] sm:$0xff]
  %v83 = vld [vmem:[%s1 + $0x28] sm:$0xff]
  %v84 = vld [vmem:[%s1 + $0x30] sm:$0xff]
  %v85 = vld [vmem:[%s1 + $0x38] sm:$0xff]
  %v86 = vld [vmem:[%s2] sm:$0x1]
  %v88 = vlaneseq
  %v89 = vshrl.u32 %v88, 7
  %v90 = vsub.s32 0, %v89
  %v91 = vrot.slane %v86, %v90
  %vm93 = vcmask 523264
  %v95 = vsel %vm93, %v14, 0
  %v98 = vsel %vm93, %v15, 0
  %v101 = vsel %vm93, %v16, 0
  %v104 = vsel %vm93, %v17, 0
  %v107 = vsel %vm93, %v18, 0
  %v110 = vsel %vm93, %v19, 0
  %v113 = vsel %vm93, %v20, 0
  %v116 = vsel %vm93, %v21, 0
  %v119 = vsel %vm93, %v22, 0
  %v122 = vsel %vm93, %v23, 0
  %v125 = vsel %vm93, %v24, 0
  %v128 = vsel %vm93, %v25, 0
  %v131 = vsel %vm93, %v26, 0
  %v134 = vsel %vm93, %v27, 0
  %v137 = vsel %vm93, %v28, 0
  %v140 = vsel %vm93, %v29, 0
  %v143 = vsel %vm93, %v30, 0
  %v146 = vsel %vm93, %v31, 0
  %v149 = vsel %vm93, %v32, 0
  %v152 = vsel %vm93, %v33, 0
  %v155 = vsel %vm93, %v34, 0
  %v158 = vsel %vm93, %v35, 0
  %v161 = vsel %vm93, %v36, 0
  %v164 = vsel %vm93, %v37, 0
  %v167 = vsel %vm93, %v38, 0
  %v170 = vsel %vm93, %v39, 0
  %v173 = vsel %vm93, %v40, 0
  %v176 = vsel %vm93, %v41, 0
  %v179 = vsel %vm93, %v42, 0
  %v182 = vsel %vm93, %v43, 0
  %v185 = vsel %vm93, %v44, 0
  %v188 = vsel %vm93, %v45, 0
  %v191 = vsel %vm93, %v46, 0
  %v194 = vsel %vm93, %v47, 0
  %v197 = vsel %vm93, %v48, 0
  %v200 = vsel %vm93, %v49, 0
  %v203 = vsel %vm93, %v50, 0
  %v206 = vsel %vm93, %v51, 0
  %v209 = vsel %vm93, %v52, 0
  %v212 = vsel %vm93, %v53, 0
  %v215 = vsel %vm93, %v54, 0
  %v218 = vsel %vm93, %v55, 0
  %v221 = vsel %vm93, %v56, 0
  %v224 = vsel %vm93, %v57, 0
  %v227 = vsel %vm93, %v58, 0
  %v230 = vsel %vm93, %v59, 0
  %v233 = vsel %vm93, %v60, 0
  %v236 = vsel %vm93, %v61, 0
  %v239 = vsel %vm93, %v62, 0
  %v242 = vsel %vm93, %v63, 0
  %v245 = vsel %vm93, %v64, 0
  %v248 = vsel %vm93, %v65, 0
  %v251 = vsel %vm93, %v66, 0
  %v254 = vsel %vm93, %v67, 0
  %v257 = vsel %vm93, %v68, 0
  %v260 = vsel %vm93, %v69, 0
  %v263 = vsel %vm93, %v70, 0
  %v266 = vsel %vm93, %v71, 0
  %v269 = vsel %vm93, %v72, 0
  %v272 = vsel %vm93, %v73, 0
  %v275 = vsel %vm93, %v74, 0
  %v278 = vsel %vm93, %v75, 0
  %v281 = vsel %vm93, %v76, 0
  %v284 = vsel %vm93, %v77, 0
  %286 = vmatprep.subr.mxu0 0.0
  %287 = vmatpush1.msra.mxu0 %v78
  %288 = vmatprep.subr.mxu0 0.0
  %289 = vmatpush1.msra.mxu0 %v79
  %290 = vmatprep.subr.mxu0 0.0
  %291 = vmatpush1.msra.mxu0 %v80
  %292 = vmatprep.subr.mxu0 0.0
  %293 = vmatpush1.msra.mxu0 %v81
  %294 = vmatprep.subr.mxu0 0.0
  %295 = vmatpush1.msra.mxu0 %v82
  %296 = vmatprep.subr.mxu0 0.0
  %297 = vmatpush1.msra.mxu0 %v83
  %298 = vmatprep.subr.mxu0 0.0
  %299 = vmatpush1.msra.mxu0 %v84
  %300 = vmatprep.subr.mxu0 0.0
  %301 = vmatpush1.msra.mxu0 %v85
  %302 = vmatprep.subr.mxu0 0.0
  %303 = vmatpush1.msra.mxu0 0.0
  %304 = vmatprep.subr.mxu0 0.0
  %305 = vmatpush1.msra.mxu0 0.0
  %306 = vmatprep.subr.mxu0 0.0
  %307 = vmatpush1.msra.mxu0 0.0
  %308 = vmatprep.subr.mxu0 0.0
  %309 = vmatpush1.msra.mxu0 0.0
  %310 = vmatprep.subr.mxu0 0.0
  %311 = vmatpush1.msra.mxu0 0.0
  %312 = vmatprep.subr.mxu0 0.0
  %313 = vmatpush1.msra.mxu0 0.0
  %314 = vmatprep.subr.mxu0 0.0
  %315 = vmatpush1.msra.mxu0 0.0
  %316 = vmatprep.subr.mxu0 0.0
  %317 = vmatpush1.msra.mxu0 0.0
  %318 = vmatprep.subr.mxu0 0.0
  %319 = vmatpush1.msra.mxu0 0.0
  %320 = vmatprep.subr.mxu0 0.0
  %321 = vmatpush1.msra.mxu0 0.0
  %322 = vmatprep.subr.mxu0 0.0
  %323 = vmatpush1.msra.mxu0 0.0
  %324 = vmatprep.subr.mxu0 0.0
  %325 = vmatpush1.msra.mxu0 0.0
  %326 = vmatprep.subr.mxu0 0.0
  %327 = vmatpush1.msra.mxu0 0.0
  %328 = vmatprep.subr.mxu0 0.0
  %329 = vmatpush1.msra.mxu0 0.0
  %330 = vmatprep.subr.mxu0 0.0
  %331 = vmatpush1.msra.mxu0 0.0
  %332 = vmatprep.subr.mxu0 0.0
  %333 = vmatpush1.msra.mxu0 0.0
  %334 = vmatprep.subr.mxu0 0.0
  %335 = vmatpush1.msra.mxu0 0.0
  %336 = vmatprep.subr.mxu0 0.0
  %337 = vmatpush1.msra.mxu0 0.0
  %338 = vmatprep.subr.mxu0 0.0
  %339 = vmatpush1.msra.mxu0 0.0
  %340 = vmatprep.subr.mxu0 0.0
  %341 = vmatpush1.msra.mxu0 0.0
  %342 = vmatprep.subr.mxu0 0.0
  %343 = vmatpush1.msra.mxu0 0.0
  %344 = vmatprep.subr.mxu0 0.0
  %345 = vmatpush1.msra.mxu0 0.0
  %346 = vmatprep.subr.mxu0 0.0
  %347 = vmatpush1.msra.mxu0 0.0
  %348 = vmatprep.subr.mxu0 0.0
  %349 = vmatpush1.msra.mxu0 0.0
  %350 = vmatprep.mubr.f32.mxu0 0.0
  %351 = vmatmul.mubr.f32.gmra.mrb[0].mxu0 %v95
  %v352 = vpop.f32.mrb[0].mxu0
  %v353 = vadd.f32 %v91, %v352
  %v354 = vpop.f32.mrb[0].mxu0
  %355 = vmatprep.mubr.f32.mxu0 0.0
  %356 = vmatmul.mubr.f32.gmra.mrb[0].mxu0 %v98
  %v357 = vpop.f32.mrb[0].mxu0
  %v358 = vadd.f32 %v91, %v357
  %v359 = vpop.f32.mrb[0].mxu0
  %360 = vmatprep.mubr.f32.mxu0 0.0
  %361 = vmatmul.mubr.f32.gmra.mrb[0].mxu0 %v101
  %v362 = vpop.f32.mrb[0].mxu0
  %v363 = vadd.f32 %v91, %v362
  %v364 = vpop.f32.mrb[0].mxu0
  %365 = vmatprep.mubr.f32.mxu0 0.0
  %366 = vmatmul.mubr.f32.gmra.mrb[0].mxu0 %v104
  %v367 = vpop.f32.mrb[0].mxu0
  %v368 = vadd.f32 %v91, %v367
  %v369 = vpop.f32.mrb[0].mxu0
  %370 = vmatprep.mubr.f32.mxu0 0.0
  %371 = vmatmul.mubr.f32.gmra.mrb[0].mxu0 %v107
  %v372 = vpop.f32.mrb[0].mxu0
  %v373 = vadd.f32 %v91, %v372
  %v374 = vpop.f32.mrb[0].mxu0
  %375 = vmatprep.mubr.f32.mxu0 0.0
  %376 = vmatmul.mubr.f32.gmra.mrb[0].mxu0 %v110
  %v377 = vpop.f32.mrb[0].mxu0
  %v378 = vadd.f32 %v91, %v377
  %v379 = vpop.f32.mrb[0].mxu0
  %380 = vmatprep.mubr.f32.mxu0 0.0
  %381 = vmatmul.mubr.f32.gmra.mrb[0].mxu0 %v113
  %v382 = vpop.f32.mrb[0].mxu0
  %v383 = vadd.f32 %v91, %v382
  %v384 = vpop.f32.mrb[0].mxu0
  %385 = vmatprep.mubr.f32.mxu0 0.0
  %386 = vmatmul.mubr.f32.gmra.mrb[0].mxu0 %v116
  %v387 = vpop.f32.mrb[0].mxu0
  %v388 = vadd.f32 %v91, %v387
  %v389 = vpop.f32.mrb[0].mxu0
  %390 = vmatprep.mubr.f32.mxu0 0.0
  %391 = vmatmul.mubr.f32.gmra.mrb[0].mxu0 %v119
  %v392 = vpop.f32.mrb[0].mxu0
  %v393 = vadd.f32 %v91, %v392
  %v394 = vpop.f32.mrb[0].mxu0
  %395 = vmatprep.mubr.f32.mxu0 0.0
  %396 = vmatmul.mubr.f32.gmra.mrb[0].mxu0 %v122
  %v397 = vpop.f32.mrb[0].mxu0
  %v398 = vadd.f32 %v91, %v397
  %v399 = vpop.f32.mrb[0].mxu0
  %400 = vmatprep.mubr.f32.mxu0 0.0
  %401 = vmatmul.mubr.f32.gmra.mrb[0].mxu0 %v125
  %v402 = vpop.f32.mrb[0].mxu0
  %v403 = vadd.f32 %v91, %v402
  %v404 = vpop.f32.mrb[0].mxu0
  %405 = vmatprep.mubr.f32.mxu0 0.0
  %406 = vmatmul.mubr.f32.gmra.mrb[0].mxu0 %v128
  %v407 = vpop.f32.mrb[0].mxu0
  %v408 = vadd.f32 %v91, %v407
  %v409 = vpop.f32.mrb[0].mxu0
  %410 = vmatprep.mubr.f32.mxu0 0.0
  %411 = vmatmul.mubr.f32.gmra.mrb[0].mxu0 %v131
  %v412 = vpop.f32.mrb[0].mxu0
  %v413 = vadd.f32 %v91, %v412
  %v414 = vpop.f32.mrb[0].mxu0
  %415 = vmatprep.mubr.f32.mxu0 0.0
  %416 = vmatmul.mubr.f32.gmra.mrb[0].mxu0 %v134
  %v417 = vpop.f32.mrb[0].mxu0
  %v418 = vadd.f32 %v91, %v417
  %v419 = vpop.f32.mrb[0].mxu0
  %420 = vmatprep.mubr.f32.mxu0 0.0
  %421 = vmatmul.mubr.f32.gmra.mrb[0].mxu0 %v137
  %v422 = vpop.f32.mrb[0].mxu0
  %v423 = vadd.f32 %v91, %v422
  %v424 = vpop.f32.mrb[0].mxu0
  %425 = vmatprep.mubr.f32.mxu0 0.0
  %426 = vmatmul.mubr.f32.gmra.mrb[0].mxu0 %v140
  %v427 = vpop.f32.mrb[0].mxu0
  %v428 = vadd.f32 %v91, %v427
  %v429 = vpop.f32.mrb[0].mxu0
  %430 = vmatprep.mubr.f32.mxu0 0.0
  %431 = vmatmul.mubr.f32.gmra.mrb[0].mxu0 %v143
  %v432 = vpop.f32.mrb[0].mxu0
  %v433 = vadd.f32 %v91, %v432
  %v434 = vpop.f32.mrb[0].mxu0
  %435 = vmatprep.mubr.f32.mxu0 0.0
  %436 = vmatmul.mubr.f32.gmra.mrb[0].mxu0 %v146
  %v437 = vpop.f32.mrb[0].mxu0
  %v438 = vadd.f32 %v91, %v437
  %v439 = vpop.f32.mrb[0].mxu0
  %440 = vmatprep.mubr.f32.mxu0 0.0
  %441 = vmatmul.mubr.f32.gmra.mrb[0].mxu0 %v149
  %v442 = vpop.f32.mrb[0].mxu0
  %v443 = vadd.f32 %v91, %v442
  %v444 = vpop.f32.mrb[0].mxu0
  %445 = vmatprep.mubr.f32.mxu0 0.0
  %446 = vmatmul.mubr.f32.gmra.mrb[0].mxu0 %v152
  %v447 = vpop.f32.mrb[0].mxu0
  %v448 = vadd.f32 %v91, %v447
  %v449 = vpop.f32.mrb[0].mxu0
  %450 = vmatprep.mubr.f32.mxu0 0.0
  %451 = vmatmul.mubr.f32.gmra.mrb[0].mxu0 %v155
  %v452 = vpop.f32.mrb[0].mxu0
  %v453 = vadd.f32 %v91, %v452
  %v454 = vpop.f32.mrb[0].mxu0
  %455 = vmatprep.mubr.f32.mxu0 0.0
  %456 = vmatmul.mubr.f32.gmra.mrb[0].mxu0 %v158
  %v457 = vpop.f32.mrb[0].mxu0
  %v458 = vadd.f32 %v91, %v457
  %v459 = vpop.f32.mrb[0].mxu0
  %460 = vmatprep.mubr.f32.mxu0 0.0
  %461 = vmatmul.mubr.f32.gmra.mrb[0].mxu0 %v161
  %v462 = vpop.f32.mrb[0].mxu0
  %v463 = vadd.f32 %v91, %v462
  %v464 = vpop.f32.mrb[0].mxu0
  %465 = vmatprep.mubr.f32.mxu0 0.0
  %466 = vmatmul.mubr.f32.gmra.mrb[0].mxu0 %v164
  %v467 = vpop.f32.mrb[0].mxu0
  %v468 = vadd.f32 %v91, %v467
  %v469 = vpop.f32.mrb[0].mxu0
  %470 = vmatprep.mubr.f32.mxu0 0.0
  %471 = vmatmul.mubr.f32.gmra.mrb[0].mxu0 %v167
  %v472 = vpop.f32.mrb[0].mxu0
  %v473 = vadd.f32 %v91, %v472
  %v474 = vpop.f32.mrb[0].mxu0
  %475 = vmatprep.mubr.f32.mxu0 0.0
  %476 = vmatmul.mubr.f32.gmra.mrb[0].mxu0 %v170
  %v477 = vpop.f32.mrb[0].mxu0
  %v478 = vadd.f32 %v91, %v477
  %v479 = vpop.f32.mrb[0].mxu0
  %480 = vmatprep.mubr.f32.mxu0 0.0
  %481 = vmatmul.mubr.f32.gmra.mrb[0].mxu0 %v173
  %v482 = vpop.f32.mrb[0].mxu0
  %v483 = vadd.f32 %v91, %v482
  %v484 = vpop.f32.mrb[0].mxu0
  %485 = vmatprep.mubr.f32.mxu0 0.0
  %486 = vmatmul.mubr.f32.gmra.mrb[0].mxu0 %v176
  %v487 = vpop.f32.mrb[0].mxu0
  %v488 = vadd.f32 %v91, %v487
  %v489 = vpop.f32.mrb[0].mxu0
  %490 = vmatprep.mubr.f32.mxu0 0.0
  %491 = vmatmul.mubr.f32.gmra.mrb[0].mxu0 %v179
  %v492 = vpop.f32.mrb[0].mxu0
  %v493 = vadd.f32 %v91, %v492
  %v494 = vpop.f32.mrb[0].mxu0
  %495 = vmatprep.mubr.f32.mxu0 0.0
  %496 = vmatmul.mubr.f32.gmra.mrb[0].mxu0 %v182
  %v497 = vpop.f32.mrb[0].mxu0
  %v498 = vadd.f32 %v91, %v497
  %v499 = vpop.f32.mrb[0].mxu0
  %500 = vmatprep.mubr.f32.mxu0 0.0
  %501 = vmatmul.mubr.f32.gmra.mrb[0].mxu0 %v185
  %v502 = vpop.f32.mrb[0].mxu0
  %v503 = vadd.f32 %v91, %v502
  %v504 = vpop.f32.mrb[0].mxu0
  %505 = vmatprep.mubr.f32.mxu0 0.0
  %506 = vmatmul.mubr.f32.gmra.mrb[0].mxu0 %v188
  %v507 = vpop.f32.mrb[0].mxu0
  %v508 = vadd.f32 %v91, %v507
  %v509 = vpop.f32.mrb[0].mxu0
  %510 = vmatprep.mubr.f32.mxu0 0.0
  %511 = vmatmul.mubr.f32.gmra.mrb[0].mxu0 %v191
  %v512 = vpop.f32.mrb[0].mxu0
  %v513 = vadd.f32 %v91, %v512
  %v514 = vpop.f32.mrb[0].mxu0
  %515 = vmatprep.mubr.f32.mxu0 0.0
  %516 = vmatmul.mubr.f32.gmra.mrb[0].mxu0 %v194
  %v517 = vpop.f32.mrb[0].mxu0
  %v518 = vadd.f32 %v91, %v517
  %v519 = vpop.f32.mrb[0].mxu0
  %520 = vmatprep.mubr.f32.mxu0 0.0
  %521 = vmatmul.mubr.f32.gmra.mrb[0].mxu0 %v197
  %v522 = vpop.f32.mrb[0].mxu0
  %v523 = vadd.f32 %v91, %v522
  %v524 = vpop.f32.mrb[0].mxu0
  %525 = vmatprep.mubr.f32.mxu0 0.0
  %526 = vmatmul.mubr.f32.gmra.mrb[0].mxu0 %v200
  %v527 = vpop.f32.mrb[0].mxu0
  %v528 = vadd.f32 %v91, %v527
  %v529 = vpop.f32.mrb[0].mxu0
  %530 = vmatprep.mubr.f32.mxu0 0.0
  %531 = vmatmul.mubr.f32.gmra.mrb[0].mxu0 %v203
  %v532 = vpop.f32.mrb[0].mxu0
  %v533 = vadd.f32 %v91, %v532
  %v534 = vpop.f32.mrb[0].mxu0
  %535 = vmatprep.mubr.f32.mxu0 0.0
  %536 = vmatmul.mubr.f32.gmra.mrb[0].mxu0 %v206
  %v537 = vpop.f32.mrb[0].mxu0
  %v538 = vadd.f32 %v91, %v537
  %v539 = vpop.f32.mrb[0].mxu0
  %540 = vmatprep.mubr.f32.mxu0 0.0
  %541 = vmatmul.mubr.f32.gmra.mrb[0].mxu0 %v209
  %v542 = vpop.f32.mrb[0].mxu0
  %v543 = vadd.f32 %v91, %v542
  %v544 = vpop.f32.mrb[0].mxu0
  %545 = vmatprep.mubr.f32.mxu0 0.0
  %546 = vmatmul.mubr.f32.gmra.mrb[0].mxu0 %v212
  %v547 = vpop.f32.mrb[0].mxu0
  %v548 = vadd.f32 %v91, %v547
  %v549 = vpop.f32.mrb[0].mxu0
  %550 = vmatprep.mubr.f32.mxu0 0.0
  %551 = vmatmul.mubr.f32.gmra.mrb[0].mxu0 %v215
  %v552 = vpop.f32.mrb[0].mxu0
  %v553 = vadd.f32 %v91, %v552
  %v554 = vpop.f32.mrb[0].mxu0
  %555 = vmatprep.mubr.f32.mxu0 0.0
  %556 = vmatmul.mubr.f32.gmra.mrb[0].mxu0 %v218
  %v557 = vpop.f32.mrb[0].mxu0
  %v558 = vadd.f32 %v91, %v557
  %v559 = vpop.f32.mrb[0].mxu0
  %560 = vmatprep.mubr.f32.mxu0 0.0
  %561 = vmatmul.mubr.f32.gmra.mrb[0].mxu0 %v221
  %v562 = vpop.f32.mrb[0].mxu0
  %v563 = vadd.f32 %v91, %v562
  %v564 = vpop.f32.mrb[0].mxu0
  %565 = vmatprep.mubr.f32.mxu0 0.0
  %566 = vmatmul.mubr.f32.gmra.mrb[0].mxu0 %v224
  %v567 = vpop.f32.mrb[0].mxu0
  %v568 = vadd.f32 %v91, %v567
  %v569 = vpop.f32.mrb[0].mxu0
  %570 = vmatprep.mubr.f32.mxu0 0.0
  %571 = vmatmul.mubr.f32.gmra.mrb[0].mxu0 %v227
  %v572 = vpop.f32.mrb[0].mxu0
  %v573 = vadd.f32 %v91, %v572
  %v574 = vpop.f32.mrb[0].mxu0
  %575 = vmatprep.mubr.f32.mxu0 0.0
  %576 = vmatmul.mubr.f32.gmra.mrb[0].mxu0 %v230
  %v577 = vpop.f32.mrb[0].mxu0
  %v578 = vadd.f32 %v91, %v577
  %v579 = vpop.f32.mrb[0].mxu0
  %580 = vmatprep.mubr.f32.mxu0 0.0
  %581 = vmatmul.mubr.f32.gmra.mrb[0].mxu0 %v233
  %v582 = vpop.f32.mrb[0].mxu0
  %v583 = vadd.f32 %v91, %v582
  %v584 = vpop.f32.mrb[0].mxu0
  %585 = vmatprep.mubr.f32.mxu0 0.0
  %586 = vmatmul.mubr.f32.gmra.mrb[0].mxu0 %v236
  %v587 = vpop.f32.mrb[0].mxu0
  %v588 = vadd.f32 %v91, %v587
  %v589 = vpop.f32.mrb[0].mxu0
  %590 = vmatprep.mubr.f32.mxu0 0.0
  %591 = vmatmul.mubr.f32.gmra.mrb[0].mxu0 %v239
  %v592 = vpop.f32.mrb[0].mxu0
  %v593 = vadd.f32 %v91, %v592
  %v594 = vpop.f32.mrb[0].mxu0
  %595 = vmatprep.mubr.f32.mxu0 0.0
  %596 = vmatmul.mubr.f32.gmra.mrb[0].mxu0 %v242
  %v597 = vpop.f32.mrb[0].mxu0
  %v598 = vadd.f32 %v91, %v597
  %v599 = vpop.f32.mrb[0].mxu0
  %600 = vmatprep.mubr.f32.mxu0 0.0
  %601 = vmatmul.mubr.f32.gmra.mrb[0].mxu0 %v245
  %v602 = vpop.f32.mrb[0].mxu0
  %v603 = vadd.f32 %v91, %v602
  %v604 = vpop.f32.mrb[0].mxu0
  %605 = vmatprep.mubr.f32.mxu0 0.0
  %606 = vmatmul.mubr.f32.gmra.mrb[0].mxu0 %v248
  %v607 = vpop.f32.mrb[0].mxu0
  %v608 = vadd.f32 %v91, %v607
  %v609 = vpop.f32.mrb[0].mxu0
  %610 = vmatprep.mubr.f32.mxu0 0.0
  %611 = vmatmul.mubr.f32.gmra.mrb[0].mxu0 %v251
  %v612 = vpop.f32.mrb[0].mxu0
  %v613 = vadd.f32 %v91, %v612
  %v614 = vpop.f32.mrb[0].mxu0
  %615 = vmatprep.mubr.f32.mxu0 0.0
  %616 = vmatmul.mubr.f32.gmra.mrb[0].mxu0 %v254
  %v617 = vpop.f32.mrb[0].mxu0
  %v618 = vadd.f32 %v91, %v617
  %v619 = vpop.f32.mrb[0].mxu0
  %620 = vmatprep.mubr.f32.mxu0 0.0
  %621 = vmatmul.mubr.f32.gmra.mrb[0].mxu0 %v257
  %v622 = vpop.f32.mrb[0].mxu0
  %v623 = vadd.f32 %v91, %v622
  %v624 = vpop.f32.mrb[0].mxu0
  %625 = vmatprep.mubr.f32.mxu0 0.0
  %626 = vmatmul.mubr.f32.gmra.mrb[0].mxu0 %v260
  %v627 = vpop.f32.mrb[0].mxu0
  %v628 = vadd.f32 %v91, %v627
  %v629 = vpop.f32.mrb[0].mxu0
  %630 = vmatprep.mubr.f32.mxu0 0.0
  %631 = vmatmul.mubr.f32.gmra.mrb[0].mxu0 %v263
  %v632 = vpop.f32.mrb[0].mxu0
  %v633 = vadd.f32 %v91, %v632
  %v634 = vpop.f32.mrb[0].mxu0
  %635 = vmatprep.mubr.f32.mxu0 0.0
  %636 = vmatmul.mubr.f32.gmra.mrb[0].mxu0 %v266
  %v637 = vpop.f32.mrb[0].mxu0
  %v638 = vadd.f32 %v91, %v637
  %v639 = vpop.f32.mrb[0].mxu0
  %640 = vmatprep.mubr.f32.mxu0 0.0
  %641 = vmatmul.mubr.f32.gmra.mrb[0].mxu0 %v269
  %v642 = vpop.f32.mrb[0].mxu0
  %v643 = vadd.f32 %v91, %v642
  %v644 = vpop.f32.mrb[0].mxu0
  %645 = vmatprep.mubr.f32.mxu0 0.0
  %646 = vmatmul.mubr.f32.gmra.mrb[0].mxu0 %v272
  %v647 = vpop.f32.mrb[0].mxu0
  %v648 = vadd.f32 %v91, %v647
  %v649 = vpop.f32.mrb[0].mxu0
  %650 = vmatprep.mubr.f32.mxu0 0.0
  %651 = vmatmul.mubr.f32.gmra.mrb[0].mxu0 %v275
  %v652 = vpop.f32.mrb[0].mxu0
  %v653 = vadd.f32 %v91, %v652
  %v654 = vpop.f32.mrb[0].mxu0
  %655 = vmatprep.mubr.f32.mxu0 0.0
  %656 = vmatmul.mubr.f32.gmra.mrb[0].mxu0 %v278
  %v657 = vpop.f32.mrb[0].mxu0
  %v658 = vadd.f32 %v91, %v657
  %v659 = vpop.f32.mrb[0].mxu0
  %660 = vmatprep.mubr.f32.mxu0 0.0
  %661 = vmatmul.mubr.f32.gmra.mrb[0].mxu0 %v281
  %v662 = vpop.f32.mrb[0].mxu0
  %v663 = vadd.f32 %v91, %v662
  %v664 = vpop.f32.mrb[0].mxu0
  %665 = vmatprep.mubr.f32.mxu0 0.0
  %666 = vmatmul.mubr.f32.gmra.mrb[0].mxu0 %v284
  %v667 = vpop.f32.mrb[0].mxu0
  %v668 = vadd.f32 %v91, %v667
  %v669 = vpop.f32.mrb[0].mxu0
  %670 = vdwg.mxu0
  %v671 = vmax.f32 %v353, 0.0
  %v672 = vmax.f32 %v358, 0.0
  %v673 = vmax.f32 %v363, 0.0
  %v674 = vmax.f32 %v368, 0.0
  %v675 = vmax.f32 %v373, 0.0
  %v676 = vmax.f32 %v378, 0.0
  %v677 = vmax.f32 %v383, 0.0
  %v678 = vmax.f32 %v388, 0.0
  %v679 = vmax.f32 %v393, 0.0
  %v680 = vmax.f32 %v398, 0.0
  %v681 = vmax.f32 %v403, 0.0
  %v682 = vmax.f32 %v408, 0.0
  %v683 = vmax.f32 %v413, 0.0
  %v684 = vmax.f32 %v418, 0.0
  %v685 = vmax.f32 %v423, 0.0
  %v686 = vmax.f32 %v428, 0.0
  %v687 = vmax.f32 %v433, 0.0
  %v688 = vmax.f32 %v438, 0.0
  %v689 = vmax.f32 %v443, 0.0
  %v690 = vmax.f32 %v448, 0.0
  %v691 = vmax.f32 %v453, 0.0
  %v692 = vmax.f32 %v458, 0.0
  %v693 = vmax.f32 %v463, 0.0
  %v694 = vmax.f32 %v468, 0.0
  %v695 = vmax.f32 %v473, 0.0
  %v696 = vmax.f32 %v478, 0.0
  %v697 = vmax.f32 %v483, 0.0
  %v698 = vmax.f32 %v488, 0.0
  %v699 = vmax.f32 %v493, 0.0
  %v700 = vmax.f32 %v498, 0.0
  %v701 = vmax.f32 %v503, 0.0
  %v702 = vmax.f32 %v508, 0.0
  %v703 = vmax.f32 %v513, 0.0
  %v704 = vmax.f32 %v518, 0.0
  %v705 = vmax.f32 %v523, 0.0
  %v706 = vmax.f32 %v528, 0.0
  %v707 = vmax.f32 %v533, 0.0
  %v708 = vmax.f32 %v538, 0.0
  %v709 = vmax.f32 %v543, 0.0
  %v710 = vmax.f32 %v548, 0.0
  %v711 = vmax.f32 %v553, 0.0
  %v712 = vmax.f32 %v558, 0.0
  %v713 = vmax.f32 %v563, 0.0
  %v714 = vmax.f32 %v568, 0.0
  %v715 = vmax.f32 %v573, 0.0
  %v716 = vmax.f32 %v578, 0.0
  %v717 = vmax.f32 %v583, 0.0
  %v718 = vmax.f32 %v588, 0.0
  %v719 = vmax.f32 %v593, 0.0
  %v720 = vmax.f32 %v598, 0.0
  %v721 = vmax.f32 %v603, 0.0
  %v722 = vmax.f32 %v608, 0.0
  %v723 = vmax.f32 %v613, 0.0
  %v724 = vmax.f32 %v618, 0.0
  %v725 = vmax.f32 %v623, 0.0
  %v726 = vmax.f32 %v628, 0.0
  %v727 = vmax.f32 %v633, 0.0
  %v728 = vmax.f32 %v638, 0.0
  %v729 = vmax.f32 %v643, 0.0
  %v730 = vmax.f32 %v648, 0.0
  %v731 = vmax.f32 %v653, 0.0
  %v732 = vmax.f32 %v658, 0.0
  %v733 = vmax.f32 %v663, 0.0
  %v734 = vmax.f32 %v668, 0.0
  %vm735 = vcmask 130048
  %736 = vst.msk [vmem:[%s3] sm:$0xff] %vm735, %v671
  %737 = vst.msk [vmem:[%s3 + $0x8] sm:$0xff] %vm735, %v672
  %738 = vst.msk [vmem:[%s3 + $0x10] sm:$0xff] %vm735, %v673
  %739 = vst.msk [vmem:[%s3 + $0x18] sm:$0xff] %vm735, %v674
  %740 = vst.msk [vmem:[%s3 + $0x20] sm:$0xff] %vm735, %v675
  %741 = vst.msk [vmem:[%s3 + $0x28] sm:$0xff] %vm735, %v676
  %742 = vst.msk [vmem:[%s3 + $0x30] sm:$0xff] %vm735, %v677
  %743 = vst.msk [vmem:[%s3 + $0x38] sm:$0xff] %vm735, %v678
  %744 = vst.msk [vmem:[%s3 + $0x40] sm:$0xff] %vm735, %v679
  %745 = vst.msk [vmem:[%s3 + $0x48] sm:$0xff] %vm735, %v680
  %746 = vst.msk [vmem:[%s3 + $0x50] sm:$0xff] %vm735, %v681
  %747 = vst.msk [vmem:[%s3 + $0x58] sm:$0xff] %vm735, %v682
  %748 = vst.msk [vmem:[%s3 + $0x60] sm:$0xff] %vm735, %v683
  %749 = vst.msk [vmem:[%s3 + $0x68] sm:$0xff] %vm735, %v684
  %750 = vst.msk [vmem:[%s3 + $0x70] sm:$0xff] %vm735, %v685
  %751 = vst.msk [vmem:[%s3 + $0x78] sm:$0xff] %vm735, %v686
  %752 = vst.msk [vmem:[%s3 + $0x80] sm:$0xff] %vm735, %v687
  %753 = vst.msk [vmem:[%s3 + $0x88] sm:$0xff] %vm735, %v688
  %754 = vst.msk [vmem:[%s3 + $0x90] sm:$0xff] %vm735, %v689
  %755 = vst.msk [vmem:[%s3 + $0x98] sm:$0xff] %vm735, %v690
  %756 = vst.msk [vmem:[%s3 + $0xa0] sm:$0xff] %vm735, %v691
  %757 = vst.msk [vmem:[%s3 + $0xa8] sm:$0xff] %vm735, %v692
  %758 = vst.msk [vmem:[%s3 + $0xb0] sm:$0xff] %vm735, %v693
  %759 = vst.msk [vmem:[%s3 + $0xb8] sm:$0xff] %vm735, %v694
  %760 = vst.msk [vmem:[%s3 + $0xc0] sm:$0xff] %vm735, %v695
  %761 = vst.msk [vmem:[%s3 + $0xc8] sm:$0xff] %vm735, %v696
  %762 = vst.msk [vmem:[%s3 + $0xd0] sm:$0xff] %vm735, %v697
  %763 = vst.msk [vmem:[%s3 + $0xd8] sm:$0xff] %vm735, %v698
  %764 = vst.msk [vmem:[%s3 + $0xe0] sm:$0xff] %vm735, %v699
  %765 = vst.msk [vmem:[%s3 + $0xe8] sm:$0xff] %vm735, %v700
  %766 = vst.msk [vmem:[%s3 + $0xf0] sm:$0xff] %vm735, %v701
  %767 = vst.msk [vmem:[%s3 + $0xf8] sm:$0xff] %vm735, %v702
  %768 = vst.msk [vmem:[%s3 + $0x100] sm:$0xff] %vm735, %v703
  %769 = vst.msk [vmem:[%s3 + $0x108] sm:$0xff] %vm735, %v704
  %770 = vst.msk [vmem:[%s3 + $0x110] sm:$0xff] %vm735, %v705
  %771 = vst.msk [vmem:[%s3 + $0x118] sm:$0xff] %vm735, %v706
  %772 = vst.msk [vmem:[%s3 + $0x120] sm:$0xff] %vm735, %v707
  %773 = vst.msk [vmem:[%s3 + $0x128] sm:$0xff] %vm735, %v708
  %774 = vst.msk [vmem:[%s3 + $0x130] sm:$0xff] %vm735, %v709
  %775 = vst.msk [vmem:[%s3 + $0x138] sm:$0xff] %vm735, %v710
  %776 = vst.msk [vmem:[%s3 + $0x140] sm:$0xff] %vm735, %v711
  %777 = vst.msk [vmem:[%s3 + $0x148] sm:$0xff] %vm735, %v712
  %778 = vst.msk [vmem:[%s3 + $0x150] sm:$0xff] %vm735, %v713
  %779 = vst.msk [vmem:[%s3 + $0x158] sm:$0xff] %vm735, %v714
  %780 = vst.msk [vmem:[%s3 + $0x160] sm:$0xff] %vm735, %v715
  %781 = vst.msk [vmem:[%s3 + $0x168] sm:$0xff] %vm735, %v716
  %782 = vst.msk [vmem:[%s3 + $0x170] sm:$0xff] %vm735, %v717
  %783 = vst.msk [vmem:[%s3 + $0x178] sm:$0xff] %vm735, %v718
  %784 = vst.msk [vmem:[%s3 + $0x180] sm:$0xff] %vm735, %v719
  %785 = vst.msk [vmem:[%s3 + $0x188] sm:$0xff] %vm735, %v720
  %786 = vst.msk [vmem:[%s3 + $0x190] sm:$0xff] %vm735, %v721
  %787 = vst.msk [vmem:[%s3 + $0x198] sm:$0xff] %vm735, %v722
  %788 = vst.msk [vmem:[%s3 + $0x1a0] sm:$0xff] %vm735, %v723
  %789 = vst.msk [vmem:[%s3 + $0x1a8] sm:$0xff] %vm735, %v724
  %790 = vst.msk [vmem:[%s3 + $0x1b0] sm:$0xff] %vm735, %v725
  %791 = vst.msk [vmem:[%s3 + $0x1b8] sm:$0xff] %vm735, %v726
  %792 = vst.msk [vmem:[%s3 + $0x1c0] sm:$0xff] %vm735, %v727
  %793 = vst.msk [vmem:[%s3 + $0x1c8] sm:$0xff] %vm735, %v728
  %794 = vst.msk [vmem:[%s3 + $0x1d0] sm:$0xff] %vm735, %v729
  %795 = vst.msk [vmem:[%s3 + $0x1d8] sm:$0xff] %vm735, %v730
  %796 = vst.msk [vmem:[%s3 + $0x1e0] sm:$0xff] %vm735, %v731
  %797 = vst.msk [vmem:[%s3 + $0x1e8] sm:$0xff] %vm735, %v732
  %798 = vst.msk [vmem:[%s3 + $0x1f0] sm:$0xff] %vm735, %v733
  %799 = vst.msk [vmem:[%s3 + $0x1f8] sm:$0xff] %vm735, %v734
  // Predicated region
  $region14: #{_lambda_.15} parent=0 // pred_check
    _
  $region15: #{_lambda_.15} parent=0 // pred_check_branch
    %801 = sbr.rel (0) target = $region17
  $region16: #{_lambda_.15} parent=0 // pred_region
    _
  $region17: #{_lambda_.15} parent=0 // pred_fallthru
    _
  // Predicated region
  $region18: #{_lambda_.15} parent=0 // pred_check
    _
  $region19: #{_lambda_.15} parent=0 // pred_check_branch
    %803 = sbr.rel (0) target = $region21
  $region20: #{_lambda_.15} parent=0 // pred_region
    _
  $region21: #{_lambda_.15} parent=0 // pred_fallthru
    _

// kernel: _lambda_.16
$region0: #{_lambda_.16}
  #allocation0 [shape = 'u32[]', space=smem, size = 0x4, offset = 0x4, fixed_abs, tag = 'smem constant byte address 0x4 - core index']
  #allocation1 [shape = 'u32[144,128]{1,0:T(1,128)}', space=vmem, size = 0x12000, scoped, tag = 'internal scratch']
  %s0 = inlined_call_operand.vmem [shape: f32[512,144], index: 0, kind: input, shape index: {}]
  %s1 = inlined_call_operand.vmem [shape: f32[144,16], index: 1, kind: input, shape index: {}]
  %s2 = inlined_call_operand.vmem [shape: f32[1,16], index: 2, kind: input, shape index: {}]
  %s3 = inlined_call_operand.vmem [shape: f32[512,16], index: 3, kind: output, shape index: {}]
  %s4 = sld [smem:[#allocation0]]
  $region22: #{_lambda_.16} parent=0
    _
  %s6 = ssub.s32 1, %s4
  %s7 = scalar_select 0, %s6, %s4
  // Predicated region
  $region2: #{_lambda_.16} parent=0 // pred_check
    _
  $region3: #{_lambda_.16} parent=0 // pred_check_branch
    %9 = sbr.rel (0) target = $region5
  $region4: #{_lambda_.16} parent=0 // pred_region
    _
  $region5: #{_lambda_.16} parent=0 // pred_fallthru
    _
  // Predicated region
  $region6: #{_lambda_.16} parent=0 // pred_check
    _
  $region7: #{_lambda_.16} parent=0 // pred_check_branch
    %11 = sbr.rel (0) target = $region9
  $region8: #{_lambda_.16} parent=0 // pred_region
    _
  $region9: #{_lambda_.16} parent=0 // pred_fallthru
    _
  // Predicated region
  $region10: #{_lambda_.16} parent=0 // pred_check
    _
  $region11: #{_lambda_.16} parent=0 // pred_check_branch
    %13 = sbr.rel (0) target = $region13
  $region12: #{_lambda_.16} parent=0 // pred_region
    _
  $region13: #{_lambda_.16} parent=0 // pred_fallthru
    _
  %v14 = vld [vmem:[%s0] sm:$0xff]
  %v15 = vld [vmem:[%s0 + $0x8] sm:$0xff]
  %v16 = vld [vmem:[%s0 + $0x10] sm:$0xff]
  %v17 = vld [vmem:[%s0 + $0x18] sm:$0xff]
  %v18 = vld [vmem:[%s0 + $0x20] sm:$0xff]
  %v19 = vld [vmem:[%s0 + $0x28] sm:$0xff]
  %v20 = vld [vmem:[%s0 + $0x30] sm:$0xff]
  %v21 = vld [vmem:[%s0 + $0x38] sm:$0xff]
  %v22 = vld [vmem:[%s0 + $0x40] sm:$0xff]
  %v23 = vld [vmem:[%s0 + $0x48] sm:$0xff]
  %v24 = vld [vmem:[%s0 + $0x50] sm:$0xff]
  %v25 = vld [vmem:[%s0 + $0x58] sm:$0xff]
  %v26 = vld [vmem:[%s0 + $0x60] sm:$0xff]
  %v27 = vld [vmem:[%s0 + $0x68] sm:$0xff]
  %v28 = vld [vmem:[%s0 + $0x70] sm:$0xff]
  %v29 = vld [vmem:[%s0 + $0x78] sm:$0xff]
  %v30 = vld [vmem:[%s0 + $0x80] sm:$0xff]
  %v31 = vld [vmem:[%s0 + $0x88] sm:$0xff]
  %v32 = vld [vmem:[%s0 + $0x90] sm:$0xff]
  %v33 = vld [vmem:[%s0 + $0x98] sm:$0xff]
  %v34 = vld [vmem:[%s0 + $0xa0] sm:$0xff]
  %v35 = vld [vmem:[%s0 + $0xa8] sm:$0xff]
  %v36 = vld [vmem:[%s0 + $0xb0] sm:$0xff]
  %v37 = vld [vmem:[%s0 + $0xb8] sm:$0xff]
  %v38 = vld [vmem:[%s0 + $0xc0] sm:$0xff]
  %v39 = vld [vmem:[%s0 + $0xc8] sm:$0xff]
  %v40 = vld [vmem:[%s0 + $0xd0] sm:$0xff]
  %v41 = vld [vmem:[%s0 + $0xd8] sm:$0xff]
  %v42 = vld [vmem:[%s0 + $0xe0] sm:$0xff]
  %v43 = vld [vmem:[%s0 + $0xe8] sm:$0xff]
  %v44 = vld [vmem:[%s0 + $0xf0] sm:$0xff]
  %v45 = vld [vmem:[%s0 + $0xf8] sm:$0xff]
  %v46 = vld [vmem:[%s0 + $0x100] sm:$0xff]
  %v47 = vld [vmem:[%s0 + $0x108] sm:$0xff]
  %v48 = vld [vmem:[%s0 + $0x110] sm:$0xff]
  %v49 = vld [vmem:[%s0 + $0x118] sm:$0xff]
  %v50 = vld [vmem:[%s0 + $0x120] sm:$0xff]
  %v51 = vld [vmem:[%s0 + $0x128] sm:$0xff]
  %v52 = vld [vmem:[%s0 + $0x130] sm:$0xff]
  %v53 = vld [vmem:[%s0 + $0x138] sm:$0xff]
  %v54 = vld [vmem:[%s0 + $0x140] sm:$0xff]
  %v55 = vld [vmem:[%s0 + $0x148] sm:$0xff]
  %v56 = vld [vmem:[%s0 + $0x150] sm:$0xff]
  %v57 = vld [vmem:[%s0 + $0x158] sm:$0xff]
  %v58 = vld [vmem:[%s0 + $0x160] sm:$0xff]
  %v59 = vld [vmem:[%s0 + $0x168] sm:$0xff]
  %v60 = vld [vmem:[%s0 + $0x170] sm:$0xff]
  %v61 = vld [vmem:[%s0 + $0x178] sm:$0xff]
  %v62 = vld [vmem:[%s0 + $0x180] sm:$0xff]
  %v63 = vld [vmem:[%s0 + $0x188] sm:$0xff]
  %v64 = vld [vmem:[%s0 + $0x190] sm:$0xff]
  %v65 = vld [vmem:[%s0 + $0x198] sm:$0xff]
  %v66 = vld [vmem:[%s0 + $0x1a0] sm:$0xff]
  %v67 = vld [vmem:[%s0 + $0x1a8] sm:$0xff]
  %v68 = vld [vmem:[%s0 + $0x1b0] sm:$0xff]
  %v69 = vld [vmem:[%s0 + $0x1b8] sm:$0xff]
  %v70 = vld [vmem:[%s0 + $0x1c0] sm:$0xff]
  %v71 = vld [vmem:[%s0 + $0x1c8] sm:$0xff]
  %v72 = vld [vmem:[%s0 + $0x1d0] sm:$0xff]
  %v73 = vld [vmem:[%s0 + $0x1d8] sm:$0xff]
  %v74 = vld [vmem:[%s0 + $0x1e0] sm:$0xff]
  %v75 = vld [vmem:[%s0 + $0x1e8] sm:$0xff]
  %v76 = vld [vmem:[%s0 + $0x1f0] sm:$0xff]
  %v77 = vld [vmem:[%s0 + $0x1f8] sm:$0xff]
  %v78 = vld [vmem:[%s0 + $0x200] sm:$0xff]
  %v79 = vld [vmem:[%s0 + $0x208] sm:$0xff]
  %v80 = vld [vmem:[%s0 + $0x210] sm:$0xff]
  %v81 = vld [vmem:[%s0 + $0x218] sm:$0xff]
  %v82 = vld [vmem:[%s0 + $0x220] sm:$0xff]
  %v83 = vld [vmem:[%s0 + $0x228] sm:$0xff]
  %v84 = vld [vmem:[%s0 + $0x230] sm:$0xff]
  %v85 = vld [vmem:[%s0 + $0x238] sm:$0xff]
  %v86 = vld [vmem:[%s0 + $0x240] sm:$0xff]
  %v87 = vld [vmem:[%s0 + $0x248] sm:$0xff]
  %v88 = vld [vmem:[%s0 + $0x250] sm:$0xff]
  %v89 = vld [vmem:[%s0 + $0x258] sm:$0xff]
  %v90 = vld [vmem:[%s0 + $0x260] sm:$0xff]
  %v91 = vld [vmem:[%s0 + $0x268] sm:$0xff]
  %v92 = vld [vmem:[%s0 + $0x270] sm:$0xff]
  %v93 = vld [vmem:[%s0 + $0x278] sm:$0xff]
  %v94 = vld [vmem:[%s0 + $0x280] sm:$0xff]
  %v95 = vld [vmem:[%s0 + $0x288] sm:$0xff]
  %v96 = vld [vmem:[%s0 + $0x290] sm:$0xff]
  %v97 = vld [vmem:[%s0 + $0x298] sm:$0xff]
  %v98 = vld [vmem:[%s0 + $0x2a0] sm:$0xff]
  %v99 = vld [vmem:[%s0 + $0x2a8] sm:$0xff]
  %v100 = vld [vmem:[%s0 + $0x2b0] sm:$0xff]
  %v101 = vld [vmem:[%s0 + $0x2b8] sm:$0xff]
  %v102 = vld [vmem:[%s0 + $0x2c0] sm:$0xff]
  %v103 = vld [vmem:[%s0 + $0x2c8] sm:$0xff]
  %v104 = vld [vmem:[%s0 + $0x2d0] sm:$0xff]
  %v105 = vld [vmem:[%s0 + $0x2d8] sm:$0xff]
  %v106 = vld [vmem:[%s0 + $0x2e0] sm:$0xff]
  %v107 = vld [vmem:[%s0 + $0x2e8] sm:$0xff]
  %v108 = vld [vmem:[%s0 + $0x2f0] sm:$0xff]
  %v109 = vld [vmem:[%s0 + $0x2f8] sm:$0xff]
  %v110 = vld [vmem:[%s0 + $0x300] sm:$0xff]
  %v111 = vld [vmem:[%s0 + $0x308] sm:$0xff]
  %v112 = vld [vmem:[%s0 + $0x310] sm:$0xff]
  %v113 = vld [vmem:[%s0 + $0x318] sm:$0xff]
  %v114 = vld [vmem:[%s0 + $0x320] sm:$0xff]
  %v115 = vld [vmem:[%s0 + $0x328] sm:$0xff]
  %v116 = vld [vmem:[%s0 + $0x330] sm:$0xff]
  %v117 = vld [vmem:[%s0 + $0x338] sm:$0xff]
  %v118 = vld [vmem:[%s0 + $0x340] sm:$0xff]
  %v119 = vld [vmem:[%s0 + $0x348] sm:$0xff]
  %v120 = vld [vmem:[%s0 + $0x350] sm:$0xff]
  %v121 = vld [vmem:[%s0 + $0x358] sm:$0xff]
  %v122 = vld [vmem:[%s0 + $0x360] sm:$0xff]
  %v123 = vld [vmem:[%s0 + $0x368] sm:$0xff]
  %v124 = vld [vmem:[%s0 + $0x370] sm:$0xff]
  %v125 = vld [vmem:[%s0 + $0x378] sm:$0xff]
  %v126 = vld [vmem:[%s0 + $0x380] sm:$0xff]
  %v127 = vld [vmem:[%s0 + $0x388] sm:$0xff]
  %v128 = vld [vmem:[%s0 + $0x390] sm:$0xff]
  %v129 = vld [vmem:[%s0 + $0x398] sm:$0xff]
  %v130 = vld [vmem:[%s0 + $0x3a0] sm:$0xff]
  %v131 = vld [vmem:[%s0 + $0x3a8] sm:$0xff]
  %v132 = vld [vmem:[%s0 + $0x3b0] sm:$0xff]
  %v133 = vld [vmem:[%s0 + $0x3b8] sm:$0xff]
  %v134 = vld [vmem:[%s0 + $0x3c0] sm:$0xff]
  %v135 = vld [vmem:[%s0 + $0x3c8] sm:$0xff]
  %v136 = vld [vmem:[%s0 + $0x3d0] sm:$0xff]
  %v137 = vld [vmem:[%s0 + $0x3d8] sm:$0xff]
  %v138 = vld [vmem:[%s0 + $0x3e0] sm:$0xff]
  %v139 = vld [vmem:[%s0 + $0x3e8] sm:$0xff]
  %v140 = vld [vmem:[%s0 + $0x3f0] sm:$0xff]
  %v141 = vld [vmem:[%s0 + $0x3f8] sm:$0xff]
  %v142 = vld [vmem:[%s1] sm:$0xff]
  %v143 = vld [vmem:[%s1 + $0x8] sm:$0xff]
  %v144 = vld [vmem:[%s1 + $0x10] sm:$0xff]
  %v145 = vld [vmem:[%s1 + $0x18] sm:$0xff]
  %v146 = vld [vmem:[%s1 + $0x20] sm:$0xff]
  %v147 = vld [vmem:[%s1 + $0x28] sm:$0xff]
  %v148 = vld [vmem:[%s1 + $0x30] sm:$0xff]
  %v149 = vld [vmem:[%s1 + $0x38] sm:$0xff]
  %v150 = vld [vmem:[%s1 + $0x40] sm:$0xff]
  %v151 = vld [vmem:[%s1 + $0x48] sm:$0xff]
  %v152 = vld [vmem:[%s1 + $0x50] sm:$0xff]
  %v153 = vld [vmem:[%s1 + $0x58] sm:$0xff]
  %v154 = vld [vmem:[%s1 + $0x60] sm:$0xff]
  %v155 = vld [vmem:[%s1 + $0x68] sm:$0xff]
  %v156 = vld [vmem:[%s1 + $0x70] sm:$0xff]
  %v157 = vld [vmem:[%s1 + $0x78] sm:$0xff]
  %v158 = vld [vmem:[%s1 + $0x80] sm:$0xff]
  %v159 = vld [vmem:[%s1 + $0x88] sm:$0xff]
  %v160 = vld [vmem:[%s2] sm:$0x1]
  %v162 = vlaneseq
  %v163 = vshrl.u32 %v162, 7
  %v164 = vsub.s32 0, %v163
  %v165 = vrot.slane %v160, %v164
  %vm167 = vcmask 130048
  %v169 = vsel %vm167, %v15, 0
  %v172 = vsel %vm167, %v17, 0
  %v175 = vsel %vm167, %v19, 0
  %v178 = vsel %vm167, %v21, 0
  %v181 = vsel %vm167, %v23, 0
  %v184 = vsel %vm167, %v25, 0
  %v187 = vsel %vm167, %v27, 0
  %v190 = vsel %vm167, %v29, 0
  %v193 = vsel %vm167, %v31, 0
  %v196 = vsel %vm167, %v33, 0
  %v199 = vsel %vm167, %v35, 0
  %v202 = vsel %vm167, %v37, 0
  %v205 = vsel %vm167, %v39, 0
  %v208 = vsel %vm167, %v41, 0
  %v211 = vsel %vm167, %v43, 0
  %v214 = vsel %vm167, %v45, 0
  %v217 = vsel %vm167, %v47, 0
  %v220 = vsel %vm167, %v49, 0
  %v223 = vsel %vm167, %v51, 0
  %v226 = vsel %vm167, %v53, 0
  %v229 = vsel %vm167, %v55, 0
  %v232 = vsel %vm167, %v57, 0
  %v235 = vsel %vm167, %v59, 0
  %v238 = vsel %vm167, %v61, 0
  %v241 = vsel %vm167, %v63, 0
  %v244 = vsel %vm167, %v65, 0
  %v247 = vsel %vm167, %v67, 0
  %v250 = vsel %vm167, %v69, 0
  %v253 = vsel %vm167, %v71, 0
  %v256 = vsel %vm167, %v73, 0
  %v259 = vsel %vm167, %v75, 0
  %v262 = vsel %vm167, %v77, 0
  %v265 = vsel %vm167, %v79, 0
  %v268 = vsel %vm167, %v81, 0
  %v271 = vsel %vm167, %v83, 0
  %v274 = vsel %vm167, %v85, 0
  %v277 = vsel %vm167, %v87, 0
  %v280 = vsel %vm167, %v89, 0
  %v283 = vsel %vm167, %v91, 0
  %v286 = vsel %vm167, %v93, 0
  %v289 = vsel %vm167, %v95, 0
  %v292 = vsel %vm167, %v97, 0
  %v295 = vsel %vm167, %v99, 0
  %v298 = vsel %vm167, %v101, 0
  %v301 = vsel %vm167, %v103, 0
  %v304 = vsel %vm167, %v105, 0
  %v307 = vsel %vm167, %v107, 0
  %v310 = vsel %vm167, %v109, 0
  %v313 = vsel %vm167, %v111, 0
  %v316 = vsel %vm167, %v113, 0
  %v319 = vsel %vm167, %v115, 0
  %v322 = vsel %vm167, %v117, 0
  %v325 = vsel %vm167, %v119, 0
  %v328 = vsel %vm167, %v121, 0
  %v331 = vsel %vm167, %v123, 0
  %v334 = vsel %vm167, %v125, 0
  %v337 = vsel %vm167, %v127, 0
  %v340 = vsel %vm167, %v129, 0
  %v343 = vsel %vm167, %v131, 0
  %v346 = vsel %vm167, %v133, 0
  %v349 = vsel %vm167, %v135, 0
  %v352 = vsel %vm167, %v137, 0
  %v355 = vsel %vm167, %v139, 0
  %v358 = vsel %vm167, %v141, 0
  %360 = vmatprep.subr.mxu0 0.0
  %361 = vmatpush1.msra.mxu0 %v142
  %362 = vmatprep.subr.mxu0 0.0
  %363 = vmatpush1.msra.mxu0 %v143
  %364 = vmatprep.subr.mxu0 0.0
  %365 = vmatpush1.msra.mxu0 %v144
  %366 = vmatprep.subr.mxu0 0.0
  %367 = vmatpush1.msra.mxu0 %v145
  %368 = vmatprep.subr.mxu0 0.0
  %369 = vmatpush1.msra.mxu0 %v146
  %370 = vmatprep.subr.mxu0 0.0
  %371 = vmatpush1.msra.mxu0 %v147
  %372 = vmatprep.subr.mxu0 0.0
  %373 = vmatpush1.msra.mxu0 %v148
  %374 = vmatprep.subr.mxu0 0.0
  %375 = vmatpush1.msra.mxu0 %v149
  %376 = vmatprep.subr.mxu0 0.0
  %377 = vmatpush1.msra.mxu0 %v150
  %378 = vmatprep.subr.mxu0 0.0
  %379 = vmatpush1.msra.mxu0 %v151
  %380 = vmatprep.subr.mxu0 0.0
  %381 = vmatpush1.msra.mxu0 %v152
  %382 = vmatprep.subr.mxu0 0.0
  %383 = vmatpush1.msra.mxu0 %v153
  %384 = vmatprep.subr.mxu0 0.0
  %385 = vmatpush1.msra.mxu0 %v154
  %386 = vmatprep.subr.mxu0 0.0
  %387 = vmatpush1.msra.mxu0 %v155
  %388 = vmatprep.subr.mxu0 0.0
  %389 = vmatpush1.msra.mxu0 %v156
  %390 = vmatprep.subr.mxu0 0.0
  %391 = vmatpush1.msra.mxu0 %v157
  %392 = vmatprep.subr.mxu0 0.0
  %393 = vmatpush1.msra.mxu0 %v158
  %394 = vmatprep.subr.mxu0 0.0
  %395 = vmatpush1.msra.mxu0 %v159
  %396 = vmatprep.subr.mxu0 0.0
  %397 = vmatpush1.msra.mxu0 0.0
  %398 = vmatprep.subr.mxu0 0.0
  %399 = vmatpush1.msra.mxu0 0.0
  %400 = vmatprep.subr.mxu0 0.0
  %401 = vmatpush1.msra.mxu0 0.0
  %402 = vmatprep.subr.mxu0 0.0
  %403 = vmatpush1.msra.mxu0 0.0
  %404 = vmatprep.subr.mxu0 0.0
  %405 = vmatpush1.msra.mxu0 0.0
  %406 = vmatprep.subr.mxu0 0.0
  %407 = vmatpush1.msra.mxu0 0.0
  %408 = vmatprep.subr.mxu0 0.0
  %409 = vmatpush1.msra.mxu0 0.0
  %410 = vmatprep.subr.mxu0 0.0
  %411 = vmatpush1.msra.mxu0 0.0
  %412 = vmatprep.subr.mxu0 0.0
  %413 = vmatpush1.msra.mxu0 0.0
  %414 = vmatprep.subr.mxu0 0.0
  %415 = vmatpush1.msra.mxu0 0.0
  %416 = vmatprep.subr.mxu0 0.0
  %417 = vmatpush1.msra.mxu0 0.0
  %418 = vmatprep.subr.mxu0 0.0
  %419 = vmatpush1.msra.mxu0 0.0
  %420 = vmatprep.subr.mxu0 0.0
  %421 = vmatpush1.msra.mxu0 0.0
  %422 = vmatprep.subr.mxu0 0.0
  %423 = vmatpush1.msra.mxu0 0.0
  %424 = vmatprep.mubr.f32.mxu0 %v169
  %425 = vmatmul.mubr.f32.gmra.mrb[0].mxu0 %v14
  %v426 = vpop.f32.mrb[0].mxu0
  %v427 = vadd.f32 %v165, %v426
  %v428 = vpop.f32.mrb[0].mxu0
  %429 = vmatprep.mubr.f32.mxu0 %v172
  %430 = vmatmul.mubr.f32.gmra.mrb[0].mxu0 %v16
  %v431 = vpop.f32.mrb[0].mxu0
  %v432 = vadd.f32 %v165, %v431
  %v433 = vpop.f32.mrb[0].mxu0
  %434 = vmatprep.mubr.f32.mxu0 %v175
  %435 = vmatmul.mubr.f32.gmra.mrb[0].mxu0 %v18
  %v436 = vpop.f32.mrb[0].mxu0
  %v437 = vadd.f32 %v165, %v436
  %v438 = vpop.f32.mrb[0].mxu0
  %439 = vmatprep.mubr.f32.mxu0 %v178
  %440 = vmatmul.mubr.f32.gmra.mrb[0].mxu0 %v20
  %v441 = vpop.f32.mrb[0].mxu0
  %v442 = vadd.f32 %v165, %v441
  %v443 = vpop.f32.mrb[0].mxu0
  %444 = vmatprep.mubr.f32.mxu0 %v181
  %445 = vmatmul.mubr.f32.gmra.mrb[0].mxu0 %v22
  %v446 = vpop.f32.mrb[0].mxu0
  %v447 = vadd.f32 %v165, %v446
  %v448 = vpop.f32.mrb[0].mxu0
  %449 = vmatprep.mubr.f32.mxu0 %v184
  %450 = vmatmul.mubr.f32.gmra.mrb[0].mxu0 %v24
  %v451 = vpop.f32.mrb[0].mxu0
  %v452 = vadd.f32 %v165, %v451
  %v453 = vpop.f32.mrb[0].mxu0
  %454 = vmatprep.mubr.f32.mxu0 %v187
  %455 = vmatmul.mubr.f32.gmra.mrb[0].mxu0 %v26
  %v456 = vpop.f32.mrb[0].mxu0
  %v457 = vadd.f32 %v165, %v456
  %v458 = vpop.f32.mrb[0].mxu0
  %459 = vmatprep.mubr.f32.mxu0 %v190
  %460 = vmatmul.mubr.f32.gmra.mrb[0].mxu0 %v28
  %v461 = vpop.f32.mrb[0].mxu0
  %v462 = vadd.f32 %v165, %v461
  %v463 = vpop.f32.mrb[0].mxu0
  %464 = vmatprep.mubr.f32.mxu0 %v193
  %465 = vmatmul.mubr.f32.gmra.mrb[0].mxu0 %v30
  %v466 = vpop.f32.mrb[0].mxu0
  %v467 = vadd.f32 %v165, %v466
  %v468 = vpop.f32.mrb[0].mxu0
  %469 = vmatprep.mubr.f32.mxu0 %v196
  %470 = vmatmul.mubr.f32.gmra.mrb[0].mxu0 %v32
  %v471 = vpop.f32.mrb[0].mxu0
  %v472 = vadd.f32 %v165, %v471
  %v473 = vpop.f32.mrb[0].mxu0
  %474 = vmatprep.mubr.f32.mxu0 %v199
  %475 = vmatmul.mubr.f32.gmra.mrb[0].mxu0 %v34
  %v476 = vpop.f32.mrb[0].mxu0
  %v477 = vadd.f32 %v165, %v476
  %v478 = vpop.f32.mrb[0].mxu0
  %479 = vmatprep.mubr.f32.mxu0 %v202
  %480 = vmatmul.mubr.f32.gmra.mrb[0].mxu0 %v36
  %v481 = vpop.f32.mrb[0].mxu0
  %v482 = vadd.f32 %v165, %v481
  %v483 = vpop.f32.mrb[0].mxu0
  %484 = vmatprep.mubr.f32.mxu0 %v205
  %485 = vmatmul.mubr.f32.gmra.mrb[0].mxu0 %v38
  %v486 = vpop.f32.mrb[0].mxu0
  %v487 = vadd.f32 %v165, %v486
  %v488 = vpop.f32.mrb[0].mxu0
  %489 = vmatprep.mubr.f32.mxu0 %v208
  %490 = vmatmul.mubr.f32.gmra.mrb[0].mxu0 %v40
  %v491 = vpop.f32.mrb[0].mxu0
  %v492 = vadd.f32 %v165, %v491
  %v493 = vpop.f32.mrb[0].mxu0
  %494 = vmatprep.mubr.f32.mxu0 %v211
  %495 = vmatmul.mubr.f32.gmra.mrb[0].mxu0 %v42
  %v496 = vpop.f32.mrb[0].mxu0
  %v497 = vadd.f32 %v165, %v496
  %v498 = vpop.f32.mrb[0].mxu0
  %499 = vmatprep.mubr.f32.mxu0 %v214
  %500 = vmatmul.mubr.f32.gmra.mrb[0].mxu0 %v44
  %v501 = vpop.f32.mrb[0].mxu0
  %v502 = vadd.f32 %v165, %v501
  %v503 = vpop.f32.mrb[0].mxu0
  %504 = vmatprep.mubr.f32.mxu0 %v217
  %505 = vmatmul.mubr.f32.gmra.mrb[0].mxu0 %v46
  %v506 = vpop.f32.mrb[0].mxu0
  %v507 = vadd.f32 %v165, %v506
  %v508 = vpop.f32.mrb[0].mxu0
  %509 = vmatprep.mubr.f32.mxu0 %v220
  %510 = vmatmul.mubr.f32.gmra.mrb[0].mxu0 %v48
  %v511 = vpop.f32.mrb[0].mxu0
  %v512 = vadd.f32 %v165, %v511
  %v513 = vpop.f32.mrb[0].mxu0
  %514 = vmatprep.mubr.f32.mxu0 %v223
  %515 = vmatmul.mubr.f32.gmra.mrb[0].mxu0 %v50
  %v516 = vpop.f32.mrb[0].mxu0
  %v517 = vadd.f32 %v165, %v516
  %v518 = vpop.f32.mrb[0].mxu0
  %519 = vmatprep.mubr.f32.mxu0 %v226
  %520 = vmatmul.mubr.f32.gmra.mrb[0].mxu0 %v52
  %v521 = vpop.f32.mrb[0].mxu0
  %v522 = vadd.f32 %v165, %v521
  %v523 = vpop.f32.mrb[0].mxu0
  %524 = vmatprep.mubr.f32.mxu0 %v229
  %525 = vmatmul.mubr.f32.gmra.mrb[0].mxu0 %v54
  %v526 = vpop.f32.mrb[0].mxu0
  %v527 = vadd.f32 %v165, %v526
  %v528 = vpop.f32.mrb[0].mxu0
  %529 = vmatprep.mubr.f32.mxu0 %v232
  %530 = vmatmul.mubr.f32.gmra.mrb[0].mxu0 %v56
  %v531 = vpop.f32.mrb[0].mxu0
  %v532 = vadd.f32 %v165, %v531
  %v533 = vpop.f32.mrb[0].mxu0
  %534 = vmatprep.mubr.f32.mxu0 %v235
  %535 = vmatmul.mubr.f32.gmra.mrb[0].mxu0 %v58
  %v536 = vpop.f32.mrb[0].mxu0
  %v537 = vadd.f32 %v165, %v536
  %v538 = vpop.f32.mrb[0].mxu0
  %539 = vmatprep.mubr.f32.mxu0 %v238
  %540 = vmatmul.mubr.f32.gmra.mrb[0].mxu0 %v60
  %v541 = vpop.f32.mrb[0].mxu0
  %v542 = vadd.f32 %v165, %v541
  %v543 = vpop.f32.mrb[0].mxu0
  %544 = vmatprep.mubr.f32.mxu0 %v241
  %545 = vmatmul.mubr.f32.gmra.mrb[0].mxu0 %v62
  %v546 = vpop.f32.mrb[0].mxu0
  %v547 = vadd.f32 %v165, %v546
  %v548 = vpop.f32.mrb[0].mxu0
  %549 = vmatprep.mubr.f32.mxu0 %v244
  %550 = vmatmul.mubr.f32.gmra.mrb[0].mxu0 %v64
  %v551 = vpop.f32.mrb[0].mxu0
  %v552 = vadd.f32 %v165, %v551
  %v553 = vpop.f32.mrb[0].mxu0
  %554 = vmatprep.mubr.f32.mxu0 %v247
  %555 = vmatmul.mubr.f32.gmra.mrb[0].mxu0 %v66
  %v556 = vpop.f32.mrb[0].mxu0
  %v557 = vadd.f32 %v165, %v556
  %v558 = vpop.f32.mrb[0].mxu0
  %559 = vmatprep.mubr.f32.mxu0 %v250
  %560 = vmatmul.mubr.f32.gmra.mrb[0].mxu0 %v68
  %v561 = vpop.f32.mrb[0].mxu0
  %v562 = vadd.f32 %v165, %v561
  %v563 = vpop.f32.mrb[0].mxu0
  %564 = vmatprep.mubr.f32.mxu0 %v253
  %565 = vmatmul.mubr.f32.gmra.mrb[0].mxu0 %v70
  %v566 = vpop.f32.mrb[0].mxu0
  %v567 = vadd.f32 %v165, %v566
  %v568 = vpop.f32.mrb[0].mxu0
  %569 = vmatprep.mubr.f32.mxu0 %v256
  %570 = vmatmul.mubr.f32.gmra.mrb[0].mxu0 %v72
  %v571 = vpop.f32.mrb[0].mxu0
  %v572 = vadd.f32 %v165, %v571
  %v573 = vpop.f32.mrb[0].mxu0
  %574 = vmatprep.mubr.f32.mxu0 %v259
  %575 = vmatmul.mubr.f32.gmra.mrb[0].mxu0 %v74
  %v576 = vpop.f32.mrb[0].mxu0
  %v577 = vadd.f32 %v165, %v576
  %v578 = vpop.f32.mrb[0].mxu0
  %579 = vmatprep.mubr.f32.mxu0 %v262
  %580 = vmatmul.mubr.f32.gmra.mrb[0].mxu0 %v76
  %v581 = vpop.f32.mrb[0].mxu0
  %v582 = vadd.f32 %v165, %v581
  %v583 = vpop.f32.mrb[0].mxu0
  %584 = vmatprep.mubr.f32.mxu0 %v265
  %585 = vmatmul.mubr.f32.gmra.mrb[0].mxu0 %v78
  %v586 = vpop.f32.mrb[0].mxu0
  %v587 = vadd.f32 %v165, %v586
  %v588 = vpop.f32.mrb[0].mxu0
  %589 = vmatprep.mubr.f32.mxu0 %v268
  %590 = vmatmul.mubr.f32.gmra.mrb[0].mxu0 %v80
  %v591 = vpop.f32.mrb[0].mxu0
  %v592 = vadd.f32 %v165, %v591
  %v593 = vpop.f32.mrb[0].mxu0
  %594 = vmatprep.mubr.f32.mxu0 %v271
  %595 = vmatmul.mubr.f32.gmra.mrb[0].mxu0 %v82
  %v596 = vpop.f32.mrb[0].mxu0
  %v597 = vadd.f32 %v165, %v596
  %v598 = vpop.f32.mrb[0].mxu0
  %599 = vmatprep.mubr.f32.mxu0 %v274
  %600 = vmatmul.mubr.f32.gmra.mrb[0].mxu0 %v84
  %v601 = vpop.f32.mrb[0].mxu0
  %v602 = vadd.f32 %v165, %v601
  %v603 = vpop.f32.mrb[0].mxu0
  %604 = vmatprep.mubr.f32.mxu0 %v277
  %605 = vmatmul.mubr.f32.gmra.mrb[0].mxu0 %v86
  %v606 = vpop.f32.mrb[0].mxu0
  %v607 = vadd.f32 %v165, %v606
  %v608 = vpop.f32.mrb[0].mxu0
  %609 = vmatprep.mubr.f32.mxu0 %v280
  %610 = vmatmul.mubr.f32.gmra.mrb[0].mxu0 %v88
  %v611 = vpop.f32.mrb[0].mxu0
  %v612 = vadd.f32 %v165, %v611
  %v613 = vpop.f32.mrb[0].mxu0
  %614 = vmatprep.mubr.f32.mxu0 %v283
  %615 = vmatmul.mubr.f32.gmra.mrb[0].mxu0 %v90
  %v616 = vpop.f32.mrb[0].mxu0
  %v617 = vadd.f32 %v165, %v616
  %v618 = vpop.f32.mrb[0].mxu0
  %619 = vmatprep.mubr.f32.mxu0 %v286
  %620 = vmatmul.mubr.f32.gmra.mrb[0].mxu0 %v92
  %v621 = vpop.f32.mrb[0].mxu0
  %v622 = vadd.f32 %v165, %v621
  %v623 = vpop.f32.mrb[0].mxu0
  %624 = vmatprep.mubr.f32.mxu0 %v289
  %625 = vmatmul.mubr.f32.gmra.mrb[0].mxu0 %v94
  %v626 = vpop.f32.mrb[0].mxu0
  %v627 = vadd.f32 %v165, %v626
  %v628 = vpop.f32.mrb[0].mxu0
  %629 = vmatprep.mubr.f32.mxu0 %v292
  %630 = vmatmul.mubr.f32.gmra.mrb[0].mxu0 %v96
  %v631 = vpop.f32.mrb[0].mxu0
  %v632 = vadd.f32 %v165, %v631
  %v633 = vpop.f32.mrb[0].mxu0
  %634 = vmatprep.mubr.f32.mxu0 %v295
  %635 = vmatmul.mubr.f32.gmra.mrb[0].mxu0 %v98
  %v636 = vpop.f32.mrb[0].mxu0
  %v637 = vadd.f32 %v165, %v636
  %v638 = vpop.f32.mrb[0].mxu0
  %639 = vmatprep.mubr.f32.mxu0 %v298
  %640 = vmatmul.mubr.f32.gmra.mrb[0].mxu0 %v100
  %v641 = vpop.f32.mrb[0].mxu0
  %v642 = vadd.f32 %v165, %v641
  %v643 = vpop.f32.mrb[0].mxu0
  %644 = vmatprep.mubr.f32.mxu0 %v301
  %645 = vmatmul.mubr.f32.gmra.mrb[0].mxu0 %v102
  %v646 = vpop.f32.mrb[0].mxu0
  %v647 = vadd.f32 %v165, %v646
  %v648 = vpop.f32.mrb[0].mxu0
  %649 = vmatprep.mubr.f32.mxu0 %v304
  %650 = vmatmul.mubr.f32.gmra.mrb[0].mxu0 %v104
  %v651 = vpop.f32.mrb[0].mxu0
  %v652 = vadd.f32 %v165, %v651
  %v653 = vpop.f32.mrb[0].mxu0
  %654 = vmatprep.mubr.f32.mxu0 %v307
  %655 = vmatmul.mubr.f32.gmra.mrb[0].mxu0 %v106
  %v656 = vpop.f32.mrb[0].mxu0
  %v657 = vadd.f32 %v165, %v656
  %v658 = vpop.f32.mrb[0].mxu0
  %659 = vmatprep.mubr.f32.mxu0 %v310
  %660 = vmatmul.mubr.f32.gmra.mrb[0].mxu0 %v108
  %v661 = vpop.f32.mrb[0].mxu0
  %v662 = vadd.f32 %v165, %v661
  %v663 = vpop.f32.mrb[0].mxu0
  %664 = vmatprep.mubr.f32.mxu0 %v313
  %665 = vmatmul.mubr.f32.gmra.mrb[0].mxu0 %v110
  %v666 = vpop.f32.mrb[0].mxu0
  %v667 = vadd.f32 %v165, %v666
  %v668 = vpop.f32.mrb[0].mxu0
  %669 = vmatprep.mubr.f32.mxu0 %v316
  %670 = vmatmul.mubr.f32.gmra.mrb[0].mxu0 %v112
  %v671 = vpop.f32.mrb[0].mxu0
  %v672 = vadd.f32 %v165, %v671
  %v673 = vpop.f32.mrb[0].mxu0
  %674 = vmatprep.mubr.f32.mxu0 %v319
  %675 = vmatmul.mubr.f32.gmra.mrb[0].mxu0 %v114
  %v676 = vpop.f32.mrb[0].mxu0
  %v677 = vadd.f32 %v165, %v676
  %v678 = vpop.f32.mrb[0].mxu0
  %679 = vmatprep.mubr.f32.mxu0 %v322
  %680 = vmatmul.mubr.f32.gmra.mrb[0].mxu0 %v116
  %v681 = vpop.f32.mrb[0].mxu0
  %v682 = vadd.f32 %v165, %v681
  %v683 = vpop.f32.mrb[0].mxu0
  %684 = vmatprep.mubr.f32.mxu0 %v325
  %685 = vmatmul.mubr.f32.gmra.mrb[0].mxu0 %v118
  %v686 = vpop.f32.mrb[0].mxu0
  %v687 = vadd.f32 %v165, %v686
  %v688 = vpop.f32.mrb[0].mxu0
  %689 = vmatprep.mubr.f32.mxu0 %v328
  %690 = vmatmul.mubr.f32.gmra.mrb[0].mxu0 %v120
  %v691 = vpop.f32.mrb[0].mxu0
  %v692 = vadd.f32 %v165, %v691
  %v693 = vpop.f32.mrb[0].mxu0
  %694 = vmatprep.mubr.f32.mxu0 %v331
  %695 = vmatmul.mubr.f32.gmra.mrb[0].mxu0 %v122
  %v696 = vpop.f32.mrb[0].mxu0
  %v697 = vadd.f32 %v165, %v696
  %v698 = vpop.f32.mrb[0].mxu0
  %699 = vmatprep.mubr.f32.mxu0 %v334
  %700 = vmatmul.mubr.f32.gmra.mrb[0].mxu0 %v124
  %v701 = vpop.f32.mrb[0].mxu0
  %v702 = vadd.f32 %v165, %v701
  %v703 = vpop.f32.mrb[0].mxu0
  %704 = vmatprep.mubr.f32.mxu0 %v337
  %705 = vmatmul.mubr.f32.gmra.mrb[0].mxu0 %v126
  %v706 = vpop.f32.mrb[0].mxu0
  %v707 = vadd.f32 %v165, %v706
  %v708 = vpop.f32.mrb[0].mxu0
  %709 = vmatprep.mubr.f32.mxu0 %v340
  %710 = vmatmul.mubr.f32.gmra.mrb[0].mxu0 %v128
  %v711 = vpop.f32.mrb[0].mxu0
  %v712 = vadd.f32 %v165, %v711
  %v713 = vpop.f32.mrb[0].mxu0
  %714 = vmatprep.mubr.f32.mxu0 %v343
  %715 = vmatmul.mubr.f32.gmra.mrb[0].mxu0 %v130
  %v716 = vpop.f32.mrb[0].mxu0
  %v717 = vadd.f32 %v165, %v716
  %v718 = vpop.f32.mrb[0].mxu0
  %719 = vmatprep.mubr.f32.mxu0 %v346
  %720 = vmatmul.mubr.f32.gmra.mrb[0].mxu0 %v132
  %v721 = vpop.f32.mrb[0].mxu0
  %v722 = vadd.f32 %v165, %v721
  %v723 = vpop.f32.mrb[0].mxu0
  %724 = vmatprep.mubr.f32.mxu0 %v349
  %725 = vmatmul.mubr.f32.gmra.mrb[0].mxu0 %v134
  %v726 = vpop.f32.mrb[0].mxu0
  %v727 = vadd.f32 %v165, %v726
  %v728 = vpop.f32.mrb[0].mxu0
  %729 = vmatprep.mubr.f32.mxu0 %v352
  %730 = vmatmul.mubr.f32.gmra.mrb[0].mxu0 %v136
  %v731 = vpop.f32.mrb[0].mxu0
  %v732 = vadd.f32 %v165, %v731
  %v733 = vpop.f32.mrb[0].mxu0
  %734 = vmatprep.mubr.f32.mxu0 %v355
  %735 = vmatmul.mubr.f32.gmra.mrb[0].mxu0 %v138
  %v736 = vpop.f32.mrb[0].mxu0
  %v737 = vadd.f32 %v165, %v736
  %v738 = vpop.f32.mrb[0].mxu0
  %739 = vmatprep.mubr.f32.mxu0 %v358
  %740 = vmatmul.mubr.f32.gmra.mrb[0].mxu0 %v140
  %v741 = vpop.f32.mrb[0].mxu0
  %v742 = vadd.f32 %v165, %v741
  %v743 = vpop.f32.mrb[0].mxu0
  %744 = vdwg.mxu0
  %v745 = vmax.f32 %v427, 0.0
  %v746 = vmax.f32 %v432, 0.0
  %v747 = vmax.f32 %v437, 0.0
  %v748 = vmax.f32 %v442, 0.0
  %v749 = vmax.f32 %v447, 0.0
  %v750 = vmax.f32 %v452, 0.0
  %v751 = vmax.f32 %v457, 0.0
  %v752 = vmax.f32 %v462, 0.0
  %v753 = vmax.f32 %v467, 0.0
  %v754 = vmax.f32 %v472, 0.0
  %v755 = vmax.f32 %v477, 0.0
  %v756 = vmax.f32 %v482, 0.0
  %v757 = vmax.f32 %v487, 0.0
  %v758 = vmax.f32 %v492, 0.0
  %v759 = vmax.f32 %v497, 0.0
  %v760 = vmax.f32 %v502, 0.0
  %v761 = vmax.f32 %v507, 0.0
  %v762 = vmax.f32 %v512, 0.0
  %v763 = vmax.f32 %v517, 0.0
  %v764 = vmax.f32 %v522, 0.0
  %v765 = vmax.f32 %v527, 0.0
  %v766 = vmax.f32 %v532, 0.0
  %v767 = vmax.f32 %v537, 0.0
  %v768 = vmax.f32 %v542, 0.0
  %v769 = vmax.f32 %v547, 0.0
  %v770 = vmax.f32 %v552, 0.0
  %v771 = vmax.f32 %v557, 0.0
  %v772 = vmax.f32 %v562, 0.0
  %v773 = vmax.f32 %v567, 0.0
  %v774 = vmax.f32 %v572, 0.0
  %v775 = vmax.f32 %v577, 0.0
  %v776 = vmax.f32 %v582, 0.0
  %v777 = vmax.f32 %v587, 0.0
  %v778 = vmax.f32 %v592, 0.0
  %v779 = vmax.f32 %v597, 0.0
  %v780 = vmax.f32 %v602, 0.0
  %v781 = vmax.f32 %v607, 0.0
  %v782 = vmax.f32 %v612, 0.0
  %v783 = vmax.f32 %v617, 0.0
  %v784 = vmax.f32 %v622, 0.0
  %v785 = vmax.f32 %v627, 0.0
  %v786 = vmax.f32 %v632, 0.0
  %v787 = vmax.f32 %v637, 0.0
  %v788 = vmax.f32 %v642, 0.0
  %v789 = vmax.f32 %v647, 0.0
  %v790 = vmax.f32 %v652, 0.0
  %v791 = vmax.f32 %v657, 0.0
  %v792 = vmax.f32 %v662, 0.0
  %v793 = vmax.f32 %v667, 0.0
  %v794 = vmax.f32 %v672, 0.0
  %v795 = vmax.f32 %v677, 0.0
  %v796 = vmax.f32 %v682, 0.0
  %v797 = vmax.f32 %v687, 0.0
  %v798 = vmax.f32 %v692, 0.0
  %v799 = vmax.f32 %v697, 0.0
  %v800 = vmax.f32 %v702, 0.0
  %v801 = vmax.f32 %v707, 0.0
  %v802 = vmax.f32 %v712, 0.0
  %v803 = vmax.f32 %v717, 0.0
  %v804 = vmax.f32 %v722, 0.0
  %v805 = vmax.f32 %v727, 0.0
  %v806 = vmax.f32 %v732, 0.0
  %v807 = vmax.f32 %v737, 0.0
  %v808 = vmax.f32 %v742, 0.0
  %809 = vst.msk [vmem:[%s3] sm:$0xff] %vm167, %v745
  %810 = vst.msk [vmem:[%s3 + $0x8] sm:$0xff] %vm167, %v746
  %811 = vst.msk [vmem:[%s3 + $0x10] sm:$0xff] %vm167, %v747
  %812 = vst.msk [vmem:[%s3 + $0x18] sm:$0xff] %vm167, %v748
  %813 = vst.msk [vmem:[%s3 + $0x20] sm:$0xff] %vm167, %v749
  %814 = vst.msk [vmem:[%s3 + $0x28] sm:$0xff] %vm167, %v750
  %815 = vst.msk [vmem:[%s3 + $0x30] sm:$0xff] %vm167, %v751
  %816 = vst.msk [vmem:[%s3 + $0x38] sm:$0xff] %vm167, %v752
  %817 = vst.msk [vmem:[%s3 + $0x40] sm:$0xff] %vm167, %v753
  %818 = vst.msk [vmem:[%s3 + $0x48] sm:$0xff] %vm167, %v754
  %819 = vst.msk [vmem:[%s3 + $0x50] sm:$0xff] %vm167, %v755
  %820 = vst.msk [vmem:[%s3 + $0x58] sm:$0xff] %vm167, %v756
  %821 = vst.msk [vmem:[%s3 + $0x60] sm:$0xff] %vm167, %v757
  %822 = vst.msk [vmem:[%s3 + $0x68] sm:$0xff] %vm167, %v758
  %823 = vst.msk [vmem:[%s3 + $0x70] sm:$0xff] %vm167, %v759
  %824 = vst.msk [vmem:[%s3 + $0x78] sm:$0xff] %vm167, %v760
  %825 = vst.msk [vmem:[%s3 + $0x80] sm:$0xff] %vm167, %v761
  %826 = vst.msk [vmem:[%s3 + $0x88] sm:$0xff] %vm167, %v762
  %827 = vst.msk [vmem:[%s3 + $0x90] sm:$0xff] %vm167, %v763
  %828 = vst.msk [vmem:[%s3 + $0x98] sm:$0xff] %vm167, %v764
  %829 = vst.msk [vmem:[%s3 + $0xa0] sm:$0xff] %vm167, %v765
  %830 = vst.msk [vmem:[%s3 + $0xa8] sm:$0xff] %vm167, %v766
  %831 = vst.msk [vmem:[%s3 + $0xb0] sm:$0xff] %vm167, %v767
  %832 = vst.msk [vmem:[%s3 + $0xb8] sm:$0xff] %vm167, %v768
  %833 = vst.msk [vmem:[%s3 + $0xc0] sm:$0xff] %vm167, %v769
  %834 = vst.msk [vmem:[%s3 + $0xc8] sm:$0xff] %vm167, %v770
  %835 = vst.msk [vmem:[%s3 + $0xd0] sm:$0xff] %vm167, %v771
  %836 = vst.msk [vmem:[%s3 + $0xd8] sm:$0xff] %vm167, %v772
  %837 = vst.msk [vmem:[%s3 + $0xe0] sm:$0xff] %vm167, %v773
  %838 = vst.msk [vmem:[%s3 + $0xe8] sm:$0xff] %vm167, %v774
  %839 = vst.msk [vmem:[%s3 + $0xf0] sm:$0xff] %vm167, %v775
  %840 = vst.msk [vmem:[%s3 + $0xf8] sm:$0xff] %vm167, %v776
  %841 = vst.msk [vmem:[%s3 + $0x100] sm:$0xff] %vm167, %v777
  %842 = vst.msk [vmem:[%s3 + $0x108] sm:$0xff] %vm167, %v778
  %843 = vst.msk [vmem:[%s3 + $0x110] sm:$0xff] %vm167, %v779
  %844 = vst.msk [vmem:[%s3 + $0x118] sm:$0xff] %vm167, %v780
  %845 = vst.msk [vmem:[%s3 + $0x120] sm:$0xff] %vm167, %v781
  %846 = vst.msk [vmem:[%s3 + $0x128] sm:$0xff] %vm167, %v782
  %847 = vst.msk [vmem:[%s3 + $0x130] sm:$0xff] %vm167, %v783
  %848 = vst.msk [vmem:[%s3 + $0x138] sm:$0xff] %vm167, %v784
  %849 = vst.msk [vmem:[%s3 + $0x140] sm:$0xff] %vm167, %v785
  %850 = vst.msk [vmem:[%s3 + $0x148] sm:$0xff] %vm167, %v786
  %851 = vst.msk [vmem:[%s3 + $0x150] sm:$0xff] %vm167, %v787
  %852 = vst.msk [vmem:[%s3 + $0x158] sm:$0xff] %vm167, %v788
  %853 = vst.msk [vmem:[%s3 + $0x160] sm:$0xff] %vm167, %v789
  %854 = vst.msk [vmem:[%s3 + $0x168] sm:$0xff] %vm167, %v790
  %855 = vst.msk [vmem:[%s3 + $0x170] sm:$0xff] %vm167, %v791
  %856 = vst.msk [vmem:[%s3 + $0x178] sm:$0xff] %vm167, %v792
  %857 = vst.msk [vmem:[%s3 + $0x180] sm:$0xff] %vm167, %v793
  %858 = vst.msk [vmem:[%s3 + $0x188] sm:$0xff] %vm167, %v794
  %859 = vst.msk [vmem:[%s3 + $0x190] sm:$0xff] %vm167, %v795
  %860 = vst.msk [vmem:[%s3 + $0x198] sm:$0xff] %vm167, %v796
  %861 = vst.msk [vmem:[%s3 + $0x1a0] sm:$0xff] %vm167, %v797
  %862 = vst.msk [vmem:[%s3 + $0x1a8] sm:$0xff] %vm167, %v798
  %863 = vst.msk [vmem:[%s3 + $0x1b0] sm:$0xff] %vm167, %v799
  %864 = vst.msk [vmem:[%s3 + $0x1b8] sm:$0xff] %vm167, %v800
  %865 = vst.msk [vmem:[%s3 + $0x1c0] sm:$0xff] %vm167, %v801
  %866 = vst.msk [vmem:[%s3 + $0x1c8] sm:$0xff] %vm167, %v802
  %867 = vst.msk [vmem:[%s3 + $0x1d0] sm:$0xff] %vm167, %v803
  %868 = vst.msk [vmem:[%s3 + $0x1d8] sm:$0xff] %vm167, %v804
  %869 = vst.msk [vmem:[%s3 + $0x1e0] sm:$0xff] %vm167, %v805
  %870 = vst.msk [vmem:[%s3 + $0x1e8] sm:$0xff] %vm167, %v806
  %871 = vst.msk [vmem:[%s3 + $0x1f0] sm:$0xff] %vm167, %v807
  %872 = vst.msk [vmem:[%s3 + $0x1f8] sm:$0xff] %vm167, %v808
  // Predicated region
  $region14: #{_lambda_.16} parent=0 // pred_check
    _
  $region15: #{_lambda_.16} parent=0 // pred_check_branch
    %874 = sbr.rel (0) target = $region17
  $region16: #{_lambda_.16} parent=0 // pred_region
    _
  $region17: #{_lambda_.16} parent=0 // pred_fallthru
    _
  // Predicated region
  $region18: #{_lambda_.16} parent=0 // pred_check
    _
  $region19: #{_lambda_.16} parent=0 // pred_check_branch
    %876 = sbr.rel (0) target = $region21
  $region20: #{_lambda_.16} parent=0 // pred_region
    _
  $region21: #{_lambda_.16} parent=0 // pred_fallthru
    _

// kernel: _lambda_.20
$region0: #{_lambda_.20}
  #allocation0 [shape = 'u32[]', space=smem, size = 0x4, offset = 0x4, fixed_abs, tag = 'smem constant byte address 0x4 - core index']
  #allocation1 [shape = 'u32[144,128]{1,0:T(1,128)}', space=vmem, size = 0x12000, scoped, tag = 'internal scratch']
  %s0 = inlined_call_operand.vmem [shape: f32[512,16], index: 0, kind: input, shape index: {}]
  %s1 = inlined_call_operand.vmem [shape: f32[16,64], index: 1, kind: input, shape index: {}]
  %s2 = inlined_call_operand.vmem [shape: f32[1,64], index: 2, kind: input, shape index: {}]
  %s3 = inlined_call_operand.vmem [shape: f32[512,64], index: 3, kind: input, shape index: {}]
  %s4 = inlined_call_operand.vmem [shape: f32[512,64], index: 4, kind: output, shape index: {}]
  %s5 = sld [smem:[#allocation0]]
  $region26: #{_lambda_.20} parent=0
    _
  %s7 = ssub.s32 1, %s5
  %s8 = scalar_select 0, %s7, %s5
  // Predicated region
  $region2: #{_lambda_.20} parent=0 // pred_check
    _
  $region3: #{_lambda_.20} parent=0 // pred_check_branch
    %10 = sbr.rel (0) target = $region5
  $region4: #{_lambda_.20} parent=0 // pred_region
    _
  $region5: #{_lambda_.20} parent=0 // pred_fallthru
    _
  // Predicated region
  $region6: #{_lambda_.20} parent=0 // pred_check
    _
  $region7: #{_lambda_.20} parent=0 // pred_check_branch
    %12 = sbr.rel (0) target = $region9
  $region8: #{_lambda_.20} parent=0 // pred_region
    _
  $region9: #{_lambda_.20} parent=0 // pred_fallthru
    _
  // Predicated region
  $region10: #{_lambda_.20} parent=0 // pred_check
    _
  $region11: #{_lambda_.20} parent=0 // pred_check_branch
    %14 = sbr.rel (0) target = $region13
  $region12: #{_lambda_.20} parent=0 // pred_region
    _
  $region13: #{_lambda_.20} parent=0 // pred_fallthru
    _
  // Predicated region
  $region14: #{_lambda_.20} parent=0 // pred_check
    _
  $region15: #{_lambda_.20} parent=0 // pred_check_branch
    %16 = sbr.rel (0) target = $region17
  $region16: #{_lambda_.20} parent=0 // pred_region
    _
  $region17: #{_lambda_.20} parent=0 // pred_fallthru
    _
  %v17 = vld [vmem:[%s0] sm:$0xff]
  %v18 = vld [vmem:[%s0 + $0x8] sm:$0xff]
  %v19 = vld [vmem:[%s0 + $0x10] sm:$0xff]
  %v20 = vld [vmem:[%s0 + $0x18] sm:$0xff]
  %v21 = vld [vmem:[%s0 + $0x20] sm:$0xff]
  %v22 = vld [vmem:[%s0 + $0x28] sm:$0xff]
  %v23 = vld [vmem:[%s0 + $0x30] sm:$0xff]
  %v24 = vld [vmem:[%s0 + $0x38] sm:$0xff]
  %v25 = vld [vmem:[%s0 + $0x40] sm:$0xff]
  %v26 = vld [vmem:[%s0 + $0x48] sm:$0xff]
  %v27 = vld [vmem:[%s0 + $0x50] sm:$0xff]
  %v28 = vld [vmem:[%s0 + $0x58] sm:$0xff]
  %v29 = vld [vmem:[%s0 + $0x60] sm:$0xff]
  %v30 = vld [vmem:[%s0 + $0x68] sm:$0xff]
  %v31 = vld [vmem:[%s0 + $0x70] sm:$0xff]
  %v32 = vld [vmem:[%s0 + $0x78] sm:$0xff]
  %v33 = vld [vmem:[%s0 + $0x80] sm:$0xff]
  %v34 = vld [vmem:[%s0 + $0x88] sm:$0xff]
  %v35 = vld [vmem:[%s0 + $0x90] sm:$0xff]
  %v36 = vld [vmem:[%s0 + $0x98] sm:$0xff]
  %v37 = vld [vmem:[%s0 + $0xa0] sm:$0xff]
  %v38 = vld [vmem:[%s0 + $0xa8] sm:$0xff]
  %v39 = vld [vmem:[%s0 + $0xb0] sm:$0xff]
  %v40 = vld [vmem:[%s0 + $0xb8] sm:$0xff]
  %v41 = vld [vmem:[%s0 + $0xc0] sm:$0xff]
  %v42 = vld [vmem:[%s0 + $0xc8] sm:$0xff]
  %v43 = vld [vmem:[%s0 + $0xd0] sm:$0xff]
  %v44 = vld [vmem:[%s0 + $0xd8] sm:$0xff]
  %v45 = vld [vmem:[%s0 + $0xe0] sm:$0xff]
  %v46 = vld [vmem:[%s0 + $0xe8] sm:$0xff]
  %v47 = vld [vmem:[%s0 + $0xf0] sm:$0xff]
  %v48 = vld [vmem:[%s0 + $0xf8] sm:$0xff]
  %v49 = vld [vmem:[%s0 + $0x100] sm:$0xff]
  %v50 = vld [vmem:[%s0 + $0x108] sm:$0xff]
  %v51 = vld [vmem:[%s0 + $0x110] sm:$0xff]
  %v52 = vld [vmem:[%s0 + $0x118] sm:$0xff]
  %v53 = vld [vmem:[%s0 + $0x120] sm:$0xff]
  %v54 = vld [vmem:[%s0 + $0x128] sm:$0xff]
  %v55 = vld [vmem:[%s0 + $0x130] sm:$0xff]
  %v56 = vld [vmem:[%s0 + $0x138] sm:$0xff]
  %v57 = vld [vmem:[%s0 + $0x140] sm:$0xff]
  %v58 = vld [vmem:[%s0 + $0x148] sm:$0xff]
  %v59 = vld [vmem:[%s0 + $0x150] sm:$0xff]
  %v60 = vld [vmem:[%s0 + $0x158] sm:$0xff]
  %v61 = vld [vmem:[%s0 + $0x160] sm:$0xff]
  %v62 = vld [vmem:[%s0 + $0x168] sm:$0xff]
  %v63 = vld [vmem:[%s0 + $0x170] sm:$0xff]
  %v64 = vld [vmem:[%s0 + $0x178] sm:$0xff]
  %v65 = vld [vmem:[%s0 + $0x180] sm:$0xff]
  %v66 = vld [vmem:[%s0 + $0x188] sm:$0xff]
  %v67 = vld [vmem:[%s0 + $0x190] sm:$0xff]
  %v68 = vld [vmem:[%s0 + $0x198] sm:$0xff]
  %v69 = vld [vmem:[%s0 + $0x1a0] sm:$0xff]
  %v70 = vld [vmem:[%s0 + $0x1a8] sm:$0xff]
  %v71 = vld [vmem:[%s0 + $0x1b0] sm:$0xff]
  %v72 = vld [vmem:[%s0 + $0x1b8] sm:$0xff]
  %v73 = vld [vmem:[%s0 + $0x1c0] sm:$0xff]
  %v74 = vld [vmem:[%s0 + $0x1c8] sm:$0xff]
  %v75 = vld [vmem:[%s0 + $0x1d0] sm:$0xff]
  %v76 = vld [vmem:[%s0 + $0x1d8] sm:$0xff]
  %v77 = vld [vmem:[%s0 + $0x1e0] sm:$0xff]
  %v78 = vld [vmem:[%s0 + $0x1e8] sm:$0xff]
  %v79 = vld [vmem:[%s0 + $0x1f0] sm:$0xff]
  %v80 = vld [vmem:[%s0 + $0x1f8] sm:$0xff]
  %v81 = vld [vmem:[%s1] sm:$0xff]
  %v82 = vld [vmem:[%s1 + $0x8] sm:$0xff]
  %v83 = vld [vmem:[%s2] sm:$0x1]
  %v85 = vlaneseq
  %v86 = vshrl.u32 %v85, 7
  %v87 = vsub.s32 0, %v86
  %v88 = vrot.slane %v83, %v87
  %vm90 = vcmask 130048
  %v92 = vsel %vm90, %v17, 0
  %v95 = vsel %vm90, %v18, 0
  %v98 = vsel %vm90, %v19, 0
  %v101 = vsel %vm90, %v20, 0
  %v104 = vsel %vm90, %v21, 0
  %v107 = vsel %vm90, %v22, 0
  %v110 = vsel %vm90, %v23, 0
  %v113 = vsel %vm90, %v24, 0
  %v116 = vsel %vm90, %v25, 0
  %v119 = vsel %vm90, %v26, 0
  %v122 = vsel %vm90, %v27, 0
  %v125 = vsel %vm90, %v28, 0
  %v128 = vsel %vm90, %v29, 0
  %v131 = vsel %vm90, %v30, 0
  %v134 = vsel %vm90, %v31, 0
  %v137 = vsel %vm90, %v32, 0
  %v140 = vsel %vm90, %v33, 0
  %v143 = vsel %vm90, %v34, 0
  %v146 = vsel %vm90, %v35, 0
  %v149 = vsel %vm90, %v36, 0
  %v152 = vsel %vm90, %v37, 0
  %v155 = vsel %vm90, %v38, 0
  %v158 = vsel %vm90, %v39, 0
  %v161 = vsel %vm90, %v40, 0
  %v164 = vsel %vm90, %v41, 0
  %v167 = vsel %vm90, %v42, 0
  %v170 = vsel %vm90, %v43, 0
  %v173 = vsel %vm90, %v44, 0
  %v176 = vsel %vm90, %v45, 0
  %v179 = vsel %vm90, %v46, 0
  %v182 = vsel %vm90, %v47, 0
  %v185 = vsel %vm90, %v48, 0
  %v188 = vsel %vm90, %v49, 0
  %v191 = vsel %vm90, %v50, 0
  %v194 = vsel %vm90, %v51, 0
  %v197 = vsel %vm90, %v52, 0
  %v200 = vsel %vm90, %v53, 0
  %v203 = vsel %vm90, %v54, 0
  %v206 = vsel %vm90, %v55, 0
  %v209 = vsel %vm90, %v56, 0
  %v212 = vsel %vm90, %v57, 0
  %v215 = vsel %vm90, %v58, 0
  %v218 = vsel %vm90, %v59, 0
  %v221 = vsel %vm90, %v60, 0
  %v224 = vsel %vm90, %v61, 0
  %v227 = vsel %vm90, %v62, 0
  %v230 = vsel %vm90, %v63, 0
  %v233 = vsel %vm90, %v64, 0
  %v236 = vsel %vm90, %v65, 0
  %v239 = vsel %vm90, %v66, 0
  %v242 = vsel %vm90, %v67, 0
  %v245 = vsel %vm90, %v68, 0
  %v248 = vsel %vm90, %v69, 0
  %v251 = vsel %vm90, %v70, 0
  %v254 = vsel %vm90, %v71, 0
  %v257 = vsel %vm90, %v72, 0
  %v260 = vsel %vm90, %v73, 0
  %v263 = vsel %vm90, %v74, 0
  %v266 = vsel %vm90, %v75, 0
  %v269 = vsel %vm90, %v76, 0
  %v272 = vsel %vm90, %v77, 0
  %v275 = vsel %vm90, %v78, 0
  %v278 = vsel %vm90, %v79, 0
  %v281 = vsel %vm90, %v80, 0
  %283 = vmatprep.subr.mxu0 0.0
  %284 = vmatpush1.msra.mxu0 %v81
  %285 = vmatprep.subr.mxu0 0.0
  %286 = vmatpush1.msra.mxu0 %v82
  %287 = vmatprep.subr.mxu0 0.0
  %288 = vmatpush1.msra.mxu0 0.0
  %289 = vmatprep.subr.mxu0 0.0
  %290 = vmatpush1.msra.mxu0 0.0
  %291 = vmatprep.subr.mxu0 0.0
  %292 = vmatpush1.msra.mxu0 0.0
  %293 = vmatprep.subr.mxu0 0.0
  %294 = vmatpush1.msra.mxu0 0.0
  %295 = vmatprep.subr.mxu0 0.0
  %296 = vmatpush1.msra.mxu0 0.0
  %297 = vmatprep.subr.mxu0 0.0
  %298 = vmatpush1.msra.mxu0 0.0
  %299 = vmatprep.subr.mxu0 0.0
  %300 = vmatpush1.msra.mxu0 0.0
  %301 = vmatprep.subr.mxu0 0.0
  %302 = vmatpush1.msra.mxu0 0.0
  %303 = vmatprep.subr.mxu0 0.0
  %304 = vmatpush1.msra.mxu0 0.0
  %305 = vmatprep.subr.mxu0 0.0
  %306 = vmatpush1.msra.mxu0 0.0
  %307 = vmatprep.subr.mxu0 0.0
  %308 = vmatpush1.msra.mxu0 0.0
  %309 = vmatprep.subr.mxu0 0.0
  %310 = vmatpush1.msra.mxu0 0.0
  %311 = vmatprep.subr.mxu0 0.0
  %312 = vmatpush1.msra.mxu0 0.0
  %313 = vmatprep.subr.mxu0 0.0
  %314 = vmatpush1.msra.mxu0 0.0
  %315 = vmatprep.subr.mxu0 0.0
  %316 = vmatpush1.msra.mxu0 0.0
  %317 = vmatprep.subr.mxu0 0.0
  %318 = vmatpush1.msra.mxu0 0.0
  %319 = vmatprep.subr.mxu0 0.0
  %320 = vmatpush1.msra.mxu0 0.0
  %321 = vmatprep.subr.mxu0 0.0
  %322 = vmatpush1.msra.mxu0 0.0
  %323 = vmatprep.subr.mxu0 0.0
  %324 = vmatpush1.msra.mxu0 0.0
  %325 = vmatprep.subr.mxu0 0.0
  %326 = vmatpush1.msra.mxu0 0.0
  %327 = vmatprep.subr.mxu0 0.0
  %328 = vmatpush1.msra.mxu0 0.0
  %329 = vmatprep.subr.mxu0 0.0
  %330 = vmatpush1.msra.mxu0 0.0
  %331 = vmatprep.subr.mxu0 0.0
  %332 = vmatpush1.msra.mxu0 0.0
  %333 = vmatprep.subr.mxu0 0.0
  %334 = vmatpush1.msra.mxu0 0.0
  %335 = vmatprep.subr.mxu0 0.0
  %336 = vmatpush1.msra.mxu0 0.0
  %337 = vmatprep.subr.mxu0 0.0
  %338 = vmatpush1.msra.mxu0 0.0
  %339 = vmatprep.subr.mxu0 0.0
  %340 = vmatpush1.msra.mxu0 0.0
  %341 = vmatprep.subr.mxu0 0.0
  %342 = vmatpush1.msra.mxu0 0.0
  %343 = vmatprep.subr.mxu0 0.0
  %344 = vmatpush1.msra.mxu0 0.0
  %345 = vmatprep.subr.mxu0 0.0
  %346 = vmatpush1.msra.mxu0 0.0
  %347 = vmatprep.mubr.f32.mxu0 0.0
  %348 = vmatmul.mubr.f32.gmra.mrb[0].mxu0 %v92
  %v349 = vpop.f32.mrb[0].mxu0
  %v350 = vadd.f32 %v88, %v349
  %v351 = vpop.f32.mrb[0].mxu0
  %352 = vmatprep.mubr.f32.mxu0 0.0
  %353 = vmatmul.mubr.f32.gmra.mrb[0].mxu0 %v95
  %v354 = vpop.f32.mrb[0].mxu0
  %v355 = vadd.f32 %v88, %v354
  %v356 = vpop.f32.mrb[0].mxu0
  %357 = vmatprep.mubr.f32.mxu0 0.0
  %358 = vmatmul.mubr.f32.gmra.mrb[0].mxu0 %v98
  %v359 = vpop.f32.mrb[0].mxu0
  %v360 = vadd.f32 %v88, %v359
  %v361 = vpop.f32.mrb[0].mxu0
  %362 = vmatprep.mubr.f32.mxu0 0.0
  %363 = vmatmul.mubr.f32.gmra.mrb[0].mxu0 %v101
  %v364 = vpop.f32.mrb[0].mxu0
  %v365 = vadd.f32 %v88, %v364
  %v366 = vpop.f32.mrb[0].mxu0
  %367 = vmatprep.mubr.f32.mxu0 0.0
  %368 = vmatmul.mubr.f32.gmra.mrb[0].mxu0 %v104
  %v369 = vpop.f32.mrb[0].mxu0
  %v370 = vadd.f32 %v88, %v369
  %v371 = vpop.f32.mrb[0].mxu0
  %372 = vmatprep.mubr.f32.mxu0 0.0
  %373 = vmatmul.mubr.f32.gmra.mrb[0].mxu0 %v107
  %v374 = vpop.f32.mrb[0].mxu0
  %v375 = vadd.f32 %v88, %v374
  %v376 = vpop.f32.mrb[0].mxu0
  %377 = vmatprep.mubr.f32.mxu0 0.0
  %378 = vmatmul.mubr.f32.gmra.mrb[0].mxu0 %v110
  %v379 = vpop.f32.mrb[0].mxu0
  %v380 = vadd.f32 %v88, %v379
  %v381 = vpop.f32.mrb[0].mxu0
  %382 = vmatprep.mubr.f32.mxu0 0.0
  %383 = vmatmul.mubr.f32.gmra.mrb[0].mxu0 %v113
  %v384 = vpop.f32.mrb[0].mxu0
  %v385 = vadd.f32 %v88, %v384
  %v386 = vpop.f32.mrb[0].mxu0
  %387 = vmatprep.mubr.f32.mxu0 0.0
  %388 = vmatmul.mubr.f32.gmra.mrb[0].mxu0 %v116
  %v389 = vpop.f32.mrb[0].mxu0
  %v390 = vadd.f32 %v88, %v389
  %v391 = vpop.f32.mrb[0].mxu0
  %392 = vmatprep.mubr.f32.mxu0 0.0
  %393 = vmatmul.mubr.f32.gmra.mrb[0].mxu0 %v119
  %v394 = vpop.f32.mrb[0].mxu0
  %v395 = vadd.f32 %v88, %v394
  %v396 = vpop.f32.mrb[0].mxu0
  %397 = vmatprep.mubr.f32.mxu0 0.0
  %398 = vmatmul.mubr.f32.gmra.mrb[0].mxu0 %v122
  %v399 = vpop.f32.mrb[0].mxu0
  %v400 = vadd.f32 %v88, %v399
  %v401 = vpop.f32.mrb[0].mxu0
  %402 = vmatprep.mubr.f32.mxu0 0.0
  %403 = vmatmul.mubr.f32.gmra.mrb[0].mxu0 %v125
  %v404 = vpop.f32.mrb[0].mxu0
  %v405 = vadd.f32 %v88, %v404
  %v406 = vpop.f32.mrb[0].mxu0
  %407 = vmatprep.mubr.f32.mxu0 0.0
  %408 = vmatmul.mubr.f32.gmra.mrb[0].mxu0 %v128
  %v409 = vpop.f32.mrb[0].mxu0
  %v410 = vadd.f32 %v88, %v409
  %v411 = vpop.f32.mrb[0].mxu0
  %412 = vmatprep.mubr.f32.mxu0 0.0
  %413 = vmatmul.mubr.f32.gmra.mrb[0].mxu0 %v131
  %v414 = vpop.f32.mrb[0].mxu0
  %v415 = vadd.f32 %v88, %v414
  %v416 = vpop.f32.mrb[0].mxu0
  %417 = vmatprep.mubr.f32.mxu0 0.0
  %418 = vmatmul.mubr.f32.gmra.mrb[0].mxu0 %v134
  %v419 = vpop.f32.mrb[0].mxu0
  %v420 = vadd.f32 %v88, %v419
  %v421 = vpop.f32.mrb[0].mxu0
  %422 = vmatprep.mubr.f32.mxu0 0.0
  %423 = vmatmul.mubr.f32.gmra.mrb[0].mxu0 %v137
  %v424 = vpop.f32.mrb[0].mxu0
  %v425 = vadd.f32 %v88, %v424
  %v426 = vpop.f32.mrb[0].mxu0
  %427 = vmatprep.mubr.f32.mxu0 0.0
  %428 = vmatmul.mubr.f32.gmra.mrb[0].mxu0 %v140
  %v429 = vpop.f32.mrb[0].mxu0
  %v430 = vadd.f32 %v88, %v429
  %v431 = vpop.f32.mrb[0].mxu0
  %432 = vmatprep.mubr.f32.mxu0 0.0
  %433 = vmatmul.mubr.f32.gmra.mrb[0].mxu0 %v143
  %v434 = vpop.f32.mrb[0].mxu0
  %v435 = vadd.f32 %v88, %v434
  %v436 = vpop.f32.mrb[0].mxu0
  %437 = vmatprep.mubr.f32.mxu0 0.0
  %438 = vmatmul.mubr.f32.gmra.mrb[0].mxu0 %v146
  %v439 = vpop.f32.mrb[0].mxu0
  %v440 = vadd.f32 %v88, %v439
  %v441 = vpop.f32.mrb[0].mxu0
  %442 = vmatprep.mubr.f32.mxu0 0.0
  %443 = vmatmul.mubr.f32.gmra.mrb[0].mxu0 %v149
  %v444 = vpop.f32.mrb[0].mxu0
  %v445 = vadd.f32 %v88, %v444
  %v446 = vpop.f32.mrb[0].mxu0
  %447 = vmatprep.mubr.f32.mxu0 0.0
  %448 = vmatmul.mubr.f32.gmra.mrb[0].mxu0 %v152
  %v449 = vpop.f32.mrb[0].mxu0
  %v450 = vadd.f32 %v88, %v449
  %v451 = vpop.f32.mrb[0].mxu0
  %452 = vmatprep.mubr.f32.mxu0 0.0
  %453 = vmatmul.mubr.f32.gmra.mrb[0].mxu0 %v155
  %v454 = vpop.f32.mrb[0].mxu0
  %v455 = vadd.f32 %v88, %v454
  %v456 = vpop.f32.mrb[0].mxu0
  %457 = vmatprep.mubr.f32.mxu0 0.0
  %458 = vmatmul.mubr.f32.gmra.mrb[0].mxu0 %v158
  %v459 = vpop.f32.mrb[0].mxu0
  %v460 = vadd.f32 %v88, %v459
  %v461 = vpop.f32.mrb[0].mxu0
  %462 = vmatprep.mubr.f32.mxu0 0.0
  %463 = vmatmul.mubr.f32.gmra.mrb[0].mxu0 %v161
  %v464 = vpop.f32.mrb[0].mxu0
  %v465 = vadd.f32 %v88, %v464
  %v466 = vpop.f32.mrb[0].mxu0
  %467 = vmatprep.mubr.f32.mxu0 0.0
  %468 = vmatmul.mubr.f32.gmra.mrb[0].mxu0 %v164
  %v469 = vpop.f32.mrb[0].mxu0
  %v470 = vadd.f32 %v88, %v469
  %v471 = vpop.f32.mrb[0].mxu0
  %472 = vmatprep.mubr.f32.mxu0 0.0
  %473 = vmatmul.mubr.f32.gmra.mrb[0].mxu0 %v167
  %v474 = vpop.f32.mrb[0].mxu0
  %v475 = vadd.f32 %v88, %v474
  %v476 = vpop.f32.mrb[0].mxu0
  %477 = vmatprep.mubr.f32.mxu0 0.0
  %478 = vmatmul.mubr.f32.gmra.mrb[0].mxu0 %v170
  %v479 = vpop.f32.mrb[0].mxu0
  %v480 = vadd.f32 %v88, %v479
  %v481 = vpop.f32.mrb[0].mxu0
  %482 = vmatprep.mubr.f32.mxu0 0.0
  %483 = vmatmul.mubr.f32.gmra.mrb[0].mxu0 %v173
  %v484 = vpop.f32.mrb[0].mxu0
  %v485 = vadd.f32 %v88, %v484
  %v486 = vpop.f32.mrb[0].mxu0
  %487 = vmatprep.mubr.f32.mxu0 0.0
  %488 = vmatmul.mubr.f32.gmra.mrb[0].mxu0 %v176
  %v489 = vpop.f32.mrb[0].mxu0
  %v490 = vadd.f32 %v88, %v489
  %v491 = vpop.f32.mrb[0].mxu0
  %492 = vmatprep.mubr.f32.mxu0 0.0
  %493 = vmatmul.mubr.f32.gmra.mrb[0].mxu0 %v179
  %v494 = vpop.f32.mrb[0].mxu0
  %v495 = vadd.f32 %v88, %v494
  %v496 = vpop.f32.mrb[0].mxu0
  %497 = vmatprep.mubr.f32.mxu0 0.0
  %498 = vmatmul.mubr.f32.gmra.mrb[0].mxu0 %v182
  %v499 = vpop.f32.mrb[0].mxu0
  %v500 = vadd.f32 %v88, %v499
  %v501 = vpop.f32.mrb[0].mxu0
  %502 = vmatprep.mubr.f32.mxu0 0.0
  %503 = vmatmul.mubr.f32.gmra.mrb[0].mxu0 %v185
  %v504 = vpop.f32.mrb[0].mxu0
  %v505 = vadd.f32 %v88, %v504
  %v506 = vpop.f32.mrb[0].mxu0
  %507 = vmatprep.mubr.f32.mxu0 0.0
  %508 = vmatmul.mubr.f32.gmra.mrb[0].mxu0 %v188
  %v509 = vpop.f32.mrb[0].mxu0
  %v510 = vadd.f32 %v88, %v509
  %v511 = vpop.f32.mrb[0].mxu0
  %512 = vmatprep.mubr.f32.mxu0 0.0
  %513 = vmatmul.mubr.f32.gmra.mrb[0].mxu0 %v191
  %v514 = vpop.f32.mrb[0].mxu0
  %v515 = vadd.f32 %v88, %v514
  %v516 = vpop.f32.mrb[0].mxu0
  %517 = vmatprep.mubr.f32.mxu0 0.0
  %518 = vmatmul.mubr.f32.gmra.mrb[0].mxu0 %v194
  %v519 = vpop.f32.mrb[0].mxu0
  %v520 = vadd.f32 %v88, %v519
  %v521 = vpop.f32.mrb[0].mxu0
  %522 = vmatprep.mubr.f32.mxu0 0.0
  %523 = vmatmul.mubr.f32.gmra.mrb[0].mxu0 %v197
  %v524 = vpop.f32.mrb[0].mxu0
  %v525 = vadd.f32 %v88, %v524
  %v526 = vpop.f32.mrb[0].mxu0
  %527 = vmatprep.mubr.f32.mxu0 0.0
  %528 = vmatmul.mubr.f32.gmra.mrb[0].mxu0 %v200
  %v529 = vpop.f32.mrb[0].mxu0
  %v530 = vadd.f32 %v88, %v529
  %v531 = vpop.f32.mrb[0].mxu0
  %532 = vmatprep.mubr.f32.mxu0 0.0
  %533 = vmatmul.mubr.f32.gmra.mrb[0].mxu0 %v203
  %v534 = vpop.f32.mrb[0].mxu0
  %v535 = vadd.f32 %v88, %v534
  %v536 = vpop.f32.mrb[0].mxu0
  %537 = vmatprep.mubr.f32.mxu0 0.0
  %538 = vmatmul.mubr.f32.gmra.mrb[0].mxu0 %v206
  %v539 = vpop.f32.mrb[0].mxu0
  %v540 = vadd.f32 %v88, %v539
  %v541 = vpop.f32.mrb[0].mxu0
  %542 = vmatprep.mubr.f32.mxu0 0.0
  %543 = vmatmul.mubr.f32.gmra.mrb[0].mxu0 %v209
  %v544 = vpop.f32.mrb[0].mxu0
  %v545 = vadd.f32 %v88, %v544
  %v546 = vpop.f32.mrb[0].mxu0
  %547 = vmatprep.mubr.f32.mxu0 0.0
  %548 = vmatmul.mubr.f32.gmra.mrb[0].mxu0 %v212
  %v549 = vpop.f32.mrb[0].mxu0
  %v550 = vadd.f32 %v88, %v549
  %v551 = vpop.f32.mrb[0].mxu0
  %552 = vmatprep.mubr.f32.mxu0 0.0
  %553 = vmatmul.mubr.f32.gmra.mrb[0].mxu0 %v215
  %v554 = vpop.f32.mrb[0].mxu0
  %v555 = vadd.f32 %v88, %v554
  %v556 = vpop.f32.mrb[0].mxu0
  %557 = vmatprep.mubr.f32.mxu0 0.0
  %558 = vmatmul.mubr.f32.gmra.mrb[0].mxu0 %v218
  %v559 = vpop.f32.mrb[0].mxu0
  %v560 = vadd.f32 %v88, %v559
  %v561 = vpop.f32.mrb[0].mxu0
  %562 = vmatprep.mubr.f32.mxu0 0.0
  %563 = vmatmul.mubr.f32.gmra.mrb[0].mxu0 %v221
  %v564 = vpop.f32.mrb[0].mxu0
  %v565 = vadd.f32 %v88, %v564
  %v566 = vpop.f32.mrb[0].mxu0
  %567 = vmatprep.mubr.f32.mxu0 0.0
  %568 = vmatmul.mubr.f32.gmra.mrb[0].mxu0 %v224
  %v569 = vpop.f32.mrb[0].mxu0
  %v570 = vadd.f32 %v88, %v569
  %v571 = vpop.f32.mrb[0].mxu0
  %572 = vmatprep.mubr.f32.mxu0 0.0
  %573 = vmatmul.mubr.f32.gmra.mrb[0].mxu0 %v227
  %v574 = vpop.f32.mrb[0].mxu0
  %v575 = vadd.f32 %v88, %v574
  %v576 = vpop.f32.mrb[0].mxu0
  %577 = vmatprep.mubr.f32.mxu0 0.0
  %578 = vmatmul.mubr.f32.gmra.mrb[0].mxu0 %v230
  %v579 = vpop.f32.mrb[0].mxu0
  %v580 = vadd.f32 %v88, %v579
  %v581 = vpop.f32.mrb[0].mxu0
  %582 = vmatprep.mubr.f32.mxu0 0.0
  %583 = vmatmul.mubr.f32.gmra.mrb[0].mxu0 %v233
  %v584 = vpop.f32.mrb[0].mxu0
  %v585 = vadd.f32 %v88, %v584
  %v586 = vpop.f32.mrb[0].mxu0
  %587 = vmatprep.mubr.f32.mxu0 0.0
  %588 = vmatmul.mubr.f32.gmra.mrb[0].mxu0 %v236
  %v589 = vpop.f32.mrb[0].mxu0
  %v590 = vadd.f32 %v88, %v589
  %v591 = vpop.f32.mrb[0].mxu0
  %592 = vmatprep.mubr.f32.mxu0 0.0
  %593 = vmatmul.mubr.f32.gmra.mrb[0].mxu0 %v239
  %v594 = vpop.f32.mrb[0].mxu0
  %v595 = vadd.f32 %v88, %v594
  %v596 = vpop.f32.mrb[0].mxu0
  %597 = vmatprep.mubr.f32.mxu0 0.0
  %598 = vmatmul.mubr.f32.gmra.mrb[0].mxu0 %v242
  %v599 = vpop.f32.mrb[0].mxu0
  %v600 = vadd.f32 %v88, %v599
  %v601 = vpop.f32.mrb[0].mxu0
  %602 = vmatprep.mubr.f32.mxu0 0.0
  %603 = vmatmul.mubr.f32.gmra.mrb[0].mxu0 %v245
  %v604 = vpop.f32.mrb[0].mxu0
  %v605 = vadd.f32 %v88, %v604
  %v606 = vpop.f32.mrb[0].mxu0
  %607 = vmatprep.mubr.f32.mxu0 0.0
  %608 = vmatmul.mubr.f32.gmra.mrb[0].mxu0 %v248
  %v609 = vpop.f32.mrb[0].mxu0
  %v610 = vadd.f32 %v88, %v609
  %v611 = vpop.f32.mrb[0].mxu0
  %612 = vmatprep.mubr.f32.mxu0 0.0
  %613 = vmatmul.mubr.f32.gmra.mrb[0].mxu0 %v251
  %v614 = vpop.f32.mrb[0].mxu0
  %v615 = vadd.f32 %v88, %v614
  %v616 = vpop.f32.mrb[0].mxu0
  %617 = vmatprep.mubr.f32.mxu0 0.0
  %618 = vmatmul.mubr.f32.gmra.mrb[0].mxu0 %v254
  %v619 = vpop.f32.mrb[0].mxu0
  %v620 = vadd.f32 %v88, %v619
  %v621 = vpop.f32.mrb[0].mxu0
  %622 = vmatprep.mubr.f32.mxu0 0.0
  %623 = vmatmul.mubr.f32.gmra.mrb[0].mxu0 %v257
  %v624 = vpop.f32.mrb[0].mxu0
  %v625 = vadd.f32 %v88, %v624
  %v626 = vpop.f32.mrb[0].mxu0
  %627 = vmatprep.mubr.f32.mxu0 0.0
  %628 = vmatmul.mubr.f32.gmra.mrb[0].mxu0 %v260
  %v629 = vpop.f32.mrb[0].mxu0
  %v630 = vadd.f32 %v88, %v629
  %v631 = vpop.f32.mrb[0].mxu0
  %632 = vmatprep.mubr.f32.mxu0 0.0
  %633 = vmatmul.mubr.f32.gmra.mrb[0].mxu0 %v263
  %v634 = vpop.f32.mrb[0].mxu0
  %v635 = vadd.f32 %v88, %v634
  %v636 = vpop.f32.mrb[0].mxu0
  %637 = vmatprep.mubr.f32.mxu0 0.0
  %638 = vmatmul.mubr.f32.gmra.mrb[0].mxu0 %v266
  %v639 = vpop.f32.mrb[0].mxu0
  %v640 = vadd.f32 %v88, %v639
  %v641 = vpop.f32.mrb[0].mxu0
  %642 = vmatprep.mubr.f32.mxu0 0.0
  %643 = vmatmul.mubr.f32.gmra.mrb[0].mxu0 %v269
  %v644 = vpop.f32.mrb[0].mxu0
  %v645 = vadd.f32 %v88, %v644
  %v646 = vpop.f32.mrb[0].mxu0
  %647 = vmatprep.mubr.f32.mxu0 0.0
  %648 = vmatmul.mubr.f32.gmra.mrb[0].mxu0 %v272
  %v649 = vpop.f32.mrb[0].mxu0
  %v650 = vadd.f32 %v88, %v649
  %v651 = vpop.f32.mrb[0].mxu0
  %652 = vmatprep.mubr.f32.mxu0 0.0
  %653 = vmatmul.mubr.f32.gmra.mrb[0].mxu0 %v275
  %v654 = vpop.f32.mrb[0].mxu0
  %v655 = vadd.f32 %v88, %v654
  %v656 = vpop.f32.mrb[0].mxu0
  %657 = vmatprep.mubr.f32.mxu0 0.0
  %658 = vmatmul.mubr.f32.gmra.mrb[0].mxu0 %v278
  %v659 = vpop.f32.mrb[0].mxu0
  %v660 = vadd.f32 %v88, %v659
  %v661 = vpop.f32.mrb[0].mxu0
  %662 = vmatprep.mubr.f32.mxu0 0.0
  %663 = vmatmul.mubr.f32.gmra.mrb[0].mxu0 %v281
  %v664 = vpop.f32.mrb[0].mxu0
  %v665 = vadd.f32 %v88, %v664
  %v666 = vpop.f32.mrb[0].mxu0
  %667 = vdwg.mxu0
  %v668 = vld [vmem:[%s3] sm:$0xff]
  %v669 = vld [vmem:[%s3 + $0x8] sm:$0xff]
  %v670 = vld [vmem:[%s3 + $0x10] sm:$0xff]
  %v671 = vld [vmem:[%s3 + $0x18] sm:$0xff]
  %v672 = vld [vmem:[%s3 + $0x20] sm:$0xff]
  %v673 = vld [vmem:[%s3 + $0x28] sm:$0xff]
  %v674 = vld [vmem:[%s3 + $0x30] sm:$0xff]
  %v675 = vld [vmem:[%s3 + $0x38] sm:$0xff]
  %v676 = vld [vmem:[%s3 + $0x40] sm:$0xff]
  %v677 = vld [vmem:[%s3 + $0x48] sm:$0xff]
  %v678 = vld [vmem:[%s3 + $0x50] sm:$0xff]
  %v679 = vld [vmem:[%s3 + $0x58] sm:$0xff]
  %v680 = vld [vmem:[%s3 + $0x60] sm:$0xff]
  %v681 = vld [vmem:[%s3 + $0x68] sm:$0xff]
  %v682 = vld [vmem:[%s3 + $0x70] sm:$0xff]
  %v683 = vld [vmem:[%s3 + $0x78] sm:$0xff]
  %v684 = vld [vmem:[%s3 + $0x80] sm:$0xff]
  %v685 = vld [vmem:[%s3 + $0x88] sm:$0xff]
  %v686 = vld [vmem:[%s3 + $0x90] sm:$0xff]
  %v687 = vld [vmem:[%s3 + $0x98] sm:$0xff]
  %v688 = vld [vmem:[%s3 + $0xa0] sm:$0xff]
  %v689 = vld [vmem:[%s3 + $0xa8] sm:$0xff]
  %v690 = vld [vmem:[%s3 + $0xb0] sm:$0xff]
  %v691 = vld [vmem:[%s3 + $0xb8] sm:$0xff]
  %v692 = vld [vmem:[%s3 + $0xc0] sm:$0xff]
  %v693 = vld [vmem:[%s3 + $0xc8] sm:$0xff]
  %v694 = vld [vmem:[%s3 + $0xd0] sm:$0xff]
  %v695 = vld [vmem:[%s3 + $0xd8] sm:$0xff]
  %v696 = vld [vmem:[%s3 + $0xe0] sm:$0xff]
  %v697 = vld [vmem:[%s3 + $0xe8] sm:$0xff]
  %v698 = vld [vmem:[%s3 + $0xf0] sm:$0xff]
  %v699 = vld [vmem:[%s3 + $0xf8] sm:$0xff]
  %v700 = vld [vmem:[%s3 + $0x100] sm:$0xff]
  %v701 = vld [vmem:[%s3 + $0x108] sm:$0xff]
  %v702 = vld [vmem:[%s3 + $0x110] sm:$0xff]
  %v703 = vld [vmem:[%s3 + $0x118] sm:$0xff]
  %v704 = vld [vmem:[%s3 + $0x120] sm:$0xff]
  %v705 = vld [vmem:[%s3 + $0x128] sm:$0xff]
  %v706 = vld [vmem:[%s3 + $0x130] sm:$0xff]
  %v707 = vld [vmem:[%s3 + $0x138] sm:$0xff]
  %v708 = vld [vmem:[%s3 + $0x140] sm:$0xff]
  %v709 = vld [vmem:[%s3 + $0x148] sm:$0xff]
  %v710 = vld [vmem:[%s3 + $0x150] sm:$0xff]
  %v711 = vld [vmem:[%s3 + $0x158] sm:$0xff]
  %v712 = vld [vmem:[%s3 + $0x160] sm:$0xff]
  %v713 = vld [vmem:[%s3 + $0x168] sm:$0xff]
  %v714 = vld [vmem:[%s3 + $0x170] sm:$0xff]
  %v715 = vld [vmem:[%s3 + $0x178] sm:$0xff]
  %v716 = vld [vmem:[%s3 + $0x180] sm:$0xff]
  %v717 = vld [vmem:[%s3 + $0x188] sm:$0xff]
  %v718 = vld [vmem:[%s3 + $0x190] sm:$0xff]
  %v719 = vld [vmem:[%s3 + $0x198] sm:$0xff]
  %v720 = vld [vmem:[%s3 + $0x1a0] sm:$0xff]
  %v721 = vld [vmem:[%s3 + $0x1a8] sm:$0xff]
  %v722 = vld [vmem:[%s3 + $0x1b0] sm:$0xff]
  %v723 = vld [vmem:[%s3 + $0x1b8] sm:$0xff]
  %v724 = vld [vmem:[%s3 + $0x1c0] sm:$0xff]
  %v725 = vld [vmem:[%s3 + $0x1c8] sm:$0xff]
  %v726 = vld [vmem:[%s3 + $0x1d0] sm:$0xff]
  %v727 = vld [vmem:[%s3 + $0x1d8] sm:$0xff]
  %v728 = vld [vmem:[%s3 + $0x1e0] sm:$0xff]
  %v729 = vld [vmem:[%s3 + $0x1e8] sm:$0xff]
  %v730 = vld [vmem:[%s3 + $0x1f0] sm:$0xff]
  %v731 = vld [vmem:[%s3 + $0x1f8] sm:$0xff]
  %v732 = vadd.f32 %v350, %v668
  %v733 = vadd.f32 %v355, %v669
  %v734 = vadd.f32 %v360, %v670
  %v735 = vadd.f32 %v365, %v671
  %v736 = vadd.f32 %v370, %v672
  %v737 = vadd.f32 %v375, %v673
  %v738 = vadd.f32 %v380, %v674
  %v739 = vadd.f32 %v385, %v675
  %v740 = vadd.f32 %v390, %v676
  %v741 = vadd.f32 %v395, %v677
  %v742 = vadd.f32 %v400, %v678
  %v743 = vadd.f32 %v405, %v679
  %v744 = vadd.f32 %v410, %v680
  %v745 = vadd.f32 %v415, %v681
  %v746 = vadd.f32 %v420, %v682
  %v747 = vadd.f32 %v425, %v683
  %v748 = vadd.f32 %v430, %v684
  %v749 = vadd.f32 %v435, %v685
  %v750 = vadd.f32 %v440, %v686
  %v751 = vadd.f32 %v445, %v687
  %v752 = vadd.f32 %v450, %v688
  %v753 = vadd.f32 %v455, %v689
  %v754 = vadd.f32 %v460, %v690
  %v755 = vadd.f32 %v465, %v691
  %v756 = vadd.f32 %v470, %v692
  %v757 = vadd.f32 %v475, %v693
  %v758 = vadd.f32 %v480, %v694
  %v759 = vadd.f32 %v485, %v695
  %v760 = vadd.f32 %v490, %v696
  %v761 = vadd.f32 %v495, %v697
  %v762 = vadd.f32 %v500, %v698
  %v763 = vadd.f32 %v505, %v699
  %v764 = vadd.f32 %v510, %v700
  %v765 = vadd.f32 %v515, %v701
  %v766 = vadd.f32 %v520, %v702
  %v767 = vadd.f32 %v525, %v703
  %v768 = vadd.f32 %v530, %v704
  %v769 = vadd.f32 %v535, %v705
  %v770 = vadd.f32 %v540, %v706
  %v771 = vadd.f32 %v545, %v707
  %v772 = vadd.f32 %v550, %v708
  %v773 = vadd.f32 %v555, %v709
  %v774 = vadd.f32 %v560, %v710
  %v775 = vadd.f32 %v565, %v711
  %v776 = vadd.f32 %v570, %v712
  %v777 = vadd.f32 %v575, %v713
  %v778 = vadd.f32 %v580, %v714
  %v779 = vadd.f32 %v585, %v715
  %v780 = vadd.f32 %v590, %v716
  %v781 = vadd.f32 %v595, %v717
  %v782 = vadd.f32 %v600, %v718
  %v783 = vadd.f32 %v605, %v719
  %v784 = vadd.f32 %v610, %v720
  %v785 = vadd.f32 %v615, %v721
  %v786 = vadd.f32 %v620, %v722
  %v787 = vadd.f32 %v625, %v723
  %v788 = vadd.f32 %v630, %v724
  %v789 = vadd.f32 %v635, %v725
  %v790 = vadd.f32 %v640, %v726
  %v791 = vadd.f32 %v645, %v727
  %v792 = vadd.f32 %v650, %v728
  %v793 = vadd.f32 %v655, %v729
  %v794 = vadd.f32 %v660, %v730
  %v795 = vadd.f32 %v665, %v731
  %v796 = vmax.f32 %v732, 0.0
  %v797 = vmax.f32 %v733, 0.0
  %v798 = vmax.f32 %v734, 0.0
  %v799 = vmax.f32 %v735, 0.0
  %v800 = vmax.f32 %v736, 0.0
  %v801 = vmax.f32 %v737, 0.0
  %v802 = vmax.f32 %v738, 0.0
  %v803 = vmax.f32 %v739, 0.0
  %v804 = vmax.f32 %v740, 0.0
  %v805 = vmax.f32 %v741, 0.0
  %v806 = vmax.f32 %v742, 0.0
  %v807 = vmax.f32 %v743, 0.0
  %v808 = vmax.f32 %v744, 0.0
  %v809 = vmax.f32 %v745, 0.0
  %v810 = vmax.f32 %v746, 0.0
  %v811 = vmax.f32 %v747, 0.0
  %v812 = vmax.f32 %v748, 0.0
  %v813 = vmax.f32 %v749, 0.0
  %v814 = vmax.f32 %v750, 0.0
  %v815 = vmax.f32 %v751, 0.0
  %v816 = vmax.f32 %v752, 0.0
  %v817 = vmax.f32 %v753, 0.0
  %v818 = vmax.f32 %v754, 0.0
  %v819 = vmax.f32 %v755, 0.0
  %v820 = vmax.f32 %v756, 0.0
  %v821 = vmax.f32 %v757, 0.0
  %v822 = vmax.f32 %v758, 0.0
  %v823 = vmax.f32 %v759, 0.0
  %v824 = vmax.f32 %v760, 0.0
  %v825 = vmax.f32 %v761, 0.0
  %v826 = vmax.f32 %v762, 0.0
  %v827 = vmax.f32 %v763, 0.0
  %v828 = vmax.f32 %v764, 0.0
  %v829 = vmax.f32 %v765, 0.0
  %v830 = vmax.f32 %v766, 0.0
  %v831 = vmax.f32 %v767, 0.0
  %v832 = vmax.f32 %v768, 0.0
  %v833 = vmax.f32 %v769, 0.0
  %v834 = vmax.f32 %v770, 0.0
  %v835 = vmax.f32 %v771, 0.0
  %v836 = vmax.f32 %v772, 0.0
  %v837 = vmax.f32 %v773, 0.0
  %v838 = vmax.f32 %v774, 0.0
  %v839 = vmax.f32 %v775, 0.0
  %v840 = vmax.f32 %v776, 0.0
  %v841 = vmax.f32 %v777, 0.0
  %v842 = vmax.f32 %v778, 0.0
  %v843 = vmax.f32 %v779, 0.0
  %v844 = vmax.f32 %v780, 0.0
  %v845 = vmax.f32 %v781, 0.0
  %v846 = vmax.f32 %v782, 0.0
  %v847 = vmax.f32 %v783, 0.0
  %v848 = vmax.f32 %v784, 0.0
  %v849 = vmax.f32 %v785, 0.0
  %v850 = vmax.f32 %v786, 0.0
  %v851 = vmax.f32 %v787, 0.0
  %v852 = vmax.f32 %v788, 0.0
  %v853 = vmax.f32 %v789, 0.0
  %v854 = vmax.f32 %v790, 0.0
  %v855 = vmax.f32 %v791, 0.0
  %v856 = vmax.f32 %v792, 0.0
  %v857 = vmax.f32 %v793, 0.0
  %v858 = vmax.f32 %v794, 0.0
  %v859 = vmax.f32 %v795, 0.0
  %vm860 = vcmask 523264
  %861 = vst.msk [vmem:[%s4] sm:$0xff] %vm860, %v796
  %862 = vst.msk [vmem:[%s4 + $0x8] sm:$0xff] %vm860, %v797
  %863 = vst.msk [vmem:[%s4 + $0x10] sm:$0xff] %vm860, %v798
  %864 = vst.msk [vmem:[%s4 + $0x18] sm:$0xff] %vm860, %v799
  %865 = vst.msk [vmem:[%s4 + $0x20] sm:$0xff] %vm860, %v800
  %866 = vst.msk [vmem:[%s4 + $0x28] sm:$0xff] %vm860, %v801
  %867 = vst.msk [vmem:[%s4 + $0x30] sm:$0xff] %vm860, %v802
  %868 = vst.msk [vmem:[%s4 + $0x38] sm:$0xff] %vm860, %v803
  %869 = vst.msk [vmem:[%s4 + $0x40] sm:$0xff] %vm860, %v804
  %870 = vst.msk [vmem:[%s4 + $0x48] sm:$0xff] %vm860, %v805
  %871 = vst.msk [vmem:[%s4 + $0x50] sm:$0xff] %vm860, %v806
  %872 = vst.msk [vmem:[%s4 + $0x58] sm:$0xff] %vm860, %v807
  %873 = vst.msk [vmem:[%s4 + $0x60] sm:$0xff] %vm860, %v808
  %874 = vst.msk [vmem:[%s4 + $0x68] sm:$0xff] %vm860, %v809
  %875 = vst.msk [vmem:[%s4 + $0x70] sm:$0xff] %vm860, %v810
  %876 = vst.msk [vmem:[%s4 + $0x78] sm:$0xff] %vm860, %v811
  %877 = vst.msk [vmem:[%s4 + $0x80] sm:$0xff] %vm860, %v812
  %878 = vst.msk [vmem:[%s4 + $0x88] sm:$0xff] %vm860, %v813
  %879 = vst.msk [vmem:[%s4 + $0x90] sm:$0xff] %vm860, %v814
  %880 = vst.msk [vmem:[%s4 + $0x98] sm:$0xff] %vm860, %v815
  %881 = vst.msk [vmem:[%s4 + $0xa0] sm:$0xff] %vm860, %v816
  %882 = vst.msk [vmem:[%s4 + $0xa8] sm:$0xff] %vm860, %v817
  %883 = vst.msk [vmem:[%s4 + $0xb0] sm:$0xff] %vm860, %v818
  %884 = vst.msk [vmem:[%s4 + $0xb8] sm:$0xff] %vm860, %v819
  %885 = vst.msk [vmem:[%s4 + $0xc0] sm:$0xff] %vm860, %v820
  %886 = vst.msk [vmem:[%s4 + $0xc8] sm:$0xff] %vm860, %v821
  %887 = vst.msk [vmem:[%s4 + $0xd0] sm:$0xff] %vm860, %v822
  %888 = vst.msk [vmem:[%s4 + $0xd8] sm:$0xff] %vm860, %v823
  %889 = vst.msk [vmem:[%s4 + $0xe0] sm:$0xff] %vm860, %v824
  %890 = vst.msk [vmem:[%s4 + $0xe8] sm:$0xff] %vm860, %v825
  %891 = vst.msk [vmem:[%s4 + $0xf0] sm:$0xff] %vm860, %v826
  %892 = vst.msk [vmem:[%s4 + $0xf8] sm:$0xff] %vm860, %v827
  %893 = vst.msk [vmem:[%s4 + $0x100] sm:$0xff] %vm860, %v828
  %894 = vst.msk [vmem:[%s4 + $0x108] sm:$0xff] %vm860, %v829
  %895 = vst.msk [vmem:[%s4 + $0x110] sm:$0xff] %vm860, %v830
  %896 = vst.msk [vmem:[%s4 + $0x118] sm:$0xff] %vm860, %v831
  %897 = vst.msk [vmem:[%s4 + $0x120] sm:$0xff] %vm860, %v832
  %898 = vst.msk [vmem:[%s4 + $0x128] sm:$0xff] %vm860, %v833
  %899 = vst.msk [vmem:[%s4 + $0x130] sm:$0xff] %vm860, %v834
  %900 = vst.msk [vmem:[%s4 + $0x138] sm:$0xff] %vm860, %v835
  %901 = vst.msk [vmem:[%s4 + $0x140] sm:$0xff] %vm860, %v836
  %902 = vst.msk [vmem:[%s4 + $0x148] sm:$0xff] %vm860, %v837
  %903 = vst.msk [vmem:[%s4 + $0x150] sm:$0xff] %vm860, %v838
  %904 = vst.msk [vmem:[%s4 + $0x158] sm:$0xff] %vm860, %v839
  %905 = vst.msk [vmem:[%s4 + $0x160] sm:$0xff] %vm860, %v840
  %906 = vst.msk [vmem:[%s4 + $0x168] sm:$0xff] %vm860, %v841
  %907 = vst.msk [vmem:[%s4 + $0x170] sm:$0xff] %vm860, %v842
  %908 = vst.msk [vmem:[%s4 + $0x178] sm:$0xff] %vm860, %v843
  %909 = vst.msk [vmem:[%s4 + $0x180] sm:$0xff] %vm860, %v844
  %910 = vst.msk [vmem:[%s4 + $0x188] sm:$0xff] %vm860, %v845
  %911 = vst.msk [vmem:[%s4 + $0x190] sm:$0xff] %vm860, %v846
  %912 = vst.msk [vmem:[%s4 + $0x198] sm:$0xff] %vm860, %v847
  %913 = vst.msk [vmem:[%s4 + $0x1a0] sm:$0xff] %vm860, %v848
  %914 = vst.msk [vmem:[%s4 + $0x1a8] sm:$0xff] %vm860, %v849
  %915 = vst.msk [vmem:[%s4 + $0x1b0] sm:$0xff] %vm860, %v850
  %916 = vst.msk [vmem:[%s4 + $0x1b8] sm:$0xff] %vm860, %v851
  %917 = vst.msk [vmem:[%s4 + $0x1c0] sm:$0xff] %vm860, %v852
  %918 = vst.msk [vmem:[%s4 + $0x1c8] sm:$0xff] %vm860, %v853
  %919 = vst.msk [vmem:[%s4 + $0x1d0] sm:$0xff] %vm860, %v854
  %920 = vst.msk [vmem:[%s4 + $0x1d8] sm:$0xff] %vm860, %v855
  %921 = vst.msk [vmem:[%s4 + $0x1e0] sm:$0xff] %vm860, %v856
  %922 = vst.msk [vmem:[%s4 + $0x1e8] sm:$0xff] %vm860, %v857
  %923 = vst.msk [vmem:[%s4 + $0x1f0] sm:$0xff] %vm860, %v858
  %924 = vst.msk [vmem:[%s4 + $0x1f8] sm:$0xff] %vm860, %v859
  // Predicated region
  $region18: #{_lambda_.20} parent=0 // pred_check
    _
  $region19: #{_lambda_.20} parent=0 // pred_check_branch
    %926 = sbr.rel (0) target = $region21
  $region20: #{_lambda_.20} parent=0 // pred_region
    _
  $region21: #{_lambda_.20} parent=0 // pred_fallthru
    _
  // Predicated region
  $region22: #{_lambda_.20} parent=0 // pred_check
    _
  $region23: #{_lambda_.20} parent=0 // pred_check_branch
    %928 = sbr.rel (0) target = $region25
  $region24: #{_lambda_.20} parent=0 // pred_region
    _
  $region25: #{_lambda_.20} parent=0 // pred_fallthru
    _

// kernel: _lambda_.17
$region0: #{_lambda_.17}
  #allocation0 [shape = 'u32[]', space=smem, size = 0x4, offset = 0x4, fixed_abs, tag = 'smem constant byte address 0x4 - core index']
  #allocation1 [shape = 'u32[144,128]{1,0:T(1,128)}', space=vmem, size = 0x12000, scoped, tag = 'internal scratch']
  %s0 = inlined_call_operand.vmem [shape: f32[512,16], index: 0, kind: input, shape index: {}]
  %s1 = inlined_call_operand.vmem [shape: f32[16,64], index: 1, kind: input, shape index: {}]
  %s2 = inlined_call_operand.vmem [shape: f32[1,64], index: 2, kind: input, shape index: {}]
  %s3 = inlined_call_operand.vmem [shape: f32[512,64], index: 3, kind: input, shape index: {}]
  %s4 = inlined_call_operand.vmem [shape: f32[512,64], index: 4, kind: output, shape index: {}]
  %s5 = sld [smem:[#allocation0]]
  $region26: #{_lambda_.17} parent=0
    _
  %s7 = ssub.s32 1, %s5
  %s8 = scalar_select 0, %s7, %s5
  // Predicated region
  $region2: #{_lambda_.17} parent=0 // pred_check
    _
  $region3: #{_lambda_.17} parent=0 // pred_check_branch
    %10 = sbr.rel (0) target = $region5
  $region4: #{_lambda_.17} parent=0 // pred_region
    _
  $region5: #{_lambda_.17} parent=0 // pred_fallthru
    _
  // Predicated region
  $region6: #{_lambda_.17} parent=0 // pred_check
    _
  $region7: #{_lambda_.17} parent=0 // pred_check_branch
    %12 = sbr.rel (0) target = $region9
  $region8: #{_lambda_.17} parent=0 // pred_region
    _
  $region9: #{_lambda_.17} parent=0 // pred_fallthru
    _
  // Predicated region
  $region10: #{_lambda_.17} parent=0 // pred_check
    _
  $region11: #{_lambda_.17} parent=0 // pred_check_branch
    %14 = sbr.rel (0) target = $region13
  $region12: #{_lambda_.17} parent=0 // pred_region
    _
  $region13: #{_lambda_.17} parent=0 // pred_fallthru
    _
  // Predicated region
  $region14: #{_lambda_.17} parent=0 // pred_check
    _
  $region15: #{_lambda_.17} parent=0 // pred_check_branch
    %16 = sbr.rel (0) target = $region17
  $region16: #{_lambda_.17} parent=0 // pred_region
    _
  $region17: #{_lambda_.17} parent=0 // pred_fallthru
    _
  %v17 = vld [vmem:[%s0] sm:$0xff]
  %v18 = vld [vmem:[%s0 + $0x8] sm:$0xff]
  %v19 = vld [vmem:[%s0 + $0x10] sm:$0xff]
  %v20 = vld [vmem:[%s0 + $0x18] sm:$0xff]
  %v21 = vld [vmem:[%s0 + $0x20] sm:$0xff]
  %v22 = vld [vmem:[%s0 + $0x28] sm:$0xff]
  %v23 = vld [vmem:[%s0 + $0x30] sm:$0xff]
  %v24 = vld [vmem:[%s0 + $0x38] sm:$0xff]
  %v25 = vld [vmem:[%s0 + $0x40] sm:$0xff]
  %v26 = vld [vmem:[%s0 + $0x48] sm:$0xff]
  %v27 = vld [vmem:[%s0 + $0x50] sm:$0xff]
  %v28 = vld [vmem:[%s0 + $0x58] sm:$0xff]
  %v29 = vld [vmem:[%s0 + $0x60] sm:$0xff]
  %v30 = vld [vmem:[%s0 + $0x68] sm:$0xff]
  %v31 = vld [vmem:[%s0 + $0x70] sm:$0xff]
  %v32 = vld [vmem:[%s0 + $0x78] sm:$0xff]
  %v33 = vld [vmem:[%s0 + $0x80] sm:$0xff]
  %v34 = vld [vmem:[%s0 + $0x88] sm:$0xff]
  %v35 = vld [vmem:[%s0 + $0x90] sm:$0xff]
  %v36 = vld [vmem:[%s0 + $0x98] sm:$0xff]
  %v37 = vld [vmem:[%s0 + $0xa0] sm:$0xff]
  %v38 = vld [vmem:[%s0 + $0xa8] sm:$0xff]
  %v39 = vld [vmem:[%s0 + $0xb0] sm:$0xff]
  %v40 = vld [vmem:[%s0 + $0xb8] sm:$0xff]
  %v41 = vld [vmem:[%s0 + $0xc0] sm:$0xff]
  %v42 = vld [vmem:[%s0 + $0xc8] sm:$0xff]
  %v43 = vld [vmem:[%s0 + $0xd0] sm:$0xff]
  %v44 = vld [vmem:[%s0 + $0xd8] sm:$0xff]
  %v45 = vld [vmem:[%s0 + $0xe0] sm:$0xff]
  %v46 = vld [vmem:[%s0 + $0xe8] sm:$0xff]
  %v47 = vld [vmem:[%s0 + $0xf0] sm:$0xff]
  %v48 = vld [vmem:[%s0 + $0xf8] sm:$0xff]
  %v49 = vld [vmem:[%s0 + $0x100] sm:$0xff]
  %v50 = vld [vmem:[%s0 + $0x108] sm:$0xff]
  %v51 = vld [vmem:[%s0 + $0x110] sm:$0xff]
  %v52 = vld [vmem:[%s0 + $0x118] sm:$0xff]
  %v53 = vld [vmem:[%s0 + $0x120] sm:$0xff]
  %v54 = vld [vmem:[%s0 + $0x128] sm:$0xff]
  %v55 = vld [vmem:[%s0 + $0x130] sm:$0xff]
  %v56 = vld [vmem:[%s0 + $0x138] sm:$0xff]
  %v57 = vld [vmem:[%s0 + $0x140] sm:$0xff]
  %v58 = vld [vmem:[%s0 + $0x148] sm:$0xff]
  %v59 = vld [vmem:[%s0 + $0x150] sm:$0xff]
  %v60 = vld [vmem:[%s0 + $0x158] sm:$0xff]
  %v61 = vld [vmem:[%s0 + $0x160] sm:$0xff]
  %v62 = vld [vmem:[%s0 + $0x168] sm:$0xff]
  %v63 = vld [vmem:[%s0 + $0x170] sm:$0xff]
  %v64 = vld [vmem:[%s0 + $0x178] sm:$0xff]
  %v65 = vld [vmem:[%s0 + $0x180] sm:$0xff]
  %v66 = vld [vmem:[%s0 + $0x188] sm:$0xff]
  %v67 = vld [vmem:[%s0 + $0x190] sm:$0xff]
  %v68 = vld [vmem:[%s0 + $0x198] sm:$0xff]
  %v69 = vld [vmem:[%s0 + $0x1a0] sm:$0xff]
  %v70 = vld [vmem:[%s0 + $0x1a8] sm:$0xff]
  %v71 = vld [vmem:[%s0 + $0x1b0] sm:$0xff]
  %v72 = vld [vmem:[%s0 + $0x1b8] sm:$0xff]
  %v73 = vld [vmem:[%s0 + $0x1c0] sm:$0xff]
  %v74 = vld [vmem:[%s0 + $0x1c8] sm:$0xff]
  %v75 = vld [vmem:[%s0 + $0x1d0] sm:$0xff]
  %v76 = vld [vmem:[%s0 + $0x1d8] sm:$0xff]
  %v77 = vld [vmem:[%s0 + $0x1e0] sm:$0xff]
  %v78 = vld [vmem:[%s0 + $0x1e8] sm:$0xff]
  %v79 = vld [vmem:[%s0 + $0x1f0] sm:$0xff]
  %v80 = vld [vmem:[%s0 + $0x1f8] sm:$0xff]
  %v81 = vld [vmem:[%s1] sm:$0xff]
  %v82 = vld [vmem:[%s1 + $0x8] sm:$0xff]
  %v83 = vld [vmem:[%s2] sm:$0x1]
  %v85 = vlaneseq
  %v86 = vshrl.u32 %v85, 7
  %v87 = vsub.s32 0, %v86
  %v88 = vrot.slane %v83, %v87
  %vm90 = vcmask 130048
  %v92 = vsel %vm90, %v17, 0
  %v95 = vsel %vm90, %v18, 0
  %v98 = vsel %vm90, %v19, 0
  %v101 = vsel %vm90, %v20, 0
  %v104 = vsel %vm90, %v21, 0
  %v107 = vsel %vm90, %v22, 0
  %v110 = vsel %vm90, %v23, 0
  %v113 = vsel %vm90, %v24, 0
  %v116 = vsel %vm90, %v25, 0
  %v119 = vsel %vm90, %v26, 0
  %v122 = vsel %vm90, %v27, 0
  %v125 = vsel %vm90, %v28, 0
  %v128 = vsel %vm90, %v29, 0
  %v131 = vsel %vm90, %v30, 0
  %v134 = vsel %vm90, %v31, 0
  %v137 = vsel %vm90, %v32, 0
  %v140 = vsel %vm90, %v33, 0
  %v143 = vsel %vm90, %v34, 0
  %v146 = vsel %vm90, %v35, 0
  %v149 = vsel %vm90, %v36, 0
  %v152 = vsel %vm90, %v37, 0
  %v155 = vsel %vm90, %v38, 0
  %v158 = vsel %vm90, %v39, 0
  %v161 = vsel %vm90, %v40, 0
  %v164 = vsel %vm90, %v41, 0
  %v167 = vsel %vm90, %v42, 0
  %v170 = vsel %vm90, %v43, 0
  %v173 = vsel %vm90, %v44, 0
  %v176 = vsel %vm90, %v45, 0
  %v179 = vsel %vm90, %v46, 0
  %v182 = vsel %vm90, %v47, 0
  %v185 = vsel %vm90, %v48, 0
  %v188 = vsel %vm90, %v49, 0
  %v191 = vsel %vm90, %v50, 0
  %v194 = vsel %vm90, %v51, 0
  %v197 = vsel %vm90, %v52, 0
  %v200 = vsel %vm90, %v53, 0
  %v203 = vsel %vm90, %v54, 0
  %v206 = vsel %vm90, %v55, 0
  %v209 = vsel %vm90, %v56, 0
  %v212 = vsel %vm90, %v57, 0
  %v215 = vsel %vm90, %v58, 0
  %v218 = vsel %vm90, %v59, 0
  %v221 = vsel %vm90, %v60, 0
  %v224 = vsel %vm90, %v61, 0
  %v227 = vsel %vm90, %v62, 0
  %v230 = vsel %vm90, %v63, 0
  %v233 = vsel %vm90, %v64, 0
  %v236 = vsel %vm90, %v65, 0
  %v239 = vsel %vm90, %v66, 0
  %v242 = vsel %vm90, %v67, 0
  %v245 = vsel %vm90, %v68, 0
  %v248 = vsel %vm90, %v69, 0
  %v251 = vsel %vm90, %v70, 0
  %v254 = vsel %vm90, %v71, 0
  %v257 = vsel %vm90, %v72, 0
  %v260 = vsel %vm90, %v73, 0
  %v263 = vsel %vm90, %v74, 0
  %v266 = vsel %vm90, %v75, 0
  %v269 = vsel %vm90, %v76, 0
  %v272 = vsel %vm90, %v77, 0
  %v275 = vsel %vm90, %v78, 0
  %v278 = vsel %vm90, %v79, 0
  %v281 = vsel %vm90, %v80, 0
  %283 = vmatprep.subr.mxu0 0.0
  %284 = vmatpush1.msra.mxu0 %v81
  %285 = vmatprep.subr.mxu0 0.0
  %286 = vmatpush1.msra.mxu0 %v82
  %287 = vmatprep.subr.mxu0 0.0
  %288 = vmatpush1.msra.mxu0 0.0
  %289 = vmatprep.subr.mxu0 0.0
  %290 = vmatpush1.msra.mxu0 0.0
  %291 = vmatprep.subr.mxu0 0.0
  %292 = vmatpush1.msra.mxu0 0.0
  %293 = vmatprep.subr.mxu0 0.0
  %294 = vmatpush1.msra.mxu0 0.0
  %295 = vmatprep.subr.mxu0 0.0
  %296 = vmatpush1.msra.mxu0 0.0
  %297 = vmatprep.subr.mxu0 0.0
  %298 = vmatpush1.msra.mxu0 0.0
  %299 = vmatprep.subr.mxu0 0.0
  %300 = vmatpush1.msra.mxu0 0.0
  %301 = vmatprep.subr.mxu0 0.0
  %302 = vmatpush1.msra.mxu0 0.0
  %303 = vmatprep.subr.mxu0 0.0
  %304 = vmatpush1.msra.mxu0 0.0
  %305 = vmatprep.subr.mxu0 0.0
  %306 = vmatpush1.msra.mxu0 0.0
  %307 = vmatprep.subr.mxu0 0.0
  %308 = vmatpush1.msra.mxu0 0.0
  %309 = vmatprep.subr.mxu0 0.0
  %310 = vmatpush1.msra.mxu0 0.0
  %311 = vmatprep.subr.mxu0 0.0
  %312 = vmatpush1.msra.mxu0 0.0
  %313 = vmatprep.subr.mxu0 0.0
  %314 = vmatpush1.msra.mxu0 0.0
  %315 = vmatprep.subr.mxu0 0.0
  %316 = vmatpush1.msra.mxu0 0.0
  %317 = vmatprep.subr.mxu0 0.0
  %318 = vmatpush1.msra.mxu0 0.0
  %319 = vmatprep.subr.mxu0 0.0
  %320 = vmatpush1.msra.mxu0 0.0
  %321 = vmatprep.subr.mxu0 0.0
  %322 = vmatpush1.msra.mxu0 0.0
  %323 = vmatprep.subr.mxu0 0.0
  %324 = vmatpush1.msra.mxu0 0.0
  %325 = vmatprep.subr.mxu0 0.0
  %326 = vmatpush1.msra.mxu0 0.0
  %327 = vmatprep.subr.mxu0 0.0
  %328 = vmatpush1.msra.mxu0 0.0
  %329 = vmatprep.subr.mxu0 0.0
  %330 = vmatpush1.msra.mxu0 0.0
  %331 = vmatprep.subr.mxu0 0.0
  %332 = vmatpush1.msra.mxu0 0.0
  %333 = vmatprep.subr.mxu0 0.0
  %334 = vmatpush1.msra.mxu0 0.0
  %335 = vmatprep.subr.mxu0 0.0
  %336 = vmatpush1.msra.mxu0 0.0
  %337 = vmatprep.subr.mxu0 0.0
  %338 = vmatpush1.msra.mxu0 0.0
  %339 = vmatprep.subr.mxu0 0.0
  %340 = vmatpush1.msra.mxu0 0.0
  %341 = vmatprep.subr.mxu0 0.0
  %342 = vmatpush1.msra.mxu0 0.0
  %343 = vmatprep.subr.mxu0 0.0
  %344 = vmatpush1.msra.mxu0 0.0
  %345 = vmatprep.subr.mxu0 0.0
  %346 = vmatpush1.msra.mxu0 0.0
  %347 = vmatprep.mubr.f32.mxu0 0.0
  %348 = vmatmul.mubr.f32.gmra.mrb[0].mxu0 %v92
  %v349 = vpop.f32.mrb[0].mxu0
  %v350 = vadd.f32 %v88, %v349
  %v351 = vpop.f32.mrb[0].mxu0
  %352 = vmatprep.mubr.f32.mxu0 0.0
  %353 = vmatmul.mubr.f32.gmra.mrb[0].mxu0 %v95
  %v354 = vpop.f32.mrb[0].mxu0
  %v355 = vadd.f32 %v88, %v354
  %v356 = vpop.f32.mrb[0].mxu0
  %357 = vmatprep.mubr.f32.mxu0 0.0
  %358 = vmatmul.mubr.f32.gmra.mrb[0].mxu0 %v98
  %v359 = vpop.f32.mrb[0].mxu0
  %v360 = vadd.f32 %v88, %v359
  %v361 = vpop.f32.mrb[0].mxu0
  %362 = vmatprep.mubr.f32.mxu0 0.0
  %363 = vmatmul.mubr.f32.gmra.mrb[0].mxu0 %v101
  %v364 = vpop.f32.mrb[0].mxu0
  %v365 = vadd.f32 %v88, %v364
  %v366 = vpop.f32.mrb[0].mxu0
  %367 = vmatprep.mubr.f32.mxu0 0.0
  %368 = vmatmul.mubr.f32.gmra.mrb[0].mxu0 %v104
  %v369 = vpop.f32.mrb[0].mxu0
  %v370 = vadd.f32 %v88, %v369
  %v371 = vpop.f32.mrb[0].mxu0
  %372 = vmatprep.mubr.f32.mxu0 0.0
  %373 = vmatmul.mubr.f32.gmra.mrb[0].mxu0 %v107
  %v374 = vpop.f32.mrb[0].mxu0
  %v375 = vadd.f32 %v88, %v374
  %v376 = vpop.f32.mrb[0].mxu0
  %377 = vmatprep.mubr.f32.mxu0 0.0
  %378 = vmatmul.mubr.f32.gmra.mrb[0].mxu0 %v110
  %v379 = vpop.f32.mrb[0].mxu0
  %v380 = vadd.f32 %v88, %v379
  %v381 = vpop.f32.mrb[0].mxu0
  %382 = vmatprep.mubr.f32.mxu0 0.0
  %383 = vmatmul.mubr.f32.gmra.mrb[0].mxu0 %v113
  %v384 = vpop.f32.mrb[0].mxu0
  %v385 = vadd.f32 %v88, %v384
  %v386 = vpop.f32.mrb[0].mxu0
  %387 = vmatprep.mubr.f32.mxu0 0.0
  %388 = vmatmul.mubr.f32.gmra.mrb[0].mxu0 %v116
  %v389 = vpop.f32.mrb[0].mxu0
  %v390 = vadd.f32 %v88, %v389
  %v391 = vpop.f32.mrb[0].mxu0
  %392 = vmatprep.mubr.f32.mxu0 0.0
  %393 = vmatmul.mubr.f32.gmra.mrb[0].mxu0 %v119
  %v394 = vpop.f32.mrb[0].mxu0
  %v395 = vadd.f32 %v88, %v394
  %v396 = vpop.f32.mrb[0].mxu0
  %397 = vmatprep.mubr.f32.mxu0 0.0
  %398 = vmatmul.mubr.f32.gmra.mrb[0].mxu0 %v122
  %v399 = vpop.f32.mrb[0].mxu0
  %v400 = vadd.f32 %v88, %v399
  %v401 = vpop.f32.mrb[0].mxu0
  %402 = vmatprep.mubr.f32.mxu0 0.0
  %403 = vmatmul.mubr.f32.gmra.mrb[0].mxu0 %v125
  %v404 = vpop.f32.mrb[0].mxu0
  %v405 = vadd.f32 %v88, %v404
  %v406 = vpop.f32.mrb[0].mxu0
  %407 = vmatprep.mubr.f32.mxu0 0.0
  %408 = vmatmul.mubr.f32.gmra.mrb[0].mxu0 %v128
  %v409 = vpop.f32.mrb[0].mxu0
  %v410 = vadd.f32 %v88, %v409
  %v411 = vpop.f32.mrb[0].mxu0
  %412 = vmatprep.mubr.f32.mxu0 0.0
  %413 = vmatmul.mubr.f32.gmra.mrb[0].mxu0 %v131
  %v414 = vpop.f32.mrb[0].mxu0
  %v415 = vadd.f32 %v88, %v414
  %v416 = vpop.f32.mrb[0].mxu0
  %417 = vmatprep.mubr.f32.mxu0 0.0
  %418 = vmatmul.mubr.f32.gmra.mrb[0].mxu0 %v134
  %v419 = vpop.f32.mrb[0].mxu0
  %v420 = vadd.f32 %v88, %v419
  %v421 = vpop.f32.mrb[0].mxu0
  %422 = vmatprep.mubr.f32.mxu0 0.0
  %423 = vmatmul.mubr.f32.gmra.mrb[0].mxu0 %v137
  %v424 = vpop.f32.mrb[0].mxu0
  %v425 = vadd.f32 %v88, %v424
  %v426 = vpop.f32.mrb[0].mxu0
  %427 = vmatprep.mubr.f32.mxu0 0.0
  %428 = vmatmul.mubr.f32.gmra.mrb[0].mxu0 %v140
  %v429 = vpop.f32.mrb[0].mxu0
  %v430 = vadd.f32 %v88, %v429
  %v431 = vpop.f32.mrb[0].mxu0
  %432 = vmatprep.mubr.f32.mxu0 0.0
  %433 = vmatmul.mubr.f32.gmra.mrb[0].mxu0 %v143
  %v434 = vpop.f32.mrb[0].mxu0
  %v435 = vadd.f32 %v88, %v434
  %v436 = vpop.f32.mrb[0].mxu0
  %437 = vmatprep.mubr.f32.mxu0 0.0
  %438 = vmatmul.mubr.f32.gmra.mrb[0].mxu0 %v146
  %v439 = vpop.f32.mrb[0].mxu0
  %v440 = vadd.f32 %v88, %v439
  %v441 = vpop.f32.mrb[0].mxu0
  %442 = vmatprep.mubr.f32.mxu0 0.0
  %443 = vmatmul.mubr.f32.gmra.mrb[0].mxu0 %v149
  %v444 = vpop.f32.mrb[0].mxu0
  %v445 = vadd.f32 %v88, %v444
  %v446 = vpop.f32.mrb[0].mxu0
  %447 = vmatprep.mubr.f32.mxu0 0.0
  %448 = vmatmul.mubr.f32.gmra.mrb[0].mxu0 %v152
  %v449 = vpop.f32.mrb[0].mxu0
  %v450 = vadd.f32 %v88, %v449
  %v451 = vpop.f32.mrb[0].mxu0
  %452 = vmatprep.mubr.f32.mxu0 0.0
  %453 = vmatmul.mubr.f32.gmra.mrb[0].mxu0 %v155
  %v454 = vpop.f32.mrb[0].mxu0
  %v455 = vadd.f32 %v88, %v454
  %v456 = vpop.f32.mrb[0].mxu0
  %457 = vmatprep.mubr.f32.mxu0 0.0
  %458 = vmatmul.mubr.f32.gmra.mrb[0].mxu0 %v158
  %v459 = vpop.f32.mrb[0].mxu0
  %v460 = vadd.f32 %v88, %v459
  %v461 = vpop.f32.mrb[0].mxu0
  %462 = vmatprep.mubr.f32.mxu0 0.0
  %463 = vmatmul.mubr.f32.gmra.mrb[0].mxu0 %v161
  %v464 = vpop.f32.mrb[0].mxu0
  %v465 = vadd.f32 %v88, %v464
  %v466 = vpop.f32.mrb[0].mxu0
  %467 = vmatprep.mubr.f32.mxu0 0.0
  %468 = vmatmul.mubr.f32.gmra.mrb[0].mxu0 %v164
  %v469 = vpop.f32.mrb[0].mxu0
  %v470 = vadd.f32 %v88, %v469
  %v471 = vpop.f32.mrb[0].mxu0
  %472 = vmatprep.mubr.f32.mxu0 0.0
  %473 = vmatmul.mubr.f32.gmra.mrb[0].mxu0 %v167
  %v474 = vpop.f32.mrb[0].mxu0
  %v475 = vadd.f32 %v88, %v474
  %v476 = vpop.f32.mrb[0].mxu0
  %477 = vmatprep.mubr.f32.mxu0 0.0
  %478 = vmatmul.mubr.f32.gmra.mrb[0].mxu0 %v170
  %v479 = vpop.f32.mrb[0].mxu0
  %v480 = vadd.f32 %v88, %v479
  %v481 = vpop.f32.mrb[0].mxu0
  %482 = vmatprep.mubr.f32.mxu0 0.0
  %483 = vmatmul.mubr.f32.gmra.mrb[0].mxu0 %v173
  %v484 = vpop.f32.mrb[0].mxu0
  %v485 = vadd.f32 %v88, %v484
  %v486 = vpop.f32.mrb[0].mxu0
  %487 = vmatprep.mubr.f32.mxu0 0.0
  %488 = vmatmul.mubr.f32.gmra.mrb[0].mxu0 %v176
  %v489 = vpop.f32.mrb[0].mxu0
  %v490 = vadd.f32 %v88, %v489
  %v491 = vpop.f32.mrb[0].mxu0
  %492 = vmatprep.mubr.f32.mxu0 0.0
  %493 = vmatmul.mubr.f32.gmra.mrb[0].mxu0 %v179
  %v494 = vpop.f32.mrb[0].mxu0
  %v495 = vadd.f32 %v88, %v494
  %v496 = vpop.f32.mrb[0].mxu0
  %497 = vmatprep.mubr.f32.mxu0 0.0
  %498 = vmatmul.mubr.f32.gmra.mrb[0].mxu0 %v182
  %v499 = vpop.f32.mrb[0].mxu0
  %v500 = vadd.f32 %v88, %v499
  %v501 = vpop.f32.mrb[0].mxu0
  %502 = vmatprep.mubr.f32.mxu0 0.0
  %503 = vmatmul.mubr.f32.gmra.mrb[0].mxu0 %v185
  %v504 = vpop.f32.mrb[0].mxu0
  %v505 = vadd.f32 %v88, %v504
  %v506 = vpop.f32.mrb[0].mxu0
  %507 = vmatprep.mubr.f32.mxu0 0.0
  %508 = vmatmul.mubr.f32.gmra.mrb[0].mxu0 %v188
  %v509 = vpop.f32.mrb[0].mxu0
  %v510 = vadd.f32 %v88, %v509
  %v511 = vpop.f32.mrb[0].mxu0
  %512 = vmatprep.mubr.f32.mxu0 0.0
  %513 = vmatmul.mubr.f32.gmra.mrb[0].mxu0 %v191
  %v514 = vpop.f32.mrb[0].mxu0
  %v515 = vadd.f32 %v88, %v514
  %v516 = vpop.f32.mrb[0].mxu0
  %517 = vmatprep.mubr.f32.mxu0 0.0
  %518 = vmatmul.mubr.f32.gmra.mrb[0].mxu0 %v194
  %v519 = vpop.f32.mrb[0].mxu0
  %v520 = vadd.f32 %v88, %v519
  %v521 = vpop.f32.mrb[0].mxu0
  %522 = vmatprep.mubr.f32.mxu0 0.0
  %523 = vmatmul.mubr.f32.gmra.mrb[0].mxu0 %v197
  %v524 = vpop.f32.mrb[0].mxu0
  %v525 = vadd.f32 %v88, %v524
  %v526 = vpop.f32.mrb[0].mxu0
  %527 = vmatprep.mubr.f32.mxu0 0.0
  %528 = vmatmul.mubr.f32.gmra.mrb[0].mxu0 %v200
  %v529 = vpop.f32.mrb[0].mxu0
  %v530 = vadd.f32 %v88, %v529
  %v531 = vpop.f32.mrb[0].mxu0
  %532 = vmatprep.mubr.f32.mxu0 0.0
  %533 = vmatmul.mubr.f32.gmra.mrb[0].mxu0 %v203
  %v534 = vpop.f32.mrb[0].mxu0
  %v535 = vadd.f32 %v88, %v534
  %v536 = vpop.f32.mrb[0].mxu0
  %537 = vmatprep.mubr.f32.mxu0 0.0
  %538 = vmatmul.mubr.f32.gmra.mrb[0].mxu0 %v206
  %v539 = vpop.f32.mrb[0].mxu0
  %v540 = vadd.f32 %v88, %v539
  %v541 = vpop.f32.mrb[0].mxu0
  %542 = vmatprep.mubr.f32.mxu0 0.0
  %543 = vmatmul.mubr.f32.gmra.mrb[0].mxu0 %v209
  %v544 = vpop.f32.mrb[0].mxu0
  %v545 = vadd.f32 %v88, %v544
  %v546 = vpop.f32.mrb[0].mxu0
  %547 = vmatprep.mubr.f32.mxu0 0.0
  %548 = vmatmul.mubr.f32.gmra.mrb[0].mxu0 %v212
  %v549 = vpop.f32.mrb[0].mxu0
  %v550 = vadd.f32 %v88, %v549
  %v551 = vpop.f32.mrb[0].mxu0
  %552 = vmatprep.mubr.f32.mxu0 0.0
  %553 = vmatmul.mubr.f32.gmra.mrb[0].mxu0 %v215
  %v554 = vpop.f32.mrb[0].mxu0
  %v555 = vadd.f32 %v88, %v554
  %v556 = vpop.f32.mrb[0].mxu0
  %557 = vmatprep.mubr.f32.mxu0 0.0
  %558 = vmatmul.mubr.f32.gmra.mrb[0].mxu0 %v218
  %v559 = vpop.f32.mrb[0].mxu0
  %v560 = vadd.f32 %v88, %v559
  %v561 = vpop.f32.mrb[0].mxu0
  %562 = vmatprep.mubr.f32.mxu0 0.0
  %563 = vmatmul.mubr.f32.gmra.mrb[0].mxu0 %v221
  %v564 = vpop.f32.mrb[0].mxu0
  %v565 = vadd.f32 %v88, %v564
  %v566 = vpop.f32.mrb[0].mxu0
  %567 = vmatprep.mubr.f32.mxu0 0.0
  %568 = vmatmul.mubr.f32.gmra.mrb[0].mxu0 %v224
  %v569 = vpop.f32.mrb[0].mxu0
  %v570 = vadd.f32 %v88, %v569
  %v571 = vpop.f32.mrb[0].mxu0
  %572 = vmatprep.mubr.f32.mxu0 0.0
  %573 = vmatmul.mubr.f32.gmra.mrb[0].mxu0 %v227
  %v574 = vpop.f32.mrb[0].mxu0
  %v575 = vadd.f32 %v88, %v574
  %v576 = vpop.f32.mrb[0].mxu0
  %577 = vmatprep.mubr.f32.mxu0 0.0
  %578 = vmatmul.mubr.f32.gmra.mrb[0].mxu0 %v230
  %v579 = vpop.f32.mrb[0].mxu0
  %v580 = vadd.f32 %v88, %v579
  %v581 = vpop.f32.mrb[0].mxu0
  %582 = vmatprep.mubr.f32.mxu0 0.0
  %583 = vmatmul.mubr.f32.gmra.mrb[0].mxu0 %v233
  %v584 = vpop.f32.mrb[0].mxu0
  %v585 = vadd.f32 %v88, %v584
  %v586 = vpop.f32.mrb[0].mxu0
  %587 = vmatprep.mubr.f32.mxu0 0.0
  %588 = vmatmul.mubr.f32.gmra.mrb[0].mxu0 %v236
  %v589 = vpop.f32.mrb[0].mxu0
  %v590 = vadd.f32 %v88, %v589
  %v591 = vpop.f32.mrb[0].mxu0
  %592 = vmatprep.mubr.f32.mxu0 0.0
  %593 = vmatmul.mubr.f32.gmra.mrb[0].mxu0 %v239
  %v594 = vpop.f32.mrb[0].mxu0
  %v595 = vadd.f32 %v88, %v594
  %v596 = vpop.f32.mrb[0].mxu0
  %597 = vmatprep.mubr.f32.mxu0 0.0
  %598 = vmatmul.mubr.f32.gmra.mrb[0].mxu0 %v242
  %v599 = vpop.f32.mrb[0].mxu0
  %v600 = vadd.f32 %v88, %v599
  %v601 = vpop.f32.mrb[0].mxu0
  %602 = vmatprep.mubr.f32.mxu0 0.0
  %603 = vmatmul.mubr.f32.gmra.mrb[0].mxu0 %v245
  %v604 = vpop.f32.mrb[0].mxu0
  %v605 = vadd.f32 %v88, %v604
  %v606 = vpop.f32.mrb[0].mxu0
  %607 = vmatprep.mubr.f32.mxu0 0.0
  %608 = vmatmul.mubr.f32.gmra.mrb[0].mxu0 %v248
  %v609 = vpop.f32.mrb[0].mxu0
  %v610 = vadd.f32 %v88, %v609
  %v611 = vpop.f32.mrb[0].mxu0
  %612 = vmatprep.mubr.f32.mxu0 0.0
  %613 = vmatmul.mubr.f32.gmra.mrb[0].mxu0 %v251
  %v614 = vpop.f32.mrb[0].mxu0
  %v615 = vadd.f32 %v88, %v614
  %v616 = vpop.f32.mrb[0].mxu0
  %617 = vmatprep.mubr.f32.mxu0 0.0
  %618 = vmatmul.mubr.f32.gmra.mrb[0].mxu0 %v254
  %v619 = vpop.f32.mrb[0].mxu0
  %v620 = vadd.f32 %v88, %v619
  %v621 = vpop.f32.mrb[0].mxu0
  %622 = vmatprep.mubr.f32.mxu0 0.0
  %623 = vmatmul.mubr.f32.gmra.mrb[0].mxu0 %v257
  %v624 = vpop.f32.mrb[0].mxu0
  %v625 = vadd.f32 %v88, %v624
  %v626 = vpop.f32.mrb[0].mxu0
  %627 = vmatprep.mubr.f32.mxu0 0.0
  %628 = vmatmul.mubr.f32.gmra.mrb[0].mxu0 %v260
  %v629 = vpop.f32.mrb[0].mxu0
  %v630 = vadd.f32 %v88, %v629
  %v631 = vpop.f32.mrb[0].mxu0
  %632 = vmatprep.mubr.f32.mxu0 0.0
  %633 = vmatmul.mubr.f32.gmra.mrb[0].mxu0 %v263
  %v634 = vpop.f32.mrb[0].mxu0
  %v635 = vadd.f32 %v88, %v634
  %v636 = vpop.f32.mrb[0].mxu0
  %637 = vmatprep.mubr.f32.mxu0 0.0
  %638 = vmatmul.mubr.f32.gmra.mrb[0].mxu0 %v266
  %v639 = vpop.f32.mrb[0].mxu0
  %v640 = vadd.f32 %v88, %v639
  %v641 = vpop.f32.mrb[0].mxu0
  %642 = vmatprep.mubr.f32.mxu0 0.0
  %643 = vmatmul.mubr.f32.gmra.mrb[0].mxu0 %v269
  %v644 = vpop.f32.mrb[0].mxu0
  %v645 = vadd.f32 %v88, %v644
  %v646 = vpop.f32.mrb[0].mxu0
  %647 = vmatprep.mubr.f32.mxu0 0.0
  %648 = vmatmul.mubr.f32.gmra.mrb[0].mxu0 %v272
  %v649 = vpop.f32.mrb[0].mxu0
  %v650 = vadd.f32 %v88, %v649
  %v651 = vpop.f32.mrb[0].mxu0
  %652 = vmatprep.mubr.f32.mxu0 0.0
  %653 = vmatmul.mubr.f32.gmra.mrb[0].mxu0 %v275
  %v654 = vpop.f32.mrb[0].mxu0
  %v655 = vadd.f32 %v88, %v654
  %v656 = vpop.f32.mrb[0].mxu0
  %657 = vmatprep.mubr.f32.mxu0 0.0
  %658 = vmatmul.mubr.f32.gmra.mrb[0].mxu0 %v278
  %v659 = vpop.f32.mrb[0].mxu0
  %v660 = vadd.f32 %v88, %v659
  %v661 = vpop.f32.mrb[0].mxu0
  %662 = vmatprep.mubr.f32.mxu0 0.0
  %663 = vmatmul.mubr.f32.gmra.mrb[0].mxu0 %v281
  %v664 = vpop.f32.mrb[0].mxu0
  %v665 = vadd.f32 %v88, %v664
  %v666 = vpop.f32.mrb[0].mxu0
  %667 = vdwg.mxu0
  %v668 = vld [vmem:[%s3] sm:$0xff]
  %v669 = vld [vmem:[%s3 + $0x8] sm:$0xff]
  %v670 = vld [vmem:[%s3 + $0x10] sm:$0xff]
  %v671 = vld [vmem:[%s3 + $0x18] sm:$0xff]
  %v672 = vld [vmem:[%s3 + $0x20] sm:$0xff]
  %v673 = vld [vmem:[%s3 + $0x28] sm:$0xff]
  %v674 = vld [vmem:[%s3 + $0x30] sm:$0xff]
  %v675 = vld [vmem:[%s3 + $0x38] sm:$0xff]
  %v676 = vld [vmem:[%s3 + $0x40] sm:$0xff]
  %v677 = vld [vmem:[%s3 + $0x48] sm:$0xff]
  %v678 = vld [vmem:[%s3 + $0x50] sm:$0xff]
  %v679 = vld [vmem:[%s3 + $0x58] sm:$0xff]
  %v680 = vld [vmem:[%s3 + $0x60] sm:$0xff]
  %v681 = vld [vmem:[%s3 + $0x68] sm:$0xff]
  %v682 = vld [vmem:[%s3 + $0x70] sm:$0xff]
  %v683 = vld [vmem:[%s3 + $0x78] sm:$0xff]
  %v684 = vld [vmem:[%s3 + $0x80] sm:$0xff]
  %v685 = vld [vmem:[%s3 + $0x88] sm:$0xff]
  %v686 = vld [vmem:[%s3 + $0x90] sm:$0xff]
  %v687 = vld [vmem:[%s3 + $0x98] sm:$0xff]
  %v688 = vld [vmem:[%s3 + $0xa0] sm:$0xff]
  %v689 = vld [vmem:[%s3 + $0xa8] sm:$0xff]
  %v690 = vld [vmem:[%s3 + $0xb0] sm:$0xff]
  %v691 = vld [vmem:[%s3 + $0xb8] sm:$0xff]
  %v692 = vld [vmem:[%s3 + $0xc0] sm:$0xff]
  %v693 = vld [vmem:[%s3 + $0xc8] sm:$0xff]
  %v694 = vld [vmem:[%s3 + $0xd0] sm:$0xff]
  %v695 = vld [vmem:[%s3 + $0xd8] sm:$0xff]
  %v696 = vld [vmem:[%s3 + $0xe0] sm:$0xff]
  %v697 = vld [vmem:[%s3 + $0xe8] sm:$0xff]
  %v698 = vld [vmem:[%s3 + $0xf0] sm:$0xff]
  %v699 = vld [vmem:[%s3 + $0xf8] sm:$0xff]
  %v700 = vld [vmem:[%s3 + $0x100] sm:$0xff]
  %v701 = vld [vmem:[%s3 + $0x108] sm:$0xff]
  %v702 = vld [vmem:[%s3 + $0x110] sm:$0xff]
  %v703 = vld [vmem:[%s3 + $0x118] sm:$0xff]
  %v704 = vld [vmem:[%s3 + $0x120] sm:$0xff]
  %v705 = vld [vmem:[%s3 + $0x128] sm:$0xff]
  %v706 = vld [vmem:[%s3 + $0x130] sm:$0xff]
  %v707 = vld [vmem:[%s3 + $0x138] sm:$0xff]
  %v708 = vld [vmem:[%s3 + $0x140] sm:$0xff]
  %v709 = vld [vmem:[%s3 + $0x148] sm:$0xff]
  %v710 = vld [vmem:[%s3 + $0x150] sm:$0xff]
  %v711 = vld [vmem:[%s3 + $0x158] sm:$0xff]
  %v712 = vld [vmem:[%s3 + $0x160] sm:$0xff]
  %v713 = vld [vmem:[%s3 + $0x168] sm:$0xff]
  %v714 = vld [vmem:[%s3 + $0x170] sm:$0xff]
  %v715 = vld [vmem:[%s3 + $0x178] sm:$0xff]
  %v716 = vld [vmem:[%s3 + $0x180] sm:$0xff]
  %v717 = vld [vmem:[%s3 + $0x188] sm:$0xff]
  %v718 = vld [vmem:[%s3 + $0x190] sm:$0xff]
  %v719 = vld [vmem:[%s3 + $0x198] sm:$0xff]
  %v720 = vld [vmem:[%s3 + $0x1a0] sm:$0xff]
  %v721 = vld [vmem:[%s3 + $0x1a8] sm:$0xff]
  %v722 = vld [vmem:[%s3 + $0x1b0] sm:$0xff]
  %v723 = vld [vmem:[%s3 + $0x1b8] sm:$0xff]
  %v724 = vld [vmem:[%s3 + $0x1c0] sm:$0xff]
  %v725 = vld [vmem:[%s3 + $0x1c8] sm:$0xff]
  %v726 = vld [vmem:[%s3 + $0x1d0] sm:$0xff]
  %v727 = vld [vmem:[%s3 + $0x1d8] sm:$0xff]
  %v728 = vld [vmem:[%s3 + $0x1e0] sm:$0xff]
  %v729 = vld [vmem:[%s3 + $0x1e8] sm:$0xff]
  %v730 = vld [vmem:[%s3 + $0x1f0] sm:$0xff]
  %v731 = vld [vmem:[%s3 + $0x1f8] sm:$0xff]
  %796 = vrot.lane.b32.xlu0 %v668, 112
  %v797 = vpop.permute.xlu0 %796
  %798 = vrot.lane.b32.xlu0 %v669, 112
  %v799 = vpop.permute.xlu0 %798
  %800 = vrot.lane.b32.xlu0 %v670, 112
  %v801 = vpop.permute.xlu0 %800
  %802 = vrot.lane.b32.xlu0 %v671, 112
  %v803 = vpop.permute.xlu0 %802
  %804 = vrot.lane.b32.xlu0 %v672, 112
  %v805 = vpop.permute.xlu0 %804
  %806 = vrot.lane.b32.xlu0 %v673, 112
  %v807 = vpop.permute.xlu0 %806
  %808 = vrot.lane.b32.xlu0 %v674, 112
  %v809 = vpop.permute.xlu0 %808
  %810 = vrot.lane.b32.xlu0 %v675, 112
  %v811 = vpop.permute.xlu0 %810
  %812 = vrot.lane.b32.xlu0 %v676, 112
  %v813 = vpop.permute.xlu0 %812
  %814 = vrot.lane.b32.xlu0 %v677, 112
  %v815 = vpop.permute.xlu0 %814
  %816 = vrot.lane.b32.xlu0 %v678, 112
  %v817 = vpop.permute.xlu0 %816
  %818 = vrot.lane.b32.xlu0 %v679, 112
  %v819 = vpop.permute.xlu0 %818
  %820 = vrot.lane.b32.xlu0 %v680, 112
  %v821 = vpop.permute.xlu0 %820
  %822 = vrot.lane.b32.xlu0 %v681, 112
  %v823 = vpop.permute.xlu0 %822
  %824 = vrot.lane.b32.xlu0 %v682, 112
  %v825 = vpop.permute.xlu0 %824
  %826 = vrot.lane.b32.xlu0 %v683, 112
  %v827 = vpop.permute.xlu0 %826
  %828 = vrot.lane.b32.xlu0 %v684, 112
  %v829 = vpop.permute.xlu0 %828
  %830 = vrot.lane.b32.xlu0 %v685, 112
  %v831 = vpop.permute.xlu0 %830
  %832 = vrot.lane.b32.xlu0 %v686, 112
  %v833 = vpop.permute.xlu0 %832
  %834 = vrot.lane.b32.xlu0 %v687, 112
  %v835 = vpop.permute.xlu0 %834
  %836 = vrot.lane.b32.xlu0 %v688, 112
  %v837 = vpop.permute.xlu0 %836
  %838 = vrot.lane.b32.xlu0 %v689, 112
  %v839 = vpop.permute.xlu0 %838
  %840 = vrot.lane.b32.xlu0 %v690, 112
  %v841 = vpop.permute.xlu0 %840
  %842 = vrot.lane.b32.xlu0 %v691, 112
  %v843 = vpop.permute.xlu0 %842
  %844 = vrot.lane.b32.xlu0 %v692, 112
  %v845 = vpop.permute.xlu0 %844
  %846 = vrot.lane.b32.xlu0 %v693, 112
  %v847 = vpop.permute.xlu0 %846
  %848 = vrot.lane.b32.xlu0 %v694, 112
  %v849 = vpop.permute.xlu0 %848
  %850 = vrot.lane.b32.xlu0 %v695, 112
  %v851 = vpop.permute.xlu0 %850
  %852 = vrot.lane.b32.xlu0 %v696, 112
  %v853 = vpop.permute.xlu0 %852
  %854 = vrot.lane.b32.xlu0 %v697, 112
  %v855 = vpop.permute.xlu0 %854
  %856 = vrot.lane.b32.xlu0 %v698, 112
  %v857 = vpop.permute.xlu0 %856
  %858 = vrot.lane.b32.xlu0 %v699, 112
  %v859 = vpop.permute.xlu0 %858
  %860 = vrot.lane.b32.xlu0 %v700, 112
  %v861 = vpop.permute.xlu0 %860
  %862 = vrot.lane.b32.xlu0 %v701, 112
  %v863 = vpop.permute.xlu0 %862
  %864 = vrot.lane.b32.xlu0 %v702, 112
  %v865 = vpop.permute.xlu0 %864
  %866 = vrot.lane.b32.xlu0 %v703, 112
  %v867 = vpop.permute.xlu0 %866
  %868 = vrot.lane.b32.xlu0 %v704, 112
  %v869 = vpop.permute.xlu0 %868
  %870 = vrot.lane.b32.xlu0 %v705, 112
  %v871 = vpop.permute.xlu0 %870
  %872 = vrot.lane.b32.xlu0 %v706, 112
  %v873 = vpop.permute.xlu0 %872
  %874 = vrot.lane.b32.xlu0 %v707, 112
  %v875 = vpop.permute.xlu0 %874
  %876 = vrot.lane.b32.xlu0 %v708, 112
  %v877 = vpop.permute.xlu0 %876
  %878 = vrot.lane.b32.xlu0 %v709, 112
  %v879 = vpop.permute.xlu0 %878
  %880 = vrot.lane.b32.xlu0 %v710, 112
  %v881 = vpop.permute.xlu0 %880
  %882 = vrot.lane.b32.xlu0 %v711, 112
  %v883 = vpop.permute.xlu0 %882
  %884 = vrot.lane.b32.xlu0 %v712, 112
  %v885 = vpop.permute.xlu0 %884
  %886 = vrot.lane.b32.xlu0 %v713, 112
  %v887 = vpop.permute.xlu0 %886
  %888 = vrot.lane.b32.xlu0 %v714, 112
  %v889 = vpop.permute.xlu0 %888
  %890 = vrot.lane.b32.xlu0 %v715, 112
  %v891 = vpop.permute.xlu0 %890
  %892 = vrot.lane.b32.xlu0 %v716, 112
  %v893 = vpop.permute.xlu0 %892
  %894 = vrot.lane.b32.xlu0 %v717, 112
  %v895 = vpop.permute.xlu0 %894
  %896 = vrot.lane.b32.xlu0 %v718, 112
  %v897 = vpop.permute.xlu0 %896
  %898 = vrot.lane.b32.xlu0 %v719, 112
  %v899 = vpop.permute.xlu0 %898
  %900 = vrot.lane.b32.xlu0 %v720, 112
  %v901 = vpop.permute.xlu0 %900
  %902 = vrot.lane.b32.xlu0 %v721, 112
  %v903 = vpop.permute.xlu0 %902
  %904 = vrot.lane.b32.xlu0 %v722, 112
  %v905 = vpop.permute.xlu0 %904
  %906 = vrot.lane.b32.xlu0 %v723, 112
  %v907 = vpop.permute.xlu0 %906
  %908 = vrot.lane.b32.xlu0 %v724, 112
  %v909 = vpop.permute.xlu0 %908
  %910 = vrot.lane.b32.xlu0 %v725, 112
  %v911 = vpop.permute.xlu0 %910
  %912 = vrot.lane.b32.xlu0 %v726, 112
  %v913 = vpop.permute.xlu0 %912
  %914 = vrot.lane.b32.xlu0 %v727, 112
  %v915 = vpop.permute.xlu0 %914
  %916 = vrot.lane.b32.xlu0 %v728, 112
  %v917 = vpop.permute.xlu0 %916
  %918 = vrot.lane.b32.xlu0 %v729, 112
  %v919 = vpop.permute.xlu0 %918
  %920 = vrot.lane.b32.xlu0 %v730, 112
  %v921 = vpop.permute.xlu0 %920
  %922 = vrot.lane.b32.xlu0 %v731, 112
  %v923 = vpop.permute.xlu0 %922
  %v988 = vmax.f32 %v668, %v797
  %v989 = vmax.f32 %v669, %v799
  %v990 = vmax.f32 %v670, %v801
  %v991 = vmax.f32 %v671, %v803
  %v992 = vmax.f32 %v672, %v805
  %v993 = vmax.f32 %v673, %v807
  %v994 = vmax.f32 %v674, %v809
  %v995 = vmax.f32 %v675, %v811
  %v996 = vmax.f32 %v676, %v813
  %v997 = vmax.f32 %v677, %v815
  %v998 = vmax.f32 %v678, %v817
  %v999 = vmax.f32 %v679, %v819
  %v1000 = vmax.f32 %v680, %v821
  %v1001 = vmax.f32 %v681, %v823
  %v1002 = vmax.f32 %v682, %v825
  %v1003 = vmax.f32 %v683, %v827
  %v1004 = vmax.f32 %v684, %v829
  %v1005 = vmax.f32 %v685, %v831
  %v1006 = vmax.f32 %v686, %v833
  %v1007 = vmax.f32 %v687, %v835
  %v1008 = vmax.f32 %v688, %v837
  %v1009 = vmax.f32 %v689, %v839
  %v1010 = vmax.f32 %v690, %v841
  %v1011 = vmax.f32 %v691, %v843
  %v1012 = vmax.f32 %v692, %v845
  %v1013 = vmax.f32 %v693, %v847
  %v1014 = vmax.f32 %v694, %v849
  %v1015 = vmax.f32 %v695, %v851
  %v1016 = vmax.f32 %v696, %v853
  %v1017 = vmax.f32 %v697, %v855
  %v1018 = vmax.f32 %v698, %v857
  %v1019 = vmax.f32 %v699, %v859
  %v1020 = vmax.f32 %v700, %v861
  %v1021 = vmax.f32 %v701, %v863
  %v1022 = vmax.f32 %v702, %v865
  %v1023 = vmax.f32 %v703, %v867
  %v1024 = vmax.f32 %v704, %v869
  %v1025 = vmax.f32 %v705, %v871
  %v1026 = vmax.f32 %v706, %v873
  %v1027 = vmax.f32 %v707, %v875
  %v1028 = vmax.f32 %v708, %v877
  %v1029 = vmax.f32 %v709, %v879
  %v1030 = vmax.f32 %v710, %v881
  %v1031 = vmax.f32 %v711, %v883
  %v1032 = vmax.f32 %v712, %v885
  %v1033 = vmax.f32 %v713, %v887
  %v1034 = vmax.f32 %v714, %v889
  %v1035 = vmax.f32 %v715, %v891
  %v1036 = vmax.f32 %v716, %v893
  %v1037 = vmax.f32 %v717, %v895
  %v1038 = vmax.f32 %v718, %v897
  %v1039 = vmax.f32 %v719, %v899
  %v1040 = vmax.f32 %v720, %v901
  %v1041 = vmax.f32 %v721, %v903
  %v1042 = vmax.f32 %v722, %v905
  %v1043 = vmax.f32 %v723, %v907
  %v1044 = vmax.f32 %v724, %v909
  %v1045 = vmax.f32 %v725, %v911
  %v1046 = vmax.f32 %v726, %v913
  %v1047 = vmax.f32 %v727, %v915
  %v1048 = vmax.f32 %v728, %v917
  %v1049 = vmax.f32 %v729, %v919
  %v1050 = vmax.f32 %v730, %v921
  %v1051 = vmax.f32 %v731, %v923
  %1116 = vrot.lane.b32.xlu0 %v988, 96
  %v1117 = vpop.permute.xlu0 %1116
  %1118 = vrot.lane.b32.xlu0 %v989, 96
  %v1119 = vpop.permute.xlu0 %1118
  %1120 = vrot.lane.b32.xlu0 %v990, 96
  %v1121 = vpop.permute.xlu0 %1120
  %1122 = vrot.lane.b32.xlu0 %v991, 96
  %v1123 = vpop.permute.xlu0 %1122
  %1124 = vrot.lane.b32.xlu0 %v992, 96
  %v1125 = vpop.permute.xlu0 %1124
  %1126 = vrot.lane.b32.xlu0 %v993, 96
  %v1127 = vpop.permute.xlu0 %1126
  %1128 = vrot.lane.b32.xlu0 %v994, 96
  %v1129 = vpop.permute.xlu0 %1128
  %1130 = vrot.lane.b32.xlu0 %v995, 96
  %v1131 = vpop.permute.xlu0 %1130
  %1132 = vrot.lane.b32.xlu0 %v996, 96
  %v1133 = vpop.permute.xlu0 %1132
  %1134 = vrot.lane.b32.xlu0 %v997, 96
  %v1135 = vpop.permute.xlu0 %1134
  %1136 = vrot.lane.b32.xlu0 %v998, 96
  %v1137 = vpop.permute.xlu0 %1136
  %1138 = vrot.lane.b32.xlu0 %v999, 96
  %v1139 = vpop.permute.xlu0 %1138
  %1140 = vrot.lane.b32.xlu0 %v1000, 96
  %v1141 = vpop.permute.xlu0 %1140
  %1142 = vrot.lane.b32.xlu0 %v1001, 96
  %v1143 = vpop.permute.xlu0 %1142
  %1144 = vrot.lane.b32.xlu0 %v1002, 96
  %v1145 = vpop.permute.xlu0 %1144
  %1146 = vrot.lane.b32.xlu0 %v1003, 96
  %v1147 = vpop.permute.xlu0 %1146
  %1148 = vrot.lane.b32.xlu0 %v1004, 96
  %v1149 = vpop.permute.xlu0 %1148
  %1150 = vrot.lane.b32.xlu0 %v1005, 96
  %v1151 = vpop.permute.xlu0 %1150
  %1152 = vrot.lane.b32.xlu0 %v1006, 96
  %v1153 = vpop.permute.xlu0 %1152
  %1154 = vrot.lane.b32.xlu0 %v1007, 96
  %v1155 = vpop.permute.xlu0 %1154
  %1156 = vrot.lane.b32.xlu0 %v1008, 96
  %v1157 = vpop.permute.xlu0 %1156
  %1158 = vrot.lane.b32.xlu0 %v1009, 96
  %v1159 = vpop.permute.xlu0 %1158
  %1160 = vrot.lane.b32.xlu0 %v1010, 96
  %v1161 = vpop.permute.xlu0 %1160
  %1162 = vrot.lane.b32.xlu0 %v1011, 96
  %v1163 = vpop.permute.xlu0 %1162
  %1164 = vrot.lane.b32.xlu0 %v1012, 96
  %v1165 = vpop.permute.xlu0 %1164
  %1166 = vrot.lane.b32.xlu0 %v1013, 96
  %v1167 = vpop.permute.xlu0 %1166
  %1168 = vrot.lane.b32.xlu0 %v1014, 96
  %v1169 = vpop.permute.xlu0 %1168
  %1170 = vrot.lane.b32.xlu0 %v1015, 96
  %v1171 = vpop.permute.xlu0 %1170
  %1172 = vrot.lane.b32.xlu0 %v1016, 96
  %v1173 = vpop.permute.xlu0 %1172
  %1174 = vrot.lane.b32.xlu0 %v1017, 96
  %v1175 = vpop.permute.xlu0 %1174
  %1176 = vrot.lane.b32.xlu0 %v1018, 96
  %v1177 = vpop.permute.xlu0 %1176
  %1178 = vrot.lane.b32.xlu0 %v1019, 96
  %v1179 = vpop.permute.xlu0 %1178
  %1180 = vrot.lane.b32.xlu0 %v1020, 96
  %v1181 = vpop.permute.xlu0 %1180
  %1182 = vrot.lane.b32.xlu0 %v1021, 96
  %v1183 = vpop.permute.xlu0 %1182
  %1184 = vrot.lane.b32.xlu0 %v1022, 96
  %v1185 = vpop.permute.xlu0 %1184
  %1186 = vrot.lane.b32.xlu0 %v1023, 96
  %v1187 = vpop.permute.xlu0 %1186
  %1188 = vrot.lane.b32.xlu0 %v1024, 96
  %v1189 = vpop.permute.xlu0 %1188
  %1190 = vrot.lane.b32.xlu0 %v1025, 96
  %v1191 = vpop.permute.xlu0 %1190
  %1192 = vrot.lane.b32.xlu0 %v1026, 96
  %v1193 = vpop.permute.xlu0 %1192
  %1194 = vrot.lane.b32.xlu0 %v1027, 96
  %v1195 = vpop.permute.xlu0 %1194
  %1196 = vrot.lane.b32.xlu0 %v1028, 96
  %v1197 = vpop.permute.xlu0 %1196
  %1198 = vrot.lane.b32.xlu0 %v1029, 96
  %v1199 = vpop.permute.xlu0 %1198
  %1200 = vrot.lane.b32.xlu0 %v1030, 96
  %v1201 = vpop.permute.xlu0 %1200
  %1202 = vrot.lane.b32.xlu0 %v1031, 96
  %v1203 = vpop.permute.xlu0 %1202
  %1204 = vrot.lane.b32.xlu0 %v1032, 96
  %v1205 = vpop.permute.xlu0 %1204
  %1206 = vrot.lane.b32.xlu0 %v1033, 96
  %v1207 = vpop.permute.xlu0 %1206
  %1208 = vrot.lane.b32.xlu0 %v1034, 96
  %v1209 = vpop.permute.xlu0 %1208
  %1210 = vrot.lane.b32.xlu0 %v1035, 96
  %v1211 = vpop.permute.xlu0 %1210
  %1212 = vrot.lane.b32.xlu0 %v1036, 96
  %v1213 = vpop.permute.xlu0 %1212
  %1214 = vrot.lane.b32.xlu0 %v1037, 96
  %v1215 = vpop.permute.xlu0 %1214
  %1216 = vrot.lane.b32.xlu0 %v1038, 96
  %v1217 = vpop.permute.xlu0 %1216
  %1218 = vrot.lane.b32.xlu0 %v1039, 96
  %v1219 = vpop.permute.xlu0 %1218
  %1220 = vrot.lane.b32.xlu0 %v1040, 96
  %v1221 = vpop.permute.xlu0 %1220
  %1222 = vrot.lane.b32.xlu0 %v1041, 96
  %v1223 = vpop.permute.xlu0 %1222
  %1224 = vrot.lane.b32.xlu0 %v1042, 96
  %v1225 = vpop.permute.xlu0 %1224
  %1226 = vrot.lane.b32.xlu0 %v1043, 96
  %v1227 = vpop.permute.xlu0 %1226
  %1228 = vrot.lane.b32.xlu0 %v1044, 96
  %v1229 = vpop.permute.xlu0 %1228
  %1230 = vrot.lane.b32.xlu0 %v1045, 96
  %v1231 = vpop.permute.xlu0 %1230
  %1232 = vrot.lane.b32.xlu0 %v1046, 96
  %v1233 = vpop.permute.xlu0 %1232
  %1234 = vrot.lane.b32.xlu0 %v1047, 96
  %v1235 = vpop.permute.xlu0 %1234
  %1236 = vrot.lane.b32.xlu0 %v1048, 96
  %v1237 = vpop.permute.xlu0 %1236
  %1238 = vrot.lane.b32.xlu0 %v1049, 96
  %v1239 = vpop.permute.xlu0 %1238
  %1240 = vrot.lane.b32.xlu0 %v1050, 96
  %v1241 = vpop.permute.xlu0 %1240
  %1242 = vrot.lane.b32.xlu0 %v1051, 96
  %v1243 = vpop.permute.xlu0 %1242
  %v1308 = vmax.f32 %v988, %v1117
  %v1309 = vmax.f32 %v989, %v1119
  %v1310 = vmax.f32 %v990, %v1121
  %v1311 = vmax.f32 %v991, %v1123
  %v1312 = vmax.f32 %v992, %v1125
  %v1313 = vmax.f32 %v993, %v1127
  %v1314 = vmax.f32 %v994, %v1129
  %v1315 = vmax.f32 %v995, %v1131
  %v1316 = vmax.f32 %v996, %v1133
  %v1317 = vmax.f32 %v997, %v1135
  %v1318 = vmax.f32 %v998, %v1137
  %v1319 = vmax.f32 %v999, %v1139
  %v1320 = vmax.f32 %v1000, %v1141
  %v1321 = vmax.f32 %v1001, %v1143
  %v1322 = vmax.f32 %v1002, %v1145
  %v1323 = vmax.f32 %v1003, %v1147
  %v1324 = vmax.f32 %v1004, %v1149
  %v1325 = vmax.f32 %v1005, %v1151
  %v1326 = vmax.f32 %v1006, %v1153
  %v1327 = vmax.f32 %v1007, %v1155
  %v1328 = vmax.f32 %v1008, %v1157
  %v1329 = vmax.f32 %v1009, %v1159
  %v1330 = vmax.f32 %v1010, %v1161
  %v1331 = vmax.f32 %v1011, %v1163
  %v1332 = vmax.f32 %v1012, %v1165
  %v1333 = vmax.f32 %v1013, %v1167
  %v1334 = vmax.f32 %v1014, %v1169
  %v1335 = vmax.f32 %v1015, %v1171
  %v1336 = vmax.f32 %v1016, %v1173
  %v1337 = vmax.f32 %v1017, %v1175
  %v1338 = vmax.f32 %v1018, %v1177
  %v1339 = vmax.f32 %v1019, %v1179
  %v1340 = vmax.f32 %v1020, %v1181
  %v1341 = vmax.f32 %v1021, %v1183
  %v1342 = vmax.f32 %v1022, %v1185
  %v1343 = vmax.f32 %v1023, %v1187
  %v1344 = vmax.f32 %v1024, %v1189
  %v1345 = vmax.f32 %v1025, %v1191
  %v1346 = vmax.f32 %v1026, %v1193
  %v1347 = vmax.f32 %v1027, %v1195
  %v1348 = vmax.f32 %v1028, %v1197
  %v1349 = vmax.f32 %v1029, %v1199
  %v1350 = vmax.f32 %v1030, %v1201
  %v1351 = vmax.f32 %v1031, %v1203
  %v1352 = vmax.f32 %v1032, %v1205
  %v1353 = vmax.f32 %v1033, %v1207
  %v1354 = vmax.f32 %v1034, %v1209
  %v1355 = vmax.f32 %v1035, %v1211
  %v1356 = vmax.f32 %v1036, %v1213
  %v1357 = vmax.f32 %v1037, %v1215
  %v1358 = vmax.f32 %v1038, %v1217
  %v1359 = vmax.f32 %v1039, %v1219
  %v1360 = vmax.f32 %v1040, %v1221
  %v1361 = vmax.f32 %v1041, %v1223
  %v1362 = vmax.f32 %v1042, %v1225
  %v1363 = vmax.f32 %v1043, %v1227
  %v1364 = vmax.f32 %v1044, %v1229
  %v1365 = vmax.f32 %v1045, %v1231
  %v1366 = vmax.f32 %v1046, %v1233
  %v1367 = vmax.f32 %v1047, %v1235
  %v1368 = vmax.f32 %v1048, %v1237
  %v1369 = vmax.f32 %v1049, %v1239
  %v1370 = vmax.f32 %v1050, %v1241
  %v1371 = vmax.f32 %v1051, %v1243
  %1436 = vrot.lane.b32.xlu0 %v1308, 16
  %v1437 = vpop.permute.xlu0 %1436
  %1438 = vrot.lane.b32.xlu0 %v1309, 16
  %v1439 = vpop.permute.xlu0 %1438
  %1440 = vrot.lane.b32.xlu0 %v1310, 16
  %v1441 = vpop.permute.xlu0 %1440
  %1442 = vrot.lane.b32.xlu0 %v1311, 16
  %v1443 = vpop.permute.xlu0 %1442
  %1444 = vrot.lane.b32.xlu0 %v1312, 16
  %v1445 = vpop.permute.xlu0 %1444
  %1446 = vrot.lane.b32.xlu0 %v1313, 16
  %v1447 = vpop.permute.xlu0 %1446
  %1448 = vrot.lane.b32.xlu0 %v1314, 16
  %v1449 = vpop.permute.xlu0 %1448
  %1450 = vrot.lane.b32.xlu0 %v1315, 16
  %v1451 = vpop.permute.xlu0 %1450
  %1452 = vrot.lane.b32.xlu0 %v1316, 16
  %v1453 = vpop.permute.xlu0 %1452
  %1454 = vrot.lane.b32.xlu0 %v1317, 16
  %v1455 = vpop.permute.xlu0 %1454
  %1456 = vrot.lane.b32.xlu0 %v1318, 16
  %v1457 = vpop.permute.xlu0 %1456
  %1458 = vrot.lane.b32.xlu0 %v1319, 16
  %v1459 = vpop.permute.xlu0 %1458
  %1460 = vrot.lane.b32.xlu0 %v1320, 16
  %v1461 = vpop.permute.xlu0 %1460
  %1462 = vrot.lane.b32.xlu0 %v1321, 16
  %v1463 = vpop.permute.xlu0 %1462
  %1464 = vrot.lane.b32.xlu0 %v1322, 16
  %v1465 = vpop.permute.xlu0 %1464
  %1466 = vrot.lane.b32.xlu0 %v1323, 16
  %v1467 = vpop.permute.xlu0 %1466
  %1468 = vrot.lane.b32.xlu0 %v1324, 16
  %v1469 = vpop.permute.xlu0 %1468
  %1470 = vrot.lane.b32.xlu0 %v1325, 16
  %v1471 = vpop.permute.xlu0 %1470
  %1472 = vrot.lane.b32.xlu0 %v1326, 16
  %v1473 = vpop.permute.xlu0 %1472
  %1474 = vrot.lane.b32.xlu0 %v1327, 16
  %v1475 = vpop.permute.xlu0 %1474
  %1476 = vrot.lane.b32.xlu0 %v1328, 16
  %v1477 = vpop.permute.xlu0 %1476
  %1478 = vrot.lane.b32.xlu0 %v1329, 16
  %v1479 = vpop.permute.xlu0 %1478
  %1480 = vrot.lane.b32.xlu0 %v1330, 16
  %v1481 = vpop.permute.xlu0 %1480
  %1482 = vrot.lane.b32.xlu0 %v1331, 16
  %v1483 = vpop.permute.xlu0 %1482
  %1484 = vrot.lane.b32.xlu0 %v1332, 16
  %v1485 = vpop.permute.xlu0 %1484
  %1486 = vrot.lane.b32.xlu0 %v1333, 16
  %v1487 = vpop.permute.xlu0 %1486
  %1488 = vrot.lane.b32.xlu0 %v1334, 16
  %v1489 = vpop.permute.xlu0 %1488
  %1490 = vrot.lane.b32.xlu0 %v1335, 16
  %v1491 = vpop.permute.xlu0 %1490
  %1492 = vrot.lane.b32.xlu0 %v1336, 16
  %v1493 = vpop.permute.xlu0 %1492
  %1494 = vrot.lane.b32.xlu0 %v1337, 16
  %v1495 = vpop.permute.xlu0 %1494
  %1496 = vrot.lane.b32.xlu0 %v1338, 16
  %v1497 = vpop.permute.xlu0 %1496
  %1498 = vrot.lane.b32.xlu0 %v1339, 16
  %v1499 = vpop.permute.xlu0 %1498
  %1500 = vrot.lane.b32.xlu0 %v1340, 16
  %v1501 = vpop.permute.xlu0 %1500
  %1502 = vrot.lane.b32.xlu0 %v1341, 16
  %v1503 = vpop.permute.xlu0 %1502
  %1504 = vrot.lane.b32.xlu0 %v1342, 16
  %v1505 = vpop.permute.xlu0 %1504
  %1506 = vrot.lane.b32.xlu0 %v1343, 16
  %v1507 = vpop.permute.xlu0 %1506
  %1508 = vrot.lane.b32.xlu0 %v1344, 16
  %v1509 = vpop.permute.xlu0 %1508
  %1510 = vrot.lane.b32.xlu0 %v1345, 16
  %v1511 = vpop.permute.xlu0 %1510
  %1512 = vrot.lane.b32.xlu0 %v1346, 16
  %v1513 = vpop.permute.xlu0 %1512
  %1514 = vrot.lane.b32.xlu0 %v1347, 16
  %v1515 = vpop.permute.xlu0 %1514
  %1516 = vrot.lane.b32.xlu0 %v1348, 16
  %v1517 = vpop.permute.xlu0 %1516
  %1518 = vrot.lane.b32.xlu0 %v1349, 16
  %v1519 = vpop.permute.xlu0 %1518
  %1520 = vrot.lane.b32.xlu0 %v1350, 16
  %v1521 = vpop.permute.xlu0 %1520
  %1522 = vrot.lane.b32.xlu0 %v1351, 16
  %v1523 = vpop.permute.xlu0 %1522
  %1524 = vrot.lane.b32.xlu0 %v1352, 16
  %v1525 = vpop.permute.xlu0 %1524
  %1526 = vrot.lane.b32.xlu0 %v1353, 16
  %v1527 = vpop.permute.xlu0 %1526
  %1528 = vrot.lane.b32.xlu0 %v1354, 16
  %v1529 = vpop.permute.xlu0 %1528
  %1530 = vrot.lane.b32.xlu0 %v1355, 16
  %v1531 = vpop.permute.xlu0 %1530
  %1532 = vrot.lane.b32.xlu0 %v1356, 16
  %v1533 = vpop.permute.xlu0 %1532
  %1534 = vrot.lane.b32.xlu0 %v1357, 16
  %v1535 = vpop.permute.xlu0 %1534
  %1536 = vrot.lane.b32.xlu0 %v1358, 16
  %v1537 = vpop.permute.xlu0 %1536
  %1538 = vrot.lane.b32.xlu0 %v1359, 16
  %v1539 = vpop.permute.xlu0 %1538
  %1540 = vrot.lane.b32.xlu0 %v1360, 16
  %v1541 = vpop.permute.xlu0 %1540
  %1542 = vrot.lane.b32.xlu0 %v1361, 16
  %v1543 = vpop.permute.xlu0 %1542
  %1544 = vrot.lane.b32.xlu0 %v1362, 16
  %v1545 = vpop.permute.xlu0 %1544
  %1546 = vrot.lane.b32.xlu0 %v1363, 16
  %v1547 = vpop.permute.xlu0 %1546
  %1548 = vrot.lane.b32.xlu0 %v1364, 16
  %v1549 = vpop.permute.xlu0 %1548
  %1550 = vrot.lane.b32.xlu0 %v1365, 16
  %v1551 = vpop.permute.xlu0 %1550
  %1552 = vrot.lane.b32.xlu0 %v1366, 16
  %v1553 = vpop.permute.xlu0 %1552
  %1554 = vrot.lane.b32.xlu0 %v1367, 16
  %v1555 = vpop.permute.xlu0 %1554
  %1556 = vrot.lane.b32.xlu0 %v1368, 16
  %v1557 = vpop.permute.xlu0 %1556
  %1558 = vrot.lane.b32.xlu0 %v1369, 16
  %v1559 = vpop.permute.xlu0 %1558
  %1560 = vrot.lane.b32.xlu0 %v1370, 16
  %v1561 = vpop.permute.xlu0 %1560
  %1562 = vrot.lane.b32.xlu0 %v1371, 16
  %v1563 = vpop.permute.xlu0 %1562
  %1628 = vrot.lane.b32.xlu0 %v1308, 32
  %v1629 = vpop.permute.xlu0 %1628
  %1630 = vrot.lane.b32.xlu0 %v1309, 32
  %v1631 = vpop.permute.xlu0 %1630
  %1632 = vrot.lane.b32.xlu0 %v1310, 32
  %v1633 = vpop.permute.xlu0 %1632
  %1634 = vrot.lane.b32.xlu0 %v1311, 32
  %v1635 = vpop.permute.xlu0 %1634
  %1636 = vrot.lane.b32.xlu0 %v1312, 32
  %v1637 = vpop.permute.xlu0 %1636
  %1638 = vrot.lane.b32.xlu0 %v1313, 32
  %v1639 = vpop.permute.xlu0 %1638
  %1640 = vrot.lane.b32.xlu0 %v1314, 32
  %v1641 = vpop.permute.xlu0 %1640
  %1642 = vrot.lane.b32.xlu0 %v1315, 32
  %v1643 = vpop.permute.xlu0 %1642
  %1644 = vrot.lane.b32.xlu0 %v1316, 32
  %v1645 = vpop.permute.xlu0 %1644
  %1646 = vrot.lane.b32.xlu0 %v1317, 32
  %v1647 = vpop.permute.xlu0 %1646
  %1648 = vrot.lane.b32.xlu0 %v1318, 32
  %v1649 = vpop.permute.xlu0 %1648
  %1650 = vrot.lane.b32.xlu0 %v1319, 32
  %v1651 = vpop.permute.xlu0 %1650
  %1652 = vrot.lane.b32.xlu0 %v1320, 32
  %v1653 = vpop.permute.xlu0 %1652
  %1654 = vrot.lane.b32.xlu0 %v1321, 32
  %v1655 = vpop.permute.xlu0 %1654
  %1656 = vrot.lane.b32.xlu0 %v1322, 32
  %v1657 = vpop.permute.xlu0 %1656
  %1658 = vrot.lane.b32.xlu0 %v1323, 32
  %v1659 = vpop.permute.xlu0 %1658
  %1660 = vrot.lane.b32.xlu0 %v1324, 32
  %v1661 = vpop.permute.xlu0 %1660
  %1662 = vrot.lane.b32.xlu0 %v1325, 32
  %v1663 = vpop.permute.xlu0 %1662
  %1664 = vrot.lane.b32.xlu0 %v1326, 32
  %v1665 = vpop.permute.xlu0 %1664
  %1666 = vrot.lane.b32.xlu0 %v1327, 32
  %v1667 = vpop.permute.xlu0 %1666
  %1668 = vrot.lane.b32.xlu0 %v1328, 32
  %v1669 = vpop.permute.xlu0 %1668
  %1670 = vrot.lane.b32.xlu0 %v1329, 32
  %v1671 = vpop.permute.xlu0 %1670
  %1672 = vrot.lane.b32.xlu0 %v1330, 32
  %v1673 = vpop.permute.xlu0 %1672
  %1674 = vrot.lane.b32.xlu0 %v1331, 32
  %v1675 = vpop.permute.xlu0 %1674
  %1676 = vrot.lane.b32.xlu0 %v1332, 32
  %v1677 = vpop.permute.xlu0 %1676
  %1678 = vrot.lane.b32.xlu0 %v1333, 32
  %v1679 = vpop.permute.xlu0 %1678
  %1680 = vrot.lane.b32.xlu0 %v1334, 32
  %v1681 = vpop.permute.xlu0 %1680
  %1682 = vrot.lane.b32.xlu0 %v1335, 32
  %v1683 = vpop.permute.xlu0 %1682
  %1684 = vrot.lane.b32.xlu0 %v1336, 32
  %v1685 = vpop.permute.xlu0 %1684
  %1686 = vrot.lane.b32.xlu0 %v1337, 32
  %v1687 = vpop.permute.xlu0 %1686
  %1688 = vrot.lane.b32.xlu0 %v1338, 32
  %v1689 = vpop.permute.xlu0 %1688
  %1690 = vrot.lane.b32.xlu0 %v1339, 32
  %v1691 = vpop.permute.xlu0 %1690
  %1692 = vrot.lane.b32.xlu0 %v1340, 32
  %v1693 = vpop.permute.xlu0 %1692
  %1694 = vrot.lane.b32.xlu0 %v1341, 32
  %v1695 = vpop.permute.xlu0 %1694
  %1696 = vrot.lane.b32.xlu0 %v1342, 32
  %v1697 = vpop.permute.xlu0 %1696
  %1698 = vrot.lane.b32.xlu0 %v1343, 32
  %v1699 = vpop.permute.xlu0 %1698
  %1700 = vrot.lane.b32.xlu0 %v1344, 32
  %v1701 = vpop.permute.xlu0 %1700
  %1702 = vrot.lane.b32.xlu0 %v1345, 32
  %v1703 = vpop.permute.xlu0 %1702
  %1704 = vrot.lane.b32.xlu0 %v1346, 32
  %v1705 = vpop.permute.xlu0 %1704
  %1706 = vrot.lane.b32.xlu0 %v1347, 32
  %v1707 = vpop.permute.xlu0 %1706
  %1708 = vrot.lane.b32.xlu0 %v1348, 32
  %v1709 = vpop.permute.xlu0 %1708
  %1710 = vrot.lane.b32.xlu0 %v1349, 32
  %v1711 = vpop.permute.xlu0 %1710
  %1712 = vrot.lane.b32.xlu0 %v1350, 32
  %v1713 = vpop.permute.xlu0 %1712
  %1714 = vrot.lane.b32.xlu0 %v1351, 32
  %v1715 = vpop.permute.xlu0 %1714
  %1716 = vrot.lane.b32.xlu0 %v1352, 32
  %v1717 = vpop.permute.xlu0 %1716
  %1718 = vrot.lane.b32.xlu0 %v1353, 32
  %v1719 = vpop.permute.xlu0 %1718
  %1720 = vrot.lane.b32.xlu0 %v1354, 32
  %v1721 = vpop.permute.xlu0 %1720
  %1722 = vrot.lane.b32.xlu0 %v1355, 32
  %v1723 = vpop.permute.xlu0 %1722
  %1724 = vrot.lane.b32.xlu0 %v1356, 32
  %v1725 = vpop.permute.xlu0 %1724
  %1726 = vrot.lane.b32.xlu0 %v1357, 32
  %v1727 = vpop.permute.xlu0 %1726
  %1728 = vrot.lane.b32.xlu0 %v1358, 32
  %v1729 = vpop.permute.xlu0 %1728
  %1730 = vrot.lane.b32.xlu0 %v1359, 32
  %v1731 = vpop.permute.xlu0 %1730
  %1732 = vrot.lane.b32.xlu0 %v1360, 32
  %v1733 = vpop.permute.xlu0 %1732
  %1734 = vrot.lane.b32.xlu0 %v1361, 32
  %v1735 = vpop.permute.xlu0 %1734
  %1736 = vrot.lane.b32.xlu0 %v1362, 32
  %v1737 = vpop.permute.xlu0 %1736
  %1738 = vrot.lane.b32.xlu0 %v1363, 32
  %v1739 = vpop.permute.xlu0 %1738
  %1740 = vrot.lane.b32.xlu0 %v1364, 32
  %v1741 = vpop.permute.xlu0 %1740
  %1742 = vrot.lane.b32.xlu0 %v1365, 32
  %v1743 = vpop.permute.xlu0 %1742
  %1744 = vrot.lane.b32.xlu0 %v1366, 32
  %v1745 = vpop.permute.xlu0 %1744
  %1746 = vrot.lane.b32.xlu0 %v1367, 32
  %v1747 = vpop.permute.xlu0 %1746
  %1748 = vrot.lane.b32.xlu0 %v1368, 32
  %v1749 = vpop.permute.xlu0 %1748
  %1750 = vrot.lane.b32.xlu0 %v1369, 32
  %v1751 = vpop.permute.xlu0 %1750
  %1752 = vrot.lane.b32.xlu0 %v1370, 32
  %v1753 = vpop.permute.xlu0 %1752
  %1754 = vrot.lane.b32.xlu0 %v1371, 32
  %v1755 = vpop.permute.xlu0 %1754
  %1820 = vrot.lane.b32.xlu0 %v1308, 48
  %v1821 = vpop.permute.xlu0 %1820
  %1822 = vrot.lane.b32.xlu0 %v1309, 48
  %v1823 = vpop.permute.xlu0 %1822
  %1824 = vrot.lane.b32.xlu0 %v1310, 48
  %v1825 = vpop.permute.xlu0 %1824
  %1826 = vrot.lane.b32.xlu0 %v1311, 48
  %v1827 = vpop.permute.xlu0 %1826
  %1828 = vrot.lane.b32.xlu0 %v1312, 48
  %v1829 = vpop.permute.xlu0 %1828
  %1830 = vrot.lane.b32.xlu0 %v1313, 48
  %v1831 = vpop.permute.xlu0 %1830
  %1832 = vrot.lane.b32.xlu0 %v1314, 48
  %v1833 = vpop.permute.xlu0 %1832
  %1834 = vrot.lane.b32.xlu0 %v1315, 48
  %v1835 = vpop.permute.xlu0 %1834
  %1836 = vrot.lane.b32.xlu0 %v1316, 48
  %v1837 = vpop.permute.xlu0 %1836
  %1838 = vrot.lane.b32.xlu0 %v1317, 48
  %v1839 = vpop.permute.xlu0 %1838
  %1840 = vrot.lane.b32.xlu0 %v1318, 48
  %v1841 = vpop.permute.xlu0 %1840
  %1842 = vrot.lane.b32.xlu0 %v1319, 48
  %v1843 = vpop.permute.xlu0 %1842
  %1844 = vrot.lane.b32.xlu0 %v1320, 48
  %v1845 = vpop.permute.xlu0 %1844
  %1846 = vrot.lane.b32.xlu0 %v1321, 48
  %v1847 = vpop.permute.xlu0 %1846
  %1848 = vrot.lane.b32.xlu0 %v1322, 48
  %v1849 = vpop.permute.xlu0 %1848
  %1850 = vrot.lane.b32.xlu0 %v1323, 48
  %v1851 = vpop.permute.xlu0 %1850
  %1852 = vrot.lane.b32.xlu0 %v1324, 48
  %v1853 = vpop.permute.xlu0 %1852
  %1854 = vrot.lane.b32.xlu0 %v1325, 48
  %v1855 = vpop.permute.xlu0 %1854
  %1856 = vrot.lane.b32.xlu0 %v1326, 48
  %v1857 = vpop.permute.xlu0 %1856
  %1858 = vrot.lane.b32.xlu0 %v1327, 48
  %v1859 = vpop.permute.xlu0 %1858
  %1860 = vrot.lane.b32.xlu0 %v1328, 48
  %v1861 = vpop.permute.xlu0 %1860
  %1862 = vrot.lane.b32.xlu0 %v1329, 48
  %v1863 = vpop.permute.xlu0 %1862
  %1864 = vrot.lane.b32.xlu0 %v1330, 48
  %v1865 = vpop.permute.xlu0 %1864
  %1866 = vrot.lane.b32.xlu0 %v1331, 48
  %v1867 = vpop.permute.xlu0 %1866
  %1868 = vrot.lane.b32.xlu0 %v1332, 48
  %v1869 = vpop.permute.xlu0 %1868
  %1870 = vrot.lane.b32.xlu0 %v1333, 48
  %v1871 = vpop.permute.xlu0 %1870
  %1872 = vrot.lane.b32.xlu0 %v1334, 48
  %v1873 = vpop.permute.xlu0 %1872
  %1874 = vrot.lane.b32.xlu0 %v1335, 48
  %v1875 = vpop.permute.xlu0 %1874
  %1876 = vrot.lane.b32.xlu0 %v1336, 48
  %v1877 = vpop.permute.xlu0 %1876
  %1878 = vrot.lane.b32.xlu0 %v1337, 48
  %v1879 = vpop.permute.xlu0 %1878
  %1880 = vrot.lane.b32.xlu0 %v1338, 48
  %v1881 = vpop.permute.xlu0 %1880
  %1882 = vrot.lane.b32.xlu0 %v1339, 48
  %v1883 = vpop.permute.xlu0 %1882
  %1884 = vrot.lane.b32.xlu0 %v1340, 48
  %v1885 = vpop.permute.xlu0 %1884
  %1886 = vrot.lane.b32.xlu0 %v1341, 48
  %v1887 = vpop.permute.xlu0 %1886
  %1888 = vrot.lane.b32.xlu0 %v1342, 48
  %v1889 = vpop.permute.xlu0 %1888
  %1890 = vrot.lane.b32.xlu0 %v1343, 48
  %v1891 = vpop.permute.xlu0 %1890
  %1892 = vrot.lane.b32.xlu0 %v1344, 48
  %v1893 = vpop.permute.xlu0 %1892
  %1894 = vrot.lane.b32.xlu0 %v1345, 48
  %v1895 = vpop.permute.xlu0 %1894
  %1896 = vrot.lane.b32.xlu0 %v1346, 48
  %v1897 = vpop.permute.xlu0 %1896
  %1898 = vrot.lane.b32.xlu0 %v1347, 48
  %v1899 = vpop.permute.xlu0 %1898
  %1900 = vrot.lane.b32.xlu0 %v1348, 48
  %v1901 = vpop.permute.xlu0 %1900
  %1902 = vrot.lane.b32.xlu0 %v1349, 48
  %v1903 = vpop.permute.xlu0 %1902
  %1904 = vrot.lane.b32.xlu0 %v1350, 48
  %v1905 = vpop.permute.xlu0 %1904
  %1906 = vrot.lane.b32.xlu0 %v1351, 48
  %v1907 = vpop.permute.xlu0 %1906
  %1908 = vrot.lane.b32.xlu0 %v1352, 48
  %v1909 = vpop.permute.xlu0 %1908
  %1910 = vrot.lane.b32.xlu0 %v1353, 48
  %v1911 = vpop.permute.xlu0 %1910
  %1912 = vrot.lane.b32.xlu0 %v1354, 48
  %v1913 = vpop.permute.xlu0 %1912
  %1914 = vrot.lane.b32.xlu0 %v1355, 48
  %v1915 = vpop.permute.xlu0 %1914
  %1916 = vrot.lane.b32.xlu0 %v1356, 48
  %v1917 = vpop.permute.xlu0 %1916
  %1918 = vrot.lane.b32.xlu0 %v1357, 48
  %v1919 = vpop.permute.xlu0 %1918
  %1920 = vrot.lane.b32.xlu0 %v1358, 48
  %v1921 = vpop.permute.xlu0 %1920
  %1922 = vrot.lane.b32.xlu0 %v1359, 48
  %v1923 = vpop.permute.xlu0 %1922
  %1924 = vrot.lane.b32.xlu0 %v1360, 48
  %v1925 = vpop.permute.xlu0 %1924
  %1926 = vrot.lane.b32.xlu0 %v1361, 48
  %v1927 = vpop.permute.xlu0 %1926
  %1928 = vrot.lane.b32.xlu0 %v1362, 48
  %v1929 = vpop.permute.xlu0 %1928
  %1930 = vrot.lane.b32.xlu0 %v1363, 48
  %v1931 = vpop.permute.xlu0 %1930
  %1932 = vrot.lane.b32.xlu0 %v1364, 48
  %v1933 = vpop.permute.xlu0 %1932
  %1934 = vrot.lane.b32.xlu0 %v1365, 48
  %v1935 = vpop.permute.xlu0 %1934
  %1936 = vrot.lane.b32.xlu0 %v1366, 48
  %v1937 = vpop.permute.xlu0 %1936
  %1938 = vrot.lane.b32.xlu0 %v1367, 48
  %v1939 = vpop.permute.xlu0 %1938
  %1940 = vrot.lane.b32.xlu0 %v1368, 48
  %v1941 = vpop.permute.xlu0 %1940
  %1942 = vrot.lane.b32.xlu0 %v1369, 48
  %v1943 = vpop.permute.xlu0 %1942
  %1944 = vrot.lane.b32.xlu0 %v1370, 48
  %v1945 = vpop.permute.xlu0 %1944
  %1946 = vrot.lane.b32.xlu0 %v1371, 48
  %v1947 = vpop.permute.xlu0 %1946
  %v2012 = vsel %vm90, %v1308, %v1437
  %v2013 = vsel %vm90, %v1309, %v1439
  %v2014 = vsel %vm90, %v1310, %v1441
  %v2015 = vsel %vm90, %v1311, %v1443
  %v2016 = vsel %vm90, %v1312, %v1445
  %v2017 = vsel %vm90, %v1313, %v1447
  %v2018 = vsel %vm90, %v1314, %v1449
  %v2019 = vsel %vm90, %v1315, %v1451
  %v2020 = vsel %vm90, %v1316, %v1453
  %v2021 = vsel %vm90, %v1317, %v1455
  %v2022 = vsel %vm90, %v1318, %v1457
  %v2023 = vsel %vm90, %v1319, %v1459
  %v2024 = vsel %vm90, %v1320, %v1461
  %v2025 = vsel %vm90, %v1321, %v1463
  %v2026 = vsel %vm90, %v1322, %v1465
  %v2027 = vsel %vm90, %v1323, %v1467
  %v2028 = vsel %vm90, %v1324, %v1469
  %v2029 = vsel %vm90, %v1325, %v1471
  %v2030 = vsel %vm90, %v1326, %v1473
  %v2031 = vsel %vm90, %v1327, %v1475
  %v2032 = vsel %vm90, %v1328, %v1477
  %v2033 = vsel %vm90, %v1329, %v1479
  %v2034 = vsel %vm90, %v1330, %v1481
  %v2035 = vsel %vm90, %v1331, %v1483
  %v2036 = vsel %vm90, %v1332, %v1485
  %v2037 = vsel %vm90, %v1333, %v1487
  %v2038 = vsel %vm90, %v1334, %v1489
  %v2039 = vsel %vm90, %v1335, %v1491
  %v2040 = vsel %vm90, %v1336, %v1493
  %v2041 = vsel %vm90, %v1337, %v1495
  %v2042 = vsel %vm90, %v1338, %v1497
  %v2043 = vsel %vm90, %v1339, %v1499
  %v2044 = vsel %vm90, %v1340, %v1501
  %v2045 = vsel %vm90, %v1341, %v1503
  %v2046 = vsel %vm90, %v1342, %v1505
  %v2047 = vsel %vm90, %v1343, %v1507
  %v2048 = vsel %vm90, %v1344, %v1509
  %v2049 = vsel %vm90, %v1345, %v1511
  %v2050 = vsel %vm90, %v1346, %v1513
  %v2051 = vsel %vm90, %v1347, %v1515
  %v2052 = vsel %vm90, %v1348, %v1517
  %v2053 = vsel %vm90, %v1349, %v1519
  %v2054 = vsel %vm90, %v1350, %v1521
  %v2055 = vsel %vm90, %v1351, %v1523
  %v2056 = vsel %vm90, %v1352, %v1525
  %v2057 = vsel %vm90, %v1353, %v1527
  %v2058 = vsel %vm90, %v1354, %v1529
  %v2059 = vsel %vm90, %v1355, %v1531
  %v2060 = vsel %vm90, %v1356, %v1533
  %v2061 = vsel %vm90, %v1357, %v1535
  %v2062 = vsel %vm90, %v1358, %v1537
  %v2063 = vsel %vm90, %v1359, %v1539
  %v2064 = vsel %vm90, %v1360, %v1541
  %v2065 = vsel %vm90, %v1361, %v1543
  %v2066 = vsel %vm90, %v1362, %v1545
  %v2067 = vsel %vm90, %v1363, %v1547
  %v2068 = vsel %vm90, %v1364, %v1549
  %v2069 = vsel %vm90, %v1365, %v1551
  %v2070 = vsel %vm90, %v1366, %v1553
  %v2071 = vsel %vm90, %v1367, %v1555
  %v2072 = vsel %vm90, %v1368, %v1557
  %v2073 = vsel %vm90, %v1369, %v1559
  %v2074 = vsel %vm90, %v1370, %v1561
  %v2075 = vsel %vm90, %v1371, %v1563
  %vm2076 = vcmask 261120
  %v2077 = vsel %vm2076, %v2012, %v1629
  %v2078 = vsel %vm2076, %v2013, %v1631
  %v2079 = vsel %vm2076, %v2014, %v1633
  %v2080 = vsel %vm2076, %v2015, %v1635
  %v2081 = vsel %vm2076, %v2016, %v1637
  %v2082 = vsel %vm2076, %v2017, %v1639
  %v2083 = vsel %vm2076, %v2018, %v1641
  %v2084 = vsel %vm2076, %v2019, %v1643
  %v2085 = vsel %vm2076, %v2020, %v1645
  %v2086 = vsel %vm2076, %v2021, %v1647
  %v2087 = vsel %vm2076, %v2022, %v1649
  %v2088 = vsel %vm2076, %v2023, %v1651
  %v2089 = vsel %vm2076, %v2024, %v1653
  %v2090 = vsel %vm2076, %v2025, %v1655
  %v2091 = vsel %vm2076, %v2026, %v1657
  %v2092 = vsel %vm2076, %v2027, %v1659
  %v2093 = vsel %vm2076, %v2028, %v1661
  %v2094 = vsel %vm2076, %v2029, %v1663
  %v2095 = vsel %vm2076, %v2030, %v1665
  %v2096 = vsel %vm2076, %v2031, %v1667
  %v2097 = vsel %vm2076, %v2032, %v1669
  %v2098 = vsel %vm2076, %v2033, %v1671
  %v2099 = vsel %vm2076, %v2034, %v1673
  %v2100 = vsel %vm2076, %v2035, %v1675
  %v2101 = vsel %vm2076, %v2036, %v1677
  %v2102 = vsel %vm2076, %v2037, %v1679
  %v2103 = vsel %vm2076, %v2038, %v1681
  %v2104 = vsel %vm2076, %v2039, %v1683
  %v2105 = vsel %vm2076, %v2040, %v1685
  %v2106 = vsel %vm2076, %v2041, %v1687
  %v2107 = vsel %vm2076, %v2042, %v1689
  %v2108 = vsel %vm2076, %v2043, %v1691
  %v2109 = vsel %vm2076, %v2044, %v1693
  %v2110 = vsel %vm2076, %v2045, %v1695
  %v2111 = vsel %vm2076, %v2046, %v1697
  %v2112 = vsel %vm2076, %v2047, %v1699
  %v2113 = vsel %vm2076, %v2048, %v1701
  %v2114 = vsel %vm2076, %v2049, %v1703
  %v2115 = vsel %vm2076, %v2050, %v1705
  %v2116 = vsel %vm2076, %v2051, %v1707
  %v2117 = vsel %vm2076, %v2052, %v1709
  %v2118 = vsel %vm2076, %v2053, %v1711
  %v2119 = vsel %vm2076, %v2054, %v1713
  %v2120 = vsel %vm2076, %v2055, %v1715
  %v2121 = vsel %vm2076, %v2056, %v1717
  %v2122 = vsel %vm2076, %v2057, %v1719
  %v2123 = vsel %vm2076, %v2058, %v1721
  %v2124 = vsel %vm2076, %v2059, %v1723
  %v2125 = vsel %vm2076, %v2060, %v1725
  %v2126 = vsel %vm2076, %v2061, %v1727
  %v2127 = vsel %vm2076, %v2062, %v1729
  %v2128 = vsel %vm2076, %v2063, %v1731
  %v2129 = vsel %vm2076, %v2064, %v1733
  %v2130 = vsel %vm2076, %v2065, %v1735
  %v2131 = vsel %vm2076, %v2066, %v1737
  %v2132 = vsel %vm2076, %v2067, %v1739
  %v2133 = vsel %vm2076, %v2068, %v1741
  %v2134 = vsel %vm2076, %v2069, %v1743
  %v2135 = vsel %vm2076, %v2070, %v1745
  %v2136 = vsel %vm2076, %v2071, %v1747
  %v2137 = vsel %vm2076, %v2072, %v1749
  %v2138 = vsel %vm2076, %v2073, %v1751
  %v2139 = vsel %vm2076, %v2074, %v1753
  %v2140 = vsel %vm2076, %v2075, %v1755
  %vm2141 = vcmask 392192
  %v2142 = vsel %vm2141, %v2077, %v1821
  %v2143 = vsel %vm2141, %v2078, %v1823
  %v2144 = vsel %vm2141, %v2079, %v1825
  %v2145 = vsel %vm2141, %v2080, %v1827
  %v2146 = vsel %vm2141, %v2081, %v1829
  %v2147 = vsel %vm2141, %v2082, %v1831
  %v2148 = vsel %vm2141, %v2083, %v1833
  %v2149 = vsel %vm2141, %v2084, %v1835
  %v2150 = vsel %vm2141, %v2085, %v1837
  %v2151 = vsel %vm2141, %v2086, %v1839
  %v2152 = vsel %vm2141, %v2087, %v1841
  %v2153 = vsel %vm2141, %v2088, %v1843
  %v2154 = vsel %vm2141, %v2089, %v1845
  %v2155 = vsel %vm2141, %v2090, %v1847
  %v2156 = vsel %vm2141, %v2091, %v1849
  %v2157 = vsel %vm2141, %v2092, %v1851
  %v2158 = vsel %vm2141, %v2093, %v1853
  %v2159 = vsel %vm2141, %v2094, %v1855
  %v2160 = vsel %vm2141, %v2095, %v1857
  %v2161 = vsel %vm2141, %v2096, %v1859
  %v2162 = vsel %vm2141, %v2097, %v1861
  %v2163 = vsel %vm2141, %v2098, %v1863
  %v2164 = vsel %vm2141, %v2099, %v1865
  %v2165 = vsel %vm2141, %v2100, %v1867
  %v2166 = vsel %vm2141, %v2101, %v1869
  %v2167 = vsel %vm2141, %v2102, %v1871
  %v2168 = vsel %vm2141, %v2103, %v1873
  %v2169 = vsel %vm2141, %v2104, %v1875
  %v2170 = vsel %vm2141, %v2105, %v1877
  %v2171 = vsel %vm2141, %v2106, %v1879
  %v2172 = vsel %vm2141, %v2107, %v1881
  %v2173 = vsel %vm2141, %v2108, %v1883
  %v2174 = vsel %vm2141, %v2109, %v1885
  %v2175 = vsel %vm2141, %v2110, %v1887
  %v2176 = vsel %vm2141, %v2111, %v1889
  %v2177 = vsel %vm2141, %v2112, %v1891
  %v2178 = vsel %vm2141, %v2113, %v1893
  %v2179 = vsel %vm2141, %v2114, %v1895
  %v2180 = vsel %vm2141, %v2115, %v1897
  %v2181 = vsel %vm2141, %v2116, %v1899
  %v2182 = vsel %vm2141, %v2117, %v1901
  %v2183 = vsel %vm2141, %v2118, %v1903
  %v2184 = vsel %vm2141, %v2119, %v1905
  %v2185 = vsel %vm2141, %v2120, %v1907
  %v2186 = vsel %vm2141, %v2121, %v1909
  %v2187 = vsel %vm2141, %v2122, %v1911
  %v2188 = vsel %vm2141, %v2123, %v1913
  %v2189 = vsel %vm2141, %v2124, %v1915
  %v2190 = vsel %vm2141, %v2125, %v1917
  %v2191 = vsel %vm2141, %v2126, %v1919
  %v2192 = vsel %vm2141, %v2127, %v1921
  %v2193 = vsel %vm2141, %v2128, %v1923
  %v2194 = vsel %vm2141, %v2129, %v1925
  %v2195 = vsel %vm2141, %v2130, %v1927
  %v2196 = vsel %vm2141, %v2131, %v1929
  %v2197 = vsel %vm2141, %v2132, %v1931
  %v2198 = vsel %vm2141, %v2133, %v1933
  %v2199 = vsel %vm2141, %v2134, %v1935
  %v2200 = vsel %vm2141, %v2135, %v1937
  %v2201 = vsel %vm2141, %v2136, %v1939
  %v2202 = vsel %vm2141, %v2137, %v1941
  %v2203 = vsel %vm2141, %v2138, %v1943
  %v2204 = vsel %vm2141, %v2139, %v1945
  %v2205 = vsel %vm2141, %v2140, %v1947
  %v2206 = vadd.f32 %v350, %v2142
  %v2207 = vadd.f32 %v355, %v2143
  %v2208 = vadd.f32 %v360, %v2144
  %v2209 = vadd.f32 %v365, %v2145
  %v2210 = vadd.f32 %v370, %v2146
  %v2211 = vadd.f32 %v375, %v2147
  %v2212 = vadd.f32 %v380, %v2148
  %v2213 = vadd.f32 %v385, %v2149
  %v2214 = vadd.f32 %v390, %v2150
  %v2215 = vadd.f32 %v395, %v2151
  %v2216 = vadd.f32 %v400, %v2152
  %v2217 = vadd.f32 %v405, %v2153
  %v2218 = vadd.f32 %v410, %v2154
  %v2219 = vadd.f32 %v415, %v2155
  %v2220 = vadd.f32 %v420, %v2156
  %v2221 = vadd.f32 %v425, %v2157
  %v2222 = vadd.f32 %v430, %v2158
  %v2223 = vadd.f32 %v435, %v2159
  %v2224 = vadd.f32 %v440, %v2160
  %v2225 = vadd.f32 %v445, %v2161
  %v2226 = vadd.f32 %v450, %v2162
  %v2227 = vadd.f32 %v455, %v2163
  %v2228 = vadd.f32 %v460, %v2164
  %v2229 = vadd.f32 %v465, %v2165
  %v2230 = vadd.f32 %v470, %v2166
  %v2231 = vadd.f32 %v475, %v2167
  %v2232 = vadd.f32 %v480, %v2168
  %v2233 = vadd.f32 %v485, %v2169
  %v2234 = vadd.f32 %v490, %v2170
  %v2235 = vadd.f32 %v495, %v2171
  %v2236 = vadd.f32 %v500, %v2172
  %v2237 = vadd.f32 %v505, %v2173
  %v2238 = vadd.f32 %v510, %v2174
  %v2239 = vadd.f32 %v515, %v2175
  %v2240 = vadd.f32 %v520, %v2176
  %v2241 = vadd.f32 %v525, %v2177
  %v2242 = vadd.f32 %v530, %v2178
  %v2243 = vadd.f32 %v535, %v2179
  %v2244 = vadd.f32 %v540, %v2180
  %v2245 = vadd.f32 %v545, %v2181
  %v2246 = vadd.f32 %v550, %v2182
  %v2247 = vadd.f32 %v555, %v2183
  %v2248 = vadd.f32 %v560, %v2184
  %v2249 = vadd.f32 %v565, %v2185
  %v2250 = vadd.f32 %v570, %v2186
  %v2251 = vadd.f32 %v575, %v2187
  %v2252 = vadd.f32 %v580, %v2188
  %v2253 = vadd.f32 %v585, %v2189
  %v2254 = vadd.f32 %v590, %v2190
  %v2255 = vadd.f32 %v595, %v2191
  %v2256 = vadd.f32 %v600, %v2192
  %v2257 = vadd.f32 %v605, %v2193
  %v2258 = vadd.f32 %v610, %v2194
  %v2259 = vadd.f32 %v615, %v2195
  %v2260 = vadd.f32 %v620, %v2196
  %v2261 = vadd.f32 %v625, %v2197
  %v2262 = vadd.f32 %v630, %v2198
  %v2263 = vadd.f32 %v635, %v2199
  %v2264 = vadd.f32 %v640, %v2200
  %v2265 = vadd.f32 %v645, %v2201
  %v2266 = vadd.f32 %v650, %v2202
  %v2267 = vadd.f32 %v655, %v2203
  %v2268 = vadd.f32 %v660, %v2204
  %v2269 = vadd.f32 %v665, %v2205
  %v2270 = vmax.f32 %v2206, 0.0
  %v2271 = vmax.f32 %v2207, 0.0
  %v2272 = vmax.f32 %v2208, 0.0
  %v2273 = vmax.f32 %v2209, 0.0
  %v2274 = vmax.f32 %v2210, 0.0
  %v2275 = vmax.f32 %v2211, 0.0
  %v2276 = vmax.f32 %v2212, 0.0
  %v2277 = vmax.f32 %v2213, 0.0
  %v2278 = vmax.f32 %v2214, 0.0
  %v2279 = vmax.f32 %v2215, 0.0
  %v2280 = vmax.f32 %v2216, 0.0
  %v2281 = vmax.f32 %v2217, 0.0
  %v2282 = vmax.f32 %v2218, 0.0
  %v2283 = vmax.f32 %v2219, 0.0
  %v2284 = vmax.f32 %v2220, 0.0
  %v2285 = vmax.f32 %v2221, 0.0
  %v2286 = vmax.f32 %v2222, 0.0
  %v2287 = vmax.f32 %v2223, 0.0
  %v2288 = vmax.f32 %v2224, 0.0
  %v2289 = vmax.f32 %v2225, 0.0
  %v2290 = vmax.f32 %v2226, 0.0
  %v2291 = vmax.f32 %v2227, 0.0
  %v2292 = vmax.f32 %v2228, 0.0
  %v2293 = vmax.f32 %v2229, 0.0
  %v2294 = vmax.f32 %v2230, 0.0
  %v2295 = vmax.f32 %v2231, 0.0
  %v2296 = vmax.f32 %v2232, 0.0
  %v2297 = vmax.f32 %v2233, 0.0
  %v2298 = vmax.f32 %v2234, 0.0
  %v2299 = vmax.f32 %v2235, 0.0
  %v2300 = vmax.f32 %v2236, 0.0
  %v2301 = vmax.f32 %v2237, 0.0
  %v2302 = vmax.f32 %v2238, 0.0
  %v2303 = vmax.f32 %v2239, 0.0
  %v2304 = vmax.f32 %v2240, 0.0
  %v2305 = vmax.f32 %v2241, 0.0
  %v2306 = vmax.f32 %v2242, 0.0
  %v2307 = vmax.f32 %v2243, 0.0
  %v2308 = vmax.f32 %v2244, 0.0
  %v2309 = vmax.f32 %v2245, 0.0
  %v2310 = vmax.f32 %v2246, 0.0
  %v2311 = vmax.f32 %v2247, 0.0
  %v2312 = vmax.f32 %v2248, 0.0
  %v2313 = vmax.f32 %v2249, 0.0
  %v2314 = vmax.f32 %v2250, 0.0
  %v2315 = vmax.f32 %v2251, 0.0
  %v2316 = vmax.f32 %v2252, 0.0
  %v2317 = vmax.f32 %v2253, 0.0
  %v2318 = vmax.f32 %v2254, 0.0
  %v2319 = vmax.f32 %v2255, 0.0
  %v2320 = vmax.f32 %v2256, 0.0
  %v2321 = vmax.f32 %v2257, 0.0
  %v2322 = vmax.f32 %v2258, 0.0
  %v2323 = vmax.f32 %v2259, 0.0
  %v2324 = vmax.f32 %v2260, 0.0
  %v2325 = vmax.f32 %v2261, 0.0
  %v2326 = vmax.f32 %v2262, 0.0
  %v2327 = vmax.f32 %v2263, 0.0
  %v2328 = vmax.f32 %v2264, 0.0
  %v2329 = vmax.f32 %v2265, 0.0
  %v2330 = vmax.f32 %v2266, 0.0
  %v2331 = vmax.f32 %v2267, 0.0
  %v2332 = vmax.f32 %v2268, 0.0
  %v2333 = vmax.f32 %v2269, 0.0
  %vm2334 = vcmask 523264
  %2335 = vst.msk [vmem:[%s4] sm:$0xff] %vm2334, %v2270
  %2336 = vst.msk [vmem:[%s4 + $0x8] sm:$0xff] %vm2334, %v2271
  %2337 = vst.msk [vmem:[%s4 + $0x10] sm:$0xff] %vm2334, %v2272
  %2338 = vst.msk [vmem:[%s4 + $0x18] sm:$0xff] %vm2334, %v2273
  %2339 = vst.msk [vmem:[%s4 + $0x20] sm:$0xff] %vm2334, %v2274
  %2340 = vst.msk [vmem:[%s4 + $0x28] sm:$0xff] %vm2334, %v2275
  %2341 = vst.msk [vmem:[%s4 + $0x30] sm:$0xff] %vm2334, %v2276
  %2342 = vst.msk [vmem:[%s4 + $0x38] sm:$0xff] %vm2334, %v2277
  %2343 = vst.msk [vmem:[%s4 + $0x40] sm:$0xff] %vm2334, %v2278
  %2344 = vst.msk [vmem:[%s4 + $0x48] sm:$0xff] %vm2334, %v2279
  %2345 = vst.msk [vmem:[%s4 + $0x50] sm:$0xff] %vm2334, %v2280
  %2346 = vst.msk [vmem:[%s4 + $0x58] sm:$0xff] %vm2334, %v2281
  %2347 = vst.msk [vmem:[%s4 + $0x60] sm:$0xff] %vm2334, %v2282
  %2348 = vst.msk [vmem:[%s4 + $0x68] sm:$0xff] %vm2334, %v2283
  %2349 = vst.msk [vmem:[%s4 + $0x70] sm:$0xff] %vm2334, %v2284
  %2350 = vst.msk [vmem:[%s4 + $0x78] sm:$0xff] %vm2334, %v2285
  %2351 = vst.msk [vmem:[%s4 + $0x80] sm:$0xff] %vm2334, %v2286
  %2352 = vst.msk [vmem:[%s4 + $0x88] sm:$0xff] %vm2334, %v2287
  %2353 = vst.msk [vmem:[%s4 + $0x90] sm:$0xff] %vm2334, %v2288
  %2354 = vst.msk [vmem:[%s4 + $0x98] sm:$0xff] %vm2334, %v2289
  %2355 = vst.msk [vmem:[%s4 + $0xa0] sm:$0xff] %vm2334, %v2290
  %2356 = vst.msk [vmem:[%s4 + $0xa8] sm:$0xff] %vm2334, %v2291
  %2357 = vst.msk [vmem:[%s4 + $0xb0] sm:$0xff] %vm2334, %v2292
  %2358 = vst.msk [vmem:[%s4 + $0xb8] sm:$0xff] %vm2334, %v2293
  %2359 = vst.msk [vmem:[%s4 + $0xc0] sm:$0xff] %vm2334, %v2294
  %2360 = vst.msk [vmem:[%s4 + $0xc8] sm:$0xff] %vm2334, %v2295
  %2361 = vst.msk [vmem:[%s4 + $0xd0] sm:$0xff] %vm2334, %v2296
  %2362 = vst.msk [vmem:[%s4 + $0xd8] sm:$0xff] %vm2334, %v2297
  %2363 = vst.msk [vmem:[%s4 + $0xe0] sm:$0xff] %vm2334, %v2298
  %2364 = vst.msk [vmem:[%s4 + $0xe8] sm:$0xff] %vm2334, %v2299
  %2365 = vst.msk [vmem:[%s4 + $0xf0] sm:$0xff] %vm2334, %v2300
  %2366 = vst.msk [vmem:[%s4 + $0xf8] sm:$0xff] %vm2334, %v2301
  %2367 = vst.msk [vmem:[%s4 + $0x100] sm:$0xff] %vm2334, %v2302
  %2368 = vst.msk [vmem:[%s4 + $0x108] sm:$0xff] %vm2334, %v2303
  %2369 = vst.msk [vmem:[%s4 + $0x110] sm:$0xff] %vm2334, %v2304
  %2370 = vst.msk [vmem:[%s4 + $0x118] sm:$0xff] %vm2334, %v2305
  %2371 = vst.msk [vmem:[%s4 + $0x120] sm:$0xff] %vm2334, %v2306
  %2372 = vst.msk [vmem:[%s4 + $0x128] sm:$0xff] %vm2334, %v2307
  %2373 = vst.msk [vmem:[%s4 + $0x130] sm:$0xff] %vm2334, %v2308
  %2374 = vst.msk [vmem:[%s4 + $0x138] sm:$0xff] %vm2334, %v2309
  %2375 = vst.msk [vmem:[%s4 + $0x140] sm:$0xff] %vm2334, %v2310
  %2376 = vst.msk [vmem:[%s4 + $0x148] sm:$0xff] %vm2334, %v2311
  %2377 = vst.msk [vmem:[%s4 + $0x150] sm:$0xff] %vm2334, %v2312
  %2378 = vst.msk [vmem:[%s4 + $0x158] sm:$0xff] %vm2334, %v2313
  %2379 = vst.msk [vmem:[%s4 + $0x160] sm:$0xff] %vm2334, %v2314
  %2380 = vst.msk [vmem:[%s4 + $0x168] sm:$0xff] %vm2334, %v2315
  %2381 = vst.msk [vmem:[%s4 + $0x170] sm:$0xff] %vm2334, %v2316
  %2382 = vst.msk [vmem:[%s4 + $0x178] sm:$0xff] %vm2334, %v2317
  %2383 = vst.msk [vmem:[%s4 + $0x180] sm:$0xff] %vm2334, %v2318
  %2384 = vst.msk [vmem:[%s4 + $0x188] sm:$0xff] %vm2334, %v2319
  %2385 = vst.msk [vmem:[%s4 + $0x190] sm:$0xff] %vm2334, %v2320
  %2386 = vst.msk [vmem:[%s4 + $0x198] sm:$0xff] %vm2334, %v2321
  %2387 = vst.msk [vmem:[%s4 + $0x1a0] sm:$0xff] %vm2334, %v2322
  %2388 = vst.msk [vmem:[%s4 + $0x1a8] sm:$0xff] %vm2334, %v2323
  %2389 = vst.msk [vmem:[%s4 + $0x1b0] sm:$0xff] %vm2334, %v2324
  %2390 = vst.msk [vmem:[%s4 + $0x1b8] sm:$0xff] %vm2334, %v2325
  %2391 = vst.msk [vmem:[%s4 + $0x1c0] sm:$0xff] %vm2334, %v2326
  %2392 = vst.msk [vmem:[%s4 + $0x1c8] sm:$0xff] %vm2334, %v2327
  %2393 = vst.msk [vmem:[%s4 + $0x1d0] sm:$0xff] %vm2334, %v2328
  %2394 = vst.msk [vmem:[%s4 + $0x1d8] sm:$0xff] %vm2334, %v2329
  %2395 = vst.msk [vmem:[%s4 + $0x1e0] sm:$0xff] %vm2334, %v2330
  %2396 = vst.msk [vmem:[%s4 + $0x1e8] sm:$0xff] %vm2334, %v2331
  %2397 = vst.msk [vmem:[%s4 + $0x1f0] sm:$0xff] %vm2334, %v2332
  %2398 = vst.msk [vmem:[%s4 + $0x1f8] sm:$0xff] %vm2334, %v2333
  // Predicated region
  $region18: #{_lambda_.17} parent=0 // pred_check
    _
  $region19: #{_lambda_.17} parent=0 // pred_check_branch
    %2400 = sbr.rel (0) target = $region21
  $region20: #{_lambda_.17} parent=0 // pred_region
    _
  $region21: #{_lambda_.17} parent=0 // pred_fallthru
    _
  // Predicated region
  $region22: #{_lambda_.17} parent=0 // pred_check
    _
  $region23: #{_lambda_.17} parent=0 // pred_check_branch
    %2402 = sbr.rel (0) target = $region25
  $region24: #{_lambda_.17} parent=0 // pred_region
    _
  $region25: #{_lambda_.17} parent=0 // pred_fallthru
    _

// kernel: _lambda_.21
$region0: #{_lambda_.21}
  #allocation0 [shape = 'u32[]', space=smem, size = 0x4, offset = 0x4, fixed_abs, tag = 'smem constant byte address 0x4 - core index']
  #allocation1 [shape = 'u32[144,128]{1,0:T(1,128)}', space=vmem, size = 0x12000, scoped, tag = 'internal scratch']
  %s0 = inlined_call_operand.vmem [shape: f32[128,256], index: 0, kind: input, shape index: {}]
  %s1 = inlined_call_operand.vmem [shape: f32[256,32], index: 1, kind: input, shape index: {}]
  %s2 = inlined_call_operand.vmem [shape: f32[1,32], index: 2, kind: input, shape index: {}]
  %s3 = inlined_call_operand.vmem [shape: f32[128,32], index: 3, kind: output, shape index: {}]
  %s4 = sld [smem:[#allocation0]]
  $region22: #{_lambda_.21} parent=0
    _
  %s6 = ssub.s32 1, %s4
  %s7 = scalar_select 0, %s6, %s4
  // Predicated region
  $region2: #{_lambda_.21} parent=0 // pred_check
    _
  $region3: #{_lambda_.21} parent=0 // pred_check_branch
    %9 = sbr.rel (0) target = $region5
  $region4: #{_lambda_.21} parent=0 // pred_region
    _
  $region5: #{_lambda_.21} parent=0 // pred_fallthru
    _
  // Predicated region
  $region6: #{_lambda_.21} parent=0 // pred_check
    _
  $region7: #{_lambda_.21} parent=0 // pred_check_branch
    %11 = sbr.rel (0) target = $region9
  $region8: #{_lambda_.21} parent=0 // pred_region
    _
  $region9: #{_lambda_.21} parent=0 // pred_fallthru
    _
  // Predicated region
  $region10: #{_lambda_.21} parent=0 // pred_check
    _
  $region11: #{_lambda_.21} parent=0 // pred_check_branch
    %13 = sbr.rel (0) target = $region13
  $region12: #{_lambda_.21} parent=0 // pred_region
    _
  $region13: #{_lambda_.21} parent=0 // pred_fallthru
    _
  %v14 = vld [vmem:[%s0] sm:$0xff]
  %v15 = vld [vmem:[%s0 + $0x8] sm:$0xff]
  %v16 = vld [vmem:[%s0 + $0x10] sm:$0xff]
  %v17 = vld [vmem:[%s0 + $0x18] sm:$0xff]
  %v18 = vld [vmem:[%s0 + $0x20] sm:$0xff]
  %v19 = vld [vmem:[%s0 + $0x28] sm:$0xff]
  %v20 = vld [vmem:[%s0 + $0x30] sm:$0xff]
  %v21 = vld [vmem:[%s0 + $0x38] sm:$0xff]
  %v22 = vld [vmem:[%s0 + $0x40] sm:$0xff]
  %v23 = vld [vmem:[%s0 + $0x48] sm:$0xff]
  %v24 = vld [vmem:[%s0 + $0x50] sm:$0xff]
  %v25 = vld [vmem:[%s0 + $0x58] sm:$0xff]
  %v26 = vld [vmem:[%s0 + $0x60] sm:$0xff]
  %v27 = vld [vmem:[%s0 + $0x68] sm:$0xff]
  %v28 = vld [vmem:[%s0 + $0x70] sm:$0xff]
  %v29 = vld [vmem:[%s0 + $0x78] sm:$0xff]
  %v30 = vld [vmem:[%s0 + $0x80] sm:$0xff]
  %v31 = vld [vmem:[%s0 + $0x88] sm:$0xff]
  %v32 = vld [vmem:[%s0 + $0x90] sm:$0xff]
  %v33 = vld [vmem:[%s0 + $0x98] sm:$0xff]
  %v34 = vld [vmem:[%s0 + $0xa0] sm:$0xff]
  %v35 = vld [vmem:[%s0 + $0xa8] sm:$0xff]
  %v36 = vld [vmem:[%s0 + $0xb0] sm:$0xff]
  %v37 = vld [vmem:[%s0 + $0xb8] sm:$0xff]
  %v38 = vld [vmem:[%s0 + $0xc0] sm:$0xff]
  %v39 = vld [vmem:[%s0 + $0xc8] sm:$0xff]
  %v40 = vld [vmem:[%s0 + $0xd0] sm:$0xff]
  %v41 = vld [vmem:[%s0 + $0xd8] sm:$0xff]
  %v42 = vld [vmem:[%s0 + $0xe0] sm:$0xff]
  %v43 = vld [vmem:[%s0 + $0xe8] sm:$0xff]
  %v44 = vld [vmem:[%s0 + $0xf0] sm:$0xff]
  %v45 = vld [vmem:[%s0 + $0xf8] sm:$0xff]
  %v46 = vld [vmem:[%s1] sm:$0xff]
  %v47 = vld [vmem:[%s1 + $0x8] sm:$0xff]
  %v48 = vld [vmem:[%s1 + $0x10] sm:$0xff]
  %v49 = vld [vmem:[%s1 + $0x18] sm:$0xff]
  %v50 = vld [vmem:[%s1 + $0x20] sm:$0xff]
  %v51 = vld [vmem:[%s1 + $0x28] sm:$0xff]
  %v52 = vld [vmem:[%s1 + $0x30] sm:$0xff]
  %v53 = vld [vmem:[%s1 + $0x38] sm:$0xff]
  %v54 = vld [vmem:[%s1 + $0x40] sm:$0xff]
  %v55 = vld [vmem:[%s1 + $0x48] sm:$0xff]
  %v56 = vld [vmem:[%s1 + $0x50] sm:$0xff]
  %v57 = vld [vmem:[%s1 + $0x58] sm:$0xff]
  %v58 = vld [vmem:[%s1 + $0x60] sm:$0xff]
  %v59 = vld [vmem:[%s1 + $0x68] sm:$0xff]
  %v60 = vld [vmem:[%s1 + $0x70] sm:$0xff]
  %v61 = vld [vmem:[%s1 + $0x78] sm:$0xff]
  %v62 = vld [vmem:[%s1 + $0x80] sm:$0xff]
  %v63 = vld [vmem:[%s1 + $0x88] sm:$0xff]
  %v64 = vld [vmem:[%s1 + $0x90] sm:$0xff]
  %v65 = vld [vmem:[%s1 + $0x98] sm:$0xff]
  %v66 = vld [vmem:[%s1 + $0xa0] sm:$0xff]
  %v67 = vld [vmem:[%s1 + $0xa8] sm:$0xff]
  %v68 = vld [vmem:[%s1 + $0xb0] sm:$0xff]
  %v69 = vld [vmem:[%s1 + $0xb8] sm:$0xff]
  %v70 = vld [vmem:[%s1 + $0xc0] sm:$0xff]
  %v71 = vld [vmem:[%s1 + $0xc8] sm:$0xff]
  %v72 = vld [vmem:[%s1 + $0xd0] sm:$0xff]
  %v73 = vld [vmem:[%s1 + $0xd8] sm:$0xff]
  %v74 = vld [vmem:[%s1 + $0xe0] sm:$0xff]
  %v75 = vld [vmem:[%s1 + $0xe8] sm:$0xff]
  %v76 = vld [vmem:[%s1 + $0xf0] sm:$0xff]
  %v77 = vld [vmem:[%s1 + $0xf8] sm:$0xff]
  %v78 = vld [vmem:[%s2] sm:$0x1]
  %v80 = vlaneseq
  %v81 = vshrl.u32 %v80, 7
  %v82 = vsub.s32 0, %v81
  %v83 = vrot.slane %v78, %v82
  %85 = vmatprep.subr.mxu0 0.0
  %86 = vmatpush1.msra.mxu0 %v46
  %87 = vmatprep.subr.mxu0 0.0
  %88 = vmatpush1.msra.mxu0 %v47
  %89 = vmatprep.subr.mxu0 0.0
  %90 = vmatpush1.msra.mxu0 %v48
  %91 = vmatprep.subr.mxu0 0.0
  %92 = vmatpush1.msra.mxu0 %v49
  %93 = vmatprep.subr.mxu0 0.0
  %94 = vmatpush1.msra.mxu0 %v50
  %95 = vmatprep.subr.mxu0 0.0
  %96 = vmatpush1.msra.mxu0 %v51
  %97 = vmatprep.subr.mxu0 0.0
  %98 = vmatpush1.msra.mxu0 %v52
  %99 = vmatprep.subr.mxu0 0.0
  %100 = vmatpush1.msra.mxu0 %v53
  %101 = vmatprep.subr.mxu0 0.0
  %102 = vmatpush1.msra.mxu0 %v54
  %103 = vmatprep.subr.mxu0 0.0
  %104 = vmatpush1.msra.mxu0 %v55
  %105 = vmatprep.subr.mxu0 0.0
  %106 = vmatpush1.msra.mxu0 %v56
  %107 = vmatprep.subr.mxu0 0.0
  %108 = vmatpush1.msra.mxu0 %v57
  %109 = vmatprep.subr.mxu0 0.0
  %110 = vmatpush1.msra.mxu0 %v58
  %111 = vmatprep.subr.mxu0 0.0
  %112 = vmatpush1.msra.mxu0 %v59
  %113 = vmatprep.subr.mxu0 0.0
  %114 = vmatpush1.msra.mxu0 %v60
  %115 = vmatprep.subr.mxu0 0.0
  %116 = vmatpush1.msra.mxu0 %v61
  %117 = vmatprep.subr.mxu0 0.0
  %118 = vmatpush1.msra.mxu0 %v62
  %119 = vmatprep.subr.mxu0 0.0
  %120 = vmatpush1.msra.mxu0 %v63
  %121 = vmatprep.subr.mxu0 0.0
  %122 = vmatpush1.msra.mxu0 %v64
  %123 = vmatprep.subr.mxu0 0.0
  %124 = vmatpush1.msra.mxu0 %v65
  %125 = vmatprep.subr.mxu0 0.0
  %126 = vmatpush1.msra.mxu0 %v66
  %127 = vmatprep.subr.mxu0 0.0
  %128 = vmatpush1.msra.mxu0 %v67
  %129 = vmatprep.subr.mxu0 0.0
  %130 = vmatpush1.msra.mxu0 %v68
  %131 = vmatprep.subr.mxu0 0.0
  %132 = vmatpush1.msra.mxu0 %v69
  %133 = vmatprep.subr.mxu0 0.0
  %134 = vmatpush1.msra.mxu0 %v70
  %135 = vmatprep.subr.mxu0 0.0
  %136 = vmatpush1.msra.mxu0 %v71
  %137 = vmatprep.subr.mxu0 0.0
  %138 = vmatpush1.msra.mxu0 %v72
  %139 = vmatprep.subr.mxu0 0.0
  %140 = vmatpush1.msra.mxu0 %v73
  %141 = vmatprep.subr.mxu0 0.0
  %142 = vmatpush1.msra.mxu0 %v74
  %143 = vmatprep.subr.mxu0 0.0
  %144 = vmatpush1.msra.mxu0 %v75
  %145 = vmatprep.subr.mxu0 0.0
  %146 = vmatpush1.msra.mxu0 %v76
  %147 = vmatprep.subr.mxu0 0.0
  %148 = vmatpush1.msra.mxu0 %v77
  %149 = vmatprep.mubr.f32.mxu0 %v15
  %150 = vmatmul.mubr.f32.gmra.mrb[0].mxu0 %v14
  %v151 = vpop.f32.mrb[0].mxu0
  %v152 = vadd.f32 %v83, %v151
  %v153 = vpop.f32.mrb[0].mxu0
  %154 = vmatprep.mubr.f32.mxu0 %v17
  %155 = vmatmul.mubr.f32.gmra.mrb[0].mxu0 %v16
  %v156 = vpop.f32.mrb[0].mxu0
  %v157 = vadd.f32 %v83, %v156
  %v158 = vpop.f32.mrb[0].mxu0
  %159 = vmatprep.mubr.f32.mxu0 %v19
  %160 = vmatmul.mubr.f32.gmra.mrb[0].mxu0 %v18
  %v161 = vpop.f32.mrb[0].mxu0
  %v162 = vadd.f32 %v83, %v161
  %v163 = vpop.f32.mrb[0].mxu0
  %164 = vmatprep.mubr.f32.mxu0 %v21
  %165 = vmatmul.mubr.f32.gmra.mrb[0].mxu0 %v20
  %v166 = vpop.f32.mrb[0].mxu0
  %v167 = vadd.f32 %v83, %v166
  %v168 = vpop.f32.mrb[0].mxu0
  %169 = vmatprep.mubr.f32.mxu0 %v23
  %170 = vmatmul.mubr.f32.gmra.mrb[0].mxu0 %v22
  %v171 = vpop.f32.mrb[0].mxu0
  %v172 = vadd.f32 %v83, %v171
  %v173 = vpop.f32.mrb[0].mxu0
  %174 = vmatprep.mubr.f32.mxu0 %v25
  %175 = vmatmul.mubr.f32.gmra.mrb[0].mxu0 %v24
  %v176 = vpop.f32.mrb[0].mxu0
  %v177 = vadd.f32 %v83, %v176
  %v178 = vpop.f32.mrb[0].mxu0
  %179 = vmatprep.mubr.f32.mxu0 %v27
  %180 = vmatmul.mubr.f32.gmra.mrb[0].mxu0 %v26
  %v181 = vpop.f32.mrb[0].mxu0
  %v182 = vadd.f32 %v83, %v181
  %v183 = vpop.f32.mrb[0].mxu0
  %184 = vmatprep.mubr.f32.mxu0 %v29
  %185 = vmatmul.mubr.f32.gmra.mrb[0].mxu0 %v28
  %v186 = vpop.f32.mrb[0].mxu0
  %v187 = vadd.f32 %v83, %v186
  %v188 = vpop.f32.mrb[0].mxu0
  %189 = vmatprep.mubr.f32.mxu0 %v31
  %190 = vmatmul.mubr.f32.gmra.mrb[0].mxu0 %v30
  %v191 = vpop.f32.mrb[0].mxu0
  %v192 = vadd.f32 %v83, %v191
  %v193 = vpop.f32.mrb[0].mxu0
  %194 = vmatprep.mubr.f32.mxu0 %v33
  %195 = vmatmul.mubr.f32.gmra.mrb[0].mxu0 %v32
  %v196 = vpop.f32.mrb[0].mxu0
  %v197 = vadd.f32 %v83, %v196
  %v198 = vpop.f32.mrb[0].mxu0
  %199 = vmatprep.mubr.f32.mxu0 %v35
  %200 = vmatmul.mubr.f32.gmra.mrb[0].mxu0 %v34
  %v201 = vpop.f32.mrb[0].mxu0
  %v202 = vadd.f32 %v83, %v201
  %v203 = vpop.f32.mrb[0].mxu0
  %204 = vmatprep.mubr.f32.mxu0 %v37
  %205 = vmatmul.mubr.f32.gmra.mrb[0].mxu0 %v36
  %v206 = vpop.f32.mrb[0].mxu0
  %v207 = vadd.f32 %v83, %v206
  %v208 = vpop.f32.mrb[0].mxu0
  %209 = vmatprep.mubr.f32.mxu0 %v39
  %210 = vmatmul.mubr.f32.gmra.mrb[0].mxu0 %v38
  %v211 = vpop.f32.mrb[0].mxu0
  %v212 = vadd.f32 %v83, %v211
  %v213 = vpop.f32.mrb[0].mxu0
  %214 = vmatprep.mubr.f32.mxu0 %v41
  %215 = vmatmul.mubr.f32.gmra.mrb[0].mxu0 %v40
  %v216 = vpop.f32.mrb[0].mxu0
  %v217 = vadd.f32 %v83, %v216
  %v218 = vpop.f32.mrb[0].mxu0
  %219 = vmatprep.mubr.f32.mxu0 %v43
  %220 = vmatmul.mubr.f32.gmra.mrb[0].mxu0 %v42
  %v221 = vpop.f32.mrb[0].mxu0
  %v222 = vadd.f32 %v83, %v221
  %v223 = vpop.f32.mrb[0].mxu0
  %224 = vmatprep.mubr.f32.mxu0 %v45
  %225 = vmatmul.mubr.f32.gmra.mrb[0].mxu0 %v44
  %v226 = vpop.f32.mrb[0].mxu0
  %v227 = vadd.f32 %v83, %v226
  %v228 = vpop.f32.mrb[0].mxu0
  %229 = vdwg.mxu0
  %v230 = vmax.f32 %v152, 0.0
  %v231 = vmax.f32 %v157, 0.0
  %v232 = vmax.f32 %v162, 0.0
  %v233 = vmax.f32 %v167, 0.0
  %v234 = vmax.f32 %v172, 0.0
  %v235 = vmax.f32 %v177, 0.0
  %v236 = vmax.f32 %v182, 0.0
  %v237 = vmax.f32 %v187, 0.0
  %v238 = vmax.f32 %v192, 0.0
  %v239 = vmax.f32 %v197, 0.0
  %v240 = vmax.f32 %v202, 0.0
  %v241 = vmax.f32 %v207, 0.0
  %v242 = vmax.f32 %v212, 0.0
  %v243 = vmax.f32 %v217, 0.0
  %v244 = vmax.f32 %v222, 0.0
  %v245 = vmax.f32 %v227, 0.0
  %vm246 = vcmask 261120
  %247 = vst.msk [vmem:[%s3] sm:$0xff] %vm246, %v230
  %248 = vst.msk [vmem:[%s3 + $0x8] sm:$0xff] %vm246, %v231
  %249 = vst.msk [vmem:[%s3 + $0x10] sm:$0xff] %vm246, %v232
  %250 = vst.msk [vmem:[%s3 + $0x18] sm:$0xff] %vm246, %v233
  %251 = vst.msk [vmem:[%s3 + $0x20] sm:$0xff] %vm246, %v234
  %252 = vst.msk [vmem:[%s3 + $0x28] sm:$0xff] %vm246, %v235
  %253 = vst.msk [vmem:[%s3 + $0x30] sm:$0xff] %vm246, %v236
  %254 = vst.msk [vmem:[%s3 + $0x38] sm:$0xff] %vm246, %v237
  %255 = vst.msk [vmem:[%s3 + $0x40] sm:$0xff] %vm246, %v238
  %256 = vst.msk [vmem:[%s3 + $0x48] sm:$0xff] %vm246, %v239
  %257 = vst.msk [vmem:[%s3 + $0x50] sm:$0xff] %vm246, %v240
  %258 = vst.msk [vmem:[%s3 + $0x58] sm:$0xff] %vm246, %v241
  %259 = vst.msk [vmem:[%s3 + $0x60] sm:$0xff] %vm246, %v242
  %260 = vst.msk [vmem:[%s3 + $0x68] sm:$0xff] %vm246, %v243
  %261 = vst.msk [vmem:[%s3 + $0x70] sm:$0xff] %vm246, %v244
  %262 = vst.msk [vmem:[%s3 + $0x78] sm:$0xff] %vm246, %v245
  // Predicated region
  $region14: #{_lambda_.21} parent=0 // pred_check
    _
  $region15: #{_lambda_.21} parent=0 // pred_check_branch
    %264 = sbr.rel (0) target = $region17
  $region16: #{_lambda_.21} parent=0 // pred_region
    _
  $region17: #{_lambda_.21} parent=0 // pred_fallthru
    _
  // Predicated region
  $region18: #{_lambda_.21} parent=0 // pred_check
    _
  $region19: #{_lambda_.21} parent=0 // pred_check_branch
    %266 = sbr.rel (0) target = $region21
  $region20: #{_lambda_.21} parent=0 // pred_region
    _
  $region21: #{_lambda_.21} parent=0 // pred_fallthru
    _

// kernel: _lambda_.23
$region0: #{_lambda_.23}
  #allocation0 [shape = 'u32[]', space=smem, size = 0x4, offset = 0x4, fixed_abs, tag = 'smem constant byte address 0x4 - core index']
  #allocation1 [shape = 'u32[144,128]{1,0:T(1,128)}', space=vmem, size = 0x12000, scoped, tag = 'internal scratch']
  %s0 = inlined_call_operand.vmem [shape: f32[128,32], index: 0, kind: input, shape index: {}]
  %s1 = inlined_call_operand.vmem [shape: f32[32,128], index: 1, kind: input, shape index: {}]
  %s2 = inlined_call_operand.vmem [shape: f32[1,128], index: 2, kind: input, shape index: {}]
  %s3 = inlined_call_operand.vmem [shape: f32[128,256], index: 3, kind: input, shape index: {}]
  %s4 = inlined_call_operand.vmem [shape: f32[128,128], index: 4, kind: output, shape index: {}]
  %s5 = sld [smem:[#allocation0]]
  $region26: #{_lambda_.23} parent=0
    _
  %s7 = ssub.s32 1, %s5
  %s8 = scalar_select 0, %s7, %s5
  // Predicated region
  $region2: #{_lambda_.23} parent=0 // pred_check
    _
  $region3: #{_lambda_.23} parent=0 // pred_check_branch
    %10 = sbr.rel (0) target = $region5
  $region4: #{_lambda_.23} parent=0 // pred_region
    _
  $region5: #{_lambda_.23} parent=0 // pred_fallthru
    _
  // Predicated region
  $region6: #{_lambda_.23} parent=0 // pred_check
    _
  $region7: #{_lambda_.23} parent=0 // pred_check_branch
    %12 = sbr.rel (0) target = $region9
  $region8: #{_lambda_.23} parent=0 // pred_region
    _
  $region9: #{_lambda_.23} parent=0 // pred_fallthru
    _
  // Predicated region
  $region10: #{_lambda_.23} parent=0 // pred_check
    _
  $region11: #{_lambda_.23} parent=0 // pred_check_branch
    %14 = sbr.rel (0) target = $region13
  $region12: #{_lambda_.23} parent=0 // pred_region
    _
  $region13: #{_lambda_.23} parent=0 // pred_fallthru
    _
  // Predicated region
  $region14: #{_lambda_.23} parent=0 // pred_check
    _
  $region15: #{_lambda_.23} parent=0 // pred_check_branch
    %16 = sbr.rel (0) target = $region17
  $region16: #{_lambda_.23} parent=0 // pred_region
    _
  $region17: #{_lambda_.23} parent=0 // pred_fallthru
    _
  %v17 = vld [vmem:[%s0] sm:$0xff]
  %v18 = vld [vmem:[%s0 + $0x8] sm:$0xff]
  %v19 = vld [vmem:[%s0 + $0x10] sm:$0xff]
  %v20 = vld [vmem:[%s0 + $0x18] sm:$0xff]
  %v21 = vld [vmem:[%s0 + $0x20] sm:$0xff]
  %v22 = vld [vmem:[%s0 + $0x28] sm:$0xff]
  %v23 = vld [vmem:[%s0 + $0x30] sm:$0xff]
  %v24 = vld [vmem:[%s0 + $0x38] sm:$0xff]
  %v25 = vld [vmem:[%s0 + $0x40] sm:$0xff]
  %v26 = vld [vmem:[%s0 + $0x48] sm:$0xff]
  %v27 = vld [vmem:[%s0 + $0x50] sm:$0xff]
  %v28 = vld [vmem:[%s0 + $0x58] sm:$0xff]
  %v29 = vld [vmem:[%s0 + $0x60] sm:$0xff]
  %v30 = vld [vmem:[%s0 + $0x68] sm:$0xff]
  %v31 = vld [vmem:[%s0 + $0x70] sm:$0xff]
  %v32 = vld [vmem:[%s0 + $0x78] sm:$0xff]
  %v33 = vld [vmem:[%s1] sm:$0xff]
  %v34 = vld [vmem:[%s1 + $0x8] sm:$0xff]
  %v35 = vld [vmem:[%s1 + $0x10] sm:$0xff]
  %v36 = vld [vmem:[%s1 + $0x18] sm:$0xff]
  %v37 = vld [vmem:[%s2] sm:$0x1]
  %v39 = vlaneseq
  %v40 = vshrl.u32 %v39, 7
  %v41 = vsub.s32 0, %v40
  %v42 = vrot.slane %v37, %v41
  %vm44 = vcmask 261120
  %v46 = vsel %vm44, %v17, 0
  %v49 = vsel %vm44, %v18, 0
  %v52 = vsel %vm44, %v19, 0
  %v55 = vsel %vm44, %v20, 0
  %v58 = vsel %vm44, %v21, 0
  %v61 = vsel %vm44, %v22, 0
  %v64 = vsel %vm44, %v23, 0
  %v67 = vsel %vm44, %v24, 0
  %v70 = vsel %vm44, %v25, 0
  %v73 = vsel %vm44, %v26, 0
  %v76 = vsel %vm44, %v27, 0
  %v79 = vsel %vm44, %v28, 0
  %v82 = vsel %vm44, %v29, 0
  %v85 = vsel %vm44, %v30, 0
  %v88 = vsel %vm44, %v31, 0
  %v91 = vsel %vm44, %v32, 0
  %93 = vmatprep.subr.mxu0 0.0
  %94 = vmatpush1.msra.mxu0 %v33
  %95 = vmatprep.subr.mxu0 0.0
  %96 = vmatpush1.msra.mxu0 %v34
  %97 = vmatprep.subr.mxu0 0.0
  %98 = vmatpush1.msra.mxu0 %v35
  %99 = vmatprep.subr.mxu0 0.0
  %100 = vmatpush1.msra.mxu0 %v36
  %101 = vmatprep.subr.mxu0 0.0
  %102 = vmatpush1.msra.mxu0 0.0
  %103 = vmatprep.subr.mxu0 0.0
  %104 = vmatpush1.msra.mxu0 0.0
  %105 = vmatprep.subr.mxu0 0.0
  %106 = vmatpush1.msra.mxu0 0.0
  %107 = vmatprep.subr.mxu0 0.0
  %108 = vmatpush1.msra.mxu0 0.0
  %109 = vmatprep.subr.mxu0 0.0
  %110 = vmatpush1.msra.mxu0 0.0
  %111 = vmatprep.subr.mxu0 0.0
  %112 = vmatpush1.msra.mxu0 0.0
  %113 = vmatprep.subr.mxu0 0.0
  %114 = vmatpush1.msra.mxu0 0.0
  %115 = vmatprep.subr.mxu0 0.0
  %116 = vmatpush1.msra.mxu0 0.0
  %117 = vmatprep.subr.mxu0 0.0
  %118 = vmatpush1.msra.mxu0 0.0
  %119 = vmatprep.subr.mxu0 0.0
  %120 = vmatpush1.msra.mxu0 0.0
  %121 = vmatprep.subr.mxu0 0.0
  %122 = vmatpush1.msra.mxu0 0.0
  %123 = vmatprep.subr.mxu0 0.0
  %124 = vmatpush1.msra.mxu0 0.0
  %125 = vmatprep.subr.mxu0 0.0
  %126 = vmatpush1.msra.mxu0 0.0
  %127 = vmatprep.subr.mxu0 0.0
  %128 = vmatpush1.msra.mxu0 0.0
  %129 = vmatprep.subr.mxu0 0.0
  %130 = vmatpush1.msra.mxu0 0.0
  %131 = vmatprep.subr.mxu0 0.0
  %132 = vmatpush1.msra.mxu0 0.0
  %133 = vmatprep.subr.mxu0 0.0
  %134 = vmatpush1.msra.mxu0 0.0
  %135 = vmatprep.subr.mxu0 0.0
  %136 = vmatpush1.msra.mxu0 0.0
  %137 = vmatprep.subr.mxu0 0.0
  %138 = vmatpush1.msra.mxu0 0.0
  %139 = vmatprep.subr.mxu0 0.0
  %140 = vmatpush1.msra.mxu0 0.0
  %141 = vmatprep.subr.mxu0 0.0
  %142 = vmatpush1.msra.mxu0 0.0
  %143 = vmatprep.subr.mxu0 0.0
  %144 = vmatpush1.msra.mxu0 0.0
  %145 = vmatprep.subr.mxu0 0.0
  %146 = vmatpush1.msra.mxu0 0.0
  %147 = vmatprep.subr.mxu0 0.0
  %148 = vmatpush1.msra.mxu0 0.0
  %149 = vmatprep.subr.mxu0 0.0
  %150 = vmatpush1.msra.mxu0 0.0
  %151 = vmatprep.subr.mxu0 0.0
  %152 = vmatpush1.msra.mxu0 0.0
  %153 = vmatprep.subr.mxu0 0.0
  %154 = vmatpush1.msra.mxu0 0.0
  %155 = vmatprep.subr.mxu0 0.0
  %156 = vmatpush1.msra.mxu0 0.0
  %157 = vmatprep.mubr.f32.mxu0 0.0
  %158 = vmatmul.mubr.f32.gmra.mrb[0].mxu0 %v46
  %v159 = vpop.f32.mrb[0].mxu0
  %v160 = vadd.f32 %v42, %v159
  %v161 = vpop.f32.mrb[0].mxu0
  %162 = vmatprep.mubr.f32.mxu0 0.0
  %163 = vmatmul.mubr.f32.gmra.mrb[0].mxu0 %v49
  %v164 = vpop.f32.mrb[0].mxu0
  %v165 = vadd.f32 %v42, %v164
  %v166 = vpop.f32.mrb[0].mxu0
  %167 = vmatprep.mubr.f32.mxu0 0.0
  %168 = vmatmul.mubr.f32.gmra.mrb[0].mxu0 %v52
  %v169 = vpop.f32.mrb[0].mxu0
  %v170 = vadd.f32 %v42, %v169
  %v171 = vpop.f32.mrb[0].mxu0
  %172 = vmatprep.mubr.f32.mxu0 0.0
  %173 = vmatmul.mubr.f32.gmra.mrb[0].mxu0 %v55
  %v174 = vpop.f32.mrb[0].mxu0
  %v175 = vadd.f32 %v42, %v174
  %v176 = vpop.f32.mrb[0].mxu0
  %177 = vmatprep.mubr.f32.mxu0 0.0
  %178 = vmatmul.mubr.f32.gmra.mrb[0].mxu0 %v58
  %v179 = vpop.f32.mrb[0].mxu0
  %v180 = vadd.f32 %v42, %v179
  %v181 = vpop.f32.mrb[0].mxu0
  %182 = vmatprep.mubr.f32.mxu0 0.0
  %183 = vmatmul.mubr.f32.gmra.mrb[0].mxu0 %v61
  %v184 = vpop.f32.mrb[0].mxu0
  %v185 = vadd.f32 %v42, %v184
  %v186 = vpop.f32.mrb[0].mxu0
  %187 = vmatprep.mubr.f32.mxu0 0.0
  %188 = vmatmul.mubr.f32.gmra.mrb[0].mxu0 %v64
  %v189 = vpop.f32.mrb[0].mxu0
  %v190 = vadd.f32 %v42, %v189
  %v191 = vpop.f32.mrb[0].mxu0
  %192 = vmatprep.mubr.f32.mxu0 0.0
  %193 = vmatmul.mubr.f32.gmra.mrb[0].mxu0 %v67
  %v194 = vpop.f32.mrb[0].mxu0
  %v195 = vadd.f32 %v42, %v194
  %v196 = vpop.f32.mrb[0].mxu0
  %197 = vmatprep.mubr.f32.mxu0 0.0
  %198 = vmatmul.mubr.f32.gmra.mrb[0].mxu0 %v70
  %v199 = vpop.f32.mrb[0].mxu0
  %v200 = vadd.f32 %v42, %v199
  %v201 = vpop.f32.mrb[0].mxu0
  %202 = vmatprep.mubr.f32.mxu0 0.0
  %203 = vmatmul.mubr.f32.gmra.mrb[0].mxu0 %v73
  %v204 = vpop.f32.mrb[0].mxu0
  %v205 = vadd.f32 %v42, %v204
  %v206 = vpop.f32.mrb[0].mxu0
  %207 = vmatprep.mubr.f32.mxu0 0.0
  %208 = vmatmul.mubr.f32.gmra.mrb[0].mxu0 %v76
  %v209 = vpop.f32.mrb[0].mxu0
  %v210 = vadd.f32 %v42, %v209
  %v211 = vpop.f32.mrb[0].mxu0
  %212 = vmatprep.mubr.f32.mxu0 0.0
  %213 = vmatmul.mubr.f32.gmra.mrb[0].mxu0 %v79
  %v214 = vpop.f32.mrb[0].mxu0
  %v215 = vadd.f32 %v42, %v214
  %v216 = vpop.f32.mrb[0].mxu0
  %217 = vmatprep.mubr.f32.mxu0 0.0
  %218 = vmatmul.mubr.f32.gmra.mrb[0].mxu0 %v82
  %v219 = vpop.f32.mrb[0].mxu0
  %v220 = vadd.f32 %v42, %v219
  %v221 = vpop.f32.mrb[0].mxu0
  %222 = vmatprep.mubr.f32.mxu0 0.0
  %223 = vmatmul.mubr.f32.gmra.mrb[0].mxu0 %v85
  %v224 = vpop.f32.mrb[0].mxu0
  %v225 = vadd.f32 %v42, %v224
  %v226 = vpop.f32.mrb[0].mxu0
  %227 = vmatprep.mubr.f32.mxu0 0.0
  %228 = vmatmul.mubr.f32.gmra.mrb[0].mxu0 %v88
  %v229 = vpop.f32.mrb[0].mxu0
  %v230 = vadd.f32 %v42, %v229
  %v231 = vpop.f32.mrb[0].mxu0
  %232 = vmatprep.mubr.f32.mxu0 0.0
  %233 = vmatmul.mubr.f32.gmra.mrb[0].mxu0 %v91
  %v234 = vpop.f32.mrb[0].mxu0
  %v235 = vadd.f32 %v42, %v234
  %v236 = vpop.f32.mrb[0].mxu0
  %237 = vdwg.mxu0
  %v238 = vld [vmem:[%s3] sm:$0xff]
  %v239 = vld [vmem:[%s3 + $0x8] sm:$0xff]
  %v240 = vld [vmem:[%s3 + $0x10] sm:$0xff]
  %v241 = vld [vmem:[%s3 + $0x18] sm:$0xff]
  %v242 = vld [vmem:[%s3 + $0x20] sm:$0xff]
  %v243 = vld [vmem:[%s3 + $0x28] sm:$0xff]
  %v244 = vld [vmem:[%s3 + $0x30] sm:$0xff]
  %v245 = vld [vmem:[%s3 + $0x38] sm:$0xff]
  %v246 = vld [vmem:[%s3 + $0x40] sm:$0xff]
  %v247 = vld [vmem:[%s3 + $0x48] sm:$0xff]
  %v248 = vld [vmem:[%s3 + $0x50] sm:$0xff]
  %v249 = vld [vmem:[%s3 + $0x58] sm:$0xff]
  %v250 = vld [vmem:[%s3 + $0x60] sm:$0xff]
  %v251 = vld [vmem:[%s3 + $0x68] sm:$0xff]
  %v252 = vld [vmem:[%s3 + $0x70] sm:$0xff]
  %v253 = vld [vmem:[%s3 + $0x78] sm:$0xff]
  %v254 = vld [vmem:[%s3 + $0x80] sm:$0xff]
  %v255 = vld [vmem:[%s3 + $0x88] sm:$0xff]
  %v256 = vld [vmem:[%s3 + $0x90] sm:$0xff]
  %v257 = vld [vmem:[%s3 + $0x98] sm:$0xff]
  %v258 = vld [vmem:[%s3 + $0xa0] sm:$0xff]
  %v259 = vld [vmem:[%s3 + $0xa8] sm:$0xff]
  %v260 = vld [vmem:[%s3 + $0xb0] sm:$0xff]
  %v261 = vld [vmem:[%s3 + $0xb8] sm:$0xff]
  %v262 = vld [vmem:[%s3 + $0xc0] sm:$0xff]
  %v263 = vld [vmem:[%s3 + $0xc8] sm:$0xff]
  %v264 = vld [vmem:[%s3 + $0xd0] sm:$0xff]
  %v265 = vld [vmem:[%s3 + $0xd8] sm:$0xff]
  %v266 = vld [vmem:[%s3 + $0xe0] sm:$0xff]
  %v267 = vld [vmem:[%s3 + $0xe8] sm:$0xff]
  %v268 = vld [vmem:[%s3 + $0xf0] sm:$0xff]
  %v269 = vld [vmem:[%s3 + $0xf8] sm:$0xff]
  %286 = vrot.lane.b32.xlu0 %v238, 64
  %v287 = vpop.permute.xlu0 %286
  %288 = vrot.lane.b32.xlu0 %v240, 64
  %v289 = vpop.permute.xlu0 %288
  %290 = vrot.lane.b32.xlu0 %v242, 64
  %v291 = vpop.permute.xlu0 %290
  %292 = vrot.lane.b32.xlu0 %v244, 64
  %v293 = vpop.permute.xlu0 %292
  %294 = vrot.lane.b32.xlu0 %v246, 64
  %v295 = vpop.permute.xlu0 %294
  %296 = vrot.lane.b32.xlu0 %v248, 64
  %v297 = vpop.permute.xlu0 %296
  %298 = vrot.lane.b32.xlu0 %v250, 64
  %v299 = vpop.permute.xlu0 %298
  %300 = vrot.lane.b32.xlu0 %v252, 64
  %v301 = vpop.permute.xlu0 %300
  %302 = vrot.lane.b32.xlu0 %v254, 64
  %v303 = vpop.permute.xlu0 %302
  %304 = vrot.lane.b32.xlu0 %v256, 64
  %v305 = vpop.permute.xlu0 %304
  %306 = vrot.lane.b32.xlu0 %v258, 64
  %v307 = vpop.permute.xlu0 %306
  %308 = vrot.lane.b32.xlu0 %v260, 64
  %v309 = vpop.permute.xlu0 %308
  %310 = vrot.lane.b32.xlu0 %v262, 64
  %v311 = vpop.permute.xlu0 %310
  %312 = vrot.lane.b32.xlu0 %v264, 64
  %v313 = vpop.permute.xlu0 %312
  %314 = vrot.lane.b32.xlu0 %v266, 64
  %v315 = vpop.permute.xlu0 %314
  %316 = vrot.lane.b32.xlu0 %v268, 64
  %v317 = vpop.permute.xlu0 %316
  %v334 = vmax.f32 %v238, %v287
  %v335 = vmax.f32 %v240, %v289
  %v336 = vmax.f32 %v242, %v291
  %v337 = vmax.f32 %v244, %v293
  %v338 = vmax.f32 %v246, %v295
  %v339 = vmax.f32 %v248, %v297
  %v340 = vmax.f32 %v250, %v299
  %v341 = vmax.f32 %v252, %v301
  %v342 = vmax.f32 %v254, %v303
  %v343 = vmax.f32 %v256, %v305
  %v344 = vmax.f32 %v258, %v307
  %v345 = vmax.f32 %v260, %v309
  %v346 = vmax.f32 %v262, %v311
  %v347 = vmax.f32 %v264, %v313
  %v348 = vmax.f32 %v266, %v315
  %v349 = vmax.f32 %v268, %v317
  %366 = vrot.lane.b32.xlu0 %v239, 64
  %v367 = vpop.permute.xlu0 %366
  %368 = vrot.lane.b32.xlu0 %v241, 64
  %v369 = vpop.permute.xlu0 %368
  %370 = vrot.lane.b32.xlu0 %v243, 64
  %v371 = vpop.permute.xlu0 %370
  %372 = vrot.lane.b32.xlu0 %v245, 64
  %v373 = vpop.permute.xlu0 %372
  %374 = vrot.lane.b32.xlu0 %v247, 64
  %v375 = vpop.permute.xlu0 %374
  %376 = vrot.lane.b32.xlu0 %v249, 64
  %v377 = vpop.permute.xlu0 %376
  %378 = vrot.lane.b32.xlu0 %v251, 64
  %v379 = vpop.permute.xlu0 %378
  %380 = vrot.lane.b32.xlu0 %v253, 64
  %v381 = vpop.permute.xlu0 %380
  %382 = vrot.lane.b32.xlu0 %v255, 64
  %v383 = vpop.permute.xlu0 %382
  %384 = vrot.lane.b32.xlu0 %v257, 64
  %v385 = vpop.permute.xlu0 %384
  %386 = vrot.lane.b32.xlu0 %v259, 64
  %v387 = vpop.permute.xlu0 %386
  %388 = vrot.lane.b32.xlu0 %v261, 64
  %v389 = vpop.permute.xlu0 %388
  %390 = vrot.lane.b32.xlu0 %v263, 64
  %v391 = vpop.permute.xlu0 %390
  %392 = vrot.lane.b32.xlu0 %v265, 64
  %v393 = vpop.permute.xlu0 %392
  %394 = vrot.lane.b32.xlu0 %v267, 64
  %v395 = vpop.permute.xlu0 %394
  %396 = vrot.lane.b32.xlu0 %v269, 64
  %v397 = vpop.permute.xlu0 %396
  %v414 = vmax.f32 %v239, %v367
  %v415 = vmax.f32 %v241, %v369
  %v416 = vmax.f32 %v243, %v371
  %v417 = vmax.f32 %v245, %v373
  %v418 = vmax.f32 %v247, %v375
  %v419 = vmax.f32 %v249, %v377
  %v420 = vmax.f32 %v251, %v379
  %v421 = vmax.f32 %v253, %v381
  %v422 = vmax.f32 %v255, %v383
  %v423 = vmax.f32 %v257, %v385
  %v424 = vmax.f32 %v259, %v387
  %v425 = vmax.f32 %v261, %v389
  %v426 = vmax.f32 %v263, %v391
  %v427 = vmax.f32 %v265, %v393
  %v428 = vmax.f32 %v267, %v395
  %v429 = vmax.f32 %v269, %v397
  %v430 = vmax.f32 %v334, %v414
  %v431 = vmax.f32 %v335, %v415
  %v432 = vmax.f32 %v336, %v416
  %v433 = vmax.f32 %v337, %v417
  %v434 = vmax.f32 %v338, %v418
  %v435 = vmax.f32 %v339, %v419
  %v436 = vmax.f32 %v340, %v420
  %v437 = vmax.f32 %v341, %v421
  %v438 = vmax.f32 %v342, %v422
  %v439 = vmax.f32 %v343, %v423
  %v440 = vmax.f32 %v344, %v424
  %v441 = vmax.f32 %v345, %v425
  %v442 = vmax.f32 %v346, %v426
  %v443 = vmax.f32 %v347, %v427
  %v444 = vmax.f32 %v348, %v428
  %v445 = vmax.f32 %v349, %v429
  %462 = vrot.lane.b32.xlu0 %v430, 64
  %v463 = vpop.permute.xlu0 %462
  %464 = vrot.lane.b32.xlu0 %v431, 64
  %v465 = vpop.permute.xlu0 %464
  %466 = vrot.lane.b32.xlu0 %v432, 64
  %v467 = vpop.permute.xlu0 %466
  %468 = vrot.lane.b32.xlu0 %v433, 64
  %v469 = vpop.permute.xlu0 %468
  %470 = vrot.lane.b32.xlu0 %v434, 64
  %v471 = vpop.permute.xlu0 %470
  %472 = vrot.lane.b32.xlu0 %v435, 64
  %v473 = vpop.permute.xlu0 %472
  %474 = vrot.lane.b32.xlu0 %v436, 64
  %v475 = vpop.permute.xlu0 %474
  %476 = vrot.lane.b32.xlu0 %v437, 64
  %v477 = vpop.permute.xlu0 %476
  %478 = vrot.lane.b32.xlu0 %v438, 64
  %v479 = vpop.permute.xlu0 %478
  %480 = vrot.lane.b32.xlu0 %v439, 64
  %v481 = vpop.permute.xlu0 %480
  %482 = vrot.lane.b32.xlu0 %v440, 64
  %v483 = vpop.permute.xlu0 %482
  %484 = vrot.lane.b32.xlu0 %v441, 64
  %v485 = vpop.permute.xlu0 %484
  %486 = vrot.lane.b32.xlu0 %v442, 64
  %v487 = vpop.permute.xlu0 %486
  %488 = vrot.lane.b32.xlu0 %v443, 64
  %v489 = vpop.permute.xlu0 %488
  %490 = vrot.lane.b32.xlu0 %v444, 64
  %v491 = vpop.permute.xlu0 %490
  %492 = vrot.lane.b32.xlu0 %v445, 64
  %v493 = vpop.permute.xlu0 %492
  %vm510 = vcmask 523264
  %v511 = vsel %vm510, %v430, %v463
  %v512 = vsel %vm510, %v431, %v465
  %v513 = vsel %vm510, %v432, %v467
  %v514 = vsel %vm510, %v433, %v469
  %v515 = vsel %vm510, %v434, %v471
  %v516 = vsel %vm510, %v435, %v473
  %v517 = vsel %vm510, %v436, %v475
  %v518 = vsel %vm510, %v437, %v477
  %v519 = vsel %vm510, %v438, %v479
  %v520 = vsel %vm510, %v439, %v481
  %v521 = vsel %vm510, %v440, %v483
  %v522 = vsel %vm510, %v441, %v485
  %v523 = vsel %vm510, %v442, %v487
  %v524 = vsel %vm510, %v443, %v489
  %v525 = vsel %vm510, %v444, %v491
  %v526 = vsel %vm510, %v445, %v493
  %v527 = vadd.f32 %v160, %v511
  %v528 = vadd.f32 %v165, %v512
  %v529 = vadd.f32 %v170, %v513
  %v530 = vadd.f32 %v175, %v514
  %v531 = vadd.f32 %v180, %v515
  %v532 = vadd.f32 %v185, %v516
  %v533 = vadd.f32 %v190, %v517
  %v534 = vadd.f32 %v195, %v518
  %v535 = vadd.f32 %v200, %v519
  %v536 = vadd.f32 %v205, %v520
  %v537 = vadd.f32 %v210, %v521
  %v538 = vadd.f32 %v215, %v522
  %v539 = vadd.f32 %v220, %v523
  %v540 = vadd.f32 %v225, %v524
  %v541 = vadd.f32 %v230, %v525
  %v542 = vadd.f32 %v235, %v526
  %v543 = vmax.f32 %v527, 0.0
  %v544 = vmax.f32 %v528, 0.0
  %v545 = vmax.f32 %v529, 0.0
  %v546 = vmax.f32 %v530, 0.0
  %v547 = vmax.f32 %v531, 0.0
  %v548 = vmax.f32 %v532, 0.0
  %v549 = vmax.f32 %v533, 0.0
  %v550 = vmax.f32 %v534, 0.0
  %v551 = vmax.f32 %v535, 0.0
  %v552 = vmax.f32 %v536, 0.0
  %v553 = vmax.f32 %v537, 0.0
  %v554 = vmax.f32 %v538, 0.0
  %v555 = vmax.f32 %v539, 0.0
  %v556 = vmax.f32 %v540, 0.0
  %v557 = vmax.f32 %v541, 0.0
  %v558 = vmax.f32 %v542, 0.0
  %559 = vst [vmem:[%s4] sm:$0xff] %v543
  %560 = vst [vmem:[%s4 + $0x8] sm:$0xff] %v544
  %561 = vst [vmem:[%s4 + $0x10] sm:$0xff] %v545
  %562 = vst [vmem:[%s4 + $0x18] sm:$0xff] %v546
  %563 = vst [vmem:[%s4 + $0x20] sm:$0xff] %v547
  %564 = vst [vmem:[%s4 + $0x28] sm:$0xff] %v548
  %565 = vst [vmem:[%s4 + $0x30] sm:$0xff] %v549
  %566 = vst [vmem:[%s4 + $0x38] sm:$0xff] %v550
  %567 = vst [vmem:[%s4 + $0x40] sm:$0xff] %v551
  %568 = vst [vmem:[%s4 + $0x48] sm:$0xff] %v552
  %569 = vst [vmem:[%s4 + $0x50] sm:$0xff] %v553
  %570 = vst [vmem:[%s4 + $0x58] sm:$0xff] %v554
  %571 = vst [vmem:[%s4 + $0x60] sm:$0xff] %v555
  %572 = vst [vmem:[%s4 + $0x68] sm:$0xff] %v556
  %573 = vst [vmem:[%s4 + $0x70] sm:$0xff] %v557
  %574 = vst [vmem:[%s4 + $0x78] sm:$0xff] %v558
  // Predicated region
  $region18: #{_lambda_.23} parent=0 // pred_check
    _
  $region19: #{_lambda_.23} parent=0 // pred_check_branch
    %576 = sbr.rel (0) target = $region21
  $region20: #{_lambda_.23} parent=0 // pred_region
    _
  $region21: #{_lambda_.23} parent=0 // pred_fallthru
    _
  // Predicated region
  $region22: #{_lambda_.23} parent=0 // pred_check
    _
  $region23: #{_lambda_.23} parent=0 // pred_check_branch
    %578 = sbr.rel (0) target = $region25
  $region24: #{_lambda_.23} parent=0 // pred_region
    _
  $region25: #{_lambda_.23} parent=0 // pred_fallthru
    _

// kernel: _lambda_.22
$region0: #{_lambda_.22}
  #allocation0 [shape = 'u32[]', space=smem, size = 0x4, offset = 0x4, fixed_abs, tag = 'smem constant byte address 0x4 - core index']
  #allocation1 [shape = 'u32[144,128]{1,0:T(1,128)}', space=vmem, size = 0x12000, scoped, tag = 'internal scratch']
  %s0 = inlined_call_operand.vmem [shape: f32[128,288], index: 0, kind: input, shape index: {}]
  %s1 = inlined_call_operand.vmem [shape: f32[288,32], index: 1, kind: input, shape index: {}]
  %s2 = inlined_call_operand.vmem [shape: f32[1,32], index: 2, kind: input, shape index: {}]
  %s3 = inlined_call_operand.vmem [shape: f32[128,32], index: 3, kind: output, shape index: {}]
  %s4 = sld [smem:[#allocation0]]
  $region22: #{_lambda_.22} parent=0
    _
  %s6 = ssub.s32 1, %s4
  %s7 = scalar_select 0, %s6, %s4
  // Predicated region
  $region2: #{_lambda_.22} parent=0 // pred_check
    _
  $region3: #{_lambda_.22} parent=0 // pred_check_branch
    %9 = sbr.rel (0) target = $region5
  $region4: #{_lambda_.22} parent=0 // pred_region
    _
  $region5: #{_lambda_.22} parent=0 // pred_fallthru
    _
  // Predicated region
  $region6: #{_lambda_.22} parent=0 // pred_check
    _
  $region7: #{_lambda_.22} parent=0 // pred_check_branch
    %11 = sbr.rel (0) target = $region9
  $region8: #{_lambda_.22} parent=0 // pred_region
    _
  $region9: #{_lambda_.22} parent=0 // pred_fallthru
    _
  // Predicated region
  $region10: #{_lambda_.22} parent=0 // pred_check
    _
  $region11: #{_lambda_.22} parent=0 // pred_check_branch
    %13 = sbr.rel (0) target = $region13
  $region12: #{_lambda_.22} parent=0 // pred_region
    _
  $region13: #{_lambda_.22} parent=0 // pred_fallthru
    _
  %v14 = vld [vmem:[%s0] sm:$0xff]
  %v15 = vld [vmem:[%s0 + $0x8] sm:$0xff]
  %v16 = vld [vmem:[%s0 + $0x10] sm:$0xff]
  %v17 = vld [vmem:[%s0 + $0x18] sm:$0xff]
  %v18 = vld [vmem:[%s0 + $0x20] sm:$0xff]
  %v19 = vld [vmem:[%s0 + $0x28] sm:$0xff]
  %v20 = vld [vmem:[%s0 + $0x30] sm:$0xff]
  %v21 = vld [vmem:[%s0 + $0x38] sm:$0xff]
  %v22 = vld [vmem:[%s0 + $0x40] sm:$0xff]
  %v23 = vld [vmem:[%s0 + $0x48] sm:$0xff]
  %v24 = vld [vmem:[%s0 + $0x50] sm:$0xff]
  %v25 = vld [vmem:[%s0 + $0x58] sm:$0xff]
  %v26 = vld [vmem:[%s0 + $0x60] sm:$0xff]
  %v27 = vld [vmem:[%s0 + $0x68] sm:$0xff]
  %v28 = vld [vmem:[%s0 + $0x70] sm:$0xff]
  %v29 = vld [vmem:[%s0 + $0x78] sm:$0xff]
  %v30 = vld [vmem:[%s0 + $0x80] sm:$0xff]
  %v31 = vld [vmem:[%s0 + $0x88] sm:$0xff]
  %v32 = vld [vmem:[%s0 + $0x90] sm:$0xff]
  %v33 = vld [vmem:[%s0 + $0x98] sm:$0xff]
  %v34 = vld [vmem:[%s0 + $0xa0] sm:$0xff]
  %v35 = vld [vmem:[%s0 + $0xa8] sm:$0xff]
  %v36 = vld [vmem:[%s0 + $0xb0] sm:$0xff]
  %v37 = vld [vmem:[%s0 + $0xb8] sm:$0xff]
  %v38 = vld [vmem:[%s0 + $0xc0] sm:$0xff]
  %v39 = vld [vmem:[%s0 + $0xc8] sm:$0xff]
  %v40 = vld [vmem:[%s0 + $0xd0] sm:$0xff]
  %v41 = vld [vmem:[%s0 + $0xd8] sm:$0xff]
  %v42 = vld [vmem:[%s0 + $0xe0] sm:$0xff]
  %v43 = vld [vmem:[%s0 + $0xe8] sm:$0xff]
  %v44 = vld [vmem:[%s0 + $0xf0] sm:$0xff]
  %v45 = vld [vmem:[%s0 + $0xf8] sm:$0xff]
  %v46 = vld [vmem:[%s0 + $0x100] sm:$0xff]
  %v47 = vld [vmem:[%s0 + $0x108] sm:$0xff]
  %v48 = vld [vmem:[%s0 + $0x110] sm:$0xff]
  %v49 = vld [vmem:[%s0 + $0x118] sm:$0xff]
  %v50 = vld [vmem:[%s0 + $0x120] sm:$0xff]
  %v51 = vld [vmem:[%s0 + $0x128] sm:$0xff]
  %v52 = vld [vmem:[%s0 + $0x130] sm:$0xff]
  %v53 = vld [vmem:[%s0 + $0x138] sm:$0xff]
  %v54 = vld [vmem:[%s0 + $0x140] sm:$0xff]
  %v55 = vld [vmem:[%s0 + $0x148] sm:$0xff]
  %v56 = vld [vmem:[%s0 + $0x150] sm:$0xff]
  %v57 = vld [vmem:[%s0 + $0x158] sm:$0xff]
  %v58 = vld [vmem:[%s0 + $0x160] sm:$0xff]
  %v59 = vld [vmem:[%s0 + $0x168] sm:$0xff]
  %v60 = vld [vmem:[%s0 + $0x170] sm:$0xff]
  %v61 = vld [vmem:[%s0 + $0x178] sm:$0xff]
  %v62 = vld [vmem:[%s1] sm:$0xff]
  %v63 = vld [vmem:[%s1 + $0x8] sm:$0xff]
  %v64 = vld [vmem:[%s1 + $0x10] sm:$0xff]
  %v65 = vld [vmem:[%s1 + $0x18] sm:$0xff]
  %v66 = vld [vmem:[%s1 + $0x20] sm:$0xff]
  %v67 = vld [vmem:[%s1 + $0x28] sm:$0xff]
  %v68 = vld [vmem:[%s1 + $0x30] sm:$0xff]
  %v69 = vld [vmem:[%s1 + $0x38] sm:$0xff]
  %v70 = vld [vmem:[%s1 + $0x40] sm:$0xff]
  %v71 = vld [vmem:[%s1 + $0x48] sm:$0xff]
  %v72 = vld [vmem:[%s1 + $0x50] sm:$0xff]
  %v73 = vld [vmem:[%s1 + $0x58] sm:$0xff]
  %v74 = vld [vmem:[%s1 + $0x60] sm:$0xff]
  %v75 = vld [vmem:[%s1 + $0x68] sm:$0xff]
  %v76 = vld [vmem:[%s1 + $0x70] sm:$0xff]
  %v77 = vld [vmem:[%s1 + $0x78] sm:$0xff]
  %v78 = vld [vmem:[%s1 + $0x80] sm:$0xff]
  %v79 = vld [vmem:[%s1 + $0x88] sm:$0xff]
  %v80 = vld [vmem:[%s1 + $0x90] sm:$0xff]
  %v81 = vld [vmem:[%s1 + $0x98] sm:$0xff]
  %v82 = vld [vmem:[%s1 + $0xa0] sm:$0xff]
  %v83 = vld [vmem:[%s1 + $0xa8] sm:$0xff]
  %v84 = vld [vmem:[%s1 + $0xb0] sm:$0xff]
  %v85 = vld [vmem:[%s1 + $0xb8] sm:$0xff]
  %v86 = vld [vmem:[%s1 + $0xc0] sm:$0xff]
  %v87 = vld [vmem:[%s1 + $0xc8] sm:$0xff]
  %v88 = vld [vmem:[%s1 + $0xd0] sm:$0xff]
  %v89 = vld [vmem:[%s1 + $0xd8] sm:$0xff]
  %v90 = vld [vmem:[%s1 + $0xe0] sm:$0xff]
  %v91 = vld [vmem:[%s1 + $0xe8] sm:$0xff]
  %v92 = vld [vmem:[%s1 + $0xf0] sm:$0xff]
  %v93 = vld [vmem:[%s1 + $0xf8] sm:$0xff]
  %v94 = vld [vmem:[%s1 + $0x100] sm:$0xff]
  %v95 = vld [vmem:[%s1 + $0x108] sm:$0xff]
  %v96 = vld [vmem:[%s1 + $0x110] sm:$0xff]
  %v97 = vld [vmem:[%s1 + $0x118] sm:$0xff]
  %v98 = vld [vmem:[%s2] sm:$0x1]
  %v100 = vlaneseq
  %v101 = vshrl.u32 %v100, 7
  %v102 = vsub.s32 0, %v101
  %v103 = vrot.slane %v98, %v102
  %vm105 = vcmask 261120
  %v107 = vsel %vm105, %v16, 0
  %v110 = vsel %vm105, %v19, 0
  %v113 = vsel %vm105, %v22, 0
  %v116 = vsel %vm105, %v25, 0
  %v119 = vsel %vm105, %v28, 0
  %v122 = vsel %vm105, %v31, 0
  %v125 = vsel %vm105, %v34, 0
  %v128 = vsel %vm105, %v37, 0
  %v131 = vsel %vm105, %v40, 0
  %v134 = vsel %vm105, %v43, 0
  %v137 = vsel %vm105, %v46, 0
  %v140 = vsel %vm105, %v49, 0
  %v143 = vsel %vm105, %v52, 0
  %v146 = vsel %vm105, %v55, 0
  %v149 = vsel %vm105, %v58, 0
  %v152 = vsel %vm105, %v61, 0
  %154 = vmatprep.subr.mxu0 0.0
  %155 = vmatpush1.msra.mxu0 %v62
  %156 = vmatprep.subr.mxu0 0.0
  %157 = vmatpush1.msra.mxu0 %v63
  %158 = vmatprep.subr.mxu0 0.0
  %159 = vmatpush1.msra.mxu0 %v64
  %160 = vmatprep.subr.mxu0 0.0
  %161 = vmatpush1.msra.mxu0 %v65
  %162 = vmatprep.subr.mxu0 0.0
  %163 = vmatpush1.msra.mxu0 %v66
  %164 = vmatprep.subr.mxu0 0.0
  %165 = vmatpush1.msra.mxu0 %v67
  %166 = vmatprep.subr.mxu0 0.0
  %167 = vmatpush1.msra.mxu0 %v68
  %168 = vmatprep.subr.mxu0 0.0
  %169 = vmatpush1.msra.mxu0 %v69
  %170 = vmatprep.subr.mxu0 0.0
  %171 = vmatpush1.msra.mxu0 %v70
  %172 = vmatprep.subr.mxu0 0.0
  %173 = vmatpush1.msra.mxu0 %v71
  %174 = vmatprep.subr.mxu0 0.0
  %175 = vmatpush1.msra.mxu0 %v72
  %176 = vmatprep.subr.mxu0 0.0
  %177 = vmatpush1.msra.mxu0 %v73
  %178 = vmatprep.subr.mxu0 0.0
  %179 = vmatpush1.msra.mxu0 %v74
  %180 = vmatprep.subr.mxu0 0.0
  %181 = vmatpush1.msra.mxu0 %v75
  %182 = vmatprep.subr.mxu0 0.0
  %183 = vmatpush1.msra.mxu0 %v76
  %184 = vmatprep.subr.mxu0 0.0
  %185 = vmatpush1.msra.mxu0 %v77
  %186 = vmatprep.subr.mxu0 0.0
  %187 = vmatpush1.msra.mxu0 %v78
  %188 = vmatprep.subr.mxu0 0.0
  %189 = vmatpush1.msra.mxu0 %v79
  %190 = vmatprep.subr.mxu0 0.0
  %191 = vmatpush1.msra.mxu0 %v80
  %192 = vmatprep.subr.mxu0 0.0
  %193 = vmatpush1.msra.mxu0 %v81
  %194 = vmatprep.subr.mxu0 0.0
  %195 = vmatpush1.msra.mxu0 %v82
  %196 = vmatprep.subr.mxu0 0.0
  %197 = vmatpush1.msra.mxu0 %v83
  %198 = vmatprep.subr.mxu0 0.0
  %199 = vmatpush1.msra.mxu0 %v84
  %200 = vmatprep.subr.mxu0 0.0
  %201 = vmatpush1.msra.mxu0 %v85
  %202 = vmatprep.subr.mxu0 0.0
  %203 = vmatpush1.msra.mxu0 %v86
  %204 = vmatprep.subr.mxu0 0.0
  %205 = vmatpush1.msra.mxu0 %v87
  %206 = vmatprep.subr.mxu0 0.0
  %207 = vmatpush1.msra.mxu0 %v88
  %208 = vmatprep.subr.mxu0 0.0
  %209 = vmatpush1.msra.mxu0 %v89
  %210 = vmatprep.subr.mxu0 0.0
  %211 = vmatpush1.msra.mxu0 %v90
  %212 = vmatprep.subr.mxu0 0.0
  %213 = vmatpush1.msra.mxu0 %v91
  %214 = vmatprep.subr.mxu0 0.0
  %215 = vmatpush1.msra.mxu0 %v92
  %216 = vmatprep.subr.mxu0 0.0
  %217 = vmatpush1.msra.mxu0 %v93
  %218 = vmatprep.mubr.f32.mxu0 %v15
  %219 = vmatmul.mubr.f32.gmra.mrb[0].mxu0 %v14
  %v220 = vpop.f32.mrb[0].mxu0
  %v221 = vadd.f32 %v103, %v220
  %v222 = vpop.f32.mrb[0].mxu0
  %223 = vmatprep.mubr.f32.mxu0 %v18
  %224 = vmatmul.mubr.f32.gmra.mrb[0].mxu0 %v17
  %v225 = vpop.f32.mrb[0].mxu0
  %v226 = vadd.f32 %v103, %v225
  %v227 = vpop.f32.mrb[0].mxu0
  %228 = vmatprep.mubr.f32.mxu0 %v21
  %229 = vmatmul.mubr.f32.gmra.mrb[0].mxu0 %v20
  %v230 = vpop.f32.mrb[0].mxu0
  %v231 = vadd.f32 %v103, %v230
  %v232 = vpop.f32.mrb[0].mxu0
  %233 = vmatprep.mubr.f32.mxu0 %v24
  %234 = vmatmul.mubr.f32.gmra.mrb[0].mxu0 %v23
  %v235 = vpop.f32.mrb[0].mxu0
  %v236 = vadd.f32 %v103, %v235
  %v237 = vpop.f32.mrb[0].mxu0
  %238 = vmatprep.mubr.f32.mxu0 %v27
  %239 = vmatmul.mubr.f32.gmra.mrb[0].mxu0 %v26
  %v240 = vpop.f32.mrb[0].mxu0
  %v241 = vadd.f32 %v103, %v240
  %v242 = vpop.f32.mrb[0].mxu0
  %243 = vmatprep.mubr.f32.mxu0 %v30
  %244 = vmatmul.mubr.f32.gmra.mrb[0].mxu0 %v29
  %v245 = vpop.f32.mrb[0].mxu0
  %v246 = vadd.f32 %v103, %v245
  %v247 = vpop.f32.mrb[0].mxu0
  %248 = vmatprep.mubr.f32.mxu0 %v33
  %249 = vmatmul.mubr.f32.gmra.mrb[0].mxu0 %v32
  %v250 = vpop.f32.mrb[0].mxu0
  %v251 = vadd.f32 %v103, %v250
  %v252 = vpop.f32.mrb[0].mxu0
  %253 = vmatprep.mubr.f32.mxu0 %v36
  %254 = vmatmul.mubr.f32.gmra.mrb[0].mxu0 %v35
  %v255 = vpop.f32.mrb[0].mxu0
  %v256 = vadd.f32 %v103, %v255
  %v257 = vpop.f32.mrb[0].mxu0
  %258 = vmatprep.mubr.f32.mxu0 %v39
  %259 = vmatmul.mubr.f32.gmra.mrb[0].mxu0 %v38
  %v260 = vpop.f32.mrb[0].mxu0
  %v261 = vadd.f32 %v103, %v260
  %v262 = vpop.f32.mrb[0].mxu0
  %263 = vmatprep.mubr.f32.mxu0 %v42
  %264 = vmatmul.mubr.f32.gmra.mrb[0].mxu0 %v41
  %v265 = vpop.f32.mrb[0].mxu0
  %v266 = vadd.f32 %v103, %v265
  %v267 = vpop.f32.mrb[0].mxu0
  %268 = vmatprep.mubr.f32.mxu0 %v45
  %269 = vmatmul.mubr.f32.gmra.mrb[0].mxu0 %v44
  %v270 = vpop.f32.mrb[0].mxu0
  %v271 = vadd.f32 %v103, %v270
  %v272 = vpop.f32.mrb[0].mxu0
  %273 = vmatprep.mubr.f32.mxu0 %v48
  %274 = vmatmul.mubr.f32.gmra.mrb[0].mxu0 %v47
  %v275 = vpop.f32.mrb[0].mxu0
  %v276 = vadd.f32 %v103, %v275
  %v277 = vpop.f32.mrb[0].mxu0
  %278 = vmatprep.mubr.f32.mxu0 %v51
  %279 = vmatmul.mubr.f32.gmra.mrb[0].mxu0 %v50
  %v280 = vpop.f32.mrb[0].mxu0
  %v281 = vadd.f32 %v103, %v280
  %v282 = vpop.f32.mrb[0].mxu0
  %283 = vmatprep.mubr.f32.mxu0 %v54
  %284 = vmatmul.mubr.f32.gmra.mrb[0].mxu0 %v53
  %v285 = vpop.f32.mrb[0].mxu0
  %v286 = vadd.f32 %v103, %v285
  %v287 = vpop.f32.mrb[0].mxu0
  %288 = vmatprep.mubr.f32.mxu0 %v57
  %289 = vmatmul.mubr.f32.gmra.mrb[0].mxu0 %v56
  %v290 = vpop.f32.mrb[0].mxu0
  %v291 = vadd.f32 %v103, %v290
  %v292 = vpop.f32.mrb[0].mxu0
  %293 = vmatprep.mubr.f32.mxu0 %v60
  %294 = vmatmul.mubr.f32.gmra.mrb[0].mxu0 %v59
  %v295 = vpop.f32.mrb[0].mxu0
  %v296 = vadd.f32 %v103, %v295
  %v297 = vpop.f32.mrb[0].mxu0
  %298 = vdwg.mxu0
  %299 = vmatprep.subr.mxu0 0.0
  %300 = vmatpush1.msra.mxu0 %v94
  %301 = vmatprep.subr.mxu0 0.0
  %302 = vmatpush1.msra.mxu0 %v95
  %303 = vmatprep.subr.mxu0 0.0
  %304 = vmatpush1.msra.mxu0 %v96
  %305 = vmatprep.subr.mxu0 0.0
  %306 = vmatpush1.msra.mxu0 %v97
  %307 = vmatprep.subr.mxu0 0.0
  %308 = vmatpush1.msra.mxu0 0.0
  %309 = vmatprep.subr.mxu0 0.0
  %310 = vmatpush1.msra.mxu0 0.0
  %311 = vmatprep.subr.mxu0 0.0
  %312 = vmatpush1.msra.mxu0 0.0
  %313 = vmatprep.subr.mxu0 0.0
  %314 = vmatpush1.msra.mxu0 0.0
  %315 = vmatprep.subr.mxu0 0.0
  %316 = vmatpush1.msra.mxu0 0.0
  %317 = vmatprep.subr.mxu0 0.0
  %318 = vmatpush1.msra.mxu0 0.0
  %319 = vmatprep.subr.mxu0 0.0
  %320 = vmatpush1.msra.mxu0 0.0
  %321 = vmatprep.subr.mxu0 0.0
  %322 = vmatpush1.msra.mxu0 0.0
  %323 = vmatprep.subr.mxu0 0.0
  %324 = vmatpush1.msra.mxu0 0.0
  %325 = vmatprep.subr.mxu0 0.0
  %326 = vmatpush1.msra.mxu0 0.0
  %327 = vmatprep.subr.mxu0 0.0
  %328 = vmatpush1.msra.mxu0 0.0
  %329 = vmatprep.subr.mxu0 0.0
  %330 = vmatpush1.msra.mxu0 0.0
  %331 = vmatprep.subr.mxu0 0.0
  %332 = vmatpush1.msra.mxu0 0.0
  %333 = vmatprep.subr.mxu0 0.0
  %334 = vmatpush1.msra.mxu0 0.0
  %335 = vmatprep.subr.mxu0 0.0
  %336 = vmatpush1.msra.mxu0 0.0
  %337 = vmatprep.subr.mxu0 0.0
  %338 = vmatpush1.msra.mxu0 0.0
  %339 = vmatprep.subr.mxu0 0.0
  %340 = vmatpush1.msra.mxu0 0.0
  %341 = vmatprep.subr.mxu0 0.0
  %342 = vmatpush1.msra.mxu0 0.0
  %343 = vmatprep.subr.mxu0 0.0
  %344 = vmatpush1.msra.mxu0 0.0
  %345 = vmatprep.subr.mxu0 0.0
  %346 = vmatpush1.msra.mxu0 0.0
  %347 = vmatprep.subr.mxu0 0.0
  %348 = vmatpush1.msra.mxu0 0.0
  %349 = vmatprep.subr.mxu0 0.0
  %350 = vmatpush1.msra.mxu0 0.0
  %351 = vmatprep.subr.mxu0 0.0
  %352 = vmatpush1.msra.mxu0 0.0
  %353 = vmatprep.subr.mxu0 0.0
  %354 = vmatpush1.msra.mxu0 0.0
  %355 = vmatprep.subr.mxu0 0.0
  %356 = vmatpush1.msra.mxu0 0.0
  %357 = vmatprep.subr.mxu0 0.0
  %358 = vmatpush1.msra.mxu0 0.0
  %359 = vmatprep.subr.mxu0 0.0
  %360 = vmatpush1.msra.mxu0 0.0
  %361 = vmatprep.subr.mxu0 0.0
  %362 = vmatpush1.msra.mxu0 0.0
  %363 = vmatprep.mubr.f32.mxu0 0.0
  %364 = vmatmul.mubr.f32.gmra.mrb[0].mxu0 %v107
  %v365 = vpop.f32.mrb[0].mxu0
  %v366 = vadd.f32 %v221, %v365
  %v367 = vpop.f32.mrb[0].mxu0
  %368 = vmatprep.mubr.f32.mxu0 0.0
  %369 = vmatmul.mubr.f32.gmra.mrb[0].mxu0 %v110
  %v370 = vpop.f32.mrb[0].mxu0
  %v371 = vadd.f32 %v226, %v370
  %v372 = vpop.f32.mrb[0].mxu0
  %373 = vmatprep.mubr.f32.mxu0 0.0
  %374 = vmatmul.mubr.f32.gmra.mrb[0].mxu0 %v113
  %v375 = vpop.f32.mrb[0].mxu0
  %v376 = vadd.f32 %v231, %v375
  %v377 = vpop.f32.mrb[0].mxu0
  %378 = vmatprep.mubr.f32.mxu0 0.0
  %379 = vmatmul.mubr.f32.gmra.mrb[0].mxu0 %v116
  %v380 = vpop.f32.mrb[0].mxu0
  %v381 = vadd.f32 %v236, %v380
  %v382 = vpop.f32.mrb[0].mxu0
  %383 = vmatprep.mubr.f32.mxu0 0.0
  %384 = vmatmul.mubr.f32.gmra.mrb[0].mxu0 %v119
  %v385 = vpop.f32.mrb[0].mxu0
  %v386 = vadd.f32 %v241, %v385
  %v387 = vpop.f32.mrb[0].mxu0
  %388 = vmatprep.mubr.f32.mxu0 0.0
  %389 = vmatmul.mubr.f32.gmra.mrb[0].mxu0 %v122
  %v390 = vpop.f32.mrb[0].mxu0
  %v391 = vadd.f32 %v246, %v390
  %v392 = vpop.f32.mrb[0].mxu0
  %393 = vmatprep.mubr.f32.mxu0 0.0
  %394 = vmatmul.mubr.f32.gmra.mrb[0].mxu0 %v125
  %v395 = vpop.f32.mrb[0].mxu0
  %v396 = vadd.f32 %v251, %v395
  %v397 = vpop.f32.mrb[0].mxu0
  %398 = vmatprep.mubr.f32.mxu0 0.0
  %399 = vmatmul.mubr.f32.gmra.mrb[0].mxu0 %v128
  %v400 = vpop.f32.mrb[0].mxu0
  %v401 = vadd.f32 %v256, %v400
  %v402 = vpop.f32.mrb[0].mxu0
  %403 = vmatprep.mubr.f32.mxu0 0.0
  %404 = vmatmul.mubr.f32.gmra.mrb[0].mxu0 %v131
  %v405 = vpop.f32.mrb[0].mxu0
  %v406 = vadd.f32 %v261, %v405
  %v407 = vpop.f32.mrb[0].mxu0
  %408 = vmatprep.mubr.f32.mxu0 0.0
  %409 = vmatmul.mubr.f32.gmra.mrb[0].mxu0 %v134
  %v410 = vpop.f32.mrb[0].mxu0
  %v411 = vadd.f32 %v266, %v410
  %v412 = vpop.f32.mrb[0].mxu0
  %413 = vmatprep.mubr.f32.mxu0 0.0
  %414 = vmatmul.mubr.f32.gmra.mrb[0].mxu0 %v137
  %v415 = vpop.f32.mrb[0].mxu0
  %v416 = vadd.f32 %v271, %v415
  %v417 = vpop.f32.mrb[0].mxu0
  %418 = vmatprep.mubr.f32.mxu0 0.0
  %419 = vmatmul.mubr.f32.gmra.mrb[0].mxu0 %v140
  %v420 = vpop.f32.mrb[0].mxu0
  %v421 = vadd.f32 %v276, %v420
  %v422 = vpop.f32.mrb[0].mxu0
  %423 = vmatprep.mubr.f32.mxu0 0.0
  %424 = vmatmul.mubr.f32.gmra.mrb[0].mxu0 %v143
  %v425 = vpop.f32.mrb[0].mxu0
  %v426 = vadd.f32 %v281, %v425
  %v427 = vpop.f32.mrb[0].mxu0
  %428 = vmatprep.mubr.f32.mxu0 0.0
  %429 = vmatmul.mubr.f32.gmra.mrb[0].mxu0 %v146
  %v430 = vpop.f32.mrb[0].mxu0
  %v431 = vadd.f32 %v286, %v430
  %v432 = vpop.f32.mrb[0].mxu0
  %433 = vmatprep.mubr.f32.mxu0 0.0
  %434 = vmatmul.mubr.f32.gmra.mrb[0].mxu0 %v149
  %v435 = vpop.f32.mrb[0].mxu0
  %v436 = vadd.f32 %v291, %v435
  %v437 = vpop.f32.mrb[0].mxu0
  %438 = vmatprep.mubr.f32.mxu0 0.0
  %439 = vmatmul.mubr.f32.gmra.mrb[0].mxu0 %v152
  %v440 = vpop.f32.mrb[0].mxu0
  %v441 = vadd.f32 %v296, %v440
  %v442 = vpop.f32.mrb[0].mxu0
  %443 = vdwg.mxu0
  %v444 = vmax.f32 %v366, 0.0
  %v445 = vmax.f32 %v371, 0.0
  %v446 = vmax.f32 %v376, 0.0
  %v447 = vmax.f32 %v381, 0.0
  %v448 = vmax.f32 %v386, 0.0
  %v449 = vmax.f32 %v391, 0.0
  %v450 = vmax.f32 %v396, 0.0
  %v451 = vmax.f32 %v401, 0.0
  %v452 = vmax.f32 %v406, 0.0
  %v453 = vmax.f32 %v411, 0.0
  %v454 = vmax.f32 %v416, 0.0
  %v455 = vmax.f32 %v421, 0.0
  %v456 = vmax.f32 %v426, 0.0
  %v457 = vmax.f32 %v431, 0.0
  %v458 = vmax.f32 %v436, 0.0
  %v459 = vmax.f32 %v441, 0.0
  %460 = vst.msk [vmem:[%s3] sm:$0xff] %vm105, %v444
  %461 = vst.msk [vmem:[%s3 + $0x8] sm:$0xff] %vm105, %v445
  %462 = vst.msk [vmem:[%s3 + $0x10] sm:$0xff] %vm105, %v446
  %463 = vst.msk [vmem:[%s3 + $0x18] sm:$0xff] %vm105, %v447
  %464 = vst.msk [vmem:[%s3 + $0x20] sm:$0xff] %vm105, %v448
  %465 = vst.msk [vmem:[%s3 + $0x28] sm:$0xff] %vm105, %v449
  %466 = vst.msk [vmem:[%s3 + $0x30] sm:$0xff] %vm105, %v450
  %467 = vst.msk [vmem:[%s3 + $0x38] sm:$0xff] %vm105, %v451
  %468 = vst.msk [vmem:[%s3 + $0x40] sm:$0xff] %vm105, %v452
  %469 = vst.msk [vmem:[%s3 + $0x48] sm:$0xff] %vm105, %v453
  %470 = vst.msk [vmem:[%s3 + $0x50] sm:$0xff] %vm105, %v454
  %471 = vst.msk [vmem:[%s3 + $0x58] sm:$0xff] %vm105, %v455
  %472 = vst.msk [vmem:[%s3 + $0x60] sm:$0xff] %vm105, %v456
  %473 = vst.msk [vmem:[%s3 + $0x68] sm:$0xff] %vm105, %v457
  %474 = vst.msk [vmem:[%s3 + $0x70] sm:$0xff] %vm105, %v458
  %475 = vst.msk [vmem:[%s3 + $0x78] sm:$0xff] %vm105, %v459
  // Predicated region
  $region14: #{_lambda_.22} parent=0 // pred_check
    _
  $region15: #{_lambda_.22} parent=0 // pred_check_branch
    %477 = sbr.rel (0) target = $region17
  $region16: #{_lambda_.22} parent=0 // pred_region
    _
  $region17: #{_lambda_.22} parent=0 // pred_fallthru
    _
  // Predicated region
  $region18: #{_lambda_.22} parent=0 // pred_check
    _
  $region19: #{_lambda_.22} parent=0 // pred_check_branch
    %479 = sbr.rel (0) target = $region21
  $region20: #{_lambda_.22} parent=0 // pred_region
    _
  $region21: #{_lambda_.22} parent=0 // pred_fallthru
    _

// kernel: _lambda_.24
$region0: #{_lambda_.24}
  #allocation0 [shape = 'u32[]', space=smem, size = 0x4, offset = 0x4, fixed_abs, tag = 'smem constant byte address 0x4 - core index']
  #allocation1 [shape = 'u32[144,128]{1,0:T(1,128)}', space=vmem, size = 0x12000, scoped, tag = 'internal scratch']
  %s0 = inlined_call_operand.vmem [shape: f32[128,128], index: 0, kind: input, shape index: {}]
  %s1 = inlined_call_operand.vmem [shape: f32[128,32], index: 1, kind: input, shape index: {}]
  %s2 = inlined_call_operand.vmem [shape: f32[1,32], index: 2, kind: input, shape index: {}]
  %s3 = inlined_call_operand.vmem [shape: f32[128,32], index: 3, kind: output, shape index: {}]
  %s4 = sld [smem:[#allocation0]]
  $region22: #{_lambda_.24} parent=0
    _
  %s6 = ssub.s32 1, %s4
  %s7 = scalar_select 0, %s6, %s4
  // Predicated region
  $region2: #{_lambda_.24} parent=0 // pred_check
    _
  $region3: #{_lambda_.24} parent=0 // pred_check_branch
    %9 = sbr.rel (0) target = $region5
  $region4: #{_lambda_.24} parent=0 // pred_region
    _
  $region5: #{_lambda_.24} parent=0 // pred_fallthru
    _
  // Predicated region
  $region6: #{_lambda_.24} parent=0 // pred_check
    _
  $region7: #{_lambda_.24} parent=0 // pred_check_branch
    %11 = sbr.rel (0) target = $region9
  $region8: #{_lambda_.24} parent=0 // pred_region
    _
  $region9: #{_lambda_.24} parent=0 // pred_fallthru
    _
  // Predicated region
  $region10: #{_lambda_.24} parent=0 // pred_check
    _
  $region11: #{_lambda_.24} parent=0 // pred_check_branch
    %13 = sbr.rel (0) target = $region13
  $region12: #{_lambda_.24} parent=0 // pred_region
    _
  $region13: #{_lambda_.24} parent=0 // pred_fallthru
    _
  %v14 = vld [vmem:[%s0] sm:$0xff]
  %v15 = vld [vmem:[%s0 + $0x8] sm:$0xff]
  %v16 = vld [vmem:[%s0 + $0x10] sm:$0xff]
  %v17 = vld [vmem:[%s0 + $0x18] sm:$0xff]
  %v18 = vld [vmem:[%s0 + $0x20] sm:$0xff]
  %v19 = vld [vmem:[%s0 + $0x28] sm:$0xff]
  %v20 = vld [vmem:[%s0 + $0x30] sm:$0xff]
  %v21 = vld [vmem:[%s0 + $0x38] sm:$0xff]
  %v22 = vld [vmem:[%s0 + $0x40] sm:$0xff]
  %v23 = vld [vmem:[%s0 + $0x48] sm:$0xff]
  %v24 = vld [vmem:[%s0 + $0x50] sm:$0xff]
  %v25 = vld [vmem:[%s0 + $0x58] sm:$0xff]
  %v26 = vld [vmem:[%s0 + $0x60] sm:$0xff]
  %v27 = vld [vmem:[%s0 + $0x68] sm:$0xff]
  %v28 = vld [vmem:[%s0 + $0x70] sm:$0xff]
  %v29 = vld [vmem:[%s0 + $0x78] sm:$0xff]
  %v30 = vld [vmem:[%s1] sm:$0xff]
  %v31 = vld [vmem:[%s1 + $0x8] sm:$0xff]
  %v32 = vld [vmem:[%s1 + $0x10] sm:$0xff]
  %v33 = vld [vmem:[%s1 + $0x18] sm:$0xff]
  %v34 = vld [vmem:[%s1 + $0x20] sm:$0xff]
  %v35 = vld [vmem:[%s1 + $0x28] sm:$0xff]
  %v36 = vld [vmem:[%s1 + $0x30] sm:$0xff]
  %v37 = vld [vmem:[%s1 + $0x38] sm:$0xff]
  %v38 = vld [vmem:[%s1 + $0x40] sm:$0xff]
  %v39 = vld [vmem:[%s1 + $0x48] sm:$0xff]
  %v40 = vld [vmem:[%s1 + $0x50] sm:$0xff]
  %v41 = vld [vmem:[%s1 + $0x58] sm:$0xff]
  %v42 = vld [vmem:[%s1 + $0x60] sm:$0xff]
  %v43 = vld [vmem:[%s1 + $0x68] sm:$0xff]
  %v44 = vld [vmem:[%s1 + $0x70] sm:$0xff]
  %v45 = vld [vmem:[%s1 + $0x78] sm:$0xff]
  %v46 = vld [vmem:[%s2] sm:$0x1]
  %v48 = vlaneseq
  %v49 = vshrl.u32 %v48, 7
  %v50 = vsub.s32 0, %v49
  %v51 = vrot.slane %v46, %v50
  %53 = vmatprep.subr.mxu0 0.0
  %54 = vmatpush1.msra.mxu0 %v30
  %55 = vmatprep.subr.mxu0 0.0
  %56 = vmatpush1.msra.mxu0 %v31
  %57 = vmatprep.subr.mxu0 0.0
  %58 = vmatpush1.msra.mxu0 %v32
  %59 = vmatprep.subr.mxu0 0.0
  %60 = vmatpush1.msra.mxu0 %v33
  %61 = vmatprep.subr.mxu0 0.0
  %62 = vmatpush1.msra.mxu0 %v34
  %63 = vmatprep.subr.mxu0 0.0
  %64 = vmatpush1.msra.mxu0 %v35
  %65 = vmatprep.subr.mxu0 0.0
  %66 = vmatpush1.msra.mxu0 %v36
  %67 = vmatprep.subr.mxu0 0.0
  %68 = vmatpush1.msra.mxu0 %v37
  %69 = vmatprep.subr.mxu0 0.0
  %70 = vmatpush1.msra.mxu0 %v38
  %71 = vmatprep.subr.mxu0 0.0
  %72 = vmatpush1.msra.mxu0 %v39
  %73 = vmatprep.subr.mxu0 0.0
  %74 = vmatpush1.msra.mxu0 %v40
  %75 = vmatprep.subr.mxu0 0.0
  %76 = vmatpush1.msra.mxu0 %v41
  %77 = vmatprep.subr.mxu0 0.0
  %78 = vmatpush1.msra.mxu0 %v42
  %79 = vmatprep.subr.mxu0 0.0
  %80 = vmatpush1.msra.mxu0 %v43
  %81 = vmatprep.subr.mxu0 0.0
  %82 = vmatpush1.msra.mxu0 %v44
  %83 = vmatprep.subr.mxu0 0.0
  %84 = vmatpush1.msra.mxu0 %v45
  %85 = vmatprep.subr.mxu0 0.0
  %86 = vmatpush1.msra.mxu0 0.0
  %87 = vmatprep.subr.mxu0 0.0
  %88 = vmatpush1.msra.mxu0 0.0
  %89 = vmatprep.subr.mxu0 0.0
  %90 = vmatpush1.msra.mxu0 0.0
  %91 = vmatprep.subr.mxu0 0.0
  %92 = vmatpush1.msra.mxu0 0.0
  %93 = vmatprep.subr.mxu0 0.0
  %94 = vmatpush1.msra.mxu0 0.0
  %95 = vmatprep.subr.mxu0 0.0
  %96 = vmatpush1.msra.mxu0 0.0
  %97 = vmatprep.subr.mxu0 0.0
  %98 = vmatpush1.msra.mxu0 0.0
  %99 = vmatprep.subr.mxu0 0.0
  %100 = vmatpush1.msra.mxu0 0.0
  %101 = vmatprep.subr.mxu0 0.0
  %102 = vmatpush1.msra.mxu0 0.0
  %103 = vmatprep.subr.mxu0 0.0
  %104 = vmatpush1.msra.mxu0 0.0
  %105 = vmatprep.subr.mxu0 0.0
  %106 = vmatpush1.msra.mxu0 0.0
  %107 = vmatprep.subr.mxu0 0.0
  %108 = vmatpush1.msra.mxu0 0.0
  %109 = vmatprep.subr.mxu0 0.0
  %110 = vmatpush1.msra.mxu0 0.0
  %111 = vmatprep.subr.mxu0 0.0
  %112 = vmatpush1.msra.mxu0 0.0
  %113 = vmatprep.subr.mxu0 0.0
  %114 = vmatpush1.msra.mxu0 0.0
  %115 = vmatprep.subr.mxu0 0.0
  %116 = vmatpush1.msra.mxu0 0.0
  %117 = vmatprep.mubr.f32.mxu0 0.0
  %118 = vmatmul.mubr.f32.gmra.mrb[0].mxu0 %v14
  %v119 = vpop.f32.mrb[0].mxu0
  %v120 = vadd.f32 %v51, %v119
  %v121 = vpop.f32.mrb[0].mxu0
  %122 = vmatprep.mubr.f32.mxu0 0.0
  %123 = vmatmul.mubr.f32.gmra.mrb[0].mxu0 %v15
  %v124 = vpop.f32.mrb[0].mxu0
  %v125 = vadd.f32 %v51, %v124
  %v126 = vpop.f32.mrb[0].mxu0
  %127 = vmatprep.mubr.f32.mxu0 0.0
  %128 = vmatmul.mubr.f32.gmra.mrb[0].mxu0 %v16
  %v129 = vpop.f32.mrb[0].mxu0
  %v130 = vadd.f32 %v51, %v129
  %v131 = vpop.f32.mrb[0].mxu0
  %132 = vmatprep.mubr.f32.mxu0 0.0
  %133 = vmatmul.mubr.f32.gmra.mrb[0].mxu0 %v17
  %v134 = vpop.f32.mrb[0].mxu0
  %v135 = vadd.f32 %v51, %v134
  %v136 = vpop.f32.mrb[0].mxu0
  %137 = vmatprep.mubr.f32.mxu0 0.0
  %138 = vmatmul.mubr.f32.gmra.mrb[0].mxu0 %v18
  %v139 = vpop.f32.mrb[0].mxu0
  %v140 = vadd.f32 %v51, %v139
  %v141 = vpop.f32.mrb[0].mxu0
  %142 = vmatprep.mubr.f32.mxu0 0.0
  %143 = vmatmul.mubr.f32.gmra.mrb[0].mxu0 %v19
  %v144 = vpop.f32.mrb[0].mxu0
  %v145 = vadd.f32 %v51, %v144
  %v146 = vpop.f32.mrb[0].mxu0
  %147 = vmatprep.mubr.f32.mxu0 0.0
  %148 = vmatmul.mubr.f32.gmra.mrb[0].mxu0 %v20
  %v149 = vpop.f32.mrb[0].mxu0
  %v150 = vadd.f32 %v51, %v149
  %v151 = vpop.f32.mrb[0].mxu0
  %152 = vmatprep.mubr.f32.mxu0 0.0
  %153 = vmatmul.mubr.f32.gmra.mrb[0].mxu0 %v21
  %v154 = vpop.f32.mrb[0].mxu0
  %v155 = vadd.f32 %v51, %v154
  %v156 = vpop.f32.mrb[0].mxu0
  %157 = vmatprep.mubr.f32.mxu0 0.0
  %158 = vmatmul.mubr.f32.gmra.mrb[0].mxu0 %v22
  %v159 = vpop.f32.mrb[0].mxu0
  %v160 = vadd.f32 %v51, %v159
  %v161 = vpop.f32.mrb[0].mxu0
  %162 = vmatprep.mubr.f32.mxu0 0.0
  %163 = vmatmul.mubr.f32.gmra.mrb[0].mxu0 %v23
  %v164 = vpop.f32.mrb[0].mxu0
  %v165 = vadd.f32 %v51, %v164
  %v166 = vpop.f32.mrb[0].mxu0
  %167 = vmatprep.mubr.f32.mxu0 0.0
  %168 = vmatmul.mubr.f32.gmra.mrb[0].mxu0 %v24
  %v169 = vpop.f32.mrb[0].mxu0
  %v170 = vadd.f32 %v51, %v169
  %v171 = vpop.f32.mrb[0].mxu0
  %172 = vmatprep.mubr.f32.mxu0 0.0
  %173 = vmatmul.mubr.f32.gmra.mrb[0].mxu0 %v25
  %v174 = vpop.f32.mrb[0].mxu0
  %v175 = vadd.f32 %v51, %v174
  %v176 = vpop.f32.mrb[0].mxu0
  %177 = vmatprep.mubr.f32.mxu0 0.0
  %178 = vmatmul.mubr.f32.gmra.mrb[0].mxu0 %v26
  %v179 = vpop.f32.mrb[0].mxu0
  %v180 = vadd.f32 %v51, %v179
  %v181 = vpop.f32.mrb[0].mxu0
  %182 = vmatprep.mubr.f32.mxu0 0.0
  %183 = vmatmul.mubr.f32.gmra.mrb[0].mxu0 %v27
  %v184 = vpop.f32.mrb[0].mxu0
  %v185 = vadd.f32 %v51, %v184
  %v186 = vpop.f32.mrb[0].mxu0
  %187 = vmatprep.mubr.f32.mxu0 0.0
  %188 = vmatmul.mubr.f32.gmra.mrb[0].mxu0 %v28
  %v189 = vpop.f32.mrb[0].mxu0
  %v190 = vadd.f32 %v51, %v189
  %v191 = vpop.f32.mrb[0].mxu0
  %192 = vmatprep.mubr.f32.mxu0 0.0
  %193 = vmatmul.mubr.f32.gmra.mrb[0].mxu0 %v29
  %v194 = vpop.f32.mrb[0].mxu0
  %v195 = vadd.f32 %v51, %v194
  %v196 = vpop.f32.mrb[0].mxu0
  %197 = vdwg.mxu0
  %v198 = vmax.f32 %v120, 0.0
  %v199 = vmax.f32 %v125, 0.0
  %v200 = vmax.f32 %v130, 0.0
  %v201 = vmax.f32 %v135, 0.0
  %v202 = vmax.f32 %v140, 0.0
  %v203 = vmax.f32 %v145, 0.0
  %v204 = vmax.f32 %v150, 0.0
  %v205 = vmax.f32 %v155, 0.0
  %v206 = vmax.f32 %v160, 0.0
  %v207 = vmax.f32 %v165, 0.0
  %v208 = vmax.f32 %v170, 0.0
  %v209 = vmax.f32 %v175, 0.0
  %v210 = vmax.f32 %v180, 0.0
  %v211 = vmax.f32 %v185, 0.0
  %v212 = vmax.f32 %v190, 0.0
  %v213 = vmax.f32 %v195, 0.0
  %vm214 = vcmask 261120
  %215 = vst.msk [vmem:[%s3] sm:$0xff] %vm214, %v198
  %216 = vst.msk [vmem:[%s3 + $0x8] sm:$0xff] %vm214, %v199
  %217 = vst.msk [vmem:[%s3 + $0x10] sm:$0xff] %vm214, %v200
  %218 = vst.msk [vmem:[%s3 + $0x18] sm:$0xff] %vm214, %v201
  %219 = vst.msk [vmem:[%s3 + $0x20] sm:$0xff] %vm214, %v202
  %220 = vst.msk [vmem:[%s3 + $0x28] sm:$0xff] %vm214, %v203
  %221 = vst.msk [vmem:[%s3 + $0x30] sm:$0xff] %vm214, %v204
  %222 = vst.msk [vmem:[%s3 + $0x38] sm:$0xff] %vm214, %v205
  %223 = vst.msk [vmem:[%s3 + $0x40] sm:$0xff] %vm214, %v206
  %224 = vst.msk [vmem:[%s3 + $0x48] sm:$0xff] %vm214, %v207
  %225 = vst.msk [vmem:[%s3 + $0x50] sm:$0xff] %vm214, %v208
  %226 = vst.msk [vmem:[%s3 + $0x58] sm:$0xff] %vm214, %v209
  %227 = vst.msk [vmem:[%s3 + $0x60] sm:$0xff] %vm214, %v210
  %228 = vst.msk [vmem:[%s3 + $0x68] sm:$0xff] %vm214, %v211
  %229 = vst.msk [vmem:[%s3 + $0x70] sm:$0xff] %vm214, %v212
  %230 = vst.msk [vmem:[%s3 + $0x78] sm:$0xff] %vm214, %v213
  // Predicated region
  $region14: #{_lambda_.24} parent=0 // pred_check
    _
  $region15: #{_lambda_.24} parent=0 // pred_check_branch
    %232 = sbr.rel (0) target = $region17
  $region16: #{_lambda_.24} parent=0 // pred_region
    _
  $region17: #{_lambda_.24} parent=0 // pred_fallthru
    _
  // Predicated region
  $region18: #{_lambda_.24} parent=0 // pred_check
    _
  $region19: #{_lambda_.24} parent=0 // pred_check_branch
    %234 = sbr.rel (0) target = $region21
  $region20: #{_lambda_.24} parent=0 // pred_region
    _
  $region21: #{_lambda_.24} parent=0 // pred_fallthru
    _

// kernel: _lambda_.26
$region0: #{_lambda_.26}
  #allocation0 [shape = 'u32[]', space=smem, size = 0x4, offset = 0x4, fixed_abs, tag = 'smem constant byte address 0x4 - core index']
  #allocation1 [shape = 'u32[144,128]{1,0:T(1,128)}', space=vmem, size = 0x12000, scoped, tag = 'internal scratch']
  %s0 = inlined_call_operand.vmem [shape: f32[128,32], index: 0, kind: input, shape index: {}]
  %s1 = inlined_call_operand.vmem [shape: f32[32,128], index: 1, kind: input, shape index: {}]
  %s2 = inlined_call_operand.vmem [shape: f32[1,128], index: 2, kind: input, shape index: {}]
  %s3 = inlined_call_operand.vmem [shape: f32[128,128], index: 3, kind: input, shape index: {}]
  %s4 = inlined_call_operand.vmem [shape: f32[128,128], index: 4, kind: output, shape index: {}]
  %s5 = sld [smem:[#allocation0]]
  $region26: #{_lambda_.26} parent=0
    _
  %s7 = ssub.s32 1, %s5
  %s8 = scalar_select 0, %s7, %s5
  // Predicated region
  $region2: #{_lambda_.26} parent=0 // pred_check
    _
  $region3: #{_lambda_.26} parent=0 // pred_check_branch
    %10 = sbr.rel (0) target = $region5
  $region4: #{_lambda_.26} parent=0 // pred_region
    _
  $region5: #{_lambda_.26} parent=0 // pred_fallthru
    _
  // Predicated region
  $region6: #{_lambda_.26} parent=0 // pred_check
    _
  $region7: #{_lambda_.26} parent=0 // pred_check_branch
    %12 = sbr.rel (0) target = $region9
  $region8: #{_lambda_.26} parent=0 // pred_region
    _
  $region9: #{_lambda_.26} parent=0 // pred_fallthru
    _
  // Predicated region
  $region10: #{_lambda_.26} parent=0 // pred_check
    _
  $region11: #{_lambda_.26} parent=0 // pred_check_branch
    %14 = sbr.rel (0) target = $region13
  $region12: #{_lambda_.26} parent=0 // pred_region
    _
  $region13: #{_lambda_.26} parent=0 // pred_fallthru
    _
  // Predicated region
  $region14: #{_lambda_.26} parent=0 // pred_check
    _
  $region15: #{_lambda_.26} parent=0 // pred_check_branch
    %16 = sbr.rel (0) target = $region17
  $region16: #{_lambda_.26} parent=0 // pred_region
    _
  $region17: #{_lambda_.26} parent=0 // pred_fallthru
    _
  %v17 = vld [vmem:[%s0] sm:$0xff]
  %v18 = vld [vmem:[%s0 + $0x8] sm:$0xff]
  %v19 = vld [vmem:[%s0 + $0x10] sm:$0xff]
  %v20 = vld [vmem:[%s0 + $0x18] sm:$0xff]
  %v21 = vld [vmem:[%s0 + $0x20] sm:$0xff]
  %v22 = vld [vmem:[%s0 + $0x28] sm:$0xff]
  %v23 = vld [vmem:[%s0 + $0x30] sm:$0xff]
  %v24 = vld [vmem:[%s0 + $0x38] sm:$0xff]
  %v25 = vld [vmem:[%s0 + $0x40] sm:$0xff]
  %v26 = vld [vmem:[%s0 + $0x48] sm:$0xff]
  %v27 = vld [vmem:[%s0 + $0x50] sm:$0xff]
  %v28 = vld [vmem:[%s0 + $0x58] sm:$0xff]
  %v29 = vld [vmem:[%s0 + $0x60] sm:$0xff]
  %v30 = vld [vmem:[%s0 + $0x68] sm:$0xff]
  %v31 = vld [vmem:[%s0 + $0x70] sm:$0xff]
  %v32 = vld [vmem:[%s0 + $0x78] sm:$0xff]
  %v33 = vld [vmem:[%s1] sm:$0xff]
  %v34 = vld [vmem:[%s1 + $0x8] sm:$0xff]
  %v35 = vld [vmem:[%s1 + $0x10] sm:$0xff]
  %v36 = vld [vmem:[%s1 + $0x18] sm:$0xff]
  %v37 = vld [vmem:[%s2] sm:$0x1]
  %v39 = vlaneseq
  %v40 = vshrl.u32 %v39, 7
  %v41 = vsub.s32 0, %v40
  %v42 = vrot.slane %v37, %v41
  %vm44 = vcmask 261120
  %v46 = vsel %vm44, %v17, 0
  %v49 = vsel %vm44, %v18, 0
  %v52 = vsel %vm44, %v19, 0
  %v55 = vsel %vm44, %v20, 0
  %v58 = vsel %vm44, %v21, 0
  %v61 = vsel %vm44, %v22, 0
  %v64 = vsel %vm44, %v23, 0
  %v67 = vsel %vm44, %v24, 0
  %v70 = vsel %vm44, %v25, 0
  %v73 = vsel %vm44, %v26, 0
  %v76 = vsel %vm44, %v27, 0
  %v79 = vsel %vm44, %v28, 0
  %v82 = vsel %vm44, %v29, 0
  %v85 = vsel %vm44, %v30, 0
  %v88 = vsel %vm44, %v31, 0
  %v91 = vsel %vm44, %v32, 0
  %93 = vmatprep.subr.mxu0 0.0
  %94 = vmatpush1.msra.mxu0 %v33
  %95 = vmatprep.subr.mxu0 0.0
  %96 = vmatpush1.msra.mxu0 %v34
  %97 = vmatprep.subr.mxu0 0.0
  %98 = vmatpush1.msra.mxu0 %v35
  %99 = vmatprep.subr.mxu0 0.0
  %100 = vmatpush1.msra.mxu0 %v36
  %101 = vmatprep.subr.mxu0 0.0
  %102 = vmatpush1.msra.mxu0 0.0
  %103 = vmatprep.subr.mxu0 0.0
  %104 = vmatpush1.msra.mxu0 0.0
  %105 = vmatprep.subr.mxu0 0.0
  %106 = vmatpush1.msra.mxu0 0.0
  %107 = vmatprep.subr.mxu0 0.0
  %108 = vmatpush1.msra.mxu0 0.0
  %109 = vmatprep.subr.mxu0 0.0
  %110 = vmatpush1.msra.mxu0 0.0
  %111 = vmatprep.subr.mxu0 0.0
  %112 = vmatpush1.msra.mxu0 0.0
  %113 = vmatprep.subr.mxu0 0.0
  %114 = vmatpush1.msra.mxu0 0.0
  %115 = vmatprep.subr.mxu0 0.0
  %116 = vmatpush1.msra.mxu0 0.0
  %117 = vmatprep.subr.mxu0 0.0
  %118 = vmatpush1.msra.mxu0 0.0
  %119 = vmatprep.subr.mxu0 0.0
  %120 = vmatpush1.msra.mxu0 0.0
  %121 = vmatprep.subr.mxu0 0.0
  %122 = vmatpush1.msra.mxu0 0.0
  %123 = vmatprep.subr.mxu0 0.0
  %124 = vmatpush1.msra.mxu0 0.0
  %125 = vmatprep.subr.mxu0 0.0
  %126 = vmatpush1.msra.mxu0 0.0
  %127 = vmatprep.subr.mxu0 0.0
  %128 = vmatpush1.msra.mxu0 0.0
  %129 = vmatprep.subr.mxu0 0.0
  %130 = vmatpush1.msra.mxu0 0.0
  %131 = vmatprep.subr.mxu0 0.0
  %132 = vmatpush1.msra.mxu0 0.0
  %133 = vmatprep.subr.mxu0 0.0
  %134 = vmatpush1.msra.mxu0 0.0
  %135 = vmatprep.subr.mxu0 0.0
  %136 = vmatpush1.msra.mxu0 0.0
  %137 = vmatprep.subr.mxu0 0.0
  %138 = vmatpush1.msra.mxu0 0.0
  %139 = vmatprep.subr.mxu0 0.0
  %140 = vmatpush1.msra.mxu0 0.0
  %141 = vmatprep.subr.mxu0 0.0
  %142 = vmatpush1.msra.mxu0 0.0
  %143 = vmatprep.subr.mxu0 0.0
  %144 = vmatpush1.msra.mxu0 0.0
  %145 = vmatprep.subr.mxu0 0.0
  %146 = vmatpush1.msra.mxu0 0.0
  %147 = vmatprep.subr.mxu0 0.0
  %148 = vmatpush1.msra.mxu0 0.0
  %149 = vmatprep.subr.mxu0 0.0
  %150 = vmatpush1.msra.mxu0 0.0
  %151 = vmatprep.subr.mxu0 0.0
  %152 = vmatpush1.msra.mxu0 0.0
  %153 = vmatprep.subr.mxu0 0.0
  %154 = vmatpush1.msra.mxu0 0.0
  %155 = vmatprep.subr.mxu0 0.0
  %156 = vmatpush1.msra.mxu0 0.0
  %157 = vmatprep.mubr.f32.mxu0 0.0
  %158 = vmatmul.mubr.f32.gmra.mrb[0].mxu0 %v46
  %v159 = vpop.f32.mrb[0].mxu0
  %v160 = vadd.f32 %v42, %v159
  %v161 = vpop.f32.mrb[0].mxu0
  %162 = vmatprep.mubr.f32.mxu0 0.0
  %163 = vmatmul.mubr.f32.gmra.mrb[0].mxu0 %v49
  %v164 = vpop.f32.mrb[0].mxu0
  %v165 = vadd.f32 %v42, %v164
  %v166 = vpop.f32.mrb[0].mxu0
  %167 = vmatprep.mubr.f32.mxu0 0.0
  %168 = vmatmul.mubr.f32.gmra.mrb[0].mxu0 %v52
  %v169 = vpop.f32.mrb[0].mxu0
  %v170 = vadd.f32 %v42, %v169
  %v171 = vpop.f32.mrb[0].mxu0
  %172 = vmatprep.mubr.f32.mxu0 0.0
  %173 = vmatmul.mubr.f32.gmra.mrb[0].mxu0 %v55
  %v174 = vpop.f32.mrb[0].mxu0
  %v175 = vadd.f32 %v42, %v174
  %v176 = vpop.f32.mrb[0].mxu0
  %177 = vmatprep.mubr.f32.mxu0 0.0
  %178 = vmatmul.mubr.f32.gmra.mrb[0].mxu0 %v58
  %v179 = vpop.f32.mrb[0].mxu0
  %v180 = vadd.f32 %v42, %v179
  %v181 = vpop.f32.mrb[0].mxu0
  %182 = vmatprep.mubr.f32.mxu0 0.0
  %183 = vmatmul.mubr.f32.gmra.mrb[0].mxu0 %v61
  %v184 = vpop.f32.mrb[0].mxu0
  %v185 = vadd.f32 %v42, %v184
  %v186 = vpop.f32.mrb[0].mxu0
  %187 = vmatprep.mubr.f32.mxu0 0.0
  %188 = vmatmul.mubr.f32.gmra.mrb[0].mxu0 %v64
  %v189 = vpop.f32.mrb[0].mxu0
  %v190 = vadd.f32 %v42, %v189
  %v191 = vpop.f32.mrb[0].mxu0
  %192 = vmatprep.mubr.f32.mxu0 0.0
  %193 = vmatmul.mubr.f32.gmra.mrb[0].mxu0 %v67
  %v194 = vpop.f32.mrb[0].mxu0
  %v195 = vadd.f32 %v42, %v194
  %v196 = vpop.f32.mrb[0].mxu0
  %197 = vmatprep.mubr.f32.mxu0 0.0
  %198 = vmatmul.mubr.f32.gmra.mrb[0].mxu0 %v70
  %v199 = vpop.f32.mrb[0].mxu0
  %v200 = vadd.f32 %v42, %v199
  %v201 = vpop.f32.mrb[0].mxu0
  %202 = vmatprep.mubr.f32.mxu0 0.0
  %203 = vmatmul.mubr.f32.gmra.mrb[0].mxu0 %v73
  %v204 = vpop.f32.mrb[0].mxu0
  %v205 = vadd.f32 %v42, %v204
  %v206 = vpop.f32.mrb[0].mxu0
  %207 = vmatprep.mubr.f32.mxu0 0.0
  %208 = vmatmul.mubr.f32.gmra.mrb[0].mxu0 %v76
  %v209 = vpop.f32.mrb[0].mxu0
  %v210 = vadd.f32 %v42, %v209
  %v211 = vpop.f32.mrb[0].mxu0
  %212 = vmatprep.mubr.f32.mxu0 0.0
  %213 = vmatmul.mubr.f32.gmra.mrb[0].mxu0 %v79
  %v214 = vpop.f32.mrb[0].mxu0
  %v215 = vadd.f32 %v42, %v214
  %v216 = vpop.f32.mrb[0].mxu0
  %217 = vmatprep.mubr.f32.mxu0 0.0
  %218 = vmatmul.mubr.f32.gmra.mrb[0].mxu0 %v82
  %v219 = vpop.f32.mrb[0].mxu0
  %v220 = vadd.f32 %v42, %v219
  %v221 = vpop.f32.mrb[0].mxu0
  %222 = vmatprep.mubr.f32.mxu0 0.0
  %223 = vmatmul.mubr.f32.gmra.mrb[0].mxu0 %v85
  %v224 = vpop.f32.mrb[0].mxu0
  %v225 = vadd.f32 %v42, %v224
  %v226 = vpop.f32.mrb[0].mxu0
  %227 = vmatprep.mubr.f32.mxu0 0.0
  %228 = vmatmul.mubr.f32.gmra.mrb[0].mxu0 %v88
  %v229 = vpop.f32.mrb[0].mxu0
  %v230 = vadd.f32 %v42, %v229
  %v231 = vpop.f32.mrb[0].mxu0
  %232 = vmatprep.mubr.f32.mxu0 0.0
  %233 = vmatmul.mubr.f32.gmra.mrb[0].mxu0 %v91
  %v234 = vpop.f32.mrb[0].mxu0
  %v235 = vadd.f32 %v42, %v234
  %v236 = vpop.f32.mrb[0].mxu0
  %237 = vdwg.mxu0
  %v238 = vld [vmem:[%s3] sm:$0xff]
  %v239 = vld [vmem:[%s3 + $0x8] sm:$0xff]
  %v240 = vld [vmem:[%s3 + $0x10] sm:$0xff]
  %v241 = vld [vmem:[%s3 + $0x18] sm:$0xff]
  %v242 = vld [vmem:[%s3 + $0x20] sm:$0xff]
  %v243 = vld [vmem:[%s3 + $0x28] sm:$0xff]
  %v244 = vld [vmem:[%s3 + $0x30] sm:$0xff]
  %v245 = vld [vmem:[%s3 + $0x38] sm:$0xff]
  %v246 = vld [vmem:[%s3 + $0x40] sm:$0xff]
  %v247 = vld [vmem:[%s3 + $0x48] sm:$0xff]
  %v248 = vld [vmem:[%s3 + $0x50] sm:$0xff]
  %v249 = vld [vmem:[%s3 + $0x58] sm:$0xff]
  %v250 = vld [vmem:[%s3 + $0x60] sm:$0xff]
  %v251 = vld [vmem:[%s3 + $0x68] sm:$0xff]
  %v252 = vld [vmem:[%s3 + $0x70] sm:$0xff]
  %v253 = vld [vmem:[%s3 + $0x78] sm:$0xff]
  %v254 = vadd.f32 %v160, %v238
  %v255 = vadd.f32 %v165, %v239
  %v256 = vadd.f32 %v170, %v240
  %v257 = vadd.f32 %v175, %v241
  %v258 = vadd.f32 %v180, %v242
  %v259 = vadd.f32 %v185, %v243
  %v260 = vadd.f32 %v190, %v244
  %v261 = vadd.f32 %v195, %v245
  %v262 = vadd.f32 %v200, %v246
  %v263 = vadd.f32 %v205, %v247
  %v264 = vadd.f32 %v210, %v248
  %v265 = vadd.f32 %v215, %v249
  %v266 = vadd.f32 %v220, %v250
  %v267 = vadd.f32 %v225, %v251
  %v268 = vadd.f32 %v230, %v252
  %v269 = vadd.f32 %v235, %v253
  %v270 = vmax.f32 %v254, 0.0
  %v271 = vmax.f32 %v255, 0.0
  %v272 = vmax.f32 %v256, 0.0
  %v273 = vmax.f32 %v257, 0.0
  %v274 = vmax.f32 %v258, 0.0
  %v275 = vmax.f32 %v259, 0.0
  %v276 = vmax.f32 %v260, 0.0
  %v277 = vmax.f32 %v261, 0.0
  %v278 = vmax.f32 %v262, 0.0
  %v279 = vmax.f32 %v263, 0.0
  %v280 = vmax.f32 %v264, 0.0
  %v281 = vmax.f32 %v265, 0.0
  %v282 = vmax.f32 %v266, 0.0
  %v283 = vmax.f32 %v267, 0.0
  %v284 = vmax.f32 %v268, 0.0
  %v285 = vmax.f32 %v269, 0.0
  %286 = vst [vmem:[%s4] sm:$0xff] %v270
  %287 = vst [vmem:[%s4 + $0x8] sm:$0xff] %v271
  %288 = vst [vmem:[%s4 + $0x10] sm:$0xff] %v272
  %289 = vst [vmem:[%s4 + $0x18] sm:$0xff] %v273
  %290 = vst [vmem:[%s4 + $0x20] sm:$0xff] %v274
  %291 = vst [vmem:[%s4 + $0x28] sm:$0xff] %v275
  %292 = vst [vmem:[%s4 + $0x30] sm:$0xff] %v276
  %293 = vst [vmem:[%s4 + $0x38] sm:$0xff] %v277
  %294 = vst [vmem:[%s4 + $0x40] sm:$0xff] %v278
  %295 = vst [vmem:[%s4 + $0x48] sm:$0xff] %v279
  %296 = vst [vmem:[%s4 + $0x50] sm:$0xff] %v280
  %297 = vst [vmem:[%s4 + $0x58] sm:$0xff] %v281
  %298 = vst [vmem:[%s4 + $0x60] sm:$0xff] %v282
  %299 = vst [vmem:[%s4 + $0x68] sm:$0xff] %v283
  %300 = vst [vmem:[%s4 + $0x70] sm:$0xff] %v284
  %301 = vst [vmem:[%s4 + $0x78] sm:$0xff] %v285
  // Predicated region
  $region18: #{_lambda_.26} parent=0 // pred_check
    _
  $region19: #{_lambda_.26} parent=0 // pred_check_branch
    %303 = sbr.rel (0) target = $region21
  $region20: #{_lambda_.26} parent=0 // pred_region
    _
  $region21: #{_lambda_.26} parent=0 // pred_fallthru
    _
  // Predicated region
  $region22: #{_lambda_.26} parent=0 // pred_check
    _
  $region23: #{_lambda_.26} parent=0 // pred_check_branch
    %305 = sbr.rel (0) target = $region25
  $region24: #{_lambda_.26} parent=0 // pred_region
    _
  $region25: #{_lambda_.26} parent=0 // pred_fallthru
    _

// kernel: _lambda_.27
$region0: #{_lambda_.27}
  #allocation0 [shape = 'u32[]', space=smem, size = 0x4, offset = 0x4, fixed_abs, tag = 'smem constant byte address 0x4 - core index']
  #allocation1 [shape = 'u32[144,128]{1,0:T(1,128)}', space=vmem, size = 0x12000, scoped, tag = 'internal scratch']
  %s0 = inlined_call_operand.vmem [shape: f32[128,128], index: 0, kind: input, shape index: {}]
  %s1 = inlined_call_operand.vmem [shape: f32[128,12], index: 1, kind: input, shape index: {}]
  %s2 = inlined_call_operand.vmem [shape: f32[1,12], index: 2, kind: input, shape index: {}]
  %s3 = inlined_call_operand.hbm [shape: f32[128,12], index: 3, kind: output, shape index: {}]
  %s4 = sld [smem:[#allocation0]]
  $region22: #{_lambda_.27} parent=0
    _
  %s6 = ssub.s32 1, %s4
  %s7 = scalar_select 0, %s6, %s4
  $region1: #{_lambda_.27} parent=0
    #allocation2 [shape = 'u8[65536]{0}', space=vmem, size = 0x10000, scoped, tag = 'output window, operand 0, single buffered']
    #allocation3 [shape = 's32[1]{0}', space=sflag, size = 0x4, scoped, tag = 'scoped memory for _lambda_.27']
    %8 = vsyncpa [#allocation3], 0
    // Predicated region
    $region2: #{_lambda_.27} parent=1 // pred_check
      _
    $region3: #{_lambda_.27} parent=1 // pred_check_branch
      %10 = sbr.rel (0) target = $region5
    $region4: #{_lambda_.27} parent=1 // pred_region
      _
    $region5: #{_lambda_.27} parent=1 // pred_fallthru
      _
    // Predicated region
    $region6: #{_lambda_.27} parent=1 // pred_check
      _
    $region7: #{_lambda_.27} parent=1 // pred_check_branch
      %12 = sbr.rel (0) target = $region9
    $region8: #{_lambda_.27} parent=1 // pred_region
      _
    $region9: #{_lambda_.27} parent=1 // pred_fallthru
      _
    // Predicated region
    $region10: #{_lambda_.27} parent=1 // pred_check
      _
    $region11: #{_lambda_.27} parent=1 // pred_check_branch
      %14 = sbr.rel (0) target = $region13
    $region12: #{_lambda_.27} parent=1 // pred_region
      _
    $region13: #{_lambda_.27} parent=1 // pred_fallthru
      _
    %v15 = vld [vmem:[%s0] sm:$0xff]
    %v16 = vld [vmem:[%s0 + $0x8] sm:$0xff]
    %v17 = vld [vmem:[%s0 + $0x10] sm:$0xff]
    %v18 = vld [vmem:[%s0 + $0x18] sm:$0xff]
    %v19 = vld [vmem:[%s0 + $0x20] sm:$0xff]
    %v20 = vld [vmem:[%s0 + $0x28] sm:$0xff]
    %v21 = vld [vmem:[%s0 + $0x30] sm:$0xff]
    %v22 = vld [vmem:[%s0 + $0x38] sm:$0xff]
    %v23 = vld [vmem:[%s0 + $0x40] sm:$0xff]
    %v24 = vld [vmem:[%s0 + $0x48] sm:$0xff]
    %v25 = vld [vmem:[%s0 + $0x50] sm:$0xff]
    %v26 = vld [vmem:[%s0 + $0x58] sm:$0xff]
    %v27 = vld [vmem:[%s0 + $0x60] sm:$0xff]
    %v28 = vld [vmem:[%s0 + $0x68] sm:$0xff]
    %v29 = vld [vmem:[%s0 + $0x70] sm:$0xff]
    %v30 = vld [vmem:[%s0 + $0x78] sm:$0xff]
    %v31 = vld [vmem:[%s1] sm:$0xff]
    %v32 = vld [vmem:[%s1 + $0x8] sm:$0xff]
    %v33 = vld [vmem:[%s1 + $0x10] sm:$0xff]
    %v34 = vld [vmem:[%s1 + $0x18] sm:$0xff]
    %v35 = vld [vmem:[%s1 + $0x20] sm:$0xff]
    %v36 = vld [vmem:[%s1 + $0x28] sm:$0xff]
    %v37 = vld [vmem:[%s1 + $0x30] sm:$0xff]
    %v38 = vld [vmem:[%s1 + $0x38] sm:$0xff]
    %v39 = vld [vmem:[%s1 + $0x40] sm:$0xff]
    %v40 = vld [vmem:[%s1 + $0x48] sm:$0xff]
    %v41 = vld [vmem:[%s1 + $0x50] sm:$0xff]
    %v42 = vld [vmem:[%s1 + $0x58] sm:$0xff]
    %v43 = vld [vmem:[%s1 + $0x60] sm:$0xff]
    %v44 = vld [vmem:[%s1 + $0x68] sm:$0xff]
    %v45 = vld [vmem:[%s1 + $0x70] sm:$0xff]
    %v46 = vld [vmem:[%s1 + $0x78] sm:$0xff]
    %v47 = vld [vmem:[%s2] sm:$0x1]
    %v49 = vlaneseq
    %v50 = vshrl.u32 %v49, 7
    %v51 = vsub.s32 0, %v50
    %v52 = vrot.slane %v47, %v51
    %54 = vmatprep.subr.mxu0 0.0
    %55 = vmatpush1.msra.mxu0 %v31
    %56 = vmatprep.subr.mxu0 0.0
    %57 = vmatpush1.msra.mxu0 %v32
    %58 = vmatprep.subr.mxu0 0.0
    %59 = vmatpush1.msra.mxu0 %v33
    %60 = vmatprep.subr.mxu0 0.0
    %61 = vmatpush1.msra.mxu0 %v34
    %62 = vmatprep.subr.mxu0 0.0
    %63 = vmatpush1.msra.mxu0 %v35
    %64 = vmatprep.subr.mxu0 0.0
    %65 = vmatpush1.msra.mxu0 %v36
    %66 = vmatprep.subr.mxu0 0.0
    %67 = vmatpush1.msra.mxu0 %v37
    %68 = vmatprep.subr.mxu0 0.0
    %69 = vmatpush1.msra.mxu0 %v38
    %70 = vmatprep.subr.mxu0 0.0
    %71 = vmatpush1.msra.mxu0 %v39
    %72 = vmatprep.subr.mxu0 0.0
    %73 = vmatpush1.msra.mxu0 %v40
    %74 = vmatprep.subr.mxu0 0.0
    %75 = vmatpush1.msra.mxu0 %v41
    %76 = vmatprep.subr.mxu0 0.0
    %77 = vmatpush1.msra.mxu0 %v42
    %78 = vmatprep.subr.mxu0 0.0
    %79 = vmatpush1.msra.mxu0 %v43
    %80 = vmatprep.subr.mxu0 0.0
    %81 = vmatpush1.msra.mxu0 %v44
    %82 = vmatprep.subr.mxu0 0.0
    %83 = vmatpush1.msra.mxu0 %v45
    %84 = vmatprep.subr.mxu0 0.0
    %85 = vmatpush1.msra.mxu0 %v46
    %86 = vmatprep.subr.mxu0 0.0
    %87 = vmatpush1.msra.mxu0 0.0
    %88 = vmatprep.subr.mxu0 0.0
    %89 = vmatpush1.msra.mxu0 0.0
    %90 = vmatprep.subr.mxu0 0.0
    %91 = vmatpush1.msra.mxu0 0.0
    %92 = vmatprep.subr.mxu0 0.0
    %93 = vmatpush1.msra.mxu0 0.0
    %94 = vmatprep.subr.mxu0 0.0
    %95 = vmatpush1.msra.mxu0 0.0
    %96 = vmatprep.subr.mxu0 0.0
    %97 = vmatpush1.msra.mxu0 0.0
    %98 = vmatprep.subr.mxu0 0.0
    %99 = vmatpush1.msra.mxu0 0.0
    %100 = vmatprep.subr.mxu0 0.0
    %101 = vmatpush1.msra.mxu0 0.0
    %102 = vmatprep.subr.mxu0 0.0
    %103 = vmatpush1.msra.mxu0 0.0
    %104 = vmatprep.subr.mxu0 0.0
    %105 = vmatpush1.msra.mxu0 0.0
    %106 = vmatprep.subr.mxu0 0.0
    %107 = vmatpush1.msra.mxu0 0.0
    %108 = vmatprep.subr.mxu0 0.0
    %109 = vmatpush1.msra.mxu0 0.0
    %110 = vmatprep.subr.mxu0 0.0
    %111 = vmatpush1.msra.mxu0 0.0
    %112 = vmatprep.subr.mxu0 0.0
    %113 = vmatpush1.msra.mxu0 0.0
    %114 = vmatprep.subr.mxu0 0.0
    %115 = vmatpush1.msra.mxu0 0.0
    %116 = vmatprep.subr.mxu0 0.0
    %117 = vmatpush1.msra.mxu0 0.0
    %118 = vmatprep.mubr.f32.mxu0 0.0
    %119 = vmatmul.mubr.f32.gmra.mrb[0].mxu0 %v15
    %v120 = vpop.f32.mrb[0].mxu0
    %v121 = vadd.f32 %v52, %v120
    %v122 = vpop.f32.mrb[0].mxu0
    %123 = vmatprep.mubr.f32.mxu0 0.0
    %124 = vmatmul.mubr.f32.gmra.mrb[0].mxu0 %v16
    %v125 = vpop.f32.mrb[0].mxu0
    %v126 = vadd.f32 %v52, %v125
    %v127 = vpop.f32.mrb[0].mxu0
    %128 = vmatprep.mubr.f32.mxu0 0.0
    %129 = vmatmul.mubr.f32.gmra.mrb[0].mxu0 %v17
    %v130 = vpop.f32.mrb[0].mxu0
    %v131 = vadd.f32 %v52, %v130
    %v132 = vpop.f32.mrb[0].mxu0
    %133 = vmatprep.mubr.f32.mxu0 0.0
    %134 = vmatmul.mubr.f32.gmra.mrb[0].mxu0 %v18
    %v135 = vpop.f32.mrb[0].mxu0
    %v136 = vadd.f32 %v52, %v135
    %v137 = vpop.f32.mrb[0].mxu0
    %138 = vmatprep.mubr.f32.mxu0 0.0
    %139 = vmatmul.mubr.f32.gmra.mrb[0].mxu0 %v19
    %v140 = vpop.f32.mrb[0].mxu0
    %v141 = vadd.f32 %v52, %v140
    %v142 = vpop.f32.mrb[0].mxu0
    %143 = vmatprep.mubr.f32.mxu0 0.0
    %144 = vmatmul.mubr.f32.gmra.mrb[0].mxu0 %v20
    %v145 = vpop.f32.mrb[0].mxu0
    %v146 = vadd.f32 %v52, %v145
    %v147 = vpop.f32.mrb[0].mxu0
    %148 = vmatprep.mubr.f32.mxu0 0.0
    %149 = vmatmul.mubr.f32.gmra.mrb[0].mxu0 %v21
    %v150 = vpop.f32.mrb[0].mxu0
    %v151 = vadd.f32 %v52, %v150
    %v152 = vpop.f32.mrb[0].mxu0
    %153 = vmatprep.mubr.f32.mxu0 0.0
    %154 = vmatmul.mubr.f32.gmra.mrb[0].mxu0 %v22
    %v155 = vpop.f32.mrb[0].mxu0
    %v156 = vadd.f32 %v52, %v155
    %v157 = vpop.f32.mrb[0].mxu0
    %158 = vmatprep.mubr.f32.mxu0 0.0
    %159 = vmatmul.mubr.f32.gmra.mrb[0].mxu0 %v23
    %v160 = vpop.f32.mrb[0].mxu0
    %v161 = vadd.f32 %v52, %v160
    %v162 = vpop.f32.mrb[0].mxu0
    %163 = vmatprep.mubr.f32.mxu0 0.0
    %164 = vmatmul.mubr.f32.gmra.mrb[0].mxu0 %v24
    %v165 = vpop.f32.mrb[0].mxu0
    %v166 = vadd.f32 %v52, %v165
    %v167 = vpop.f32.mrb[0].mxu0
    %168 = vmatprep.mubr.f32.mxu0 0.0
    %169 = vmatmul.mubr.f32.gmra.mrb[0].mxu0 %v25
    %v170 = vpop.f32.mrb[0].mxu0
    %v171 = vadd.f32 %v52, %v170
    %v172 = vpop.f32.mrb[0].mxu0
    %173 = vmatprep.mubr.f32.mxu0 0.0
    %174 = vmatmul.mubr.f32.gmra.mrb[0].mxu0 %v26
    %v175 = vpop.f32.mrb[0].mxu0
    %v176 = vadd.f32 %v52, %v175
    %v177 = vpop.f32.mrb[0].mxu0
    %178 = vmatprep.mubr.f32.mxu0 0.0
    %179 = vmatmul.mubr.f32.gmra.mrb[0].mxu0 %v27
    %v180 = vpop.f32.mrb[0].mxu0
    %v181 = vadd.f32 %v52, %v180
    %v182 = vpop.f32.mrb[0].mxu0
    %183 = vmatprep.mubr.f32.mxu0 0.0
    %184 = vmatmul.mubr.f32.gmra.mrb[0].mxu0 %v28
    %v185 = vpop.f32.mrb[0].mxu0
    %v186 = vadd.f32 %v52, %v185
    %v187 = vpop.f32.mrb[0].mxu0
    %188 = vmatprep.mubr.f32.mxu0 0.0
    %189 = vmatmul.mubr.f32.gmra.mrb[0].mxu0 %v29
    %v190 = vpop.f32.mrb[0].mxu0
    %v191 = vadd.f32 %v52, %v190
    %v192 = vpop.f32.mrb[0].mxu0
    %193 = vmatprep.mubr.f32.mxu0 0.0
    %194 = vmatmul.mubr.f32.gmra.mrb[0].mxu0 %v30
    %v195 = vpop.f32.mrb[0].mxu0
    %v196 = vadd.f32 %v52, %v195
    %v197 = vpop.f32.mrb[0].mxu0
    %198 = vdwg.mxu0
    %vm199 = vcmask 97280
    %200 = vst.msk [vmem:[#allocation2] sm:$0xff] %vm199, %v121
    %201 = vst.msk [vmem:[#allocation2 + $0x8] sm:$0xff] %vm199, %v126
    %202 = vst.msk [vmem:[#allocation2 + $0x10] sm:$0xff] %vm199, %v131
    %203 = vst.msk [vmem:[#allocation2 + $0x18] sm:$0xff] %vm199, %v136
    %204 = vst.msk [vmem:[#allocation2 + $0x20] sm:$0xff] %vm199, %v141
    %205 = vst.msk [vmem:[#allocation2 + $0x28] sm:$0xff] %vm199, %v146
    %206 = vst.msk [vmem:[#allocation2 + $0x30] sm:$0xff] %vm199, %v151
    %207 = vst.msk [vmem:[#allocation2 + $0x38] sm:$0xff] %vm199, %v156
    %208 = vst.msk [vmem:[#allocation2 + $0x40] sm:$0xff] %vm199, %v161
    %209 = vst.msk [vmem:[#allocation2 + $0x48] sm:$0xff] %vm199, %v166
    %210 = vst.msk [vmem:[#allocation2 + $0x50] sm:$0xff] %vm199, %v171
    %211 = vst.msk [vmem:[#allocation2 + $0x58] sm:$0xff] %vm199, %v176
    %212 = vst.msk [vmem:[#allocation2 + $0x60] sm:$0xff] %vm199, %v181
    %213 = vst.msk [vmem:[#allocation2 + $0x68] sm:$0xff] %vm199, %v186
    %214 = vst.msk [vmem:[#allocation2 + $0x70] sm:$0xff] %vm199, %v191
    %215 = vst.msk [vmem:[#allocation2 + $0x78] sm:$0xff] %vm199, %v196
    // Predicated region
    $region14: #{_lambda_.27} parent=1 // pred_check
      _
    $region15: #{_lambda_.27} parent=1 // pred_check_branch
      %217 = sbr.rel (0) target = $region17
    $region16: #{_lambda_.27} parent=1 // pred_region
      %s219 = ssub.s32 2048, 2048
      %220 = vsyncadd [#allocation3], %s219
      %s221 = sshll.u32 [#allocation2], 4
      %s222 = int_to_ptr.vmem [resolvable:$true] %s221
      %227 = dma.vmem_to_hbm [thread:$0]  %s222, 2048, %s3, [#allocation3], 128, 128, 8
    $region17: #{_lambda_.27} parent=1 // pred_fallthru
      _
    // Predicated region
    $region18: #{_lambda_.27} parent=1 // pred_check
      _
    $region19: #{_lambda_.27} parent=1 // pred_check_branch
      %229 = sbr.rel (0) target = $region21
    $region20: #{_lambda_.27} parent=1 // pred_region
      %230 = dma.done [#allocation3], 2048
    $region21: #{_lambda_.27} parent=1 // pred_fallthru
      _
    %231 = vsyncpa [#allocation3], 1

</llo_original>
